<compile_context>
chip_gen: v6e
topology: v6e:2x2x1
jax: 0.10.0
libtpu: 0.0.40
codegen_flags: <defaults>
</compile_context>

<pallas_src>
import jax
import jax.numpy as jnp
from jax.experimental import pallas as pl
from jax.experimental.pallas import tpu as pltpu


N_OUT_PAD = 896  # 784 -> 7*128 for lane-dense stores


def _round_up(a, m):
    return (a + m - 1) // m * m


def _choose_tiling(B):
    """Pick (TB, B_pad).  TB is a multiple of 16; prefer >=2 grid steps
    (megacore on v7x) and batch-padding waste <= ~12.5%."""
    B = max(int(B), 1)
    candidates = (256, 128, 64, 32, 16)
    # Prefer >= 2 grid steps with acceptable padding waste.
    for tb in candidates:
        b_pad = _round_up(B, tb)
        if b_pad // tb >= 2 and (b_pad - B) * 8 <= b_pad:
            return tb, b_pad
    # Otherwise the largest tile whose padding waste is acceptable.
    for tb in candidates:
        b_pad = _round_up(B, tb)
        if (b_pad - B) * 8 <= b_pad:
            return tb, b_pad
    # Tiny batches: one 16-row-granular tile.
    b_pad = _round_up(B, 16)
    return min(b_pad, 256), b_pad


def generator_kernel(x_ref,
                     w0_ref, b0_ref,
                     w1_ref, b1_ref,
                     w2_ref, b2_ref,
                     w3_ref, b3_ref,
                     o_ref):
    def lrelu(h):  # LeakyReLU(0.2), stays in h's dtype (bf16 for hidden layers)
        return jnp.where(h > 0, h, 0.2 * h)

    # In-kernel cast of the fp32 x tile; MXU pads K=100 internally.
    xb = x_ref[...].astype(jnp.bfloat16)

    # hidden0: Linear(100, 256) + LeakyReLU   (fp32 MXU acc, bf16 epilogue)
    h = jnp.dot(xb, w0_ref[...], preferred_element_type=jnp.float32)
    h = lrelu(h.astype(jnp.bfloat16) + b0_ref[...])

    # hidden1: Linear(256, 512) + LeakyReLU
    h = jnp.dot(h, w1_ref[...], preferred_element_type=jnp.float32)
    h = lrelu(h.astype(jnp.bfloat16) + b1_ref[...])

    # hidden2: Linear(512, 1024) + LeakyReLU
    h = jnp.dot(h, w2_ref[...], preferred_element_type=jnp.float32)
    h = lrelu(h.astype(jnp.bfloat16) + b2_ref[...])

    # out: Linear(1024, 784 padded to 896) + Tanh (fp32 bias add + tanh)
    h = jnp.dot(h, w3_ref[...], preferred_element_type=jnp.float32)
    o_ref[...] = jnp.tanh(h + b3_ref[...]).astype(o_ref.dtype)


def prepare_params(params):
    """One-time weight prep (hoisted out of the forward): bf16 casts and
    output-layer padding 784 -> 896.  Call once, reuse for every forward."""
    (w0, b0), (w1, b1), (w2, b2), (w3, b3) = params
    n_out = w3.shape[1]
    w3p = jnp.zeros((w3.shape[0], N_OUT_PAD), jnp.bfloat16).at[:, :n_out].set(
        w3.astype(jnp.bfloat16))
    b3p = jnp.zeros((1, N_OUT_PAD), jnp.float32).at[:, :n_out].set(b3)
    return (w0.astype(jnp.bfloat16), b0.astype(jnp.bfloat16),
            w1.astype(jnp.bfloat16), b1.astype(jnp.bfloat16),
            w2.astype(jnp.bfloat16), b2.astype(jnp.bfloat16),
            w3p, b3p, n_out)


def _build_call(TB, B_pad, K, out_dtype, shapes, single_buffer_weights):
    """Construct the pallas_call for the given tiling."""
    def resident(shape):
        # Block index never changes -> single-buffer to halve resident VMEM.
        if single_buffer_weights:
            return pl.BlockSpec(shape, lambda i: (0,) * len(shape),
                                pipeline_mode=pl.Buffered(1))
        return pl.BlockSpec(shape, lambda i: (0,) * len(shape))

    (w0s, b0s, w1s, b1s, w2s, b2s, w3s, b3s) = shapes

    grid_spec = pltpu.PrefetchScalarGridSpec(
        num_scalar_prefetch=0,
        grid=(B_pad // TB,),
        in_specs=[
            pl.BlockSpec((TB, K), lambda i: (i, 0)),   # x: fp32, K=100 (full dim)
            resident(w0s), resident(b0s),
            resident(w1s), resident(b1s),
            resident(w2s), resident(b2s),
            resident(w3s), resident(b3s),
        ],
        out_specs=pl.BlockSpec((TB, N_OUT_PAD), lambda i: (i, 0)),
    )

    flops = 2 * B_pad * (K * 256 + 256 * 512 + 512 * 1024 + 1024 * N_OUT_PAD)
    weight_bytes = 2 * (100 * 256 + 256 * 512 + 512 * 1024 + 1024 * N_OUT_PAD)
    io_bytes = 4 * B_pad * K + jnp.dtype(out_dtype).itemsize * B_pad * N_OUT_PAD

    return pl.pallas_call(
        generator_kernel,
        out_shape=jax.ShapeDtypeStruct((B_pad, N_OUT_PAD), out_dtype),
        grid_spec=grid_spec,
        compiler_params=pltpu.CompilerParams(
            dimension_semantics=("parallel",),
            # Working set is ~8-10 MiB; 32 MiB is safe on v5e/v6e/v7x.
            vmem_limit_bytes=32 * 1024 * 1024,
        ),
        cost_estimate=pl.CostEstimate(
            flops=flops,
            transcendentals=B_pad * N_OUT_PAD,
            bytes_accessed=weight_bytes + io_bytes,
        ),
    )


def generator_forward(x, prepped, *, out_dtype=jnp.float32, trim=True):
    """x: (B, 100) float32 -> (B, 784) out_dtype.

    `prepped` comes from prepare_params() (one-time bf16/padded weights).
    trim=False returns the padded (B_pad, 896) buffer so the consumer can
    fuse or skip the slice copy."""
    w0, b0, w1, b1, w2, b2, w3p, b3p, n_out = prepped
    B, K = x.shape
    TB, B_pad = _choose_tiling(B)

    # Only the (cheap) row pad of x remains; no per-call weight work and no
    # wrapper-side cast/K-pad of x.
    xp = x if B_pad == B else jnp.zeros((B_pad, K), x.dtype).at[:B].set(x)

    shapes = (w0.shape, b0.shape, w1.shape, b1.shape,
              w2.shape, b2.shape, w3p.shape, b3p.shape)
    args = (xp, w0, b0, w1, b1, w2, b2, w3p, b3p)

    try:
        out = _build_call(TB, B_pad, K, out_dtype, shapes,
                          single_buffer_weights=True)(*args)
        out = jax.block_until_ready(out)
    except Exception:
        # Fallback for jax builds where pipeline_mode=pl.Buffered(1) is not
        # supported on the TPU backend (costs ~3 MiB extra resident VMEM).
        out = _build_call(TB, B_pad, K, out_dtype, shapes,
                          single_buffer_weights=False)(*args)

    if trim:
        out = out[:B, :n_out]
    return out


def init_linear(key, fan_in, fan_out):
    """Deterministic init matching PyTorch nn.Linear default:
    U(-1/sqrt(fan_in), 1/sqrt(fan_in)) for both weight and bias."""
    kw, kb = jax.random.split(key)
    bound = 1.0 / jnp.sqrt(jnp.float32(fan_in))
    w = jax.random.uniform(kw, (fan_in, fan_out), jnp.float32, -bound, bound)
    b = jax.random.uniform(kb, (1, fan_out), jnp.float32, -bound, bound)
    return w, b


def reference_forward(x, params):
    """Pure-JAX reference mirroring the kernel's bf16 quantization
    (bf16 weights/activations, fp32 MXU accumulation, bf16 epilogue)."""
    (w0, b0), (w1, b1), (w2, b2), (w3, b3) = params
    lrelu = lambda h: jnp.where(h > 0, h, 0.2 * h)
    h = x.astype(jnp.bfloat16)
    for w, b in ((w0, b0), (w1, b1), (w2, b2)):
        a = jnp.dot(h, w.astype(jnp.bfloat16),
                    preferred_element_type=jnp.float32)
        h = lrelu(a.astype(jnp.bfloat16) + b.astype(jnp.bfloat16))
    a = jnp.dot(h, w3.astype(jnp.bfloat16),
                preferred_element_type=jnp.float32)
    return jnp.tanh(a + b3)


if __name__ == "__main__":
    key = jax.random.PRNGKey(0)
    k_x, k0, k1, k2, k3 = jax.random.split(key, 5)

    n_features = 100
    n_out = 28 * 28  # 784
    batch = 8

    params = (
        init_linear(k0, n_features, 256),
        init_linear(k1, 256, 512),
        init_linear(k2, 512, 1024),
        init_linear(k3, 1024, n_out),
    )

    # One-time weight prep (hoisted out of the per-call forward).
    prepped = prepare_params(params)

    x = jax.random.normal(k_x, (batch, n_features), jnp.float32)

    out = generator_forward(x, prepped)
    out = jax.block_until_ready(out)

    ref = reference_forward(x, params)
    assert out.shape == (batch, n_out), out.shape
    assert jnp.allclose(out, ref, atol=2e-2, rtol=2e-2), \
        float(jnp.max(jnp.abs(out - ref)))

    print("KERNEL_OK")
</pallas_src>

<mosaic_0001>
module attributes {stable_mosaic.version = 11 : i64} {
  func.func @generator_kernel(%arg0: i32, %arg1: memref<16x100xf32, #tpu.memory_space<vmem>>, %arg2: memref<100x256xbf16, #tpu.memory_space<vmem>>, %arg3: memref<1x256xbf16, #tpu.memory_space<vmem>>, %arg4: memref<256x512xbf16, #tpu.memory_space<vmem>>, %arg5: memref<1x512xbf16, #tpu.memory_space<vmem>>, %arg6: memref<512x1024xbf16, #tpu.memory_space<vmem>>, %arg7: memref<1x1024xbf16, #tpu.memory_space<vmem>>, %arg8: memref<1024x896xbf16, #tpu.memory_space<vmem>>, %arg9: memref<1x896xf32, #tpu.memory_space<vmem>>, %arg10: memref<16x896xf32, #tpu.memory_space<vmem>>) attributes {dimension_semantics = [#tpu.dimension_semantics<parallel>], iteration_bounds = array<i64: 1>, scalar_prefetch = 0 : i64, scratch_operands = 0 : i64, tpu.core_type = #tpu.core_type<tc>, window_params = [{transform_indices = @transform_0, window_bounds = array<i64: 16, 100>}, {pipeline_mode = #tpu.pipeline_mode<synchronous>, transform_indices = @transform_1, window_bounds = array<i64: 100, 256>}, {pipeline_mode = #tpu.pipeline_mode<synchronous>, transform_indices = @transform_2, window_bounds = array<i64: 1, 256>}, {pipeline_mode = #tpu.pipeline_mode<synchronous>, transform_indices = @transform_3, window_bounds = array<i64: 256, 512>}, {pipeline_mode = #tpu.pipeline_mode<synchronous>, transform_indices = @transform_4, window_bounds = array<i64: 1, 512>}, {pipeline_mode = #tpu.pipeline_mode<synchronous>, transform_indices = @transform_5, window_bounds = array<i64: 512, 1024>}, {pipeline_mode = #tpu.pipeline_mode<synchronous>, transform_indices = @transform_6, window_bounds = array<i64: 1, 1024>}, {pipeline_mode = #tpu.pipeline_mode<synchronous>, transform_indices = @transform_7, window_bounds = array<i64: 1024, 896>}, {pipeline_mode = #tpu.pipeline_mode<synchronous>, transform_indices = @transform_8, window_bounds = array<i64: 1, 896>}, {transform_indices = @transform_9, window_bounds = array<i64: 16, 896>}]} {
    %c0 = arith.constant 0 : index
    %c0_0 = arith.constant 0 : index
    %0 = vector.load %arg1[%c0, %c0_0] : memref<16x100xf32, #tpu.memory_space<vmem>>, vector<16x100xf32>
    %1 = arith.truncf %0 : vector<16x100xf32> to vector<16x100xbf16>
    %c0_1 = arith.constant 0 : index
    %c0_2 = arith.constant 0 : index
    %2 = vector.load %arg2[%c0_1, %c0_2] : memref<100x256xbf16, #tpu.memory_space<vmem>>, vector<100x256xbf16>
    %cst = arith.constant dense<0.000000e+00> : vector<16x256xf32>
    %3 = tpu.matmul %1, %2, %cst {dimension_numbers = #tpu.dot_dimension_numbers<[1], [0], [0], [1], [0, 0, 1, 1], [], []>} : vector<16x100xbf16>, vector<100x256xbf16>, vector<16x256xf32> -> vector<16x256xf32>
    %4 = arith.truncf %3 : vector<16x256xf32> to vector<16x256xbf16>
    %c0_3 = arith.constant 0 : index
    %c0_4 = arith.constant 0 : index
    %5 = vector.load %arg3[%c0_3, %c0_4] : memref<1x256xbf16, #tpu.memory_space<vmem>>, vector<1x256xbf16>
    %6 = vector.broadcast %5 : vector<1x256xbf16> to vector<16x256xbf16>
    %7 = arith.addf %4, %6 : vector<16x256xbf16>
    %cst_5 = arith.constant 0.000000e+00 : bf16
    %8 = vector.broadcast %cst_5 : bf16 to vector<16x256xbf16>
    %9 = arith.cmpf ogt, %7, %8 : vector<16x256xbf16>
    %cst_6 = arith.constant 2.001950e-01 : bf16
    %10 = vector.broadcast %cst_6 : bf16 to vector<16x256xbf16>
    %11 = arith.mulf %10, %7 : vector<16x256xbf16>
    %12 = arith.select %9, %7, %11 : vector<16x256xi1>, vector<16x256xbf16>
    %c0_7 = arith.constant 0 : index
    %c0_8 = arith.constant 0 : index
    %13 = vector.load %arg4[%c0_7, %c0_8] : memref<256x512xbf16, #tpu.memory_space<vmem>>, vector<256x512xbf16>
    %cst_9 = arith.constant dense<0.000000e+00> : vector<16x512xf32>
    %14 = tpu.matmul %12, %13, %cst_9 {dimension_numbers = #tpu.dot_dimension_numbers<[1], [0], [0], [1], [0, 0, 1, 1], [], []>} : vector<16x256xbf16>, vector<256x512xbf16>, vector<16x512xf32> -> vector<16x512xf32>
    %15 = arith.truncf %14 : vector<16x512xf32> to vector<16x512xbf16>
    %c0_10 = arith.constant 0 : index
    %c0_11 = arith.constant 0 : index
    %16 = vector.load %arg5[%c0_10, %c0_11] : memref<1x512xbf16, #tpu.memory_space<vmem>>, vector<1x512xbf16>
    %17 = vector.broadcast %16 : vector<1x512xbf16> to vector<16x512xbf16>
    %18 = arith.addf %15, %17 : vector<16x512xbf16>
    %cst_12 = arith.constant 0.000000e+00 : bf16
    %19 = vector.broadcast %cst_12 : bf16 to vector<16x512xbf16>
    %20 = arith.cmpf ogt, %18, %19 : vector<16x512xbf16>
    %cst_13 = arith.constant 2.001950e-01 : bf16
    %21 = vector.broadcast %cst_13 : bf16 to vector<16x512xbf16>
    %22 = arith.mulf %21, %18 : vector<16x512xbf16>
    %23 = arith.select %20, %18, %22 : vector<16x512xi1>, vector<16x512xbf16>
    %c0_14 = arith.constant 0 : index
    %c0_15 = arith.constant 0 : index
    %24 = vector.load %arg6[%c0_14, %c0_15] : memref<512x1024xbf16, #tpu.memory_space<vmem>>, vector<512x1024xbf16>
    %cst_16 = arith.constant dense<0.000000e+00> : vector<16x1024xf32>
    %25 = tpu.matmul %23, %24, %cst_16 {dimension_numbers = #tpu.dot_dimension_numbers<[1], [0], [0], [1], [0, 0, 1, 1], [], []>} : vector<16x512xbf16>, vector<512x1024xbf16>, vector<16x1024xf32> -> vector<16x1024xf32>
    %26 = arith.truncf %25 : vector<16x1024xf32> to vector<16x1024xbf16>
    %c0_17 = arith.constant 0 : index
    %c0_18 = arith.constant 0 : index
    %27 = vector.load %arg7[%c0_17, %c0_18] : memref<1x1024xbf16, #tpu.memory_space<vmem>>, vector<1x1024xbf16>
    %28 = vector.broadcast %27 : vector<1x1024xbf16> to vector<16x1024xbf16>
    %29 = arith.addf %26, %28 : vector<16x1024xbf16>
    %cst_19 = arith.constant 0.000000e+00 : bf16
    %30 = vector.broadcast %cst_19 : bf16 to vector<16x1024xbf16>
    %31 = arith.cmpf ogt, %29, %30 : vector<16x1024xbf16>
    %cst_20 = arith.constant 2.001950e-01 : bf16
    %32 = vector.broadcast %cst_20 : bf16 to vector<16x1024xbf16>
    %33 = arith.mulf %32, %29 : vector<16x1024xbf16>
    %34 = arith.select %31, %29, %33 : vector<16x1024xi1>, vector<16x1024xbf16>
    %c0_21 = arith.constant 0 : index
    %c0_22 = arith.constant 0 : index
    %35 = vector.load %arg8[%c0_21, %c0_22] : memref<1024x896xbf16, #tpu.memory_space<vmem>>, vector<1024x896xbf16>
    %cst_23 = arith.constant dense<0.000000e+00> : vector<16x896xf32>
    %36 = tpu.matmul %34, %35, %cst_23 {dimension_numbers = #tpu.dot_dimension_numbers<[1], [0], [0], [1], [0, 0, 1, 1], [], []>} : vector<16x1024xbf16>, vector<1024x896xbf16>, vector<16x896xf32> -> vector<16x896xf32>
    %c0_24 = arith.constant 0 : index
    %c0_25 = arith.constant 0 : index
    %37 = vector.load %arg9[%c0_24, %c0_25] : memref<1x896xf32, #tpu.memory_space<vmem>>, vector<1x896xf32>
    %38 = vector.broadcast %37 : vector<1x896xf32> to vector<16x896xf32>
    %39 = arith.addf %36, %38 : vector<16x896xf32>
    %40 = math.tanh %39 : vector<16x896xf32>
    %c0_26 = arith.constant 0 : index
    %c0_27 = arith.constant 0 : index
    %41 = vector.load %arg10[%c0_26, %c0_27] : memref<16x896xf32, #tpu.memory_space<vmem>>, vector<16x896xf32>
    tpu.vector_store %arg10[%c0_26, %c0_27], %40 {strides = array<i32>} : memref<16x896xf32, #tpu.memory_space<vmem>>, vector<16x896xf32>,
    return
  }
  func.func @transform_0(%arg0: i32) -> (i32, i32) {
    %c0_i32 = arith.constant 0 : i32
    %c0_i32_0 = arith.constant 0 : i32
    return %arg0, %c0_i32 : i32, i32
  }
  func.func @transform_1(%arg0: i32) -> (i32, i32) {
    %c0_i32 = arith.constant 0 : i32
    %c0_i32_0 = arith.constant 0 : i32
    %c0_i32_1 = arith.constant 0 : i32
    return %c0_i32, %c0_i32_0 : i32, i32
  }
  func.func @transform_2(%arg0: i32) -> (i32, i32) {
    %c0_i32 = arith.constant 0 : i32
    %c0_i32_0 = arith.constant 0 : i32
    %c0_i32_1 = arith.constant 0 : i32
    return %c0_i32, %c0_i32_0 : i32, i32
  }
  func.func @transform_3(%arg0: i32) -> (i32, i32) {
    %c0_i32 = arith.constant 0 : i32
    %c0_i32_0 = arith.constant 0 : i32
    %c0_i32_1 = arith.constant 0 : i32
    return %c0_i32, %c0_i32_0 : i32, i32
  }
  func.func @transform_4(%arg0: i32) -> (i32, i32) {
    %c0_i32 = arith.constant 0 : i32
    %c0_i32_0 = arith.constant 0 : i32
    %c0_i32_1 = arith.constant 0 : i32
    return %c0_i32, %c0_i32_0 : i32, i32
  }
  func.func @transform_5(%arg0: i32) -> (i32, i32) {
    %c0_i32 = arith.constant 0 : i32
    %c0_i32_0 = arith.constant 0 : i32
    %c0_i32_1 = arith.constant 0 : i32
    return %c0_i32, %c0_i32_0 : i32, i32
  }
  func.func @transform_6(%arg0: i32) -> (i32, i32) {
    %c0_i32 = arith.constant 0 : i32
    %c0_i32_0 = arith.constant 0 : i32
    %c0_i32_1 = arith.constant 0 : i32
    return %c0_i32, %c0_i32_0 : i32, i32
  }
  func.func @transform_7(%arg0: i32) -> (i32, i32) {
    %c0_i32 = arith.constant 0 : i32
    %c0_i32_0 = arith.constant 0 : i32
    %c0_i32_1 = arith.constant 0 : i32
    return %c0_i32, %c0_i32_0 : i32, i32
  }
  func.func @transform_8(%arg0: i32) -> (i32, i32) {
    %c0_i32 = arith.constant 0 : i32
    %c0_i32_0 = arith.constant 0 : i32
    %c0_i32_1 = arith.constant 0 : i32
    return %c0_i32, %c0_i32_0 : i32, i32
  }
  func.func @transform_9(%arg0: i32) -> (i32, i32) {
    %c0_i32 = arith.constant 0 : i32
    %c0_i32_0 = arith.constant 0 : i32
    return %arg0, %c0_i32 : i32, i32
  }
}

module attributes {stable_mosaic.version = 11 : i64} {
  func.func @generator_kernel(%arg0: i32, %arg1: memref<16x100xf32, #tpu.memory_space<vmem>>, %arg2: memref<100x256xbf16, #tpu.memory_space<vmem>>, %arg3: memref<1x256xbf16, #tpu.memory_space<vmem>>, %arg4: memref<256x512xbf16, #tpu.memory_space<vmem>>, %arg5: memref<1x512xbf16, #tpu.memory_space<vmem>>, %arg6: memref<512x1024xbf16, #tpu.memory_space<vmem>>, %arg7: memref<1x1024xbf16, #tpu.memory_space<vmem>>, %arg8: memref<1024x896xbf16, #tpu.memory_space<vmem>>, %arg9: memref<1x896xf32, #tpu.memory_space<vmem>>, %arg10: memref<16x896xf32, #tpu.memory_space<vmem>>) attributes {dimension_semantics = [#tpu.dimension_semantics<parallel>], iteration_bounds = array<i64: 1>, scalar_prefetch = 0 : i64, scratch_operands = 0 : i64, tpu.core_type = #tpu.core_type<tc>, window_params = [{transform_indices = @transform_0, window_bounds = array<i64: 16, 100>}, {pipeline_mode = #tpu.pipeline_mode<synchronous>, transform_indices = @transform_1, window_bounds = array<i64: 100, 256>}, {pipeline_mode = #tpu.pipeline_mode<synchronous>, transform_indices = @transform_2, window_bounds = array<i64: 1, 256>}, {pipeline_mode = #tpu.pipeline_mode<synchronous>, transform_indices = @transform_3, window_bounds = array<i64: 256, 512>}, {pipeline_mode = #tpu.pipeline_mode<synchronous>, transform_indices = @transform_4, window_bounds = array<i64: 1, 512>}, {pipeline_mode = #tpu.pipeline_mode<synchronous>, transform_indices = @transform_5, window_bounds = array<i64: 512, 1024>}, {pipeline_mode = #tpu.pipeline_mode<synchronous>, transform_indices = @transform_6, window_bounds = array<i64: 1, 1024>}, {pipeline_mode = #tpu.pipeline_mode<synchronous>, transform_indices = @transform_7, window_bounds = array<i64: 1024, 896>}, {pipeline_mode = #tpu.pipeline_mode<synchronous>, transform_indices = @transform_8, window_bounds = array<i64: 1, 896>}, {transform_indices = @transform_9, window_bounds = array<i64: 16, 896>}]} {
    %c0 = arith.constant 0 : index
    %c0_0 = arith.constant 0 : index
    %0 = vector.load %arg1[%c0, %c0_0] : memref<16x100xf32, #tpu.memory_space<vmem>>, vector<16x100xf32>
    %1 = arith.truncf %0 : vector<16x100xf32> to vector<16x100xbf16>
    %c0_1 = arith.constant 0 : index
    %c0_2 = arith.constant 0 : index
    %2 = vector.load %arg2[%c0_1, %c0_2] : memref<100x256xbf16, #tpu.memory_space<vmem>>, vector<100x256xbf16>
    %cst = arith.constant dense<0.000000e+00> : vector<16x256xf32>
    %3 = tpu.matmul %1, %2, %cst {dimension_numbers = #tpu.dot_dimension_numbers<[1], [0], [0], [1], [0, 0, 1, 1], [], []>} : vector<16x100xbf16>, vector<100x256xbf16>, vector<16x256xf32> -> vector<16x256xf32>
    %4 = arith.truncf %3 : vector<16x256xf32> to vector<16x256xbf16>
    %c0_3 = arith.constant 0 : index
    %c0_4 = arith.constant 0 : index
    %5 = vector.load %arg3[%c0_3, %c0_4] : memref<1x256xbf16, #tpu.memory_space<vmem>>, vector<1x256xbf16>
    %6 = vector.broadcast %5 : vector<1x256xbf16> to vector<16x256xbf16>
    %7 = arith.addf %4, %6 : vector<16x256xbf16>
    %cst_5 = arith.constant 0.000000e+00 : bf16
    %8 = vector.broadcast %cst_5 : bf16 to vector<16x256xbf16>
    %9 = arith.cmpf ogt, %7, %8 : vector<16x256xbf16>
    %cst_6 = arith.constant 2.001950e-01 : bf16
    %10 = vector.broadcast %cst_6 : bf16 to vector<16x256xbf16>
    %11 = arith.mulf %10, %7 : vector<16x256xbf16>
    %12 = arith.select %9, %7, %11 : vector<16x256xi1>, vector<16x256xbf16>
    %c0_7 = arith.constant 0 : index
    %c0_8 = arith.constant 0 : index
    %13 = vector.load %arg4[%c0_7, %c0_8] : memref<256x512xbf16, #tpu.memory_space<vmem>>, vector<256x512xbf16>
    %cst_9 = arith.constant dense<0.000000e+00> : vector<16x512xf32>
    %14 = tpu.matmul %12, %13, %cst_9 {dimension_numbers = #tpu.dot_dimension_numbers<[1], [0], [0], [1], [0, 0, 1, 1], [], []>} : vector<16x256xbf16>, vector<256x512xbf16>, vector<16x512xf32> -> vector<16x512xf32>
    %15 = arith.truncf %14 : vector<16x512xf32> to vector<16x512xbf16>
    %c0_10 = arith.constant 0 : index
    %c0_11 = arith.constant 0 : index
    %16 = vector.load %arg5[%c0_10, %c0_11] : memref<1x512xbf16, #tpu.memory_space<vmem>>, vector<1x512xbf16>
    %17 = vector.broadcast %16 : vector<1x512xbf16> to vector<16x512xbf16>
    %18 = arith.addf %15, %17 : vector<16x512xbf16>
    %cst_12 = arith.constant 0.000000e+00 : bf16
    %19 = vector.broadcast %cst_12 : bf16 to vector<16x512xbf16>
    %20 = arith.cmpf ogt, %18, %19 : vector<16x512xbf16>
    %cst_13 = arith.constant 2.001950e-01 : bf16
    %21 = vector.broadcast %cst_13 : bf16 to vector<16x512xbf16>
    %22 = arith.mulf %21, %18 : vector<16x512xbf16>
    %23 = arith.select %20, %18, %22 : vector<16x512xi1>, vector<16x512xbf16>
    %c0_14 = arith.constant 0 : index
    %c0_15 = arith.constant 0 : index
    %24 = vector.load %arg6[%c0_14, %c0_15] : memref<512x1024xbf16, #tpu.memory_space<vmem>>, vector<512x1024xbf16>
    %cst_16 = arith.constant dense<0.000000e+00> : vector<16x1024xf32>
    %25 = tpu.matmul %23, %24, %cst_16 {dimension_numbers = #tpu.dot_dimension_numbers<[1], [0], [0], [1], [0, 0, 1, 1], [], []>} : vector<16x512xbf16>, vector<512x1024xbf16>, vector<16x1024xf32> -> vector<16x1024xf32>
    %26 = arith.truncf %25 : vector<16x1024xf32> to vector<16x1024xbf16>
    %c0_17 = arith.constant 0 : index
    %c0_18 = arith.constant 0 : index
    %27 = vector.load %arg7[%c0_17, %c0_18] : memref<1x1024xbf16, #tpu.memory_space<vmem>>, vector<1x1024xbf16>
    %28 = vector.broadcast %27 : vector<1x1024xbf16> to vector<16x1024xbf16>
    %29 = arith.addf %26, %28 : vector<16x1024xbf16>
    %cst_19 = arith.constant 0.000000e+00 : bf16
    %30 = vector.broadcast %cst_19 : bf16 to vector<16x1024xbf16>
    %31 = arith.cmpf ogt, %29, %30 : vector<16x1024xbf16>
    %cst_20 = arith.constant 2.001950e-01 : bf16
    %32 = vector.broadcast %cst_20 : bf16 to vector<16x1024xbf16>
    %33 = arith.mulf %32, %29 : vector<16x1024xbf16>
    %34 = arith.select %31, %29, %33 : vector<16x1024xi1>, vector<16x1024xbf16>
    %c0_21 = arith.constant 0 : index
    %c0_22 = arith.constant 0 : index
    %35 = vector.load %arg8[%c0_21, %c0_22] : memref<1024x896xbf16, #tpu.memory_space<vmem>>, vector<1024x896xbf16>
    %cst_23 = arith.constant dense<0.000000e+00> : vector<16x896xf32>
    %36 = tpu.matmul %34, %35, %cst_23 {dimension_numbers = #tpu.dot_dimension_numbers<[1], [0], [0], [1], [0, 0, 1, 1], [], []>} : vector<16x1024xbf16>, vector<1024x896xbf16>, vector<16x896xf32> -> vector<16x896xf32>
    %c0_24 = arith.constant 0 : index
    %c0_25 = arith.constant 0 : index
    %37 = vector.load %arg9[%c0_24, %c0_25] : memref<1x896xf32, #tpu.memory_space<vmem>>, vector<1x896xf32>
    %38 = vector.broadcast %37 : vector<1x896xf32> to vector<16x896xf32>
    %39 = arith.addf %36, %38 : vector<16x896xf32>
    %40 = math.tanh %39 : vector<16x896xf32>
    %c0_26 = arith.constant 0 : index
    %c0_27 = arith.constant 0 : index
    %41 = vector.load %arg10[%c0_26, %c0_27] : memref<16x896xf32, #tpu.memory_space<vmem>>, vector<16x896xf32>
    tpu.vector_store %arg10[%c0_26, %c0_27], %40 {strides = array<i32>} : memref<16x896xf32, #tpu.memory_space<vmem>>, vector<16x896xf32>,
    return
  }
  func.func @transform_0(%arg0: i32) -> (i32, i32) {
    %c0_i32 = arith.constant 0 : i32
    %c0_i32_0 = arith.constant 0 : i32
    return %arg0, %c0_i32 : i32, i32
  }
  func.func @transform_1(%arg0: i32) -> (i32, i32) {
    %c0_i32 = arith.constant 0 : i32
    %c0_i32_0 = arith.constant 0 : i32
    %c0_i32_1 = arith.constant 0 : i32
    return %c0_i32, %c0_i32_0 : i32, i32
  }
  func.func @transform_2(%arg0: i32) -> (i32, i32) {
    %c0_i32 = arith.constant 0 : i32
    %c0_i32_0 = arith.constant 0 : i32
    %c0_i32_1 = arith.constant 0 : i32
    return %c0_i32, %c0_i32_0 : i32, i32
  }
  func.func @transform_3(%arg0: i32) -> (i32, i32) {
    %c0_i32 = arith.constant 0 : i32
    %c0_i32_0 = arith.constant 0 : i32
    %c0_i32_1 = arith.constant 0 : i32
    return %c0_i32, %c0_i32_0 : i32, i32
  }
  func.func @transform_4(%arg0: i32) -> (i32, i32) {
    %c0_i32 = arith.constant 0 : i32
    %c0_i32_0 = arith.constant 0 : i32
    %c0_i32_1 = arith.constant 0 : i32
    return %c0_i32, %c0_i32_0 : i32, i32
  }
  func.func @transform_5(%arg0: i32) -> (i32, i32) {
    %c0_i32 = arith.constant 0 : i32
    %c0_i32_0 = arith.constant 0 : i32
    %c0_i32_1 = arith.constant 0 : i32
    return %c0_i32, %c0_i32_0 : i32, i32
  }
  func.func @transform_6(%arg0: i32) -> (i32, i32) {
    %c0_i32 = arith.constant 0 : i32
    %c0_i32_0 = arith.constant 0 : i32
    %c0_i32_1 = arith.constant 0 : i32
    return %c0_i32, %c0_i32_0 : i32, i32
  }
  func.func @transform_7(%arg0: i32) -> (i32, i32) {
    %c0_i32 = arith.constant 0 : i32
    %c0_i32_0 = arith.constant 0 : i32
    %c0_i32_1 = arith.constant 0 : i32
    return %c0_i32, %c0_i32_0 : i32, i32
  }
  func.func @transform_8(%arg0: i32) -> (i32, i32) {
    %c0_i32 = arith.constant 0 : i32
    %c0_i32_0 = arith.constant 0 : i32
    %c0_i32_1 = arith.constant 0 : i32
    return %c0_i32, %c0_i32_0 : i32, i32
  }
  func.func @transform_9(%arg0: i32) -> (i32, i32) {
    %c0_i32 = arith.constant 0 : i32
    %c0_i32_0 = arith.constant 0 : i32
    return %arg0, %c0_i32 : i32, i32
  }
}

</mosaic_0001>

<llo_original>
// kernel: tpu_custom_call.1
$region0: #{tpu_custom_call.1}
  #allocation0 [shape = 'u32[]', space=smem, size = 0x4, offset = 0x4, fixed_abs, tag = 'smem constant byte address 0x4 - core index']
  #allocation1 [shape = 'u32[144,128]{1,0:T(1,128)}', space=vmem, size = 0x12000, scoped, tag = 'internal scratch']
  %s0 = inlined_call_operand.hbm [shape: f32[16,100], index: 0, kind: input, shape index: {}]
  %s1 = inlined_call_operand.hbm [shape: bf16[100,256], index: 1, kind: input, shape index: {}]
  %s2 = inlined_call_operand.hbm [shape: bf16[1,256], index: 2, kind: input, shape index: {}]
  %s3 = inlined_call_operand.hbm [shape: bf16[256,512], index: 3, kind: input, shape index: {}]
  %s4 = inlined_call_operand.hbm [shape: bf16[1,512], index: 4, kind: input, shape index: {}]
  %s5 = inlined_call_operand.hbm [shape: bf16[512,1024], index: 5, kind: input, shape index: {}]
  %s6 = inlined_call_operand.hbm [shape: bf16[1,1024], index: 6, kind: input, shape index: {}]
  %s7 = inlined_call_operand.hbm [shape: bf16[1024,896], index: 7, kind: input, shape index: {}]
  %s8 = inlined_call_operand.hbm [shape: f32[1,896], index: 8, kind: input, shape index: {}]
  %s9 = inlined_call_operand.hbm [shape: f32[16,896], index: 9, kind: output, shape index: {}]
  %s10 = sld [smem:[#allocation0]]
  $region82: #{tpu_custom_call.1} parent=0
    _
  %s12 = ssub.s32 1, %s10
  %s13 = scalar_select 0, %s12, %s10
  $region1: #{tpu_custom_call.1} parent=0
    #allocation2 [shape = 'u8[8192]{0}', space=vmem, size = 0x2000, scoped, tag = 'input window, operand 0, single buffered']
    #allocation3 [shape = 's32[1]{0}', space=sflag, size = 0x4, scoped, tag = 'scoped memory for tpu_custom_call.1']
    #allocation4 [shape = 's32[1]{0}', space=sflag, size = 0x4, scoped, tag = 'scoped memory for tpu_custom_call.1']
    #allocation5 [shape = 'u8[53248]{0}', space=vmem, size = 0xd000, scoped, tag = 'input window, operand 1, single buffered']
    #allocation6 [shape = 's32[1]{0}', space=sflag, size = 0x4, scoped, tag = 'scoped memory for tpu_custom_call.1']
    #allocation7 [shape = 'u8[1024]{0}', space=vmem, size = 0x400, scoped, tag = 'input window, operand 2, single buffered']
    #allocation8 [shape = 'u8[262144]{0}', space=vmem, size = 0x40000, scoped, tag = 'input window, operand 3, single buffered']
    #allocation9 [shape = 's32[1]{0}', space=sflag, size = 0x4, scoped, tag = 'scoped memory for tpu_custom_call.1']
    #allocation10 [shape = 'u8[2048]{0}', space=vmem, size = 0x800, scoped, tag = 'input window, operand 4, single buffered']
    #allocation11 [shape = 'u8[1048576]{0}', space=vmem, size = 0x100000, scoped, tag = 'input window, operand 5, single buffered']
    #allocation12 [shape = 's32[1]{0}', space=sflag, size = 0x4, scoped, tag = 'scoped memory for tpu_custom_call.1']
    #allocation13 [shape = 'u8[4096]{0}', space=vmem, size = 0x1000, scoped, tag = 'input window, operand 6, single buffered']
    #allocation14 [shape = 'u8[1835008]{0}', space=vmem, size = 0x1c0000, scoped, tag = 'input window, operand 7, single buffered']
    #allocation15 [shape = 's32[1]{0}', space=sflag, size = 0x4, scoped, tag = 'scoped memory for tpu_custom_call.1']
    #allocation16 [shape = 'u8[3584]{0}', space=vmem, size = 0x1000, scoped, tag = 'input window, operand 8, single buffered']
    #allocation17 [shape = 'u8[57344]{0}', space=vmem, size = 0xe000, scoped, tag = 'output window, operand 0, single buffered']
    %14 = vsyncpa [#allocation3], 0
    %15 = vsyncpa [#allocation6], 0
    %16 = vsyncpa [#allocation9], 0
    %17 = vsyncpa [#allocation12], 0
    %18 = vsyncpa [#allocation15], 0
    %19 = vsyncpa [#allocation4], 0
    // Predicated region
    $region2: #{tpu_custom_call.1} parent=1 // pred_check
      _
    $region3: #{tpu_custom_call.1} parent=1 // pred_check_branch
      %21 = sbr.rel (0) target = $region5
    $region4: #{tpu_custom_call.1} parent=1 // pred_region
      %s23 = ssub.s32 256, 256
      %24 = vsyncadd [#allocation3], %s23
      %s25 = sshll.u32 [#allocation2], 4
      %s26 = int_to_ptr.vmem [resolvable:$true] %s25
      %31 = dma.hbm_to_vmem [thread:$0]  %s0, 256, %s26, [#allocation3], 128, 128, 8
    $region5: #{tpu_custom_call.1} parent=1 // pred_fallthru
      _
    // Predicated region
    $region6: #{tpu_custom_call.1} parent=1 // pred_check
      _
    $region7: #{tpu_custom_call.1} parent=1 // pred_check_branch
      %33 = sbr.rel (0) target = $region9
    $region8: #{tpu_custom_call.1} parent=1 // pred_region
      %s35 = ssub.s32 1664, 1664
      %36 = vsyncadd [#allocation6], %s35
      %s37 = sshll.u32 [#allocation5], 4
      %s38 = int_to_ptr.vmem [resolvable:$true] %s37
      %43 = dma.hbm_to_vmem [thread:$0]  %s1, 1664, %s38, [#allocation6], 128, 128, 8
    $region9: #{tpu_custom_call.1} parent=1 // pred_fallthru
      _
    // Predicated region
    $region10: #{tpu_custom_call.1} parent=1 // pred_check
      _
    $region11: #{tpu_custom_call.1} parent=1 // pred_check_branch
      %45 = sbr.rel (0) target = $region13
    $region12: #{tpu_custom_call.1} parent=1 // pred_region
      %s47 = ssub.s32 32, 32
      %48 = vsyncadd [#allocation6], %s47
      %s50 = sshll.u32 [#allocation7], 4
      %s51 = int_to_ptr.vmem [resolvable:$true] %s50
      %53 = dma.hbm_to_vmem [thread:$0]  %s2, 32, %s51, [#allocation6]
    $region13: #{tpu_custom_call.1} parent=1 // pred_fallthru
      _
    // Predicated region
    $region14: #{tpu_custom_call.1} parent=1 // pred_check
      _
    $region15: #{tpu_custom_call.1} parent=1 // pred_check_branch
      %55 = sbr.rel (0) target = $region17
    $region16: #{tpu_custom_call.1} parent=1 // pred_region
      %s57 = ssub.s32 8192, 8192
      %58 = vsyncadd [#allocation9], %s57
      %s59 = sshll.u32 [#allocation8], 4
      %s60 = int_to_ptr.vmem [resolvable:$true] %s59
      %65 = dma.hbm_to_vmem [thread:$0]  %s3, 8192, %s60, [#allocation9], 256, 256, 16
    $region17: #{tpu_custom_call.1} parent=1 // pred_fallthru
      _
    // Predicated region
    $region18: #{tpu_custom_call.1} parent=1 // pred_check
      _
    $region19: #{tpu_custom_call.1} parent=1 // pred_check_branch
      %67 = sbr.rel (0) target = $region21
    $region20: #{tpu_custom_call.1} parent=1 // pred_region
      %s69 = ssub.s32 64, 64
      %70 = vsyncadd [#allocation9], %s69
      %s72 = sshll.u32 [#allocation10], 4
      %s73 = int_to_ptr.vmem [resolvable:$true] %s72
      %75 = dma.hbm_to_vmem [thread:$0]  %s4, 64, %s73, [#allocation9]
    $region21: #{tpu_custom_call.1} parent=1 // pred_fallthru
      _
    // Predicated region
    $region22: #{tpu_custom_call.1} parent=1 // pred_check
      _
    $region23: #{tpu_custom_call.1} parent=1 // pred_check_branch
      %77 = sbr.rel (0) target = $region25
    $region24: #{tpu_custom_call.1} parent=1 // pred_region
      %s79 = ssub.s32 32768, 32768
      %80 = vsyncadd [#allocation12], %s79
      %s81 = sshll.u32 [#allocation11], 4
      %s82 = int_to_ptr.vmem [resolvable:$true] %s81
      %87 = dma.hbm_to_vmem [thread:$0]  %s5, 32768, %s82, [#allocation12], 512, 512, 32
    $region25: #{tpu_custom_call.1} parent=1 // pred_fallthru
      _
    // Predicated region
    $region26: #{tpu_custom_call.1} parent=1 // pred_check
      _
    $region27: #{tpu_custom_call.1} parent=1 // pred_check_branch
      %89 = sbr.rel (0) target = $region29
    $region28: #{tpu_custom_call.1} parent=1 // pred_region
      %s91 = ssub.s32 128, 128
      %92 = vsyncadd [#allocation12], %s91
      %s94 = sshll.u32 [#allocation13], 4
      %s95 = int_to_ptr.vmem [resolvable:$true] %s94
      %97 = dma.hbm_to_vmem [thread:$0]  %s6, 128, %s95, [#allocation12]
    $region29: #{tpu_custom_call.1} parent=1 // pred_fallthru
      _
    // Predicated region
    $region30: #{tpu_custom_call.1} parent=1 // pred_check
      _
    $region31: #{tpu_custom_call.1} parent=1 // pred_check_branch
      %99 = sbr.rel (0) target = $region33
    $region32: #{tpu_custom_call.1} parent=1 // pred_region
      %s101 = ssub.s32 57344, 57344
      %102 = vsyncadd [#allocation15], %s101
      %s103 = sshll.u32 [#allocation14], 4
      %s104 = int_to_ptr.vmem [resolvable:$true] %s103
      %109 = dma.hbm_to_vmem [thread:$0]  %s7, 57344, %s104, [#allocation15], 448, 448, 28
    $region33: #{tpu_custom_call.1} parent=1 // pred_fallthru
      _
    // Predicated region
    $region34: #{tpu_custom_call.1} parent=1 // pred_check
      _
    $region35: #{tpu_custom_call.1} parent=1 // pred_check_branch
      %111 = sbr.rel (0) target = $region37
    $region36: #{tpu_custom_call.1} parent=1 // pred_region
      %s113 = ssub.s32 112, 112
      %114 = vsyncadd [#allocation15], %s113
      %s116 = sshll.u32 [#allocation16], 4
      %s117 = int_to_ptr.vmem [resolvable:$true] %s116
      %119 = dma.hbm_to_vmem [thread:$0]  %s8, 112, %s117, [#allocation15]
    $region37: #{tpu_custom_call.1} parent=1 // pred_fallthru
      _
    // Predicated region
    $region38: #{tpu_custom_call.1} parent=1 // pred_check
      _
    $region39: #{tpu_custom_call.1} parent=1 // pred_check_branch
      %121 = sbr.rel (0) target = $region41
    $region40: #{tpu_custom_call.1} parent=1 // pred_region
      %122 = dma.done [#allocation3], 256
    $region41: #{tpu_custom_call.1} parent=1 // pred_fallthru
      _
    // Predicated region
    $region42: #{tpu_custom_call.1} parent=1 // pred_check
      _
    $region43: #{tpu_custom_call.1} parent=1 // pred_check_branch
      %124 = sbr.rel (0) target = $region45
    $region44: #{tpu_custom_call.1} parent=1 // pred_region
      %125 = dma.done [#allocation6], 1664
    $region45: #{tpu_custom_call.1} parent=1 // pred_fallthru
      _
    // Predicated region
    $region46: #{tpu_custom_call.1} parent=1 // pred_check
      _
    $region47: #{tpu_custom_call.1} parent=1 // pred_check_branch
      %127 = sbr.rel (0) target = $region49
    $region48: #{tpu_custom_call.1} parent=1 // pred_region
      %128 = dma.done [#allocation6], 32
    $region49: #{tpu_custom_call.1} parent=1 // pred_fallthru
      _
    // Predicated region
    $region50: #{tpu_custom_call.1} parent=1 // pred_check
      _
    $region51: #{tpu_custom_call.1} parent=1 // pred_check_branch
      %130 = sbr.rel (0) target = $region53
    $region52: #{tpu_custom_call.1} parent=1 // pred_region
      %131 = dma.done [#allocation9], 8192
    $region53: #{tpu_custom_call.1} parent=1 // pred_fallthru
      _
    // Predicated region
    $region54: #{tpu_custom_call.1} parent=1 // pred_check
      _
    $region55: #{tpu_custom_call.1} parent=1 // pred_check_branch
      %133 = sbr.rel (0) target = $region57
    $region56: #{tpu_custom_call.1} parent=1 // pred_region
      %134 = dma.done [#allocation9], 64
    $region57: #{tpu_custom_call.1} parent=1 // pred_fallthru
      _
    // Predicated region
    $region58: #{tpu_custom_call.1} parent=1 // pred_check
      _
    $region59: #{tpu_custom_call.1} parent=1 // pred_check_branch
      %136 = sbr.rel (0) target = $region61
    $region60: #{tpu_custom_call.1} parent=1 // pred_region
      %137 = dma.done [#allocation12], 32768
    $region61: #{tpu_custom_call.1} parent=1 // pred_fallthru
      _
    // Predicated region
    $region62: #{tpu_custom_call.1} parent=1 // pred_check
      _
    $region63: #{tpu_custom_call.1} parent=1 // pred_check_branch
      %139 = sbr.rel (0) target = $region65
    $region64: #{tpu_custom_call.1} parent=1 // pred_region
      %140 = dma.done [#allocation12], 128
    $region65: #{tpu_custom_call.1} parent=1 // pred_fallthru
      _
    // Predicated region
    $region66: #{tpu_custom_call.1} parent=1 // pred_check
      _
    $region67: #{tpu_custom_call.1} parent=1 // pred_check_branch
      %142 = sbr.rel (0) target = $region69
    $region68: #{tpu_custom_call.1} parent=1 // pred_region
      %143 = dma.done [#allocation15], 57344
    $region69: #{tpu_custom_call.1} parent=1 // pred_fallthru
      _
    // Predicated region
    $region70: #{tpu_custom_call.1} parent=1 // pred_check
      _
    $region71: #{tpu_custom_call.1} parent=1 // pred_check_branch
      %145 = sbr.rel (0) target = $region73
    $region72: #{tpu_custom_call.1} parent=1 // pred_region
      %146 = dma.done [#allocation15], 112
    $region73: #{tpu_custom_call.1} parent=1 // pred_fallthru
      _
    %v149 = vld [vmem:[#allocation2] sm:$0xff]
    %v150 = vld [vmem:[#allocation2 + $0x8] sm:$0xff]
    %v151 = vpack.c.bf16 %v150, %v149
    %v152 = vld [vmem:[#allocation5] sm:$0xff]
    %v153 = vld [vmem:[#allocation5 + $0x8] sm:$0xff]
    %v154 = vld [vmem:[#allocation5 + $0x10] sm:$0xff]
    %v155 = vld [vmem:[#allocation5 + $0x18] sm:$0xff]
    %v156 = vld [vmem:[#allocation5 + $0x20] sm:$0xff]
    %v157 = vld [vmem:[#allocation5 + $0x28] sm:$0xff]
    %v158 = vld [vmem:[#allocation5 + $0x30] sm:$0xff]
    %v159 = vld [vmem:[#allocation5 + $0x38] sm:$0xff]
    %v160 = vld [vmem:[#allocation5 + $0x40] sm:$0xff]
    %v161 = vld [vmem:[#allocation5 + $0x48] sm:$0xff]
    %v162 = vld [vmem:[#allocation5 + $0x50] sm:$0xff]
    %v163 = vld [vmem:[#allocation5 + $0x58] sm:$0xff]
    %v164 = vld [vmem:[#allocation5 + $0x60] sm:$0x33]
    %v178 = vunpack.c.l.b16 %v152
    %v179 = vunpack.c.h.b16 %v152
    %v180 = vunpack.c.l.b16 %v153
    %v181 = vunpack.c.h.b16 %v153
    %v182 = vunpack.c.l.b16 %v154
    %v183 = vunpack.c.h.b16 %v154
    %v184 = vunpack.c.l.b16 %v155
    %v185 = vunpack.c.h.b16 %v155
    %v186 = vunpack.c.l.b16 %v156
    %v187 = vunpack.c.h.b16 %v156
    %v188 = vunpack.c.l.b16 %v157
    %v189 = vunpack.c.h.b16 %v157
    %v190 = vunpack.c.l.b16 %v158
    %v191 = vunpack.c.h.b16 %v158
    %v192 = vunpack.c.l.b16 %v159
    %v193 = vunpack.c.h.b16 %v159
    %v194 = vunpack.c.l.b16 %v160
    %v195 = vunpack.c.h.b16 %v160
    %v196 = vunpack.c.l.b16 %v161
    %v197 = vunpack.c.h.b16 %v161
    %v198 = vunpack.c.l.b16 %v162
    %v199 = vunpack.c.h.b16 %v162
    %v200 = vunpack.c.l.b16 %v163
    %v201 = vunpack.c.h.b16 %v163
    %v202 = vunpack.c.l.b16 %v164
    %v203 = vunpack.c.h.b16 %v164
    %v204 = vpack.c.b16 %v180, %v178
    %v205 = vpack.c.b16 %v181, %v179
    %v206 = vpack.c.b16 %v184, %v182
    %v207 = vpack.c.b16 %v185, %v183
    %v208 = vpack.c.b16 %v188, %v186
    %v209 = vpack.c.b16 %v189, %v187
    %v210 = vpack.c.b16 %v192, %v190
    %v211 = vpack.c.b16 %v193, %v191
    %v212 = vpack.c.b16 %v196, %v194
    %v213 = vpack.c.b16 %v197, %v195
    %v214 = vpack.c.b16 %v200, %v198
    %v215 = vpack.c.b16 %v201, %v199
    %v216 = vpack.c.b16 %v202, %v202
    %v217 = vpack.c.b16 %v203, %v203
    %vm230 = vcmask 818176
    %v232 = vsel %vm230, %v151, 0
    %vm234 = vcmask 1041408
    %v236 = vsel %vm234, %v216, 0
    %v239 = vsel %vm234, %v217, 0
    %241 = vmatprep.subr.bf16.mxu0 0
    %242 = vmatpush1.bf16.msra.mxu0 0
    %243 = vmatprep.subr.bf16.mxu0 %v239
    %244 = vmatpush1.bf16.msra.mxu0 %v236
    %245 = vmatprep.subr.bf16.mxu0 %v215
    %246 = vmatpush1.bf16.msra.mxu0 %v214
    %247 = vmatprep.subr.bf16.mxu0 %v213
    %248 = vmatpush1.bf16.msra.mxu0 %v212
    %249 = vmatprep.subr.bf16.mxu0 %v211
    %250 = vmatpush1.bf16.msra.mxu0 %v210
    %251 = vmatprep.subr.bf16.mxu0 %v209
    %252 = vmatpush1.bf16.msra.mxu0 %v208
    %253 = vmatprep.subr.bf16.mxu0 %v207
    %254 = vmatpush1.bf16.msra.mxu0 %v206
    %255 = vmatprep.subr.bf16.mxu0 %v205
    %256 = vmatpush1.bf16.msra.mxu0 %v204
    %257 = vmatprep.subr.bf16.mxu0 0
    %258 = vmatpush2.bf16.msra.mxu0 0
    %259 = vmatprep.subr.bf16.mxu0 0
    %260 = vmatpush2.bf16.msra.mxu0 0
    %261 = vmatprep.subr.bf16.mxu0 0
    %262 = vmatpush2.bf16.msra.mxu0 0
    %263 = vmatprep.subr.bf16.mxu0 0
    %264 = vmatpush2.bf16.msra.mxu0 0
    %265 = vmatprep.subr.bf16.mxu0 0
    %266 = vmatpush2.bf16.msra.mxu0 0
    %267 = vmatprep.subr.bf16.mxu0 0
    %268 = vmatpush2.bf16.msra.mxu0 0
    %269 = vmatprep.subr.bf16.mxu0 0
    %270 = vmatpush2.bf16.msra.mxu0 0
    %271 = vmatprep.subr.bf16.mxu0 0
    %272 = vmatpush2.bf16.msra.mxu0 0
    %273 = vmatprep.mubr.bf16.mxu0 0
    %274 = vmatmul.mubr.bf16.gmra.mxu0 %v232
    %v275 = vpop.f32.mrf.mxu0
    %v276 = vadd.f32 0.0, %v275
    %v277 = vpop.f32.mrf.mxu0
    %v278 = vadd.f32 0.0, %v277
    %v279 = vpop.f32.mrf.mxu0
    %v280 = vadd.f32 0.0, %v279
    %v281 = vpop.f32.mrf.mxu0
    %v282 = vadd.f32 0.0, %v281
    %283 = vdwg.mxu0
    %v284 = vpack.c.bf16 %v280, %v276
    %v285 = vpack.c.bf16 %v282, %v278
    %v286 = vld [vmem:[#allocation7] sm:$0x3]
    %v289 = vunpack.c.l.s4 1966171168
    %v290 = vunpack.c.0.s8 %v289
    %v291 = vlaneseq
    %v292 = vshrl.u32 %v291, 7
    %v293 = vsub.s32 %v290, %v292
    %v294 = vrot.slane %v286, %v293
    %v295 = vcombine.high %v294, %v294
    %v297 = vunpack.c.l.s4 1966171168
    %v298 = vunpack.c.0.s8 %v297
    %v299 = vlaneseq
    %v300 = vshrl.u32 %v299, 7
    %v301 = vsub.s32 %v298, %v300
    %v302 = vrot.slane %v294, %v301
    %v304 = vunpack.c.l.s4 1966171168
    %v305 = vunpack.c.0.s8 %v304
    %v306 = vlaneseq
    %v307 = vshrl.u32 %v306, 7
    %v308 = vsub.s32 %v305, %v307
    %v309 = vrot.slane %v295, %v308
    %v311 = vpack.i.b16 %v302, %v302
    %v313 = vlaneseq
    %v314 = vshrl.u32 %v313, 7
    %v315 = vsub.s32 0, %v314
    %v316 = vrot.slane %v311, %v315
    %v318 = vpack.i.b16 %v309, %v309
    %v320 = vlaneseq
    %v321 = vshrl.u32 %v320, 7
    %v322 = vsub.s32 0, %v321
    %v323 = vrot.slane %v318, %v322
    %v324 = vadd.bf16 %v284, %v316
    %v325 = vadd.bf16 %v285, %v323
    %vm326 = vcmp.gt.bf16.partialorder %v324, 0
    %vm327 = vcmp.gt.bf16.partialorder %v325, 0
    %v328 = vmul.bf16 %v324, 1045249613
    %v329 = vmul.bf16 %v325, 1045249613
    %v330 = vsel %vm326, %v324, %v328
    %v331 = vsel %vm327, %v325, %v329
    %v332 = vld [vmem:[#allocation8] sm:$0xff]
    %v333 = vld [vmem:[#allocation8 + $0x8] sm:$0xff]
    %v334 = vld [vmem:[#allocation8 + $0x10] sm:$0xff]
    %v335 = vld [vmem:[#allocation8 + $0x18] sm:$0xff]
    %v336 = vld [vmem:[#allocation8 + $0x20] sm:$0xff]
    %v337 = vld [vmem:[#allocation8 + $0x28] sm:$0xff]
    %v338 = vld [vmem:[#allocation8 + $0x30] sm:$0xff]
    %v339 = vld [vmem:[#allocation8 + $0x38] sm:$0xff]
    %v340 = vld [vmem:[#allocation8 + $0x40] sm:$0xff]
    %v341 = vld [vmem:[#allocation8 + $0x48] sm:$0xff]
    %v342 = vld [vmem:[#allocation8 + $0x50] sm:$0xff]
    %v343 = vld [vmem:[#allocation8 + $0x58] sm:$0xff]
    %v344 = vld [vmem:[#allocation8 + $0x60] sm:$0xff]
    %v345 = vld [vmem:[#allocation8 + $0x68] sm:$0xff]
    %v346 = vld [vmem:[#allocation8 + $0x70] sm:$0xff]
    %v347 = vld [vmem:[#allocation8 + $0x78] sm:$0xff]
    %v348 = vld [vmem:[#allocation8 + $0x80] sm:$0xff]
    %v349 = vld [vmem:[#allocation8 + $0x88] sm:$0xff]
    %v350 = vld [vmem:[#allocation8 + $0x90] sm:$0xff]
    %v351 = vld [vmem:[#allocation8 + $0x98] sm:$0xff]
    %v352 = vld [vmem:[#allocation8 + $0xa0] sm:$0xff]
    %v353 = vld [vmem:[#allocation8 + $0xa8] sm:$0xff]
    %v354 = vld [vmem:[#allocation8 + $0xb0] sm:$0xff]
    %v355 = vld [vmem:[#allocation8 + $0xb8] sm:$0xff]
    %v356 = vld [vmem:[#allocation8 + $0xc0] sm:$0xff]
    %v357 = vld [vmem:[#allocation8 + $0xc8] sm:$0xff]
    %v358 = vld [vmem:[#allocation8 + $0xd0] sm:$0xff]
    %v359 = vld [vmem:[#allocation8 + $0xd8] sm:$0xff]
    %v360 = vld [vmem:[#allocation8 + $0xe0] sm:$0xff]
    %v361 = vld [vmem:[#allocation8 + $0xe8] sm:$0xff]
    %v362 = vld [vmem:[#allocation8 + $0xf0] sm:$0xff]
    %v363 = vld [vmem:[#allocation8 + $0xf8] sm:$0xff]
    %v364 = vld [vmem:[#allocation8 + $0x100] sm:$0xff]
    %v365 = vld [vmem:[#allocation8 + $0x108] sm:$0xff]
    %v366 = vld [vmem:[#allocation8 + $0x110] sm:$0xff]
    %v367 = vld [vmem:[#allocation8 + $0x118] sm:$0xff]
    %v368 = vld [vmem:[#allocation8 + $0x120] sm:$0xff]
    %v369 = vld [vmem:[#allocation8 + $0x128] sm:$0xff]
    %v370 = vld [vmem:[#allocation8 + $0x130] sm:$0xff]
    %v371 = vld [vmem:[#allocation8 + $0x138] sm:$0xff]
    %v372 = vld [vmem:[#allocation8 + $0x140] sm:$0xff]
    %v373 = vld [vmem:[#allocation8 + $0x148] sm:$0xff]
    %v374 = vld [vmem:[#allocation8 + $0x150] sm:$0xff]
    %v375 = vld [vmem:[#allocation8 + $0x158] sm:$0xff]
    %v376 = vld [vmem:[#allocation8 + $0x160] sm:$0xff]
    %v377 = vld [vmem:[#allocation8 + $0x168] sm:$0xff]
    %v378 = vld [vmem:[#allocation8 + $0x170] sm:$0xff]
    %v379 = vld [vmem:[#allocation8 + $0x178] sm:$0xff]
    %v380 = vld [vmem:[#allocation8 + $0x180] sm:$0xff]
    %v381 = vld [vmem:[#allocation8 + $0x188] sm:$0xff]
    %v382 = vld [vmem:[#allocation8 + $0x190] sm:$0xff]
    %v383 = vld [vmem:[#allocation8 + $0x198] sm:$0xff]
    %v384 = vld [vmem:[#allocation8 + $0x1a0] sm:$0xff]
    %v385 = vld [vmem:[#allocation8 + $0x1a8] sm:$0xff]
    %v386 = vld [vmem:[#allocation8 + $0x1b0] sm:$0xff]
    %v387 = vld [vmem:[#allocation8 + $0x1b8] sm:$0xff]
    %v388 = vld [vmem:[#allocation8 + $0x1c0] sm:$0xff]
    %v389 = vld [vmem:[#allocation8 + $0x1c8] sm:$0xff]
    %v390 = vld [vmem:[#allocation8 + $0x1d0] sm:$0xff]
    %v391 = vld [vmem:[#allocation8 + $0x1d8] sm:$0xff]
    %v392 = vld [vmem:[#allocation8 + $0x1e0] sm:$0xff]
    %v393 = vld [vmem:[#allocation8 + $0x1e8] sm:$0xff]
    %v394 = vld [vmem:[#allocation8 + $0x1f0] sm:$0xff]
    %v395 = vld [vmem:[#allocation8 + $0x1f8] sm:$0xff]
    %v460 = vunpack.c.l.b16 %v332
    %v461 = vunpack.c.h.b16 %v332
    %v462 = vunpack.c.l.b16 %v333
    %v463 = vunpack.c.h.b16 %v333
    %v464 = vunpack.c.l.b16 %v334
    %v465 = vunpack.c.h.b16 %v334
    %v466 = vunpack.c.l.b16 %v335
    %v467 = vunpack.c.h.b16 %v335
    %v468 = vunpack.c.l.b16 %v336
    %v469 = vunpack.c.h.b16 %v336
    %v470 = vunpack.c.l.b16 %v337
    %v471 = vunpack.c.h.b16 %v337
    %v472 = vunpack.c.l.b16 %v338
    %v473 = vunpack.c.h.b16 %v338
    %v474 = vunpack.c.l.b16 %v339
    %v475 = vunpack.c.h.b16 %v339
    %v476 = vunpack.c.l.b16 %v340
    %v477 = vunpack.c.h.b16 %v340
    %v478 = vunpack.c.l.b16 %v341
    %v479 = vunpack.c.h.b16 %v341
    %v480 = vunpack.c.l.b16 %v342
    %v481 = vunpack.c.h.b16 %v342
    %v482 = vunpack.c.l.b16 %v343
    %v483 = vunpack.c.h.b16 %v343
    %v484 = vunpack.c.l.b16 %v344
    %v485 = vunpack.c.h.b16 %v344
    %v486 = vunpack.c.l.b16 %v345
    %v487 = vunpack.c.h.b16 %v345
    %v488 = vunpack.c.l.b16 %v346
    %v489 = vunpack.c.h.b16 %v346
    %v490 = vunpack.c.l.b16 %v347
    %v491 = vunpack.c.h.b16 %v347
    %v492 = vunpack.c.l.b16 %v348
    %v493 = vunpack.c.h.b16 %v348
    %v494 = vunpack.c.l.b16 %v349
    %v495 = vunpack.c.h.b16 %v349
    %v496 = vunpack.c.l.b16 %v350
    %v497 = vunpack.c.h.b16 %v350
    %v498 = vunpack.c.l.b16 %v351
    %v499 = vunpack.c.h.b16 %v351
    %v500 = vunpack.c.l.b16 %v352
    %v501 = vunpack.c.h.b16 %v352
    %v502 = vunpack.c.l.b16 %v353
    %v503 = vunpack.c.h.b16 %v353
    %v504 = vunpack.c.l.b16 %v354
    %v505 = vunpack.c.h.b16 %v354
    %v506 = vunpack.c.l.b16 %v355
    %v507 = vunpack.c.h.b16 %v355
    %v508 = vunpack.c.l.b16 %v356
    %v509 = vunpack.c.h.b16 %v356
    %v510 = vunpack.c.l.b16 %v357
    %v511 = vunpack.c.h.b16 %v357
    %v512 = vunpack.c.l.b16 %v358
    %v513 = vunpack.c.h.b16 %v358
    %v514 = vunpack.c.l.b16 %v359
    %v515 = vunpack.c.h.b16 %v359
    %v516 = vunpack.c.l.b16 %v360
    %v517 = vunpack.c.h.b16 %v360
    %v518 = vunpack.c.l.b16 %v361
    %v519 = vunpack.c.h.b16 %v361
    %v520 = vunpack.c.l.b16 %v362
    %v521 = vunpack.c.h.b16 %v362
    %v522 = vunpack.c.l.b16 %v363
    %v523 = vunpack.c.h.b16 %v363
    %v524 = vunpack.c.l.b16 %v364
    %v525 = vunpack.c.h.b16 %v364
    %v526 = vunpack.c.l.b16 %v365
    %v527 = vunpack.c.h.b16 %v365
    %v528 = vunpack.c.l.b16 %v366
    %v529 = vunpack.c.h.b16 %v366
    %v530 = vunpack.c.l.b16 %v367
    %v531 = vunpack.c.h.b16 %v367
    %v532 = vunpack.c.l.b16 %v368
    %v533 = vunpack.c.h.b16 %v368
    %v534 = vunpack.c.l.b16 %v369
    %v535 = vunpack.c.h.b16 %v369
    %v536 = vunpack.c.l.b16 %v370
    %v537 = vunpack.c.h.b16 %v370
    %v538 = vunpack.c.l.b16 %v371
    %v539 = vunpack.c.h.b16 %v371
    %v540 = vunpack.c.l.b16 %v372
    %v541 = vunpack.c.h.b16 %v372
    %v542 = vunpack.c.l.b16 %v373
    %v543 = vunpack.c.h.b16 %v373
    %v544 = vunpack.c.l.b16 %v374
    %v545 = vunpack.c.h.b16 %v374
    %v546 = vunpack.c.l.b16 %v375
    %v547 = vunpack.c.h.b16 %v375
    %v548 = vunpack.c.l.b16 %v376
    %v549 = vunpack.c.h.b16 %v376
    %v550 = vunpack.c.l.b16 %v377
    %v551 = vunpack.c.h.b16 %v377
    %v552 = vunpack.c.l.b16 %v378
    %v553 = vunpack.c.h.b16 %v378
    %v554 = vunpack.c.l.b16 %v379
    %v555 = vunpack.c.h.b16 %v379
    %v556 = vunpack.c.l.b16 %v380
    %v557 = vunpack.c.h.b16 %v380
    %v558 = vunpack.c.l.b16 %v381
    %v559 = vunpack.c.h.b16 %v381
    %v560 = vunpack.c.l.b16 %v382
    %v561 = vunpack.c.h.b16 %v382
    %v562 = vunpack.c.l.b16 %v383
    %v563 = vunpack.c.h.b16 %v383
    %v564 = vunpack.c.l.b16 %v384
    %v565 = vunpack.c.h.b16 %v384
    %v566 = vunpack.c.l.b16 %v385
    %v567 = vunpack.c.h.b16 %v385
    %v568 = vunpack.c.l.b16 %v386
    %v569 = vunpack.c.h.b16 %v386
    %v570 = vunpack.c.l.b16 %v387
    %v571 = vunpack.c.h.b16 %v387
    %v572 = vunpack.c.l.b16 %v388
    %v573 = vunpack.c.h.b16 %v388
    %v574 = vunpack.c.l.b16 %v389
    %v575 = vunpack.c.h.b16 %v389
    %v576 = vunpack.c.l.b16 %v390
    %v577 = vunpack.c.h.b16 %v390
    %v578 = vunpack.c.l.b16 %v391
    %v579 = vunpack.c.h.b16 %v391
    %v580 = vunpack.c.l.b16 %v392
    %v581 = vunpack.c.h.b16 %v392
    %v582 = vunpack.c.l.b16 %v393
    %v583 = vunpack.c.h.b16 %v393
    %v584 = vunpack.c.l.b16 %v394
    %v585 = vunpack.c.h.b16 %v394
    %v586 = vunpack.c.l.b16 %v395
    %v587 = vunpack.c.h.b16 %v395
    %v588 = vpack.c.b16 %v464, %v460
    %v589 = vpack.c.b16 %v465, %v461
    %v590 = vpack.c.b16 %v466, %v462
    %v591 = vpack.c.b16 %v467, %v463
    %v592 = vpack.c.b16 %v472, %v468
    %v593 = vpack.c.b16 %v473, %v469
    %v594 = vpack.c.b16 %v474, %v470
    %v595 = vpack.c.b16 %v475, %v471
    %v596 = vpack.c.b16 %v480, %v476
    %v597 = vpack.c.b16 %v481, %v477
    %v598 = vpack.c.b16 %v482, %v478
    %v599 = vpack.c.b16 %v483, %v479
    %v600 = vpack.c.b16 %v488, %v484
    %v601 = vpack.c.b16 %v489, %v485
    %v602 = vpack.c.b16 %v490, %v486
    %v603 = vpack.c.b16 %v491, %v487
    %v604 = vpack.c.b16 %v496, %v492
    %v605 = vpack.c.b16 %v497, %v493
    %v606 = vpack.c.b16 %v498, %v494
    %v607 = vpack.c.b16 %v499, %v495
    %v608 = vpack.c.b16 %v504, %v500
    %v609 = vpack.c.b16 %v505, %v501
    %v610 = vpack.c.b16 %v506, %v502
    %v611 = vpack.c.b16 %v507, %v503
    %v612 = vpack.c.b16 %v512, %v508
    %v613 = vpack.c.b16 %v513, %v509
    %v614 = vpack.c.b16 %v514, %v510
    %v615 = vpack.c.b16 %v515, %v511
    %v616 = vpack.c.b16 %v520, %v516
    %v617 = vpack.c.b16 %v521, %v517
    %v618 = vpack.c.b16 %v522, %v518
    %v619 = vpack.c.b16 %v523, %v519
    %v620 = vpack.c.b16 %v528, %v524
    %v621 = vpack.c.b16 %v529, %v525
    %v622 = vpack.c.b16 %v530, %v526
    %v623 = vpack.c.b16 %v531, %v527
    %v624 = vpack.c.b16 %v536, %v532
    %v625 = vpack.c.b16 %v537, %v533
    %v626 = vpack.c.b16 %v538, %v534
    %v627 = vpack.c.b16 %v539, %v535
    %v628 = vpack.c.b16 %v544, %v540
    %v629 = vpack.c.b16 %v545, %v541
    %v630 = vpack.c.b16 %v546, %v542
    %v631 = vpack.c.b16 %v547, %v543
    %v632 = vpack.c.b16 %v552, %v548
    %v633 = vpack.c.b16 %v553, %v549
    %v634 = vpack.c.b16 %v554, %v550
    %v635 = vpack.c.b16 %v555, %v551
    %v636 = vpack.c.b16 %v560, %v556
    %v637 = vpack.c.b16 %v561, %v557
    %v638 = vpack.c.b16 %v562, %v558
    %v639 = vpack.c.b16 %v563, %v559
    %v640 = vpack.c.b16 %v568, %v564
    %v641 = vpack.c.b16 %v569, %v565
    %v642 = vpack.c.b16 %v570, %v566
    %v643 = vpack.c.b16 %v571, %v567
    %v644 = vpack.c.b16 %v576, %v572
    %v645 = vpack.c.b16 %v577, %v573
    %v646 = vpack.c.b16 %v578, %v574
    %v647 = vpack.c.b16 %v579, %v575
    %v648 = vpack.c.b16 %v584, %v580
    %v649 = vpack.c.b16 %v585, %v581
    %v650 = vpack.c.b16 %v586, %v582
    %v651 = vpack.c.b16 %v587, %v583
    %716 = vmatprep.subr.bf16.mxu0 %v617
    %717 = vmatpush1.bf16.msra.mxu0 %v616
    %718 = vmatprep.subr.bf16.mxu0 %v613
    %719 = vmatpush1.bf16.msra.mxu0 %v612
    %720 = vmatprep.subr.bf16.mxu0 %v609
    %721 = vmatpush1.bf16.msra.mxu0 %v608
    %722 = vmatprep.subr.bf16.mxu0 %v605
    %723 = vmatpush1.bf16.msra.mxu0 %v604
    %724 = vmatprep.subr.bf16.mxu0 %v601
    %725 = vmatpush1.bf16.msra.mxu0 %v600
    %726 = vmatprep.subr.bf16.mxu0 %v597
    %727 = vmatpush1.bf16.msra.mxu0 %v596
    %728 = vmatprep.subr.bf16.mxu0 %v593
    %729 = vmatpush1.bf16.msra.mxu0 %v592
    %730 = vmatprep.subr.bf16.mxu0 %v589
    %731 = vmatpush1.bf16.msra.mxu0 %v588
    %732 = vmatprep.subr.bf16.mxu0 %v649
    %733 = vmatpush2.bf16.msra.mxu0 %v648
    %734 = vmatprep.subr.bf16.mxu0 %v645
    %735 = vmatpush2.bf16.msra.mxu0 %v644
    %736 = vmatprep.subr.bf16.mxu0 %v641
    %737 = vmatpush2.bf16.msra.mxu0 %v640
    %738 = vmatprep.subr.bf16.mxu0 %v637
    %739 = vmatpush2.bf16.msra.mxu0 %v636
    %740 = vmatprep.subr.bf16.mxu0 %v633
    %741 = vmatpush2.bf16.msra.mxu0 %v632
    %742 = vmatprep.subr.bf16.mxu0 %v629
    %743 = vmatpush2.bf16.msra.mxu0 %v628
    %744 = vmatprep.subr.bf16.mxu0 %v625
    %745 = vmatpush2.bf16.msra.mxu0 %v624
    %746 = vmatprep.subr.bf16.mxu0 %v621
    %747 = vmatpush2.bf16.msra.mxu0 %v620
    %748 = vmatprep.mubr.bf16.mxu0 %v331
    %749 = vmatmul.mubr.bf16.gmra.mxu0 %v330
    %v750 = vpop.f32.mrf.mxu0
    %v751 = vadd.f32 0.0, %v750
    %v752 = vpop.f32.mrf.mxu0
    %v753 = vadd.f32 0.0, %v752
    %v754 = vpop.f32.mrf.mxu0
    %v755 = vadd.f32 0.0, %v754
    %v756 = vpop.f32.mrf.mxu0
    %v757 = vadd.f32 0.0, %v756
    %758 = vdwg.mxu0
    %759 = vmatprep.subr.bf16.mxu0 %v619
    %760 = vmatpush1.bf16.msra.mxu0 %v618
    %761 = vmatprep.subr.bf16.mxu0 %v615
    %762 = vmatpush1.bf16.msra.mxu0 %v614
    %763 = vmatprep.subr.bf16.mxu0 %v611
    %764 = vmatpush1.bf16.msra.mxu0 %v610
    %765 = vmatprep.subr.bf16.mxu0 %v607
    %766 = vmatpush1.bf16.msra.mxu0 %v606
    %767 = vmatprep.subr.bf16.mxu0 %v603
    %768 = vmatpush1.bf16.msra.mxu0 %v602
    %769 = vmatprep.subr.bf16.mxu0 %v599
    %770 = vmatpush1.bf16.msra.mxu0 %v598
    %771 = vmatprep.subr.bf16.mxu0 %v595
    %772 = vmatpush1.bf16.msra.mxu0 %v594
    %773 = vmatprep.subr.bf16.mxu0 %v591
    %774 = vmatpush1.bf16.msra.mxu0 %v590
    %775 = vmatprep.subr.bf16.mxu0 %v651
    %776 = vmatpush2.bf16.msra.mxu0 %v650
    %777 = vmatprep.subr.bf16.mxu0 %v647
    %778 = vmatpush2.bf16.msra.mxu0 %v646
    %779 = vmatprep.subr.bf16.mxu0 %v643
    %780 = vmatpush2.bf16.msra.mxu0 %v642
    %781 = vmatprep.subr.bf16.mxu0 %v639
    %782 = vmatpush2.bf16.msra.mxu0 %v638
    %783 = vmatprep.subr.bf16.mxu0 %v635
    %784 = vmatpush2.bf16.msra.mxu0 %v634
    %785 = vmatprep.subr.bf16.mxu0 %v631
    %786 = vmatpush2.bf16.msra.mxu0 %v630
    %787 = vmatprep.subr.bf16.mxu0 %v627
    %788 = vmatpush2.bf16.msra.mxu0 %v626
    %789 = vmatprep.subr.bf16.mxu0 %v623
    %790 = vmatpush2.bf16.msra.mxu0 %v622
    %791 = vmatprep.mubr.bf16.mxu0 %v331
    %792 = vmatmul.mubr.bf16.gmra.mxu0 %v330
    %v793 = vpop.f32.mrf.mxu0
    %v794 = vadd.f32 0.0, %v793
    %v795 = vpop.f32.mrf.mxu0
    %v796 = vadd.f32 0.0, %v795
    %v797 = vpop.f32.mrf.mxu0
    %v798 = vadd.f32 0.0, %v797
    %v799 = vpop.f32.mrf.mxu0
    %v800 = vadd.f32 0.0, %v799
    %801 = vdwg.mxu0
    %v802 = vpack.c.bf16 %v755, %v751
    %v803 = vpack.c.bf16 %v757, %v753
    %v804 = vpack.c.bf16 %v798, %v794
    %v805 = vpack.c.bf16 %v800, %v796
    %v806 = vld [vmem:[#allocation10] sm:$0xf]
    %v809 = vunpack.c.l.s4 1966171168
    %v810 = vunpack.c.0.s8 %v809
    %v811 = vlaneseq
    %v812 = vshrl.u32 %v811, 7
    %v813 = vsub.s32 %v810, %v812
    %v814 = vrot.slane %v806, %v813
    %v815 = vcombine.high %v814, %v814
    %v817 = vunpack.c.l.s4 1966171168
    %v818 = vunpack.c.0.s8 %v817
    %v819 = vlaneseq
    %v820 = vshrl.u32 %v819, 7
    %v821 = vsub.s32 %v818, %v820
    %v822 = vrot.slane %v814, %v821
    %v824 = vunpack.c.l.s4 1966171168
    %v825 = vunpack.c.0.s8 %v824
    %v826 = vlaneseq
    %v827 = vshrl.u32 %v826, 7
    %v828 = vsub.s32 %v825, %v827
    %v829 = vrot.slane %v815, %v828
    %v830 = vcombine.high %v822, %v822
    %v831 = vcombine.high %v829, %v829
    %v833 = vpack.i.b16 %v822, %v822
    %v835 = vlaneseq
    %v836 = vshrl.u32 %v835, 7
    %v837 = vsub.s32 0, %v836
    %v838 = vrot.slane %v833, %v837
    %v840 = vpack.i.b16 %v829, %v829
    %v842 = vlaneseq
    %v843 = vshrl.u32 %v842, 7
    %v844 = vsub.s32 0, %v843
    %v845 = vrot.slane %v840, %v844
    %v847 = vpack.i.b16 %v830, %v830
    %v849 = vlaneseq
    %v850 = vshrl.u32 %v849, 7
    %v851 = vsub.s32 0, %v850
    %v852 = vrot.slane %v847, %v851
    %v854 = vpack.i.b16 %v831, %v831
    %v856 = vlaneseq
    %v857 = vshrl.u32 %v856, 7
    %v858 = vsub.s32 0, %v857
    %v859 = vrot.slane %v854, %v858
    %v860 = vadd.bf16 %v802, %v838
    %v861 = vadd.bf16 %v803, %v845
    %v862 = vadd.bf16 %v804, %v852
    %v863 = vadd.bf16 %v805, %v859
    %vm864 = vcmp.gt.bf16.partialorder %v860, 0
    %vm865 = vcmp.gt.bf16.partialorder %v861, 0
    %vm866 = vcmp.gt.bf16.partialorder %v862, 0
    %vm867 = vcmp.gt.bf16.partialorder %v863, 0
    %v868 = vmul.bf16 %v860, 1045249613
    %v869 = vmul.bf16 %v861, 1045249613
    %v870 = vmul.bf16 %v862, 1045249613
    %v871 = vmul.bf16 %v863, 1045249613
    %v872 = vsel %vm864, %v860, %v868
    %v873 = vsel %vm865, %v861, %v869
    %v874 = vsel %vm866, %v862, %v870
    %v875 = vsel %vm867, %v863, %v871
    %v876 = vld [vmem:[#allocation11] sm:$0xff]
    %v877 = vld [vmem:[#allocation11 + $0x8] sm:$0xff]
    %v878 = vld [vmem:[#allocation11 + $0x10] sm:$0xff]
    %v879 = vld [vmem:[#allocation11 + $0x18] sm:$0xff]
    %v880 = vld [vmem:[#allocation11 + $0x20] sm:$0xff]
    %v881 = vld [vmem:[#allocation11 + $0x28] sm:$0xff]
    %v882 = vld [vmem:[#allocation11 + $0x30] sm:$0xff]
    %v883 = vld [vmem:[#allocation11 + $0x38] sm:$0xff]
    %v884 = vld [vmem:[#allocation11 + $0x40] sm:$0xff]
    %v885 = vld [vmem:[#allocation11 + $0x48] sm:$0xff]
    %v886 = vld [vmem:[#allocation11 + $0x50] sm:$0xff]
    %v887 = vld [vmem:[#allocation11 + $0x58] sm:$0xff]
    %v888 = vld [vmem:[#allocation11 + $0x60] sm:$0xff]
    %v889 = vld [vmem:[#allocation11 + $0x68] sm:$0xff]
    %v890 = vld [vmem:[#allocation11 + $0x70] sm:$0xff]
    %v891 = vld [vmem:[#allocation11 + $0x78] sm:$0xff]
    %v892 = vld [vmem:[#allocation11 + $0x80] sm:$0xff]
    %v893 = vld [vmem:[#allocation11 + $0x88] sm:$0xff]
    %v894 = vld [vmem:[#allocation11 + $0x90] sm:$0xff]
    %v895 = vld [vmem:[#allocation11 + $0x98] sm:$0xff]
    %v896 = vld [vmem:[#allocation11 + $0xa0] sm:$0xff]
    %v897 = vld [vmem:[#allocation11 + $0xa8] sm:$0xff]
    %v898 = vld [vmem:[#allocation11 + $0xb0] sm:$0xff]
    %v899 = vld [vmem:[#allocation11 + $0xb8] sm:$0xff]
    %v900 = vld [vmem:[#allocation11 + $0xc0] sm:$0xff]
    %v901 = vld [vmem:[#allocation11 + $0xc8] sm:$0xff]
    %v902 = vld [vmem:[#allocation11 + $0xd0] sm:$0xff]
    %v903 = vld [vmem:[#allocation11 + $0xd8] sm:$0xff]
    %v904 = vld [vmem:[#allocation11 + $0xe0] sm:$0xff]
    %v905 = vld [vmem:[#allocation11 + $0xe8] sm:$0xff]
    %v906 = vld [vmem:[#allocation11 + $0xf0] sm:$0xff]
    %v907 = vld [vmem:[#allocation11 + $0xf8] sm:$0xff]
    %v908 = vld [vmem:[#allocation11 + $0x100] sm:$0xff]
    %v909 = vld [vmem:[#allocation11 + $0x108] sm:$0xff]
    %v910 = vld [vmem:[#allocation11 + $0x110] sm:$0xff]
    %v911 = vld [vmem:[#allocation11 + $0x118] sm:$0xff]
    %v912 = vld [vmem:[#allocation11 + $0x120] sm:$0xff]
    %v913 = vld [vmem:[#allocation11 + $0x128] sm:$0xff]
    %v914 = vld [vmem:[#allocation11 + $0x130] sm:$0xff]
    %v915 = vld [vmem:[#allocation11 + $0x138] sm:$0xff]
    %v916 = vld [vmem:[#allocation11 + $0x140] sm:$0xff]
    %v917 = vld [vmem:[#allocation11 + $0x148] sm:$0xff]
    %v918 = vld [vmem:[#allocation11 + $0x150] sm:$0xff]
    %v919 = vld [vmem:[#allocation11 + $0x158] sm:$0xff]
    %v920 = vld [vmem:[#allocation11 + $0x160] sm:$0xff]
    %v921 = vld [vmem:[#allocation11 + $0x168] sm:$0xff]
    %v922 = vld [vmem:[#allocation11 + $0x170] sm:$0xff]
    %v923 = vld [vmem:[#allocation11 + $0x178] sm:$0xff]
    %v924 = vld [vmem:[#allocation11 + $0x180] sm:$0xff]
    %v925 = vld [vmem:[#allocation11 + $0x188] sm:$0xff]
    %v926 = vld [vmem:[#allocation11 + $0x190] sm:$0xff]
    %v927 = vld [vmem:[#allocation11 + $0x198] sm:$0xff]
    %v928 = vld [vmem:[#allocation11 + $0x1a0] sm:$0xff]
    %v929 = vld [vmem:[#allocation11 + $0x1a8] sm:$0xff]
    %v930 = vld [vmem:[#allocation11 + $0x1b0] sm:$0xff]
    %v931 = vld [vmem:[#allocation11 + $0x1b8] sm:$0xff]
    %v932 = vld [vmem:[#allocation11 + $0x1c0] sm:$0xff]
    %v933 = vld [vmem:[#allocation11 + $0x1c8] sm:$0xff]
    %v934 = vld [vmem:[#allocation11 + $0x1d0] sm:$0xff]
    %v935 = vld [vmem:[#allocation11 + $0x1d8] sm:$0xff]
    %v936 = vld [vmem:[#allocation11 + $0x1e0] sm:$0xff]
    %v937 = vld [vmem:[#allocation11 + $0x1e8] sm:$0xff]
    %v938 = vld [vmem:[#allocation11 + $0x1f0] sm:$0xff]
    %v939 = vld [vmem:[#allocation11 + $0x1f8] sm:$0xff]
    %v940 = vld [vmem:[#allocation11 + $0x200] sm:$0xff]
    %v941 = vld [vmem:[#allocation11 + $0x208] sm:$0xff]
    %v942 = vld [vmem:[#allocation11 + $0x210] sm:$0xff]
    %v943 = vld [vmem:[#allocation11 + $0x218] sm:$0xff]
    %v944 = vld [vmem:[#allocation11 + $0x220] sm:$0xff]
    %v945 = vld [vmem:[#allocation11 + $0x228] sm:$0xff]
    %v946 = vld [vmem:[#allocation11 + $0x230] sm:$0xff]
    %v947 = vld [vmem:[#allocation11 + $0x238] sm:$0xff]
    %v948 = vld [vmem:[#allocation11 + $0x240] sm:$0xff]
    %v949 = vld [vmem:[#allocation11 + $0x248] sm:$0xff]
    %v950 = vld [vmem:[#allocation11 + $0x250] sm:$0xff]
    %v951 = vld [vmem:[#allocation11 + $0x258] sm:$0xff]
    %v952 = vld [vmem:[#allocation11 + $0x260] sm:$0xff]
    %v953 = vld [vmem:[#allocation11 + $0x268] sm:$0xff]
    %v954 = vld [vmem:[#allocation11 + $0x270] sm:$0xff]
    %v955 = vld [vmem:[#allocation11 + $0x278] sm:$0xff]
    %v956 = vld [vmem:[#allocation11 + $0x280] sm:$0xff]
    %v957 = vld [vmem:[#allocation11 + $0x288] sm:$0xff]
    %v958 = vld [vmem:[#allocation11 + $0x290] sm:$0xff]
    %v959 = vld [vmem:[#allocation11 + $0x298] sm:$0xff]
    %v960 = vld [vmem:[#allocation11 + $0x2a0] sm:$0xff]
    %v961 = vld [vmem:[#allocation11 + $0x2a8] sm:$0xff]
    %v962 = vld [vmem:[#allocation11 + $0x2b0] sm:$0xff]
    %v963 = vld [vmem:[#allocation11 + $0x2b8] sm:$0xff]
    %v964 = vld [vmem:[#allocation11 + $0x2c0] sm:$0xff]
    %v965 = vld [vmem:[#allocation11 + $0x2c8] sm:$0xff]
    %v966 = vld [vmem:[#allocation11 + $0x2d0] sm:$0xff]
    %v967 = vld [vmem:[#allocation11 + $0x2d8] sm:$0xff]
    %v968 = vld [vmem:[#allocation11 + $0x2e0] sm:$0xff]
    %v969 = vld [vmem:[#allocation11 + $0x2e8] sm:$0xff]
    %v970 = vld [vmem:[#allocation11 + $0x2f0] sm:$0xff]
    %v971 = vld [vmem:[#allocation11 + $0x2f8] sm:$0xff]
    %v972 = vld [vmem:[#allocation11 + $0x300] sm:$0xff]
    %v973 = vld [vmem:[#allocation11 + $0x308] sm:$0xff]
    %v974 = vld [vmem:[#allocation11 + $0x310] sm:$0xff]
    %v975 = vld [vmem:[#allocation11 + $0x318] sm:$0xff]
    %v976 = vld [vmem:[#allocation11 + $0x320] sm:$0xff]
    %v977 = vld [vmem:[#allocation11 + $0x328] sm:$0xff]
    %v978 = vld [vmem:[#allocation11 + $0x330] sm:$0xff]
    %v979 = vld [vmem:[#allocation11 + $0x338] sm:$0xff]
    %v980 = vld [vmem:[#allocation11 + $0x340] sm:$0xff]
    %v981 = vld [vmem:[#allocation11 + $0x348] sm:$0xff]
    %v982 = vld [vmem:[#allocation11 + $0x350] sm:$0xff]
    %v983 = vld [vmem:[#allocation11 + $0x358] sm:$0xff]
    %v984 = vld [vmem:[#allocation11 + $0x360] sm:$0xff]
    %v985 = vld [vmem:[#allocation11 + $0x368] sm:$0xff]
    %v986 = vld [vmem:[#allocation11 + $0x370] sm:$0xff]
    %v987 = vld [vmem:[#allocation11 + $0x378] sm:$0xff]
    %v988 = vld [vmem:[#allocation11 + $0x380] sm:$0xff]
    %v989 = vld [vmem:[#allocation11 + $0x388] sm:$0xff]
    %v990 = vld [vmem:[#allocation11 + $0x390] sm:$0xff]
    %v991 = vld [vmem:[#allocation11 + $0x398] sm:$0xff]
    %v992 = vld [vmem:[#allocation11 + $0x3a0] sm:$0xff]
    %v993 = vld [vmem:[#allocation11 + $0x3a8] sm:$0xff]
    %v994 = vld [vmem:[#allocation11 + $0x3b0] sm:$0xff]
    %v995 = vld [vmem:[#allocation11 + $0x3b8] sm:$0xff]
    %v996 = vld [vmem:[#allocation11 + $0x3c0] sm:$0xff]
    %v997 = vld [vmem:[#allocation11 + $0x3c8] sm:$0xff]
    %v998 = vld [vmem:[#allocation11 + $0x3d0] sm:$0xff]
    %v999 = vld [vmem:[#allocation11 + $0x3d8] sm:$0xff]
    %v1000 = vld [vmem:[#allocation11 + $0x3e0] sm:$0xff]
    %v1001 = vld [vmem:[#allocation11 + $0x3e8] sm:$0xff]
    %v1002 = vld [vmem:[#allocation11 + $0x3f0] sm:$0xff]
    %v1003 = vld [vmem:[#allocation11 + $0x3f8] sm:$0xff]
    %v1004 = vld [vmem:[#allocation11 + $0x400] sm:$0xff]
    %v1005 = vld [vmem:[#allocation11 + $0x408] sm:$0xff]
    %v1006 = vld [vmem:[#allocation11 + $0x410] sm:$0xff]
    %v1007 = vld [vmem:[#allocation11 + $0x418] sm:$0xff]
    %v1008 = vld [vmem:[#allocation11 + $0x420] sm:$0xff]
    %v1009 = vld [vmem:[#allocation11 + $0x428] sm:$0xff]
    %v1010 = vld [vmem:[#allocation11 + $0x430] sm:$0xff]
    %v1011 = vld [vmem:[#allocation11 + $0x438] sm:$0xff]
    %v1012 = vld [vmem:[#allocation11 + $0x440] sm:$0xff]
    %v1013 = vld [vmem:[#allocation11 + $0x448] sm:$0xff]
    %v1014 = vld [vmem:[#allocation11 + $0x450] sm:$0xff]
    %v1015 = vld [vmem:[#allocation11 + $0x458] sm:$0xff]
    %v1016 = vld [vmem:[#allocation11 + $0x460] sm:$0xff]
    %v1017 = vld [vmem:[#allocation11 + $0x468] sm:$0xff]
    %v1018 = vld [vmem:[#allocation11 + $0x470] sm:$0xff]
    %v1019 = vld [vmem:[#allocation11 + $0x478] sm:$0xff]
    %v1020 = vld [vmem:[#allocation11 + $0x480] sm:$0xff]
    %v1021 = vld [vmem:[#allocation11 + $0x488] sm:$0xff]
    %v1022 = vld [vmem:[#allocation11 + $0x490] sm:$0xff]
    %v1023 = vld [vmem:[#allocation11 + $0x498] sm:$0xff]
    %v1024 = vld [vmem:[#allocation11 + $0x4a0] sm:$0xff]
    %v1025 = vld [vmem:[#allocation11 + $0x4a8] sm:$0xff]
    %v1026 = vld [vmem:[#allocation11 + $0x4b0] sm:$0xff]
    %v1027 = vld [vmem:[#allocation11 + $0x4b8] sm:$0xff]
    %v1028 = vld [vmem:[#allocation11 + $0x4c0] sm:$0xff]
    %v1029 = vld [vmem:[#allocation11 + $0x4c8] sm:$0xff]
    %v1030 = vld [vmem:[#allocation11 + $0x4d0] sm:$0xff]
    %v1031 = vld [vmem:[#allocation11 + $0x4d8] sm:$0xff]
    %v1032 = vld [vmem:[#allocation11 + $0x4e0] sm:$0xff]
    %v1033 = vld [vmem:[#allocation11 + $0x4e8] sm:$0xff]
    %v1034 = vld [vmem:[#allocation11 + $0x4f0] sm:$0xff]
    %v1035 = vld [vmem:[#allocation11 + $0x4f8] sm:$0xff]
    %v1036 = vld [vmem:[#allocation11 + $0x500] sm:$0xff]
    %v1037 = vld [vmem:[#allocation11 + $0x508] sm:$0xff]
    %v1038 = vld [vmem:[#allocation11 + $0x510] sm:$0xff]
    %v1039 = vld [vmem:[#allocation11 + $0x518] sm:$0xff]
    %v1040 = vld [vmem:[#allocation11 + $0x520] sm:$0xff]
    %v1041 = vld [vmem:[#allocation11 + $0x528] sm:$0xff]
    %v1042 = vld [vmem:[#allocation11 + $0x530] sm:$0xff]
    %v1043 = vld [vmem:[#allocation11 + $0x538] sm:$0xff]
    %v1044 = vld [vmem:[#allocation11 + $0x540] sm:$0xff]
    %v1045 = vld [vmem:[#allocation11 + $0x548] sm:$0xff]
    %v1046 = vld [vmem:[#allocation11 + $0x550] sm:$0xff]
    %v1047 = vld [vmem:[#allocation11 + $0x558] sm:$0xff]
    %v1048 = vld [vmem:[#allocation11 + $0x560] sm:$0xff]
    %v1049 = vld [vmem:[#allocation11 + $0x568] sm:$0xff]
    %v1050 = vld [vmem:[#allocation11 + $0x570] sm:$0xff]
    %v1051 = vld [vmem:[#allocation11 + $0x578] sm:$0xff]
    %v1052 = vld [vmem:[#allocation11 + $0x580] sm:$0xff]
    %v1053 = vld [vmem:[#allocation11 + $0x588] sm:$0xff]
    %v1054 = vld [vmem:[#allocation11 + $0x590] sm:$0xff]
    %v1055 = vld [vmem:[#allocation11 + $0x598] sm:$0xff]
    %v1056 = vld [vmem:[#allocation11 + $0x5a0] sm:$0xff]
    %v1057 = vld [vmem:[#allocation11 + $0x5a8] sm:$0xff]
    %v1058 = vld [vmem:[#allocation11 + $0x5b0] sm:$0xff]
    %v1059 = vld [vmem:[#allocation11 + $0x5b8] sm:$0xff]
    %v1060 = vld [vmem:[#allocation11 + $0x5c0] sm:$0xff]
    %v1061 = vld [vmem:[#allocation11 + $0x5c8] sm:$0xff]
    %v1062 = vld [vmem:[#allocation11 + $0x5d0] sm:$0xff]
    %v1063 = vld [vmem:[#allocation11 + $0x5d8] sm:$0xff]
    %v1064 = vld [vmem:[#allocation11 + $0x5e0] sm:$0xff]
    %v1065 = vld [vmem:[#allocation11 + $0x5e8] sm:$0xff]
    %v1066 = vld [vmem:[#allocation11 + $0x5f0] sm:$0xff]
    %v1067 = vld [vmem:[#allocation11 + $0x5f8] sm:$0xff]
    %v1068 = vld [vmem:[#allocation11 + $0x600] sm:$0xff]
    %v1069 = vld [vmem:[#allocation11 + $0x608] sm:$0xff]
    %v1070 = vld [vmem:[#allocation11 + $0x610] sm:$0xff]
    %v1071 = vld [vmem:[#allocation11 + $0x618] sm:$0xff]
    %v1072 = vld [vmem:[#allocation11 + $0x620] sm:$0xff]
    %v1073 = vld [vmem:[#allocation11 + $0x628] sm:$0xff]
    %v1074 = vld [vmem:[#allocation11 + $0x630] sm:$0xff]
    %v1075 = vld [vmem:[#allocation11 + $0x638] sm:$0xff]
    %v1076 = vld [vmem:[#allocation11 + $0x640] sm:$0xff]
    %v1077 = vld [vmem:[#allocation11 + $0x648] sm:$0xff]
    %v1078 = vld [vmem:[#allocation11 + $0x650] sm:$0xff]
    %v1079 = vld [vmem:[#allocation11 + $0x658] sm:$0xff]
    %v1080 = vld [vmem:[#allocation11 + $0x660] sm:$0xff]
    %v1081 = vld [vmem:[#allocation11 + $0x668] sm:$0xff]
    %v1082 = vld [vmem:[#allocation11 + $0x670] sm:$0xff]
    %v1083 = vld [vmem:[#allocation11 + $0x678] sm:$0xff]
    %v1084 = vld [vmem:[#allocation11 + $0x680] sm:$0xff]
    %v1085 = vld [vmem:[#allocation11 + $0x688] sm:$0xff]
    %v1086 = vld [vmem:[#allocation11 + $0x690] sm:$0xff]
    %v1087 = vld [vmem:[#allocation11 + $0x698] sm:$0xff]
    %v1088 = vld [vmem:[#allocation11 + $0x6a0] sm:$0xff]
    %v1089 = vld [vmem:[#allocation11 + $0x6a8] sm:$0xff]
    %v1090 = vld [vmem:[#allocation11 + $0x6b0] sm:$0xff]
    %v1091 = vld [vmem:[#allocation11 + $0x6b8] sm:$0xff]
    %v1092 = vld [vmem:[#allocation11 + $0x6c0] sm:$0xff]
    %v1093 = vld [vmem:[#allocation11 + $0x6c8] sm:$0xff]
    %v1094 = vld [vmem:[#allocation11 + $0x6d0] sm:$0xff]
    %v1095 = vld [vmem:[#allocation11 + $0x6d8] sm:$0xff]
    %v1096 = vld [vmem:[#allocation11 + $0x6e0] sm:$0xff]
    %v1097 = vld [vmem:[#allocation11 + $0x6e8] sm:$0xff]
    %v1098 = vld [vmem:[#allocation11 + $0x6f0] sm:$0xff]
    %v1099 = vld [vmem:[#allocation11 + $0x6f8] sm:$0xff]
    %v1100 = vld [vmem:[#allocation11 + $0x700] sm:$0xff]
    %v1101 = vld [vmem:[#allocation11 + $0x708] sm:$0xff]
    %v1102 = vld [vmem:[#allocation11 + $0x710] sm:$0xff]
    %v1103 = vld [vmem:[#allocation11 + $0x718] sm:$0xff]
    %v1104 = vld [vmem:[#allocation11 + $0x720] sm:$0xff]
    %v1105 = vld [vmem:[#allocation11 + $0x728] sm:$0xff]
    %v1106 = vld [vmem:[#allocation11 + $0x730] sm:$0xff]
    %v1107 = vld [vmem:[#allocation11 + $0x738] sm:$0xff]
    %v1108 = vld [vmem:[#allocation11 + $0x740] sm:$0xff]
    %v1109 = vld [vmem:[#allocation11 + $0x748] sm:$0xff]
    %v1110 = vld [vmem:[#allocation11 + $0x750] sm:$0xff]
    %v1111 = vld [vmem:[#allocation11 + $0x758] sm:$0xff]
    %v1112 = vld [vmem:[#allocation11 + $0x760] sm:$0xff]
    %v1113 = vld [vmem:[#allocation11 + $0x768] sm:$0xff]
    %v1114 = vld [vmem:[#allocation11 + $0x770] sm:$0xff]
    %v1115 = vld [vmem:[#allocation11 + $0x778] sm:$0xff]
    %v1116 = vld [vmem:[#allocation11 + $0x780] sm:$0xff]
    %v1117 = vld [vmem:[#allocation11 + $0x788] sm:$0xff]
    %v1118 = vld [vmem:[#allocation11 + $0x790] sm:$0xff]
    %v1119 = vld [vmem:[#allocation11 + $0x798] sm:$0xff]
    %v1120 = vld [vmem:[#allocation11 + $0x7a0] sm:$0xff]
    %v1121 = vld [vmem:[#allocation11 + $0x7a8] sm:$0xff]
    %v1122 = vld [vmem:[#allocation11 + $0x7b0] sm:$0xff]
    %v1123 = vld [vmem:[#allocation11 + $0x7b8] sm:$0xff]
    %v1124 = vld [vmem:[#allocation11 + $0x7c0] sm:$0xff]
    %v1125 = vld [vmem:[#allocation11 + $0x7c8] sm:$0xff]
    %v1126 = vld [vmem:[#allocation11 + $0x7d0] sm:$0xff]
    %v1127 = vld [vmem:[#allocation11 + $0x7d8] sm:$0xff]
    %v1128 = vld [vmem:[#allocation11 + $0x7e0] sm:$0xff]
    %v1129 = vld [vmem:[#allocation11 + $0x7e8] sm:$0xff]
    %v1130 = vld [vmem:[#allocation11 + $0x7f0] sm:$0xff]
    %v1131 = vld [vmem:[#allocation11 + $0x7f8] sm:$0xff]
    %v1388 = vunpack.c.l.b16 %v876
    %v1389 = vunpack.c.h.b16 %v876
    %v1390 = vunpack.c.l.b16 %v877
    %v1391 = vunpack.c.h.b16 %v877
    %v1392 = vunpack.c.l.b16 %v878
    %v1393 = vunpack.c.h.b16 %v878
    %v1394 = vunpack.c.l.b16 %v879
    %v1395 = vunpack.c.h.b16 %v879
    %v1396 = vunpack.c.l.b16 %v880
    %v1397 = vunpack.c.h.b16 %v880
    %v1398 = vunpack.c.l.b16 %v881
    %v1399 = vunpack.c.h.b16 %v881
    %v1400 = vunpack.c.l.b16 %v882
    %v1401 = vunpack.c.h.b16 %v882
    %v1402 = vunpack.c.l.b16 %v883
    %v1403 = vunpack.c.h.b16 %v883
    %v1404 = vunpack.c.l.b16 %v884
    %v1405 = vunpack.c.h.b16 %v884
    %v1406 = vunpack.c.l.b16 %v885
    %v1407 = vunpack.c.h.b16 %v885
    %v1408 = vunpack.c.l.b16 %v886
    %v1409 = vunpack.c.h.b16 %v886
    %v1410 = vunpack.c.l.b16 %v887
    %v1411 = vunpack.c.h.b16 %v887
    %v1412 = vunpack.c.l.b16 %v888
    %v1413 = vunpack.c.h.b16 %v888
    %v1414 = vunpack.c.l.b16 %v889
    %v1415 = vunpack.c.h.b16 %v889
    %v1416 = vunpack.c.l.b16 %v890
    %v1417 = vunpack.c.h.b16 %v890
    %v1418 = vunpack.c.l.b16 %v891
    %v1419 = vunpack.c.h.b16 %v891
    %v1420 = vunpack.c.l.b16 %v892
    %v1421 = vunpack.c.h.b16 %v892
    %v1422 = vunpack.c.l.b16 %v893
    %v1423 = vunpack.c.h.b16 %v893
    %v1424 = vunpack.c.l.b16 %v894
    %v1425 = vunpack.c.h.b16 %v894
    %v1426 = vunpack.c.l.b16 %v895
    %v1427 = vunpack.c.h.b16 %v895
    %v1428 = vunpack.c.l.b16 %v896
    %v1429 = vunpack.c.h.b16 %v896
    %v1430 = vunpack.c.l.b16 %v897
    %v1431 = vunpack.c.h.b16 %v897
    %v1432 = vunpack.c.l.b16 %v898
    %v1433 = vunpack.c.h.b16 %v898
    %v1434 = vunpack.c.l.b16 %v899
    %v1435 = vunpack.c.h.b16 %v899
    %v1436 = vunpack.c.l.b16 %v900
    %v1437 = vunpack.c.h.b16 %v900
    %v1438 = vunpack.c.l.b16 %v901
    %v1439 = vunpack.c.h.b16 %v901
    %v1440 = vunpack.c.l.b16 %v902
    %v1441 = vunpack.c.h.b16 %v902
    %v1442 = vunpack.c.l.b16 %v903
    %v1443 = vunpack.c.h.b16 %v903
    %v1444 = vunpack.c.l.b16 %v904
    %v1445 = vunpack.c.h.b16 %v904
    %v1446 = vunpack.c.l.b16 %v905
    %v1447 = vunpack.c.h.b16 %v905
    %v1448 = vunpack.c.l.b16 %v906
    %v1449 = vunpack.c.h.b16 %v906
    %v1450 = vunpack.c.l.b16 %v907
    %v1451 = vunpack.c.h.b16 %v907
    %v1452 = vunpack.c.l.b16 %v908
    %v1453 = vunpack.c.h.b16 %v908
    %v1454 = vunpack.c.l.b16 %v909
    %v1455 = vunpack.c.h.b16 %v909
    %v1456 = vunpack.c.l.b16 %v910
    %v1457 = vunpack.c.h.b16 %v910
    %v1458 = vunpack.c.l.b16 %v911
    %v1459 = vunpack.c.h.b16 %v911
    %v1460 = vunpack.c.l.b16 %v912
    %v1461 = vunpack.c.h.b16 %v912
    %v1462 = vunpack.c.l.b16 %v913
    %v1463 = vunpack.c.h.b16 %v913
    %v1464 = vunpack.c.l.b16 %v914
    %v1465 = vunpack.c.h.b16 %v914
    %v1466 = vunpack.c.l.b16 %v915
    %v1467 = vunpack.c.h.b16 %v915
    %v1468 = vunpack.c.l.b16 %v916
    %v1469 = vunpack.c.h.b16 %v916
    %v1470 = vunpack.c.l.b16 %v917
    %v1471 = vunpack.c.h.b16 %v917
    %v1472 = vunpack.c.l.b16 %v918
    %v1473 = vunpack.c.h.b16 %v918
    %v1474 = vunpack.c.l.b16 %v919
    %v1475 = vunpack.c.h.b16 %v919
    %v1476 = vunpack.c.l.b16 %v920
    %v1477 = vunpack.c.h.b16 %v920
    %v1478 = vunpack.c.l.b16 %v921
    %v1479 = vunpack.c.h.b16 %v921
    %v1480 = vunpack.c.l.b16 %v922
    %v1481 = vunpack.c.h.b16 %v922
    %v1482 = vunpack.c.l.b16 %v923
    %v1483 = vunpack.c.h.b16 %v923
    %v1484 = vunpack.c.l.b16 %v924
    %v1485 = vunpack.c.h.b16 %v924
    %v1486 = vunpack.c.l.b16 %v925
    %v1487 = vunpack.c.h.b16 %v925
    %v1488 = vunpack.c.l.b16 %v926
    %v1489 = vunpack.c.h.b16 %v926
    %v1490 = vunpack.c.l.b16 %v927
    %v1491 = vunpack.c.h.b16 %v927
    %v1492 = vunpack.c.l.b16 %v928
    %v1493 = vunpack.c.h.b16 %v928
    %v1494 = vunpack.c.l.b16 %v929
    %v1495 = vunpack.c.h.b16 %v929
    %v1496 = vunpack.c.l.b16 %v930
    %v1497 = vunpack.c.h.b16 %v930
    %v1498 = vunpack.c.l.b16 %v931
    %v1499 = vunpack.c.h.b16 %v931
    %v1500 = vunpack.c.l.b16 %v932
    %v1501 = vunpack.c.h.b16 %v932
    %v1502 = vunpack.c.l.b16 %v933
    %v1503 = vunpack.c.h.b16 %v933
    %v1504 = vunpack.c.l.b16 %v934
    %v1505 = vunpack.c.h.b16 %v934
    %v1506 = vunpack.c.l.b16 %v935
    %v1507 = vunpack.c.h.b16 %v935
    %v1508 = vunpack.c.l.b16 %v936
    %v1509 = vunpack.c.h.b16 %v936
    %v1510 = vunpack.c.l.b16 %v937
    %v1511 = vunpack.c.h.b16 %v937
    %v1512 = vunpack.c.l.b16 %v938
    %v1513 = vunpack.c.h.b16 %v938
    %v1514 = vunpack.c.l.b16 %v939
    %v1515 = vunpack.c.h.b16 %v939
    %v1516 = vunpack.c.l.b16 %v940
    %v1517 = vunpack.c.h.b16 %v940
    %v1518 = vunpack.c.l.b16 %v941
    %v1519 = vunpack.c.h.b16 %v941
    %v1520 = vunpack.c.l.b16 %v942
    %v1521 = vunpack.c.h.b16 %v942
    %v1522 = vunpack.c.l.b16 %v943
    %v1523 = vunpack.c.h.b16 %v943
    %v1524 = vunpack.c.l.b16 %v944
    %v1525 = vunpack.c.h.b16 %v944
    %v1526 = vunpack.c.l.b16 %v945
    %v1527 = vunpack.c.h.b16 %v945
    %v1528 = vunpack.c.l.b16 %v946
    %v1529 = vunpack.c.h.b16 %v946
    %v1530 = vunpack.c.l.b16 %v947
    %v1531 = vunpack.c.h.b16 %v947
    %v1532 = vunpack.c.l.b16 %v948
    %v1533 = vunpack.c.h.b16 %v948
    %v1534 = vunpack.c.l.b16 %v949
    %v1535 = vunpack.c.h.b16 %v949
    %v1536 = vunpack.c.l.b16 %v950
    %v1537 = vunpack.c.h.b16 %v950
    %v1538 = vunpack.c.l.b16 %v951
    %v1539 = vunpack.c.h.b16 %v951
    %v1540 = vunpack.c.l.b16 %v952
    %v1541 = vunpack.c.h.b16 %v952
    %v1542 = vunpack.c.l.b16 %v953
    %v1543 = vunpack.c.h.b16 %v953
    %v1544 = vunpack.c.l.b16 %v954
    %v1545 = vunpack.c.h.b16 %v954
    %v1546 = vunpack.c.l.b16 %v955
    %v1547 = vunpack.c.h.b16 %v955
    %v1548 = vunpack.c.l.b16 %v956
    %v1549 = vunpack.c.h.b16 %v956
    %v1550 = vunpack.c.l.b16 %v957
    %v1551 = vunpack.c.h.b16 %v957
    %v1552 = vunpack.c.l.b16 %v958
    %v1553 = vunpack.c.h.b16 %v958
    %v1554 = vunpack.c.l.b16 %v959
    %v1555 = vunpack.c.h.b16 %v959
    %v1556 = vunpack.c.l.b16 %v960
    %v1557 = vunpack.c.h.b16 %v960
    %v1558 = vunpack.c.l.b16 %v961
    %v1559 = vunpack.c.h.b16 %v961
    %v1560 = vunpack.c.l.b16 %v962
    %v1561 = vunpack.c.h.b16 %v962
    %v1562 = vunpack.c.l.b16 %v963
    %v1563 = vunpack.c.h.b16 %v963
    %v1564 = vunpack.c.l.b16 %v964
    %v1565 = vunpack.c.h.b16 %v964
    %v1566 = vunpack.c.l.b16 %v965
    %v1567 = vunpack.c.h.b16 %v965
    %v1568 = vunpack.c.l.b16 %v966
    %v1569 = vunpack.c.h.b16 %v966
    %v1570 = vunpack.c.l.b16 %v967
    %v1571 = vunpack.c.h.b16 %v967
    %v1572 = vunpack.c.l.b16 %v968
    %v1573 = vunpack.c.h.b16 %v968
    %v1574 = vunpack.c.l.b16 %v969
    %v1575 = vunpack.c.h.b16 %v969
    %v1576 = vunpack.c.l.b16 %v970
    %v1577 = vunpack.c.h.b16 %v970
    %v1578 = vunpack.c.l.b16 %v971
    %v1579 = vunpack.c.h.b16 %v971
    %v1580 = vunpack.c.l.b16 %v972
    %v1581 = vunpack.c.h.b16 %v972
    %v1582 = vunpack.c.l.b16 %v973
    %v1583 = vunpack.c.h.b16 %v973
    %v1584 = vunpack.c.l.b16 %v974
    %v1585 = vunpack.c.h.b16 %v974
    %v1586 = vunpack.c.l.b16 %v975
    %v1587 = vunpack.c.h.b16 %v975
    %v1588 = vunpack.c.l.b16 %v976
    %v1589 = vunpack.c.h.b16 %v976
    %v1590 = vunpack.c.l.b16 %v977
    %v1591 = vunpack.c.h.b16 %v977
    %v1592 = vunpack.c.l.b16 %v978
    %v1593 = vunpack.c.h.b16 %v978
    %v1594 = vunpack.c.l.b16 %v979
    %v1595 = vunpack.c.h.b16 %v979
    %v1596 = vunpack.c.l.b16 %v980
    %v1597 = vunpack.c.h.b16 %v980
    %v1598 = vunpack.c.l.b16 %v981
    %v1599 = vunpack.c.h.b16 %v981
    %v1600 = vunpack.c.l.b16 %v982
    %v1601 = vunpack.c.h.b16 %v982
    %v1602 = vunpack.c.l.b16 %v983
    %v1603 = vunpack.c.h.b16 %v983
    %v1604 = vunpack.c.l.b16 %v984
    %v1605 = vunpack.c.h.b16 %v984
    %v1606 = vunpack.c.l.b16 %v985
    %v1607 = vunpack.c.h.b16 %v985
    %v1608 = vunpack.c.l.b16 %v986
    %v1609 = vunpack.c.h.b16 %v986
    %v1610 = vunpack.c.l.b16 %v987
    %v1611 = vunpack.c.h.b16 %v987
    %v1612 = vunpack.c.l.b16 %v988
    %v1613 = vunpack.c.h.b16 %v988
    %v1614 = vunpack.c.l.b16 %v989
    %v1615 = vunpack.c.h.b16 %v989
    %v1616 = vunpack.c.l.b16 %v990
    %v1617 = vunpack.c.h.b16 %v990
    %v1618 = vunpack.c.l.b16 %v991
    %v1619 = vunpack.c.h.b16 %v991
    %v1620 = vunpack.c.l.b16 %v992
    %v1621 = vunpack.c.h.b16 %v992
    %v1622 = vunpack.c.l.b16 %v993
    %v1623 = vunpack.c.h.b16 %v993
    %v1624 = vunpack.c.l.b16 %v994
    %v1625 = vunpack.c.h.b16 %v994
    %v1626 = vunpack.c.l.b16 %v995
    %v1627 = vunpack.c.h.b16 %v995
    %v1628 = vunpack.c.l.b16 %v996
    %v1629 = vunpack.c.h.b16 %v996
    %v1630 = vunpack.c.l.b16 %v997
    %v1631 = vunpack.c.h.b16 %v997
    %v1632 = vunpack.c.l.b16 %v998
    %v1633 = vunpack.c.h.b16 %v998
    %v1634 = vunpack.c.l.b16 %v999
    %v1635 = vunpack.c.h.b16 %v999
    %v1636 = vunpack.c.l.b16 %v1000
    %v1637 = vunpack.c.h.b16 %v1000
    %v1638 = vunpack.c.l.b16 %v1001
    %v1639 = vunpack.c.h.b16 %v1001
    %v1640 = vunpack.c.l.b16 %v1002
    %v1641 = vunpack.c.h.b16 %v1002
    %v1642 = vunpack.c.l.b16 %v1003
    %v1643 = vunpack.c.h.b16 %v1003
    %v1644 = vunpack.c.l.b16 %v1004
    %v1645 = vunpack.c.h.b16 %v1004
    %v1646 = vunpack.c.l.b16 %v1005
    %v1647 = vunpack.c.h.b16 %v1005
    %v1648 = vunpack.c.l.b16 %v1006
    %v1649 = vunpack.c.h.b16 %v1006
    %v1650 = vunpack.c.l.b16 %v1007
    %v1651 = vunpack.c.h.b16 %v1007
    %v1652 = vunpack.c.l.b16 %v1008
    %v1653 = vunpack.c.h.b16 %v1008
    %v1654 = vunpack.c.l.b16 %v1009
    %v1655 = vunpack.c.h.b16 %v1009
    %v1656 = vunpack.c.l.b16 %v1010
    %v1657 = vunpack.c.h.b16 %v1010
    %v1658 = vunpack.c.l.b16 %v1011
    %v1659 = vunpack.c.h.b16 %v1011
    %v1660 = vunpack.c.l.b16 %v1012
    %v1661 = vunpack.c.h.b16 %v1012
    %v1662 = vunpack.c.l.b16 %v1013
    %v1663 = vunpack.c.h.b16 %v1013
    %v1664 = vunpack.c.l.b16 %v1014
    %v1665 = vunpack.c.h.b16 %v1014
    %v1666 = vunpack.c.l.b16 %v1015
    %v1667 = vunpack.c.h.b16 %v1015
    %v1668 = vunpack.c.l.b16 %v1016
    %v1669 = vunpack.c.h.b16 %v1016
    %v1670 = vunpack.c.l.b16 %v1017
    %v1671 = vunpack.c.h.b16 %v1017
    %v1672 = vunpack.c.l.b16 %v1018
    %v1673 = vunpack.c.h.b16 %v1018
    %v1674 = vunpack.c.l.b16 %v1019
    %v1675 = vunpack.c.h.b16 %v1019
    %v1676 = vunpack.c.l.b16 %v1020
    %v1677 = vunpack.c.h.b16 %v1020
    %v1678 = vunpack.c.l.b16 %v1021
    %v1679 = vunpack.c.h.b16 %v1021
    %v1680 = vunpack.c.l.b16 %v1022
    %v1681 = vunpack.c.h.b16 %v1022
    %v1682 = vunpack.c.l.b16 %v1023
    %v1683 = vunpack.c.h.b16 %v1023
    %v1684 = vunpack.c.l.b16 %v1024
    %v1685 = vunpack.c.h.b16 %v1024
    %v1686 = vunpack.c.l.b16 %v1025
    %v1687 = vunpack.c.h.b16 %v1025
    %v1688 = vunpack.c.l.b16 %v1026
    %v1689 = vunpack.c.h.b16 %v1026
    %v1690 = vunpack.c.l.b16 %v1027
    %v1691 = vunpack.c.h.b16 %v1027
    %v1692 = vunpack.c.l.b16 %v1028
    %v1693 = vunpack.c.h.b16 %v1028
    %v1694 = vunpack.c.l.b16 %v1029
    %v1695 = vunpack.c.h.b16 %v1029
    %v1696 = vunpack.c.l.b16 %v1030
    %v1697 = vunpack.c.h.b16 %v1030
    %v1698 = vunpack.c.l.b16 %v1031
    %v1699 = vunpack.c.h.b16 %v1031
    %v1700 = vunpack.c.l.b16 %v1032
    %v1701 = vunpack.c.h.b16 %v1032
    %v1702 = vunpack.c.l.b16 %v1033
    %v1703 = vunpack.c.h.b16 %v1033
    %v1704 = vunpack.c.l.b16 %v1034
    %v1705 = vunpack.c.h.b16 %v1034
    %v1706 = vunpack.c.l.b16 %v1035
    %v1707 = vunpack.c.h.b16 %v1035
    %v1708 = vunpack.c.l.b16 %v1036
    %v1709 = vunpack.c.h.b16 %v1036
    %v1710 = vunpack.c.l.b16 %v1037
    %v1711 = vunpack.c.h.b16 %v1037
    %v1712 = vunpack.c.l.b16 %v1038
    %v1713 = vunpack.c.h.b16 %v1038
    %v1714 = vunpack.c.l.b16 %v1039
    %v1715 = vunpack.c.h.b16 %v1039
    %v1716 = vunpack.c.l.b16 %v1040
    %v1717 = vunpack.c.h.b16 %v1040
    %v1718 = vunpack.c.l.b16 %v1041
    %v1719 = vunpack.c.h.b16 %v1041
    %v1720 = vunpack.c.l.b16 %v1042
    %v1721 = vunpack.c.h.b16 %v1042
    %v1722 = vunpack.c.l.b16 %v1043
    %v1723 = vunpack.c.h.b16 %v1043
    %v1724 = vunpack.c.l.b16 %v1044
    %v1725 = vunpack.c.h.b16 %v1044
    %v1726 = vunpack.c.l.b16 %v1045
    %v1727 = vunpack.c.h.b16 %v1045
    %v1728 = vunpack.c.l.b16 %v1046
    %v1729 = vunpack.c.h.b16 %v1046
    %v1730 = vunpack.c.l.b16 %v1047
    %v1731 = vunpack.c.h.b16 %v1047
    %v1732 = vunpack.c.l.b16 %v1048
    %v1733 = vunpack.c.h.b16 %v1048
    %v1734 = vunpack.c.l.b16 %v1049
    %v1735 = vunpack.c.h.b16 %v1049
    %v1736 = vunpack.c.l.b16 %v1050
    %v1737 = vunpack.c.h.b16 %v1050
    %v1738 = vunpack.c.l.b16 %v1051
    %v1739 = vunpack.c.h.b16 %v1051
    %v1740 = vunpack.c.l.b16 %v1052
    %v1741 = vunpack.c.h.b16 %v1052
    %v1742 = vunpack.c.l.b16 %v1053
    %v1743 = vunpack.c.h.b16 %v1053
    %v1744 = vunpack.c.l.b16 %v1054
    %v1745 = vunpack.c.h.b16 %v1054
    %v1746 = vunpack.c.l.b16 %v1055
    %v1747 = vunpack.c.h.b16 %v1055
    %v1748 = vunpack.c.l.b16 %v1056
    %v1749 = vunpack.c.h.b16 %v1056
    %v1750 = vunpack.c.l.b16 %v1057
    %v1751 = vunpack.c.h.b16 %v1057
    %v1752 = vunpack.c.l.b16 %v1058
    %v1753 = vunpack.c.h.b16 %v1058
    %v1754 = vunpack.c.l.b16 %v1059
    %v1755 = vunpack.c.h.b16 %v1059
    %v1756 = vunpack.c.l.b16 %v1060
    %v1757 = vunpack.c.h.b16 %v1060
    %v1758 = vunpack.c.l.b16 %v1061
    %v1759 = vunpack.c.h.b16 %v1061
    %v1760 = vunpack.c.l.b16 %v1062
    %v1761 = vunpack.c.h.b16 %v1062
    %v1762 = vunpack.c.l.b16 %v1063
    %v1763 = vunpack.c.h.b16 %v1063
    %v1764 = vunpack.c.l.b16 %v1064
    %v1765 = vunpack.c.h.b16 %v1064
    %v1766 = vunpack.c.l.b16 %v1065
    %v1767 = vunpack.c.h.b16 %v1065
    %v1768 = vunpack.c.l.b16 %v1066
    %v1769 = vunpack.c.h.b16 %v1066
    %v1770 = vunpack.c.l.b16 %v1067
    %v1771 = vunpack.c.h.b16 %v1067
    %v1772 = vunpack.c.l.b16 %v1068
    %v1773 = vunpack.c.h.b16 %v1068
    %v1774 = vunpack.c.l.b16 %v1069
    %v1775 = vunpack.c.h.b16 %v1069
    %v1776 = vunpack.c.l.b16 %v1070
    %v1777 = vunpack.c.h.b16 %v1070
    %v1778 = vunpack.c.l.b16 %v1071
    %v1779 = vunpack.c.h.b16 %v1071
    %v1780 = vunpack.c.l.b16 %v1072
    %v1781 = vunpack.c.h.b16 %v1072
    %v1782 = vunpack.c.l.b16 %v1073
    %v1783 = vunpack.c.h.b16 %v1073
    %v1784 = vunpack.c.l.b16 %v1074
    %v1785 = vunpack.c.h.b16 %v1074
    %v1786 = vunpack.c.l.b16 %v1075
    %v1787 = vunpack.c.h.b16 %v1075
    %v1788 = vunpack.c.l.b16 %v1076
    %v1789 = vunpack.c.h.b16 %v1076
    %v1790 = vunpack.c.l.b16 %v1077
    %v1791 = vunpack.c.h.b16 %v1077
    %v1792 = vunpack.c.l.b16 %v1078
    %v1793 = vunpack.c.h.b16 %v1078
    %v1794 = vunpack.c.l.b16 %v1079
    %v1795 = vunpack.c.h.b16 %v1079
    %v1796 = vunpack.c.l.b16 %v1080
    %v1797 = vunpack.c.h.b16 %v1080
    %v1798 = vunpack.c.l.b16 %v1081
    %v1799 = vunpack.c.h.b16 %v1081
    %v1800 = vunpack.c.l.b16 %v1082
    %v1801 = vunpack.c.h.b16 %v1082
    %v1802 = vunpack.c.l.b16 %v1083
    %v1803 = vunpack.c.h.b16 %v1083
    %v1804 = vunpack.c.l.b16 %v1084
    %v1805 = vunpack.c.h.b16 %v1084
    %v1806 = vunpack.c.l.b16 %v1085
    %v1807 = vunpack.c.h.b16 %v1085
    %v1808 = vunpack.c.l.b16 %v1086
    %v1809 = vunpack.c.h.b16 %v1086
    %v1810 = vunpack.c.l.b16 %v1087
    %v1811 = vunpack.c.h.b16 %v1087
    %v1812 = vunpack.c.l.b16 %v1088
    %v1813 = vunpack.c.h.b16 %v1088
    %v1814 = vunpack.c.l.b16 %v1089
    %v1815 = vunpack.c.h.b16 %v1089
    %v1816 = vunpack.c.l.b16 %v1090
    %v1817 = vunpack.c.h.b16 %v1090
    %v1818 = vunpack.c.l.b16 %v1091
    %v1819 = vunpack.c.h.b16 %v1091
    %v1820 = vunpack.c.l.b16 %v1092
    %v1821 = vunpack.c.h.b16 %v1092
    %v1822 = vunpack.c.l.b16 %v1093
    %v1823 = vunpack.c.h.b16 %v1093
    %v1824 = vunpack.c.l.b16 %v1094
    %v1825 = vunpack.c.h.b16 %v1094
    %v1826 = vunpack.c.l.b16 %v1095
    %v1827 = vunpack.c.h.b16 %v1095
    %v1828 = vunpack.c.l.b16 %v1096
    %v1829 = vunpack.c.h.b16 %v1096
    %v1830 = vunpack.c.l.b16 %v1097
    %v1831 = vunpack.c.h.b16 %v1097
    %v1832 = vunpack.c.l.b16 %v1098
    %v1833 = vunpack.c.h.b16 %v1098
    %v1834 = vunpack.c.l.b16 %v1099
    %v1835 = vunpack.c.h.b16 %v1099
    %v1836 = vunpack.c.l.b16 %v1100
    %v1837 = vunpack.c.h.b16 %v1100
    %v1838 = vunpack.c.l.b16 %v1101
    %v1839 = vunpack.c.h.b16 %v1101
    %v1840 = vunpack.c.l.b16 %v1102
    %v1841 = vunpack.c.h.b16 %v1102
    %v1842 = vunpack.c.l.b16 %v1103
    %v1843 = vunpack.c.h.b16 %v1103
    %v1844 = vunpack.c.l.b16 %v1104
    %v1845 = vunpack.c.h.b16 %v1104
    %v1846 = vunpack.c.l.b16 %v1105
    %v1847 = vunpack.c.h.b16 %v1105
    %v1848 = vunpack.c.l.b16 %v1106
    %v1849 = vunpack.c.h.b16 %v1106
    %v1850 = vunpack.c.l.b16 %v1107
    %v1851 = vunpack.c.h.b16 %v1107
    %v1852 = vunpack.c.l.b16 %v1108
    %v1853 = vunpack.c.h.b16 %v1108
    %v1854 = vunpack.c.l.b16 %v1109
    %v1855 = vunpack.c.h.b16 %v1109
    %v1856 = vunpack.c.l.b16 %v1110
    %v1857 = vunpack.c.h.b16 %v1110
    %v1858 = vunpack.c.l.b16 %v1111
    %v1859 = vunpack.c.h.b16 %v1111
    %v1860 = vunpack.c.l.b16 %v1112
    %v1861 = vunpack.c.h.b16 %v1112
    %v1862 = vunpack.c.l.b16 %v1113
    %v1863 = vunpack.c.h.b16 %v1113
    %v1864 = vunpack.c.l.b16 %v1114
    %v1865 = vunpack.c.h.b16 %v1114
    %v1866 = vunpack.c.l.b16 %v1115
    %v1867 = vunpack.c.h.b16 %v1115
    %v1868 = vunpack.c.l.b16 %v1116
    %v1869 = vunpack.c.h.b16 %v1116
    %v1870 = vunpack.c.l.b16 %v1117
    %v1871 = vunpack.c.h.b16 %v1117
    %v1872 = vunpack.c.l.b16 %v1118
    %v1873 = vunpack.c.h.b16 %v1118
    %v1874 = vunpack.c.l.b16 %v1119
    %v1875 = vunpack.c.h.b16 %v1119
    %v1876 = vunpack.c.l.b16 %v1120
    %v1877 = vunpack.c.h.b16 %v1120
    %v1878 = vunpack.c.l.b16 %v1121
    %v1879 = vunpack.c.h.b16 %v1121
    %v1880 = vunpack.c.l.b16 %v1122
    %v1881 = vunpack.c.h.b16 %v1122
    %v1882 = vunpack.c.l.b16 %v1123
    %v1883 = vunpack.c.h.b16 %v1123
    %v1884 = vunpack.c.l.b16 %v1124
    %v1885 = vunpack.c.h.b16 %v1124
    %v1886 = vunpack.c.l.b16 %v1125
    %v1887 = vunpack.c.h.b16 %v1125
    %v1888 = vunpack.c.l.b16 %v1126
    %v1889 = vunpack.c.h.b16 %v1126
    %v1890 = vunpack.c.l.b16 %v1127
    %v1891 = vunpack.c.h.b16 %v1127
    %v1892 = vunpack.c.l.b16 %v1128
    %v1893 = vunpack.c.h.b16 %v1128
    %v1894 = vunpack.c.l.b16 %v1129
    %v1895 = vunpack.c.h.b16 %v1129
    %v1896 = vunpack.c.l.b16 %v1130
    %v1897 = vunpack.c.h.b16 %v1130
    %v1898 = vunpack.c.l.b16 %v1131
    %v1899 = vunpack.c.h.b16 %v1131
    %v1900 = vpack.c.b16 %v1396, %v1388
    %v1901 = vpack.c.b16 %v1397, %v1389
    %v1902 = vpack.c.b16 %v1398, %v1390
    %v1903 = vpack.c.b16 %v1399, %v1391
    %v1904 = vpack.c.b16 %v1400, %v1392
    %v1905 = vpack.c.b16 %v1401, %v1393
    %v1906 = vpack.c.b16 %v1402, %v1394
    %v1907 = vpack.c.b16 %v1403, %v1395
    %v1908 = vpack.c.b16 %v1412, %v1404
    %v1909 = vpack.c.b16 %v1413, %v1405
    %v1910 = vpack.c.b16 %v1414, %v1406
    %v1911 = vpack.c.b16 %v1415, %v1407
    %v1912 = vpack.c.b16 %v1416, %v1408
    %v1913 = vpack.c.b16 %v1417, %v1409
    %v1914 = vpack.c.b16 %v1418, %v1410
    %v1915 = vpack.c.b16 %v1419, %v1411
    %v1916 = vpack.c.b16 %v1428, %v1420
    %v1917 = vpack.c.b16 %v1429, %v1421
    %v1918 = vpack.c.b16 %v1430, %v1422
    %v1919 = vpack.c.b16 %v1431, %v1423
    %v1920 = vpack.c.b16 %v1432, %v1424
    %v1921 = vpack.c.b16 %v1433, %v1425
    %v1922 = vpack.c.b16 %v1434, %v1426
    %v1923 = vpack.c.b16 %v1435, %v1427
    %v1924 = vpack.c.b16 %v1444, %v1436
    %v1925 = vpack.c.b16 %v1445, %v1437
    %v1926 = vpack.c.b16 %v1446, %v1438
    %v1927 = vpack.c.b16 %v1447, %v1439
    %v1928 = vpack.c.b16 %v1448, %v1440
    %v1929 = vpack.c.b16 %v1449, %v1441
    %v1930 = vpack.c.b16 %v1450, %v1442
    %v1931 = vpack.c.b16 %v1451, %v1443
    %v1932 = vpack.c.b16 %v1460, %v1452
    %v1933 = vpack.c.b16 %v1461, %v1453
    %v1934 = vpack.c.b16 %v1462, %v1454
    %v1935 = vpack.c.b16 %v1463, %v1455
    %v1936 = vpack.c.b16 %v1464, %v1456
    %v1937 = vpack.c.b16 %v1465, %v1457
    %v1938 = vpack.c.b16 %v1466, %v1458
    %v1939 = vpack.c.b16 %v1467, %v1459
    %v1940 = vpack.c.b16 %v1476, %v1468
    %v1941 = vpack.c.b16 %v1477, %v1469
    %v1942 = vpack.c.b16 %v1478, %v1470
    %v1943 = vpack.c.b16 %v1479, %v1471
    %v1944 = vpack.c.b16 %v1480, %v1472
    %v1945 = vpack.c.b16 %v1481, %v1473
    %v1946 = vpack.c.b16 %v1482, %v1474
    %v1947 = vpack.c.b16 %v1483, %v1475
    %v1948 = vpack.c.b16 %v1492, %v1484
    %v1949 = vpack.c.b16 %v1493, %v1485
    %v1950 = vpack.c.b16 %v1494, %v1486
    %v1951 = vpack.c.b16 %v1495, %v1487
    %v1952 = vpack.c.b16 %v1496, %v1488
    %v1953 = vpack.c.b16 %v1497, %v1489
    %v1954 = vpack.c.b16 %v1498, %v1490
    %v1955 = vpack.c.b16 %v1499, %v1491
    %v1956 = vpack.c.b16 %v1508, %v1500
    %v1957 = vpack.c.b16 %v1509, %v1501
    %v1958 = vpack.c.b16 %v1510, %v1502
    %v1959 = vpack.c.b16 %v1511, %v1503
    %v1960 = vpack.c.b16 %v1512, %v1504
    %v1961 = vpack.c.b16 %v1513, %v1505
    %v1962 = vpack.c.b16 %v1514, %v1506
    %v1963 = vpack.c.b16 %v1515, %v1507
    %v1964 = vpack.c.b16 %v1524, %v1516
    %v1965 = vpack.c.b16 %v1525, %v1517
    %v1966 = vpack.c.b16 %v1526, %v1518
    %v1967 = vpack.c.b16 %v1527, %v1519
    %v1968 = vpack.c.b16 %v1528, %v1520
    %v1969 = vpack.c.b16 %v1529, %v1521
    %v1970 = vpack.c.b16 %v1530, %v1522
    %v1971 = vpack.c.b16 %v1531, %v1523
    %v1972 = vpack.c.b16 %v1540, %v1532
    %v1973 = vpack.c.b16 %v1541, %v1533
    %v1974 = vpack.c.b16 %v1542, %v1534
    %v1975 = vpack.c.b16 %v1543, %v1535
    %v1976 = vpack.c.b16 %v1544, %v1536
    %v1977 = vpack.c.b16 %v1545, %v1537
    %v1978 = vpack.c.b16 %v1546, %v1538
    %v1979 = vpack.c.b16 %v1547, %v1539
    %v1980 = vpack.c.b16 %v1556, %v1548
    %v1981 = vpack.c.b16 %v1557, %v1549
    %v1982 = vpack.c.b16 %v1558, %v1550
    %v1983 = vpack.c.b16 %v1559, %v1551
    %v1984 = vpack.c.b16 %v1560, %v1552
    %v1985 = vpack.c.b16 %v1561, %v1553
    %v1986 = vpack.c.b16 %v1562, %v1554
    %v1987 = vpack.c.b16 %v1563, %v1555
    %v1988 = vpack.c.b16 %v1572, %v1564
    %v1989 = vpack.c.b16 %v1573, %v1565
    %v1990 = vpack.c.b16 %v1574, %v1566
    %v1991 = vpack.c.b16 %v1575, %v1567
    %v1992 = vpack.c.b16 %v1576, %v1568
    %v1993 = vpack.c.b16 %v1577, %v1569
    %v1994 = vpack.c.b16 %v1578, %v1570
    %v1995 = vpack.c.b16 %v1579, %v1571
    %v1996 = vpack.c.b16 %v1588, %v1580
    %v1997 = vpack.c.b16 %v1589, %v1581
    %v1998 = vpack.c.b16 %v1590, %v1582
    %v1999 = vpack.c.b16 %v1591, %v1583
    %v2000 = vpack.c.b16 %v1592, %v1584
    %v2001 = vpack.c.b16 %v1593, %v1585
    %v2002 = vpack.c.b16 %v1594, %v1586
    %v2003 = vpack.c.b16 %v1595, %v1587
    %v2004 = vpack.c.b16 %v1604, %v1596
    %v2005 = vpack.c.b16 %v1605, %v1597
    %v2006 = vpack.c.b16 %v1606, %v1598
    %v2007 = vpack.c.b16 %v1607, %v1599
    %v2008 = vpack.c.b16 %v1608, %v1600
    %v2009 = vpack.c.b16 %v1609, %v1601
    %v2010 = vpack.c.b16 %v1610, %v1602
    %v2011 = vpack.c.b16 %v1611, %v1603
    %v2012 = vpack.c.b16 %v1620, %v1612
    %v2013 = vpack.c.b16 %v1621, %v1613
    %v2014 = vpack.c.b16 %v1622, %v1614
    %v2015 = vpack.c.b16 %v1623, %v1615
    %v2016 = vpack.c.b16 %v1624, %v1616
    %v2017 = vpack.c.b16 %v1625, %v1617
    %v2018 = vpack.c.b16 %v1626, %v1618
    %v2019 = vpack.c.b16 %v1627, %v1619
    %v2020 = vpack.c.b16 %v1636, %v1628
    %v2021 = vpack.c.b16 %v1637, %v1629
    %v2022 = vpack.c.b16 %v1638, %v1630
    %v2023 = vpack.c.b16 %v1639, %v1631
    %v2024 = vpack.c.b16 %v1640, %v1632
    %v2025 = vpack.c.b16 %v1641, %v1633
    %v2026 = vpack.c.b16 %v1642, %v1634
    %v2027 = vpack.c.b16 %v1643, %v1635
    %v2028 = vpack.c.b16 %v1652, %v1644
    %v2029 = vpack.c.b16 %v1653, %v1645
    %v2030 = vpack.c.b16 %v1654, %v1646
    %v2031 = vpack.c.b16 %v1655, %v1647
    %v2032 = vpack.c.b16 %v1656, %v1648
    %v2033 = vpack.c.b16 %v1657, %v1649
    %v2034 = vpack.c.b16 %v1658, %v1650
    %v2035 = vpack.c.b16 %v1659, %v1651
    %v2036 = vpack.c.b16 %v1668, %v1660
    %v2037 = vpack.c.b16 %v1669, %v1661
    %v2038 = vpack.c.b16 %v1670, %v1662
    %v2039 = vpack.c.b16 %v1671, %v1663
    %v2040 = vpack.c.b16 %v1672, %v1664
    %v2041 = vpack.c.b16 %v1673, %v1665
    %v2042 = vpack.c.b16 %v1674, %v1666
    %v2043 = vpack.c.b16 %v1675, %v1667
    %v2044 = vpack.c.b16 %v1684, %v1676
    %v2045 = vpack.c.b16 %v1685, %v1677
    %v2046 = vpack.c.b16 %v1686, %v1678
    %v2047 = vpack.c.b16 %v1687, %v1679
    %v2048 = vpack.c.b16 %v1688, %v1680
    %v2049 = vpack.c.b16 %v1689, %v1681
    %v2050 = vpack.c.b16 %v1690, %v1682
    %v2051 = vpack.c.b16 %v1691, %v1683
    %v2052 = vpack.c.b16 %v1700, %v1692
    %v2053 = vpack.c.b16 %v1701, %v1693
    %v2054 = vpack.c.b16 %v1702, %v1694
    %v2055 = vpack.c.b16 %v1703, %v1695
    %v2056 = vpack.c.b16 %v1704, %v1696
    %v2057 = vpack.c.b16 %v1705, %v1697
    %v2058 = vpack.c.b16 %v1706, %v1698
    %v2059 = vpack.c.b16 %v1707, %v1699
    %v2060 = vpack.c.b16 %v1716, %v1708
    %v2061 = vpack.c.b16 %v1717, %v1709
    %v2062 = vpack.c.b16 %v1718, %v1710
    %v2063 = vpack.c.b16 %v1719, %v1711
    %v2064 = vpack.c.b16 %v1720, %v1712
    %v2065 = vpack.c.b16 %v1721, %v1713
    %v2066 = vpack.c.b16 %v1722, %v1714
    %v2067 = vpack.c.b16 %v1723, %v1715
    %v2068 = vpack.c.b16 %v1732, %v1724
    %v2069 = vpack.c.b16 %v1733, %v1725
    %v2070 = vpack.c.b16 %v1734, %v1726
    %v2071 = vpack.c.b16 %v1735, %v1727
    %v2072 = vpack.c.b16 %v1736, %v1728
    %v2073 = vpack.c.b16 %v1737, %v1729
    %v2074 = vpack.c.b16 %v1738, %v1730
    %v2075 = vpack.c.b16 %v1739, %v1731
    %v2076 = vpack.c.b16 %v1748, %v1740
    %v2077 = vpack.c.b16 %v1749, %v1741
    %v2078 = vpack.c.b16 %v1750, %v1742
    %v2079 = vpack.c.b16 %v1751, %v1743
    %v2080 = vpack.c.b16 %v1752, %v1744
    %v2081 = vpack.c.b16 %v1753, %v1745
    %v2082 = vpack.c.b16 %v1754, %v1746
    %v2083 = vpack.c.b16 %v1755, %v1747
    %v2084 = vpack.c.b16 %v1764, %v1756
    %v2085 = vpack.c.b16 %v1765, %v1757
    %v2086 = vpack.c.b16 %v1766, %v1758
    %v2087 = vpack.c.b16 %v1767, %v1759
    %v2088 = vpack.c.b16 %v1768, %v1760
    %v2089 = vpack.c.b16 %v1769, %v1761
    %v2090 = vpack.c.b16 %v1770, %v1762
    %v2091 = vpack.c.b16 %v1771, %v1763
    %v2092 = vpack.c.b16 %v1780, %v1772
    %v2093 = vpack.c.b16 %v1781, %v1773
    %v2094 = vpack.c.b16 %v1782, %v1774
    %v2095 = vpack.c.b16 %v1783, %v1775
    %v2096 = vpack.c.b16 %v1784, %v1776
    %v2097 = vpack.c.b16 %v1785, %v1777
    %v2098 = vpack.c.b16 %v1786, %v1778
    %v2099 = vpack.c.b16 %v1787, %v1779
    %v2100 = vpack.c.b16 %v1796, %v1788
    %v2101 = vpack.c.b16 %v1797, %v1789
    %v2102 = vpack.c.b16 %v1798, %v1790
    %v2103 = vpack.c.b16 %v1799, %v1791
    %v2104 = vpack.c.b16 %v1800, %v1792
    %v2105 = vpack.c.b16 %v1801, %v1793
    %v2106 = vpack.c.b16 %v1802, %v1794
    %v2107 = vpack.c.b16 %v1803, %v1795
    %v2108 = vpack.c.b16 %v1812, %v1804
    %v2109 = vpack.c.b16 %v1813, %v1805
    %v2110 = vpack.c.b16 %v1814, %v1806
    %v2111 = vpack.c.b16 %v1815, %v1807
    %v2112 = vpack.c.b16 %v1816, %v1808
    %v2113 = vpack.c.b16 %v1817, %v1809
    %v2114 = vpack.c.b16 %v1818, %v1810
    %v2115 = vpack.c.b16 %v1819, %v1811
    %v2116 = vpack.c.b16 %v1828, %v1820
    %v2117 = vpack.c.b16 %v1829, %v1821
    %v2118 = vpack.c.b16 %v1830, %v1822
    %v2119 = vpack.c.b16 %v1831, %v1823
    %v2120 = vpack.c.b16 %v1832, %v1824
    %v2121 = vpack.c.b16 %v1833, %v1825
    %v2122 = vpack.c.b16 %v1834, %v1826
    %v2123 = vpack.c.b16 %v1835, %v1827
    %v2124 = vpack.c.b16 %v1844, %v1836
    %v2125 = vpack.c.b16 %v1845, %v1837
    %v2126 = vpack.c.b16 %v1846, %v1838
    %v2127 = vpack.c.b16 %v1847, %v1839
    %v2128 = vpack.c.b16 %v1848, %v1840
    %v2129 = vpack.c.b16 %v1849, %v1841
    %v2130 = vpack.c.b16 %v1850, %v1842
    %v2131 = vpack.c.b16 %v1851, %v1843
    %v2132 = vpack.c.b16 %v1860, %v1852
    %v2133 = vpack.c.b16 %v1861, %v1853
    %v2134 = vpack.c.b16 %v1862, %v1854
    %v2135 = vpack.c.b16 %v1863, %v1855
    %v2136 = vpack.c.b16 %v1864, %v1856
    %v2137 = vpack.c.b16 %v1865, %v1857
    %v2138 = vpack.c.b16 %v1866, %v1858
    %v2139 = vpack.c.b16 %v1867, %v1859
    %v2140 = vpack.c.b16 %v1876, %v1868
    %v2141 = vpack.c.b16 %v1877, %v1869
    %v2142 = vpack.c.b16 %v1878, %v1870
    %v2143 = vpack.c.b16 %v1879, %v1871
    %v2144 = vpack.c.b16 %v1880, %v1872
    %v2145 = vpack.c.b16 %v1881, %v1873
    %v2146 = vpack.c.b16 %v1882, %v1874
    %v2147 = vpack.c.b16 %v1883, %v1875
    %v2148 = vpack.c.b16 %v1892, %v1884
    %v2149 = vpack.c.b16 %v1893, %v1885
    %v2150 = vpack.c.b16 %v1894, %v1886
    %v2151 = vpack.c.b16 %v1895, %v1887
    %v2152 = vpack.c.b16 %v1896, %v1888
    %v2153 = vpack.c.b16 %v1897, %v1889
    %v2154 = vpack.c.b16 %v1898, %v1890
    %v2155 = vpack.c.b16 %v1899, %v1891
    %2412 = vmatprep.subr.bf16.mxu0 %v1957
    %2413 = vmatpush1.bf16.msra.mxu0 %v1956
    %2414 = vmatprep.subr.bf16.mxu0 %v1949
    %2415 = vmatpush1.bf16.msra.mxu0 %v1948
    %2416 = vmatprep.subr.bf16.mxu0 %v1941
    %2417 = vmatpush1.bf16.msra.mxu0 %v1940
    %2418 = vmatprep.subr.bf16.mxu0 %v1933
    %2419 = vmatpush1.bf16.msra.mxu0 %v1932
    %2420 = vmatprep.subr.bf16.mxu0 %v1925
    %2421 = vmatpush1.bf16.msra.mxu0 %v1924
    %2422 = vmatprep.subr.bf16.mxu0 %v1917
    %2423 = vmatpush1.bf16.msra.mxu0 %v1916
    %2424 = vmatprep.subr.bf16.mxu0 %v1909
    %2425 = vmatpush1.bf16.msra.mxu0 %v1908
    %2426 = vmatprep.subr.bf16.mxu0 %v1901
    %2427 = vmatpush1.bf16.msra.mxu0 %v1900
    %2428 = vmatprep.subr.bf16.mxu0 %v2021
    %2429 = vmatpush2.bf16.msra.mxu0 %v2020
    %2430 = vmatprep.subr.bf16.mxu0 %v2013
    %2431 = vmatpush2.bf16.msra.mxu0 %v2012
    %2432 = vmatprep.subr.bf16.mxu0 %v2005
    %2433 = vmatpush2.bf16.msra.mxu0 %v2004
    %2434 = vmatprep.subr.bf16.mxu0 %v1997
    %2435 = vmatpush2.bf16.msra.mxu0 %v1996
    %2436 = vmatprep.subr.bf16.mxu0 %v1989
    %2437 = vmatpush2.bf16.msra.mxu0 %v1988
    %2438 = vmatprep.subr.bf16.mxu0 %v1981
    %2439 = vmatpush2.bf16.msra.mxu0 %v1980
    %2440 = vmatprep.subr.bf16.mxu0 %v1973
    %2441 = vmatpush2.bf16.msra.mxu0 %v1972
    %2442 = vmatprep.subr.bf16.mxu0 %v1965
    %2443 = vmatpush2.bf16.msra.mxu0 %v1964
    %2444 = vmatprep.mubr.bf16.mxu0 %v873
    %2445 = vmatmul.mubr.bf16.gmra.mxu0 %v872
    %v2446 = vpop.f32.mrf.mxu0
    %v2447 = vadd.f32 0.0, %v2446
    %v2448 = vpop.f32.mrf.mxu0
    %v2449 = vadd.f32 0.0, %v2448
    %v2450 = vpop.f32.mrf.mxu0
    %v2451 = vadd.f32 0.0, %v2450
    %v2452 = vpop.f32.mrf.mxu0
    %v2453 = vadd.f32 0.0, %v2452
    %2454 = vdwg.mxu0
    %2455 = vmatprep.subr.bf16.mxu0 %v2085
    %2456 = vmatpush1.bf16.msra.mxu0 %v2084
    %2457 = vmatprep.subr.bf16.mxu0 %v2077
    %2458 = vmatpush1.bf16.msra.mxu0 %v2076
    %2459 = vmatprep.subr.bf16.mxu0 %v2069
    %2460 = vmatpush1.bf16.msra.mxu0 %v2068
    %2461 = vmatprep.subr.bf16.mxu0 %v2061
    %2462 = vmatpush1.bf16.msra.mxu0 %v2060
    %2463 = vmatprep.subr.bf16.mxu0 %v2053
    %2464 = vmatpush1.bf16.msra.mxu0 %v2052
    %2465 = vmatprep.subr.bf16.mxu0 %v2045
    %2466 = vmatpush1.bf16.msra.mxu0 %v2044
    %2467 = vmatprep.subr.bf16.mxu0 %v2037
    %2468 = vmatpush1.bf16.msra.mxu0 %v2036
    %2469 = vmatprep.subr.bf16.mxu0 %v2029
    %2470 = vmatpush1.bf16.msra.mxu0 %v2028
    %2471 = vmatprep.subr.bf16.mxu0 %v2149
    %2472 = vmatpush2.bf16.msra.mxu0 %v2148
    %2473 = vmatprep.subr.bf16.mxu0 %v2141
    %2474 = vmatpush2.bf16.msra.mxu0 %v2140
    %2475 = vmatprep.subr.bf16.mxu0 %v2133
    %2476 = vmatpush2.bf16.msra.mxu0 %v2132
    %2477 = vmatprep.subr.bf16.mxu0 %v2125
    %2478 = vmatpush2.bf16.msra.mxu0 %v2124
    %2479 = vmatprep.subr.bf16.mxu0 %v2117
    %2480 = vmatpush2.bf16.msra.mxu0 %v2116
    %2481 = vmatprep.subr.bf16.mxu0 %v2109
    %2482 = vmatpush2.bf16.msra.mxu0 %v2108
    %2483 = vmatprep.subr.bf16.mxu0 %v2101
    %2484 = vmatpush2.bf16.msra.mxu0 %v2100
    %2485 = vmatprep.subr.bf16.mxu0 %v2093
    %2486 = vmatpush2.bf16.msra.mxu0 %v2092
    %2487 = vmatprep.mubr.bf16.mxu0 %v875
    %2488 = vmatmul.mubr.bf16.gmra.mxu0 %v874
    %v2489 = vpop.f32.mrf.mxu0
    %v2490 = vadd.f32 %v2447, %v2489
    %v2491 = vpop.f32.mrf.mxu0
    %v2492 = vadd.f32 %v2449, %v2491
    %v2493 = vpop.f32.mrf.mxu0
    %v2494 = vadd.f32 %v2451, %v2493
    %v2495 = vpop.f32.mrf.mxu0
    %v2496 = vadd.f32 %v2453, %v2495
    %2497 = vdwg.mxu0
    %2498 = vmatprep.subr.bf16.mxu0 %v1959
    %2499 = vmatpush1.bf16.msra.mxu0 %v1958
    %2500 = vmatprep.subr.bf16.mxu0 %v1951
    %2501 = vmatpush1.bf16.msra.mxu0 %v1950
    %2502 = vmatprep.subr.bf16.mxu0 %v1943
    %2503 = vmatpush1.bf16.msra.mxu0 %v1942
    %2504 = vmatprep.subr.bf16.mxu0 %v1935
    %2505 = vmatpush1.bf16.msra.mxu0 %v1934
    %2506 = vmatprep.subr.bf16.mxu0 %v1927
    %2507 = vmatpush1.bf16.msra.mxu0 %v1926
    %2508 = vmatprep.subr.bf16.mxu0 %v1919
    %2509 = vmatpush1.bf16.msra.mxu0 %v1918
    %2510 = vmatprep.subr.bf16.mxu0 %v1911
    %2511 = vmatpush1.bf16.msra.mxu0 %v1910
    %2512 = vmatprep.subr.bf16.mxu0 %v1903
    %2513 = vmatpush1.bf16.msra.mxu0 %v1902
    %2514 = vmatprep.subr.bf16.mxu0 %v2023
    %2515 = vmatpush2.bf16.msra.mxu0 %v2022
    %2516 = vmatprep.subr.bf16.mxu0 %v2015
    %2517 = vmatpush2.bf16.msra.mxu0 %v2014
    %2518 = vmatprep.subr.bf16.mxu0 %v2007
    %2519 = vmatpush2.bf16.msra.mxu0 %v2006
    %2520 = vmatprep.subr.bf16.mxu0 %v1999
    %2521 = vmatpush2.bf16.msra.mxu0 %v1998
    %2522 = vmatprep.subr.bf16.mxu0 %v1991
    %2523 = vmatpush2.bf16.msra.mxu0 %v1990
    %2524 = vmatprep.subr.bf16.mxu0 %v1983
    %2525 = vmatpush2.bf16.msra.mxu0 %v1982
    %2526 = vmatprep.subr.bf16.mxu0 %v1975
    %2527 = vmatpush2.bf16.msra.mxu0 %v1974
    %2528 = vmatprep.subr.bf16.mxu0 %v1967
    %2529 = vmatpush2.bf16.msra.mxu0 %v1966
    %2530 = vmatprep.mubr.bf16.mxu0 %v873
    %2531 = vmatmul.mubr.bf16.gmra.mxu0 %v872
    %v2532 = vpop.f32.mrf.mxu0
    %v2533 = vadd.f32 0.0, %v2532
    %v2534 = vpop.f32.mrf.mxu0
    %v2535 = vadd.f32 0.0, %v2534
    %v2536 = vpop.f32.mrf.mxu0
    %v2537 = vadd.f32 0.0, %v2536
    %v2538 = vpop.f32.mrf.mxu0
    %v2539 = vadd.f32 0.0, %v2538
    %2540 = vdwg.mxu0
    %2541 = vmatprep.subr.bf16.mxu0 %v2087
    %2542 = vmatpush1.bf16.msra.mxu0 %v2086
    %2543 = vmatprep.subr.bf16.mxu0 %v2079
    %2544 = vmatpush1.bf16.msra.mxu0 %v2078
    %2545 = vmatprep.subr.bf16.mxu0 %v2071
    %2546 = vmatpush1.bf16.msra.mxu0 %v2070
    %2547 = vmatprep.subr.bf16.mxu0 %v2063
    %2548 = vmatpush1.bf16.msra.mxu0 %v2062
    %2549 = vmatprep.subr.bf16.mxu0 %v2055
    %2550 = vmatpush1.bf16.msra.mxu0 %v2054
    %2551 = vmatprep.subr.bf16.mxu0 %v2047
    %2552 = vmatpush1.bf16.msra.mxu0 %v2046
    %2553 = vmatprep.subr.bf16.mxu0 %v2039
    %2554 = vmatpush1.bf16.msra.mxu0 %v2038
    %2555 = vmatprep.subr.bf16.mxu0 %v2031
    %2556 = vmatpush1.bf16.msra.mxu0 %v2030
    %2557 = vmatprep.subr.bf16.mxu0 %v2151
    %2558 = vmatpush2.bf16.msra.mxu0 %v2150
    %2559 = vmatprep.subr.bf16.mxu0 %v2143
    %2560 = vmatpush2.bf16.msra.mxu0 %v2142
    %2561 = vmatprep.subr.bf16.mxu0 %v2135
    %2562 = vmatpush2.bf16.msra.mxu0 %v2134
    %2563 = vmatprep.subr.bf16.mxu0 %v2127
    %2564 = vmatpush2.bf16.msra.mxu0 %v2126
    %2565 = vmatprep.subr.bf16.mxu0 %v2119
    %2566 = vmatpush2.bf16.msra.mxu0 %v2118
    %2567 = vmatprep.subr.bf16.mxu0 %v2111
    %2568 = vmatpush2.bf16.msra.mxu0 %v2110
    %2569 = vmatprep.subr.bf16.mxu0 %v2103
    %2570 = vmatpush2.bf16.msra.mxu0 %v2102
    %2571 = vmatprep.subr.bf16.mxu0 %v2095
    %2572 = vmatpush2.bf16.msra.mxu0 %v2094
    %2573 = vmatprep.mubr.bf16.mxu0 %v875
    %2574 = vmatmul.mubr.bf16.gmra.mxu0 %v874
    %v2575 = vpop.f32.mrf.mxu0
    %v2576 = vadd.f32 %v2533, %v2575
    %v2577 = vpop.f32.mrf.mxu0
    %v2578 = vadd.f32 %v2535, %v2577
    %v2579 = vpop.f32.mrf.mxu0
    %v2580 = vadd.f32 %v2537, %v2579
    %v2581 = vpop.f32.mrf.mxu0
    %v2582 = vadd.f32 %v2539, %v2581
    %2583 = vdwg.mxu0
    %2584 = vmatprep.subr.bf16.mxu0 %v1961
    %2585 = vmatpush1.bf16.msra.mxu0 %v1960
    %2586 = vmatprep.subr.bf16.mxu0 %v1953
    %2587 = vmatpush1.bf16.msra.mxu0 %v1952
    %2588 = vmatprep.subr.bf16.mxu0 %v1945
    %2589 = vmatpush1.bf16.msra.mxu0 %v1944
    %2590 = vmatprep.subr.bf16.mxu0 %v1937
    %2591 = vmatpush1.bf16.msra.mxu0 %v1936
    %2592 = vmatprep.subr.bf16.mxu0 %v1929
    %2593 = vmatpush1.bf16.msra.mxu0 %v1928
    %2594 = vmatprep.subr.bf16.mxu0 %v1921
    %2595 = vmatpush1.bf16.msra.mxu0 %v1920
    %2596 = vmatprep.subr.bf16.mxu0 %v1913
    %2597 = vmatpush1.bf16.msra.mxu0 %v1912
    %2598 = vmatprep.subr.bf16.mxu0 %v1905
    %2599 = vmatpush1.bf16.msra.mxu0 %v1904
    %2600 = vmatprep.subr.bf16.mxu0 %v2025
    %2601 = vmatpush2.bf16.msra.mxu0 %v2024
    %2602 = vmatprep.subr.bf16.mxu0 %v2017
    %2603 = vmatpush2.bf16.msra.mxu0 %v2016
    %2604 = vmatprep.subr.bf16.mxu0 %v2009
    %2605 = vmatpush2.bf16.msra.mxu0 %v2008
    %2606 = vmatprep.subr.bf16.mxu0 %v2001
    %2607 = vmatpush2.bf16.msra.mxu0 %v2000
    %2608 = vmatprep.subr.bf16.mxu0 %v1993
    %2609 = vmatpush2.bf16.msra.mxu0 %v1992
    %2610 = vmatprep.subr.bf16.mxu0 %v1985
    %2611 = vmatpush2.bf16.msra.mxu0 %v1984
    %2612 = vmatprep.subr.bf16.mxu0 %v1977
    %2613 = vmatpush2.bf16.msra.mxu0 %v1976
    %2614 = vmatprep.subr.bf16.mxu0 %v1969
    %2615 = vmatpush2.bf16.msra.mxu0 %v1968
    %2616 = vmatprep.mubr.bf16.mxu0 %v873
    %2617 = vmatmul.mubr.bf16.gmra.mxu0 %v872
    %v2618 = vpop.f32.mrf.mxu0
    %v2619 = vadd.f32 0.0, %v2618
    %v2620 = vpop.f32.mrf.mxu0
    %v2621 = vadd.f32 0.0, %v2620
    %v2622 = vpop.f32.mrf.mxu0
    %v2623 = vadd.f32 0.0, %v2622
    %v2624 = vpop.f32.mrf.mxu0
    %v2625 = vadd.f32 0.0, %v2624
    %2626 = vdwg.mxu0
    %2627 = vmatprep.subr.bf16.mxu0 %v2089
    %2628 = vmatpush1.bf16.msra.mxu0 %v2088
    %2629 = vmatprep.subr.bf16.mxu0 %v2081
    %2630 = vmatpush1.bf16.msra.mxu0 %v2080
    %2631 = vmatprep.subr.bf16.mxu0 %v2073
    %2632 = vmatpush1.bf16.msra.mxu0 %v2072
    %2633 = vmatprep.subr.bf16.mxu0 %v2065
    %2634 = vmatpush1.bf16.msra.mxu0 %v2064
    %2635 = vmatprep.subr.bf16.mxu0 %v2057
    %2636 = vmatpush1.bf16.msra.mxu0 %v2056
    %2637 = vmatprep.subr.bf16.mxu0 %v2049
    %2638 = vmatpush1.bf16.msra.mxu0 %v2048
    %2639 = vmatprep.subr.bf16.mxu0 %v2041
    %2640 = vmatpush1.bf16.msra.mxu0 %v2040
    %2641 = vmatprep.subr.bf16.mxu0 %v2033
    %2642 = vmatpush1.bf16.msra.mxu0 %v2032
    %2643 = vmatprep.subr.bf16.mxu0 %v2153
    %2644 = vmatpush2.bf16.msra.mxu0 %v2152
    %2645 = vmatprep.subr.bf16.mxu0 %v2145
    %2646 = vmatpush2.bf16.msra.mxu0 %v2144
    %2647 = vmatprep.subr.bf16.mxu0 %v2137
    %2648 = vmatpush2.bf16.msra.mxu0 %v2136
    %2649 = vmatprep.subr.bf16.mxu0 %v2129
    %2650 = vmatpush2.bf16.msra.mxu0 %v2128
    %2651 = vmatprep.subr.bf16.mxu0 %v2121
    %2652 = vmatpush2.bf16.msra.mxu0 %v2120
    %2653 = vmatprep.subr.bf16.mxu0 %v2113
    %2654 = vmatpush2.bf16.msra.mxu0 %v2112
    %2655 = vmatprep.subr.bf16.mxu0 %v2105
    %2656 = vmatpush2.bf16.msra.mxu0 %v2104
    %2657 = vmatprep.subr.bf16.mxu0 %v2097
    %2658 = vmatpush2.bf16.msra.mxu0 %v2096
    %2659 = vmatprep.mubr.bf16.mxu0 %v875
    %2660 = vmatmul.mubr.bf16.gmra.mxu0 %v874
    %v2661 = vpop.f32.mrf.mxu0
    %v2662 = vadd.f32 %v2619, %v2661
    %v2663 = vpop.f32.mrf.mxu0
    %v2664 = vadd.f32 %v2621, %v2663
    %v2665 = vpop.f32.mrf.mxu0
    %v2666 = vadd.f32 %v2623, %v2665
    %v2667 = vpop.f32.mrf.mxu0
    %v2668 = vadd.f32 %v2625, %v2667
    %2669 = vdwg.mxu0
    %2670 = vmatprep.subr.bf16.mxu0 %v1963
    %2671 = vmatpush1.bf16.msra.mxu0 %v1962
    %2672 = vmatprep.subr.bf16.mxu0 %v1955
    %2673 = vmatpush1.bf16.msra.mxu0 %v1954
    %2674 = vmatprep.subr.bf16.mxu0 %v1947
    %2675 = vmatpush1.bf16.msra.mxu0 %v1946
    %2676 = vmatprep.subr.bf16.mxu0 %v1939
    %2677 = vmatpush1.bf16.msra.mxu0 %v1938
    %2678 = vmatprep.subr.bf16.mxu0 %v1931
    %2679 = vmatpush1.bf16.msra.mxu0 %v1930
    %2680 = vmatprep.subr.bf16.mxu0 %v1923
    %2681 = vmatpush1.bf16.msra.mxu0 %v1922
    %2682 = vmatprep.subr.bf16.mxu0 %v1915
    %2683 = vmatpush1.bf16.msra.mxu0 %v1914
    %2684 = vmatprep.subr.bf16.mxu0 %v1907
    %2685 = vmatpush1.bf16.msra.mxu0 %v1906
    %2686 = vmatprep.subr.bf16.mxu0 %v2027
    %2687 = vmatpush2.bf16.msra.mxu0 %v2026
    %2688 = vmatprep.subr.bf16.mxu0 %v2019
    %2689 = vmatpush2.bf16.msra.mxu0 %v2018
    %2690 = vmatprep.subr.bf16.mxu0 %v2011
    %2691 = vmatpush2.bf16.msra.mxu0 %v2010
    %2692 = vmatprep.subr.bf16.mxu0 %v2003
    %2693 = vmatpush2.bf16.msra.mxu0 %v2002
    %2694 = vmatprep.subr.bf16.mxu0 %v1995
    %2695 = vmatpush2.bf16.msra.mxu0 %v1994
    %2696 = vmatprep.subr.bf16.mxu0 %v1987
    %2697 = vmatpush2.bf16.msra.mxu0 %v1986
    %2698 = vmatprep.subr.bf16.mxu0 %v1979
    %2699 = vmatpush2.bf16.msra.mxu0 %v1978
    %2700 = vmatprep.subr.bf16.mxu0 %v1971
    %2701 = vmatpush2.bf16.msra.mxu0 %v1970
    %2702 = vmatprep.mubr.bf16.mxu0 %v873
    %2703 = vmatmul.mubr.bf16.gmra.mxu0 %v872
    %v2704 = vpop.f32.mrf.mxu0
    %v2705 = vadd.f32 0.0, %v2704
    %v2706 = vpop.f32.mrf.mxu0
    %v2707 = vadd.f32 0.0, %v2706
    %v2708 = vpop.f32.mrf.mxu0
    %v2709 = vadd.f32 0.0, %v2708
    %v2710 = vpop.f32.mrf.mxu0
    %v2711 = vadd.f32 0.0, %v2710
    %2712 = vdwg.mxu0
    %2713 = vmatprep.subr.bf16.mxu0 %v2091
    %2714 = vmatpush1.bf16.msra.mxu0 %v2090
    %2715 = vmatprep.subr.bf16.mxu0 %v2083
    %2716 = vmatpush1.bf16.msra.mxu0 %v2082
    %2717 = vmatprep.subr.bf16.mxu0 %v2075
    %2718 = vmatpush1.bf16.msra.mxu0 %v2074
    %2719 = vmatprep.subr.bf16.mxu0 %v2067
    %2720 = vmatpush1.bf16.msra.mxu0 %v2066
    %2721 = vmatprep.subr.bf16.mxu0 %v2059
    %2722 = vmatpush1.bf16.msra.mxu0 %v2058
    %2723 = vmatprep.subr.bf16.mxu0 %v2051
    %2724 = vmatpush1.bf16.msra.mxu0 %v2050
    %2725 = vmatprep.subr.bf16.mxu0 %v2043
    %2726 = vmatpush1.bf16.msra.mxu0 %v2042
    %2727 = vmatprep.subr.bf16.mxu0 %v2035
    %2728 = vmatpush1.bf16.msra.mxu0 %v2034
    %2729 = vmatprep.subr.bf16.mxu0 %v2155
    %2730 = vmatpush2.bf16.msra.mxu0 %v2154
    %2731 = vmatprep.subr.bf16.mxu0 %v2147
    %2732 = vmatpush2.bf16.msra.mxu0 %v2146
    %2733 = vmatprep.subr.bf16.mxu0 %v2139
    %2734 = vmatpush2.bf16.msra.mxu0 %v2138
    %2735 = vmatprep.subr.bf16.mxu0 %v2131
    %2736 = vmatpush2.bf16.msra.mxu0 %v2130
    %2737 = vmatprep.subr.bf16.mxu0 %v2123
    %2738 = vmatpush2.bf16.msra.mxu0 %v2122
    %2739 = vmatprep.subr.bf16.mxu0 %v2115
    %2740 = vmatpush2.bf16.msra.mxu0 %v2114
    %2741 = vmatprep.subr.bf16.mxu0 %v2107
    %2742 = vmatpush2.bf16.msra.mxu0 %v2106
    %2743 = vmatprep.subr.bf16.mxu0 %v2099
    %2744 = vmatpush2.bf16.msra.mxu0 %v2098
    %2745 = vmatprep.mubr.bf16.mxu0 %v875
    %2746 = vmatmul.mubr.bf16.gmra.mxu0 %v874
    %v2747 = vpop.f32.mrf.mxu0
    %v2748 = vadd.f32 %v2705, %v2747
    %v2749 = vpop.f32.mrf.mxu0
    %v2750 = vadd.f32 %v2707, %v2749
    %v2751 = vpop.f32.mrf.mxu0
    %v2752 = vadd.f32 %v2709, %v2751
    %v2753 = vpop.f32.mrf.mxu0
    %v2754 = vadd.f32 %v2711, %v2753
    %2755 = vdwg.mxu0
    %v2756 = vpack.c.bf16 %v2494, %v2490
    %v2757 = vpack.c.bf16 %v2496, %v2492
    %v2758 = vpack.c.bf16 %v2580, %v2576
    %v2759 = vpack.c.bf16 %v2582, %v2578
    %v2760 = vpack.c.bf16 %v2666, %v2662
    %v2761 = vpack.c.bf16 %v2668, %v2664
    %v2762 = vpack.c.bf16 %v2752, %v2748
    %v2763 = vpack.c.bf16 %v2754, %v2750
    %v2764 = vld [vmem:[#allocation13] sm:$0xff]
    %v2766 = vcombine.high %v2764, %v2764
    %v2768 = vunpack.c.l.s4 1966171168
    %v2769 = vunpack.c.0.s8 %v2768
    %v2770 = vlaneseq
    %v2771 = vshrl.u32 %v2770, 7
    %v2772 = vsub.s32 %v2769, %v2771
    %v2773 = vrot.slane %v2764, %v2772
    %v2775 = vunpack.c.l.s4 1966171168
    %v2776 = vunpack.c.0.s8 %v2775
    %v2777 = vlaneseq
    %v2778 = vshrl.u32 %v2777, 7
    %v2779 = vsub.s32 %v2776, %v2778
    %v2780 = vrot.slane %v2766, %v2779
    %v2781 = vcombine.high %v2773, %v2773
    %v2782 = vcombine.high %v2780, %v2780
    %v2784 = vunpack.c.l.s4 1966171168
    %v2785 = vunpack.c.0.s8 %v2784
    %v2786 = vlaneseq
    %v2787 = vshrl.u32 %v2786, 7
    %v2788 = vsub.s32 %v2785, %v2787
    %v2789 = vrot.slane %v2773, %v2788
    %v2791 = vunpack.c.l.s4 1966171168
    %v2792 = vunpack.c.0.s8 %v2791
    %v2793 = vlaneseq
    %v2794 = vshrl.u32 %v2793, 7
    %v2795 = vsub.s32 %v2792, %v2794
    %v2796 = vrot.slane %v2780, %v2795
    %v2798 = vunpack.c.l.s4 1966171168
    %v2799 = vunpack.c.0.s8 %v2798
    %v2800 = vlaneseq
    %v2801 = vshrl.u32 %v2800, 7
    %v2802 = vsub.s32 %v2799, %v2801
    %v2803 = vrot.slane %v2781, %v2802
    %v2805 = vunpack.c.l.s4 1966171168
    %v2806 = vunpack.c.0.s8 %v2805
    %v2807 = vlaneseq
    %v2808 = vshrl.u32 %v2807, 7
    %v2809 = vsub.s32 %v2806, %v2808
    %v2810 = vrot.slane %v2782, %v2809
    %v2811 = vcombine.high %v2789, %v2789
    %v2812 = vcombine.high %v2796, %v2796
    %v2813 = vcombine.high %v2803, %v2803
    %v2814 = vcombine.high %v2810, %v2810
    %v2816 = vpack.i.b16 %v2789, %v2789
    %v2818 = vlaneseq
    %v2819 = vshrl.u32 %v2818, 7
    %v2820 = vsub.s32 0, %v2819
    %v2821 = vrot.slane %v2816, %v2820
    %v2823 = vpack.i.b16 %v2803, %v2803
    %v2825 = vlaneseq
    %v2826 = vshrl.u32 %v2825, 7
    %v2827 = vsub.s32 0, %v2826
    %v2828 = vrot.slane %v2823, %v2827
    %v2830 = vpack.i.b16 %v2811, %v2811
    %v2832 = vlaneseq
    %v2833 = vshrl.u32 %v2832, 7
    %v2834 = vsub.s32 0, %v2833
    %v2835 = vrot.slane %v2830, %v2834
    %v2837 = vpack.i.b16 %v2813, %v2813
    %v2839 = vlaneseq
    %v2840 = vshrl.u32 %v2839, 7
    %v2841 = vsub.s32 0, %v2840
    %v2842 = vrot.slane %v2837, %v2841
    %v2844 = vpack.i.b16 %v2796, %v2796
    %v2846 = vlaneseq
    %v2847 = vshrl.u32 %v2846, 7
    %v2848 = vsub.s32 0, %v2847
    %v2849 = vrot.slane %v2844, %v2848
    %v2851 = vpack.i.b16 %v2810, %v2810
    %v2853 = vlaneseq
    %v2854 = vshrl.u32 %v2853, 7
    %v2855 = vsub.s32 0, %v2854
    %v2856 = vrot.slane %v2851, %v2855
    %v2858 = vpack.i.b16 %v2812, %v2812
    %v2860 = vlaneseq
    %v2861 = vshrl.u32 %v2860, 7
    %v2862 = vsub.s32 0, %v2861
    %v2863 = vrot.slane %v2858, %v2862
    %v2865 = vpack.i.b16 %v2814, %v2814
    %v2867 = vlaneseq
    %v2868 = vshrl.u32 %v2867, 7
    %v2869 = vsub.s32 0, %v2868
    %v2870 = vrot.slane %v2865, %v2869
    %v2871 = vadd.bf16 %v2756, %v2821
    %v2872 = vadd.bf16 %v2757, %v2828
    %v2873 = vadd.bf16 %v2758, %v2835
    %v2874 = vadd.bf16 %v2759, %v2842
    %v2875 = vadd.bf16 %v2760, %v2849
    %v2876 = vadd.bf16 %v2761, %v2856
    %v2877 = vadd.bf16 %v2762, %v2863
    %v2878 = vadd.bf16 %v2763, %v2870
    %vm2879 = vcmp.gt.bf16.partialorder %v2871, 0
    %vm2880 = vcmp.gt.bf16.partialorder %v2872, 0
    %vm2881 = vcmp.gt.bf16.partialorder %v2873, 0
    %vm2882 = vcmp.gt.bf16.partialorder %v2874, 0
    %vm2883 = vcmp.gt.bf16.partialorder %v2875, 0
    %vm2884 = vcmp.gt.bf16.partialorder %v2876, 0
    %vm2885 = vcmp.gt.bf16.partialorder %v2877, 0
    %vm2886 = vcmp.gt.bf16.partialorder %v2878, 0
    %v2887 = vmul.bf16 %v2871, 1045249613
    %v2888 = vmul.bf16 %v2872, 1045249613
    %v2889 = vmul.bf16 %v2873, 1045249613
    %v2890 = vmul.bf16 %v2874, 1045249613
    %v2891 = vmul.bf16 %v2875, 1045249613
    %v2892 = vmul.bf16 %v2876, 1045249613
    %v2893 = vmul.bf16 %v2877, 1045249613
    %v2894 = vmul.bf16 %v2878, 1045249613
    %v2895 = vsel %vm2879, %v2871, %v2887
    %v2896 = vsel %vm2880, %v2872, %v2888
    %v2897 = vsel %vm2881, %v2873, %v2889
    %v2898 = vsel %vm2882, %v2874, %v2890
    %v2899 = vsel %vm2883, %v2875, %v2891
    %v2900 = vsel %vm2884, %v2876, %v2892
    %v2901 = vsel %vm2885, %v2877, %v2893
    %v2902 = vsel %vm2886, %v2878, %v2894
    %v2903 = vld [vmem:[#allocation14] sm:$0xff]
    %v2904 = vld [vmem:[#allocation14 + $0x8] sm:$0xff]
    %v2905 = vld [vmem:[#allocation14 + $0x10] sm:$0xff]
    %v2906 = vld [vmem:[#allocation14 + $0x18] sm:$0xf]
    %v2907 = vld [vmem:[#allocation14 + $0x1c] sm:$0xff]
    %v2908 = vld [vmem:[#allocation14 + $0x24] sm:$0xff]
    %v2909 = vld [vmem:[#allocation14 + $0x2c] sm:$0xff]
    %v2910 = vld [vmem:[#allocation14 + $0x34] sm:$0xf]
    %v2911 = vld [vmem:[#allocation14 + $0x38] sm:$0xff]
    %v2912 = vld [vmem:[#allocation14 + $0x40] sm:$0xff]
    %v2913 = vld [vmem:[#allocation14 + $0x48] sm:$0xff]
    %v2914 = vld [vmem:[#allocation14 + $0x50] sm:$0xf]
    %v2915 = vld [vmem:[#allocation14 + $0x54] sm:$0xff]
    %v2916 = vld [vmem:[#allocation14 + $0x5c] sm:$0xff]
    %v2917 = vld [vmem:[#allocation14 + $0x64] sm:$0xff]
    %v2918 = vld [vmem:[#allocation14 + $0x6c] sm:$0xf]
    %v2919 = vld [vmem:[#allocation14 + $0x70] sm:$0xff]
    %v2920 = vld [vmem:[#allocation14 + $0x78] sm:$0xff]
    %v2921 = vld [vmem:[#allocation14 + $0x80] sm:$0xff]
    %v2922 = vld [vmem:[#allocation14 + $0x88] sm:$0xf]
    %v2923 = vld [vmem:[#allocation14 + $0x8c] sm:$0xff]
    %v2924 = vld [vmem:[#allocation14 + $0x94] sm:$0xff]
    %v2925 = vld [vmem:[#allocation14 + $0x9c] sm:$0xff]
    %v2926 = vld [vmem:[#allocation14 + $0xa4] sm:$0xf]
    %v2927 = vld [vmem:[#allocation14 + $0xa8] sm:$0xff]
    %v2928 = vld [vmem:[#allocation14 + $0xb0] sm:$0xff]
    %v2929 = vld [vmem:[#allocation14 + $0xb8] sm:$0xff]
    %v2930 = vld [vmem:[#allocation14 + $0xc0] sm:$0xf]
    %v2931 = vld [vmem:[#allocation14 + $0xc4] sm:$0xff]
    %v2932 = vld [vmem:[#allocation14 + $0xcc] sm:$0xff]
    %v2933 = vld [vmem:[#allocation14 + $0xd4] sm:$0xff]
    %v2934 = vld [vmem:[#allocation14 + $0xdc] sm:$0xf]
    %v2935 = vld [vmem:[#allocation14 + $0xe0] sm:$0xff]
    %v2936 = vld [vmem:[#allocation14 + $0xe8] sm:$0xff]
    %v2937 = vld [vmem:[#allocation14 + $0xf0] sm:$0xff]
    %v2938 = vld [vmem:[#allocation14 + $0xf8] sm:$0xf]
    %v2939 = vld [vmem:[#allocation14 + $0xfc] sm:$0xff]
    %v2940 = vld [vmem:[#allocation14 + $0x104] sm:$0xff]
    %v2941 = vld [vmem:[#allocation14 + $0x10c] sm:$0xff]
    %v2942 = vld [vmem:[#allocation14 + $0x114] sm:$0xf]
    %v2943 = vld [vmem:[#allocation14 + $0x118] sm:$0xff]
    %v2944 = vld [vmem:[#allocation14 + $0x120] sm:$0xff]
    %v2945 = vld [vmem:[#allocation14 + $0x128] sm:$0xff]
    %v2946 = vld [vmem:[#allocation14 + $0x130] sm:$0xf]
    %v2947 = vld [vmem:[#allocation14 + $0x134] sm:$0xff]
    %v2948 = vld [vmem:[#allocation14 + $0x13c] sm:$0xff]
    %v2949 = vld [vmem:[#allocation14 + $0x144] sm:$0xff]
    %v2950 = vld [vmem:[#allocation14 + $0x14c] sm:$0xf]
    %v2951 = vld [vmem:[#allocation14 + $0x150] sm:$0xff]
    %v2952 = vld [vmem:[#allocation14 + $0x158] sm:$0xff]
    %v2953 = vld [vmem:[#allocation14 + $0x160] sm:$0xff]
    %v2954 = vld [vmem:[#allocation14 + $0x168] sm:$0xf]
    %v2955 = vld [vmem:[#allocation14 + $0x16c] sm:$0xff]
    %v2956 = vld [vmem:[#allocation14 + $0x174] sm:$0xff]
    %v2957 = vld [vmem:[#allocation14 + $0x17c] sm:$0xff]
    %v2958 = vld [vmem:[#allocation14 + $0x184] sm:$0xf]
    %v2959 = vld [vmem:[#allocation14 + $0x188] sm:$0xff]
    %v2960 = vld [vmem:[#allocation14 + $0x190] sm:$0xff]
    %v2961 = vld [vmem:[#allocation14 + $0x198] sm:$0xff]
    %v2962 = vld [vmem:[#allocation14 + $0x1a0] sm:$0xf]
    %v2963 = vld [vmem:[#allocation14 + $0x1a4] sm:$0xff]
    %v2964 = vld [vmem:[#allocation14 + $0x1ac] sm:$0xff]
    %v2965 = vld [vmem:[#allocation14 + $0x1b4] sm:$0xff]
    %v2966 = vld [vmem:[#allocation14 + $0x1bc] sm:$0xf]
    %v2967 = vld [vmem:[#allocation14 + $0x1c0] sm:$0xff]
    %v2968 = vld [vmem:[#allocation14 + $0x1c8] sm:$0xff]
    %v2969 = vld [vmem:[#allocation14 + $0x1d0] sm:$0xff]
    %v2970 = vld [vmem:[#allocation14 + $0x1d8] sm:$0xf]
    %v2971 = vld [vmem:[#allocation14 + $0x1dc] sm:$0xff]
    %v2972 = vld [vmem:[#allocation14 + $0x1e4] sm:$0xff]
    %v2973 = vld [vmem:[#allocation14 + $0x1ec] sm:$0xff]
    %v2974 = vld [vmem:[#allocation14 + $0x1f4] sm:$0xf]
    %v2975 = vld [vmem:[#allocation14 + $0x1f8] sm:$0xff]
    %v2976 = vld [vmem:[#allocation14 + $0x200] sm:$0xff]
    %v2977 = vld [vmem:[#allocation14 + $0x208] sm:$0xff]
    %v2978 = vld [vmem:[#allocation14 + $0x210] sm:$0xf]
    %v2979 = vld [vmem:[#allocation14 + $0x214] sm:$0xff]
    %v2980 = vld [vmem:[#allocation14 + $0x21c] sm:$0xff]
    %v2981 = vld [vmem:[#allocation14 + $0x224] sm:$0xff]
    %v2982 = vld [vmem:[#allocation14 + $0x22c] sm:$0xf]
    %v2983 = vld [vmem:[#allocation14 + $0x230] sm:$0xff]
    %v2984 = vld [vmem:[#allocation14 + $0x238] sm:$0xff]
    %v2985 = vld [vmem:[#allocation14 + $0x240] sm:$0xff]
    %v2986 = vld [vmem:[#allocation14 + $0x248] sm:$0xf]
    %v2987 = vld [vmem:[#allocation14 + $0x24c] sm:$0xff]
    %v2988 = vld [vmem:[#allocation14 + $0x254] sm:$0xff]
    %v2989 = vld [vmem:[#allocation14 + $0x25c] sm:$0xff]
    %v2990 = vld [vmem:[#allocation14 + $0x264] sm:$0xf]
    %v2991 = vld [vmem:[#allocation14 + $0x268] sm:$0xff]
    %v2992 = vld [vmem:[#allocation14 + $0x270] sm:$0xff]
    %v2993 = vld [vmem:[#allocation14 + $0x278] sm:$0xff]
    %v2994 = vld [vmem:[#allocation14 + $0x280] sm:$0xf]
    %v2995 = vld [vmem:[#allocation14 + $0x284] sm:$0xff]
    %v2996 = vld [vmem:[#allocation14 + $0x28c] sm:$0xff]
    %v2997 = vld [vmem:[#allocation14 + $0x294] sm:$0xff]
    %v2998 = vld [vmem:[#allocation14 + $0x29c] sm:$0xf]
    %v2999 = vld [vmem:[#allocation14 + $0x2a0] sm:$0xff]
    %v3000 = vld [vmem:[#allocation14 + $0x2a8] sm:$0xff]
    %v3001 = vld [vmem:[#allocation14 + $0x2b0] sm:$0xff]
    %v3002 = vld [vmem:[#allocation14 + $0x2b8] sm:$0xf]
    %v3003 = vld [vmem:[#allocation14 + $0x2bc] sm:$0xff]
    %v3004 = vld [vmem:[#allocation14 + $0x2c4] sm:$0xff]
    %v3005 = vld [vmem:[#allocation14 + $0x2cc] sm:$0xff]
    %v3006 = vld [vmem:[#allocation14 + $0x2d4] sm:$0xf]
    %v3007 = vld [vmem:[#allocation14 + $0x2d8] sm:$0xff]
    %v3008 = vld [vmem:[#allocation14 + $0x2e0] sm:$0xff]
    %v3009 = vld [vmem:[#allocation14 + $0x2e8] sm:$0xff]
    %v3010 = vld [vmem:[#allocation14 + $0x2f0] sm:$0xf]
    %v3011 = vld [vmem:[#allocation14 + $0x2f4] sm:$0xff]
    %v3012 = vld [vmem:[#allocation14 + $0x2fc] sm:$0xff]
    %v3013 = vld [vmem:[#allocation14 + $0x304] sm:$0xff]
    %v3014 = vld [vmem:[#allocation14 + $0x30c] sm:$0xf]
    %v3015 = vld [vmem:[#allocation14 + $0x310] sm:$0xff]
    %v3016 = vld [vmem:[#allocation14 + $0x318] sm:$0xff]
    %v3017 = vld [vmem:[#allocation14 + $0x320] sm:$0xff]
    %v3018 = vld [vmem:[#allocation14 + $0x328] sm:$0xf]
    %v3019 = vld [vmem:[#allocation14 + $0x32c] sm:$0xff]
    %v3020 = vld [vmem:[#allocation14 + $0x334] sm:$0xff]
    %v3021 = vld [vmem:[#allocation14 + $0x33c] sm:$0xff]
    %v3022 = vld [vmem:[#allocation14 + $0x344] sm:$0xf]
    %v3023 = vld [vmem:[#allocation14 + $0x348] sm:$0xff]
    %v3024 = vld [vmem:[#allocation14 + $0x350] sm:$0xff]
    %v3025 = vld [vmem:[#allocation14 + $0x358] sm:$0xff]
    %v3026 = vld [vmem:[#allocation14 + $0x360] sm:$0xf]
    %v3027 = vld [vmem:[#allocation14 + $0x364] sm:$0xff]
    %v3028 = vld [vmem:[#allocation14 + $0x36c] sm:$0xff]
    %v3029 = vld [vmem:[#allocation14 + $0x374] sm:$0xff]
    %v3030 = vld [vmem:[#allocation14 + $0x37c] sm:$0xf]
    %v3031 = vld [vmem:[#allocation14 + $0x380] sm:$0xff]
    %v3032 = vld [vmem:[#allocation14 + $0x388] sm:$0xff]
    %v3033 = vld [vmem:[#allocation14 + $0x390] sm:$0xff]
    %v3034 = vld [vmem:[#allocation14 + $0x398] sm:$0xf]
    %v3035 = vld [vmem:[#allocation14 + $0x39c] sm:$0xff]
    %v3036 = vld [vmem:[#allocation14 + $0x3a4] sm:$0xff]
    %v3037 = vld [vmem:[#allocation14 + $0x3ac] sm:$0xff]
    %v3038 = vld [vmem:[#allocation14 + $0x3b4] sm:$0xf]
    %v3039 = vld [vmem:[#allocation14 + $0x3b8] sm:$0xff]
    %v3040 = vld [vmem:[#allocation14 + $0x3c0] sm:$0xff]
    %v3041 = vld [vmem:[#allocation14 + $0x3c8] sm:$0xff]
    %v3042 = vld [vmem:[#allocation14 + $0x3d0] sm:$0xf]
    %v3043 = vld [vmem:[#allocation14 + $0x3d4] sm:$0xff]
    %v3044 = vld [vmem:[#allocation14 + $0x3dc] sm:$0xff]
    %v3045 = vld [vmem:[#allocation14 + $0x3e4] sm:$0xff]
    %v3046 = vld [vmem:[#allocation14 + $0x3ec] sm:$0xf]
    %v3047 = vld [vmem:[#allocation14 + $0x3f0] sm:$0xff]
    %v3048 = vld [vmem:[#allocation14 + $0x3f8] sm:$0xff]
    %v3049 = vld [vmem:[#allocation14 + $0x400] sm:$0xff]
    %v3050 = vld [vmem:[#allocation14 + $0x408] sm:$0xf]
    %v3051 = vld [vmem:[#allocation14 + $0x40c] sm:$0xff]
    %v3052 = vld [vmem:[#allocation14 + $0x414] sm:$0xff]
    %v3053 = vld [vmem:[#allocation14 + $0x41c] sm:$0xff]
    %v3054 = vld [vmem:[#allocation14 + $0x424] sm:$0xf]
    %v3055 = vld [vmem:[#allocation14 + $0x428] sm:$0xff]
    %v3056 = vld [vmem:[#allocation14 + $0x430] sm:$0xff]
    %v3057 = vld [vmem:[#allocation14 + $0x438] sm:$0xff]
    %v3058 = vld [vmem:[#allocation14 + $0x440] sm:$0xf]
    %v3059 = vld [vmem:[#allocation14 + $0x444] sm:$0xff]
    %v3060 = vld [vmem:[#allocation14 + $0x44c] sm:$0xff]
    %v3061 = vld [vmem:[#allocation14 + $0x454] sm:$0xff]
    %v3062 = vld [vmem:[#allocation14 + $0x45c] sm:$0xf]
    %v3063 = vld [vmem:[#allocation14 + $0x460] sm:$0xff]
    %v3064 = vld [vmem:[#allocation14 + $0x468] sm:$0xff]
    %v3065 = vld [vmem:[#allocation14 + $0x470] sm:$0xff]
    %v3066 = vld [vmem:[#allocation14 + $0x478] sm:$0xf]
    %v3067 = vld [vmem:[#allocation14 + $0x47c] sm:$0xff]
    %v3068 = vld [vmem:[#allocation14 + $0x484] sm:$0xff]
    %v3069 = vld [vmem:[#allocation14 + $0x48c] sm:$0xff]
    %v3070 = vld [vmem:[#allocation14 + $0x494] sm:$0xf]
    %v3071 = vld [vmem:[#allocation14 + $0x498] sm:$0xff]
    %v3072 = vld [vmem:[#allocation14 + $0x4a0] sm:$0xff]
    %v3073 = vld [vmem:[#allocation14 + $0x4a8] sm:$0xff]
    %v3074 = vld [vmem:[#allocation14 + $0x4b0] sm:$0xf]
    %v3075 = vld [vmem:[#allocation14 + $0x4b4] sm:$0xff]
    %v3076 = vld [vmem:[#allocation14 + $0x4bc] sm:$0xff]
    %v3077 = vld [vmem:[#allocation14 + $0x4c4] sm:$0xff]
    %v3078 = vld [vmem:[#allocation14 + $0x4cc] sm:$0xf]
    %v3079 = vld [vmem:[#allocation14 + $0x4d0] sm:$0xff]
    %v3080 = vld [vmem:[#allocation14 + $0x4d8] sm:$0xff]
    %v3081 = vld [vmem:[#allocation14 + $0x4e0] sm:$0xff]
    %v3082 = vld [vmem:[#allocation14 + $0x4e8] sm:$0xf]
    %v3083 = vld [vmem:[#allocation14 + $0x4ec] sm:$0xff]
    %v3084 = vld [vmem:[#allocation14 + $0x4f4] sm:$0xff]
    %v3085 = vld [vmem:[#allocation14 + $0x4fc] sm:$0xff]
    %v3086 = vld [vmem:[#allocation14 + $0x504] sm:$0xf]
    %v3087 = vld [vmem:[#allocation14 + $0x508] sm:$0xff]
    %v3088 = vld [vmem:[#allocation14 + $0x510] sm:$0xff]
    %v3089 = vld [vmem:[#allocation14 + $0x518] sm:$0xff]
    %v3090 = vld [vmem:[#allocation14 + $0x520] sm:$0xf]
    %v3091 = vld [vmem:[#allocation14 + $0x524] sm:$0xff]
    %v3092 = vld [vmem:[#allocation14 + $0x52c] sm:$0xff]
    %v3093 = vld [vmem:[#allocation14 + $0x534] sm:$0xff]
    %v3094 = vld [vmem:[#allocation14 + $0x53c] sm:$0xf]
    %v3095 = vld [vmem:[#allocation14 + $0x540] sm:$0xff]
    %v3096 = vld [vmem:[#allocation14 + $0x548] sm:$0xff]
    %v3097 = vld [vmem:[#allocation14 + $0x550] sm:$0xff]
    %v3098 = vld [vmem:[#allocation14 + $0x558] sm:$0xf]
    %v3099 = vld [vmem:[#allocation14 + $0x55c] sm:$0xff]
    %v3100 = vld [vmem:[#allocation14 + $0x564] sm:$0xff]
    %v3101 = vld [vmem:[#allocation14 + $0x56c] sm:$0xff]
    %v3102 = vld [vmem:[#allocation14 + $0x574] sm:$0xf]
    %v3103 = vld [vmem:[#allocation14 + $0x578] sm:$0xff]
    %v3104 = vld [vmem:[#allocation14 + $0x580] sm:$0xff]
    %v3105 = vld [vmem:[#allocation14 + $0x588] sm:$0xff]
    %v3106 = vld [vmem:[#allocation14 + $0x590] sm:$0xf]
    %v3107 = vld [vmem:[#allocation14 + $0x594] sm:$0xff]
    %v3108 = vld [vmem:[#allocation14 + $0x59c] sm:$0xff]
    %v3109 = vld [vmem:[#allocation14 + $0x5a4] sm:$0xff]
    %v3110 = vld [vmem:[#allocation14 + $0x5ac] sm:$0xf]
    %v3111 = vld [vmem:[#allocation14 + $0x5b0] sm:$0xff]
    %v3112 = vld [vmem:[#allocation14 + $0x5b8] sm:$0xff]
    %v3113 = vld [vmem:[#allocation14 + $0x5c0] sm:$0xff]
    %v3114 = vld [vmem:[#allocation14 + $0x5c8] sm:$0xf]
    %v3115 = vld [vmem:[#allocation14 + $0x5cc] sm:$0xff]
    %v3116 = vld [vmem:[#allocation14 + $0x5d4] sm:$0xff]
    %v3117 = vld [vmem:[#allocation14 + $0x5dc] sm:$0xff]
    %v3118 = vld [vmem:[#allocation14 + $0x5e4] sm:$0xf]
    %v3119 = vld [vmem:[#allocation14 + $0x5e8] sm:$0xff]
    %v3120 = vld [vmem:[#allocation14 + $0x5f0] sm:$0xff]
    %v3121 = vld [vmem:[#allocation14 + $0x5f8] sm:$0xff]
    %v3122 = vld [vmem:[#allocation14 + $0x600] sm:$0xf]
    %v3123 = vld [vmem:[#allocation14 + $0x604] sm:$0xff]
    %v3124 = vld [vmem:[#allocation14 + $0x60c] sm:$0xff]
    %v3125 = vld [vmem:[#allocation14 + $0x614] sm:$0xff]
    %v3126 = vld [vmem:[#allocation14 + $0x61c] sm:$0xf]
    %v3127 = vld [vmem:[#allocation14 + $0x620] sm:$0xff]
    %v3128 = vld [vmem:[#allocation14 + $0x628] sm:$0xff]
    %v3129 = vld [vmem:[#allocation14 + $0x630] sm:$0xff]
    %v3130 = vld [vmem:[#allocation14 + $0x638] sm:$0xf]
    %v3131 = vld [vmem:[#allocation14 + $0x63c] sm:$0xff]
    %v3132 = vld [vmem:[#allocation14 + $0x644] sm:$0xff]
    %v3133 = vld [vmem:[#allocation14 + $0x64c] sm:$0xff]
    %v3134 = vld [vmem:[#allocation14 + $0x654] sm:$0xf]
    %v3135 = vld [vmem:[#allocation14 + $0x658] sm:$0xff]
    %v3136 = vld [vmem:[#allocation14 + $0x660] sm:$0xff]
    %v3137 = vld [vmem:[#allocation14 + $0x668] sm:$0xff]
    %v3138 = vld [vmem:[#allocation14 + $0x670] sm:$0xf]
    %v3139 = vld [vmem:[#allocation14 + $0x674] sm:$0xff]
    %v3140 = vld [vmem:[#allocation14 + $0x67c] sm:$0xff]
    %v3141 = vld [vmem:[#allocation14 + $0x684] sm:$0xff]
    %v3142 = vld [vmem:[#allocation14 + $0x68c] sm:$0xf]
    %v3143 = vld [vmem:[#allocation14 + $0x690] sm:$0xff]
    %v3144 = vld [vmem:[#allocation14 + $0x698] sm:$0xff]
    %v3145 = vld [vmem:[#allocation14 + $0x6a0] sm:$0xff]
    %v3146 = vld [vmem:[#allocation14 + $0x6a8] sm:$0xf]
    %v3147 = vld [vmem:[#allocation14 + $0x6ac] sm:$0xff]
    %v3148 = vld [vmem:[#allocation14 + $0x6b4] sm:$0xff]
    %v3149 = vld [vmem:[#allocation14 + $0x6bc] sm:$0xff]
    %v3150 = vld [vmem:[#allocation14 + $0x6c4] sm:$0xf]
    %v3151 = vld [vmem:[#allocation14 + $0x6c8] sm:$0xff]
    %v3152 = vld [vmem:[#allocation14 + $0x6d0] sm:$0xff]
    %v3153 = vld [vmem:[#allocation14 + $0x6d8] sm:$0xff]
    %v3154 = vld [vmem:[#allocation14 + $0x6e0] sm:$0xf]
    %v3155 = vld [vmem:[#allocation14 + $0x6e4] sm:$0xff]
    %v3156 = vld [vmem:[#allocation14 + $0x6ec] sm:$0xff]
    %v3157 = vld [vmem:[#allocation14 + $0x6f4] sm:$0xff]
    %v3158 = vld [vmem:[#allocation14 + $0x6fc] sm:$0xf]
    %v3159 = vld [vmem:[#allocation14 + $0x700] sm:$0xff]
    %v3160 = vld [vmem:[#allocation14 + $0x708] sm:$0xff]
    %v3161 = vld [vmem:[#allocation14 + $0x710] sm:$0xff]
    %v3162 = vld [vmem:[#allocation14 + $0x718] sm:$0xf]
    %v3163 = vld [vmem:[#allocation14 + $0x71c] sm:$0xff]
    %v3164 = vld [vmem:[#allocation14 + $0x724] sm:$0xff]
    %v3165 = vld [vmem:[#allocation14 + $0x72c] sm:$0xff]
    %v3166 = vld [vmem:[#allocation14 + $0x734] sm:$0xf]
    %v3167 = vld [vmem:[#allocation14 + $0x738] sm:$0xff]
    %v3168 = vld [vmem:[#allocation14 + $0x740] sm:$0xff]
    %v3169 = vld [vmem:[#allocation14 + $0x748] sm:$0xff]
    %v3170 = vld [vmem:[#allocation14 + $0x750] sm:$0xf]
    %v3171 = vld [vmem:[#allocation14 + $0x754] sm:$0xff]
    %v3172 = vld [vmem:[#allocation14 + $0x75c] sm:$0xff]
    %v3173 = vld [vmem:[#allocation14 + $0x764] sm:$0xff]
    %v3174 = vld [vmem:[#allocation14 + $0x76c] sm:$0xf]
    %v3175 = vld [vmem:[#allocation14 + $0x770] sm:$0xff]
    %v3176 = vld [vmem:[#allocation14 + $0x778] sm:$0xff]
    %v3177 = vld [vmem:[#allocation14 + $0x780] sm:$0xff]
    %v3178 = vld [vmem:[#allocation14 + $0x788] sm:$0xf]
    %v3179 = vld [vmem:[#allocation14 + $0x78c] sm:$0xff]
    %v3180 = vld [vmem:[#allocation14 + $0x794] sm:$0xff]
    %v3181 = vld [vmem:[#allocation14 + $0x79c] sm:$0xff]
    %v3182 = vld [vmem:[#allocation14 + $0x7a4] sm:$0xf]
    %v3183 = vld [vmem:[#allocation14 + $0x7a8] sm:$0xff]
    %v3184 = vld [vmem:[#allocation14 + $0x7b0] sm:$0xff]
    %v3185 = vld [vmem:[#allocation14 + $0x7b8] sm:$0xff]
    %v3186 = vld [vmem:[#allocation14 + $0x7c0] sm:$0xf]
    %v3187 = vld [vmem:[#allocation14 + $0x7c4] sm:$0xff]
    %v3188 = vld [vmem:[#allocation14 + $0x7cc] sm:$0xff]
    %v3189 = vld [vmem:[#allocation14 + $0x7d4] sm:$0xff]
    %v3190 = vld [vmem:[#allocation14 + $0x7dc] sm:$0xf]
    %v3191 = vld [vmem:[#allocation14 + $0x7e0] sm:$0xff]
    %v3192 = vld [vmem:[#allocation14 + $0x7e8] sm:$0xff]
    %v3193 = vld [vmem:[#allocation14 + $0x7f0] sm:$0xff]
    %v3194 = vld [vmem:[#allocation14 + $0x7f8] sm:$0xf]
    %v3195 = vld [vmem:[#allocation14 + $0x7fc] sm:$0xff]
    %v3196 = vld [vmem:[#allocation14 + $0x804] sm:$0xff]
    %v3197 = vld [vmem:[#allocation14 + $0x80c] sm:$0xff]
    %v3198 = vld [vmem:[#allocation14 + $0x814] sm:$0xf]
    %v3199 = vld [vmem:[#allocation14 + $0x818] sm:$0xff]
    %v3200 = vld [vmem:[#allocation14 + $0x820] sm:$0xff]
    %v3201 = vld [vmem:[#allocation14 + $0x828] sm:$0xff]
    %v3202 = vld [vmem:[#allocation14 + $0x830] sm:$0xf]
    %v3203 = vld [vmem:[#allocation14 + $0x834] sm:$0xff]
    %v3204 = vld [vmem:[#allocation14 + $0x83c] sm:$0xff]
    %v3205 = vld [vmem:[#allocation14 + $0x844] sm:$0xff]
    %v3206 = vld [vmem:[#allocation14 + $0x84c] sm:$0xf]
    %v3207 = vld [vmem:[#allocation14 + $0x850] sm:$0xff]
    %v3208 = vld [vmem:[#allocation14 + $0x858] sm:$0xff]
    %v3209 = vld [vmem:[#allocation14 + $0x860] sm:$0xff]
    %v3210 = vld [vmem:[#allocation14 + $0x868] sm:$0xf]
    %v3211 = vld [vmem:[#allocation14 + $0x86c] sm:$0xff]
    %v3212 = vld [vmem:[#allocation14 + $0x874] sm:$0xff]
    %v3213 = vld [vmem:[#allocation14 + $0x87c] sm:$0xff]
    %v3214 = vld [vmem:[#allocation14 + $0x884] sm:$0xf]
    %v3215 = vld [vmem:[#allocation14 + $0x888] sm:$0xff]
    %v3216 = vld [vmem:[#allocation14 + $0x890] sm:$0xff]
    %v3217 = vld [vmem:[#allocation14 + $0x898] sm:$0xff]
    %v3218 = vld [vmem:[#allocation14 + $0x8a0] sm:$0xf]
    %v3219 = vld [vmem:[#allocation14 + $0x8a4] sm:$0xff]
    %v3220 = vld [vmem:[#allocation14 + $0x8ac] sm:$0xff]
    %v3221 = vld [vmem:[#allocation14 + $0x8b4] sm:$0xff]
    %v3222 = vld [vmem:[#allocation14 + $0x8bc] sm:$0xf]
    %v3223 = vld [vmem:[#allocation14 + $0x8c0] sm:$0xff]
    %v3224 = vld [vmem:[#allocation14 + $0x8c8] sm:$0xff]
    %v3225 = vld [vmem:[#allocation14 + $0x8d0] sm:$0xff]
    %v3226 = vld [vmem:[#allocation14 + $0x8d8] sm:$0xf]
    %v3227 = vld [vmem:[#allocation14 + $0x8dc] sm:$0xff]
    %v3228 = vld [vmem:[#allocation14 + $0x8e4] sm:$0xff]
    %v3229 = vld [vmem:[#allocation14 + $0x8ec] sm:$0xff]
    %v3230 = vld [vmem:[#allocation14 + $0x8f4] sm:$0xf]
    %v3231 = vld [vmem:[#allocation14 + $0x8f8] sm:$0xff]
    %v3232 = vld [vmem:[#allocation14 + $0x900] sm:$0xff]
    %v3233 = vld [vmem:[#allocation14 + $0x908] sm:$0xff]
    %v3234 = vld [vmem:[#allocation14 + $0x910] sm:$0xf]
    %v3235 = vld [vmem:[#allocation14 + $0x914] sm:$0xff]
    %v3236 = vld [vmem:[#allocation14 + $0x91c] sm:$0xff]
    %v3237 = vld [vmem:[#allocation14 + $0x924] sm:$0xff]
    %v3238 = vld [vmem:[#allocation14 + $0x92c] sm:$0xf]
    %v3239 = vld [vmem:[#allocation14 + $0x930] sm:$0xff]
    %v3240 = vld [vmem:[#allocation14 + $0x938] sm:$0xff]
    %v3241 = vld [vmem:[#allocation14 + $0x940] sm:$0xff]
    %v3242 = vld [vmem:[#allocation14 + $0x948] sm:$0xf]
    %v3243 = vld [vmem:[#allocation14 + $0x94c] sm:$0xff]
    %v3244 = vld [vmem:[#allocation14 + $0x954] sm:$0xff]
    %v3245 = vld [vmem:[#allocation14 + $0x95c] sm:$0xff]
    %v3246 = vld [vmem:[#allocation14 + $0x964] sm:$0xf]
    %v3247 = vld [vmem:[#allocation14 + $0x968] sm:$0xff]
    %v3248 = vld [vmem:[#allocation14 + $0x970] sm:$0xff]
    %v3249 = vld [vmem:[#allocation14 + $0x978] sm:$0xff]
    %v3250 = vld [vmem:[#allocation14 + $0x980] sm:$0xf]
    %v3251 = vld [vmem:[#allocation14 + $0x984] sm:$0xff]
    %v3252 = vld [vmem:[#allocation14 + $0x98c] sm:$0xff]
    %v3253 = vld [vmem:[#allocation14 + $0x994] sm:$0xff]
    %v3254 = vld [vmem:[#allocation14 + $0x99c] sm:$0xf]
    %v3255 = vld [vmem:[#allocation14 + $0x9a0] sm:$0xff]
    %v3256 = vld [vmem:[#allocation14 + $0x9a8] sm:$0xff]
    %v3257 = vld [vmem:[#allocation14 + $0x9b0] sm:$0xff]
    %v3258 = vld [vmem:[#allocation14 + $0x9b8] sm:$0xf]
    %v3259 = vld [vmem:[#allocation14 + $0x9bc] sm:$0xff]
    %v3260 = vld [vmem:[#allocation14 + $0x9c4] sm:$0xff]
    %v3261 = vld [vmem:[#allocation14 + $0x9cc] sm:$0xff]
    %v3262 = vld [vmem:[#allocation14 + $0x9d4] sm:$0xf]
    %v3263 = vld [vmem:[#allocation14 + $0x9d8] sm:$0xff]
    %v3264 = vld [vmem:[#allocation14 + $0x9e0] sm:$0xff]
    %v3265 = vld [vmem:[#allocation14 + $0x9e8] sm:$0xff]
    %v3266 = vld [vmem:[#allocation14 + $0x9f0] sm:$0xf]
    %v3267 = vld [vmem:[#allocation14 + $0x9f4] sm:$0xff]
    %v3268 = vld [vmem:[#allocation14 + $0x9fc] sm:$0xff]
    %v3269 = vld [vmem:[#allocation14 + $0xa04] sm:$0xff]
    %v3270 = vld [vmem:[#allocation14 + $0xa0c] sm:$0xf]
    %v3271 = vld [vmem:[#allocation14 + $0xa10] sm:$0xff]
    %v3272 = vld [vmem:[#allocation14 + $0xa18] sm:$0xff]
    %v3273 = vld [vmem:[#allocation14 + $0xa20] sm:$0xff]
    %v3274 = vld [vmem:[#allocation14 + $0xa28] sm:$0xf]
    %v3275 = vld [vmem:[#allocation14 + $0xa2c] sm:$0xff]
    %v3276 = vld [vmem:[#allocation14 + $0xa34] sm:$0xff]
    %v3277 = vld [vmem:[#allocation14 + $0xa3c] sm:$0xff]
    %v3278 = vld [vmem:[#allocation14 + $0xa44] sm:$0xf]
    %v3279 = vld [vmem:[#allocation14 + $0xa48] sm:$0xff]
    %v3280 = vld [vmem:[#allocation14 + $0xa50] sm:$0xff]
    %v3281 = vld [vmem:[#allocation14 + $0xa58] sm:$0xff]
    %v3282 = vld [vmem:[#allocation14 + $0xa60] sm:$0xf]
    %v3283 = vld [vmem:[#allocation14 + $0xa64] sm:$0xff]
    %v3284 = vld [vmem:[#allocation14 + $0xa6c] sm:$0xff]
    %v3285 = vld [vmem:[#allocation14 + $0xa74] sm:$0xff]
    %v3286 = vld [vmem:[#allocation14 + $0xa7c] sm:$0xf]
    %v3287 = vld [vmem:[#allocation14 + $0xa80] sm:$0xff]
    %v3288 = vld [vmem:[#allocation14 + $0xa88] sm:$0xff]
    %v3289 = vld [vmem:[#allocation14 + $0xa90] sm:$0xff]
    %v3290 = vld [vmem:[#allocation14 + $0xa98] sm:$0xf]
    %v3291 = vld [vmem:[#allocation14 + $0xa9c] sm:$0xff]
    %v3292 = vld [vmem:[#allocation14 + $0xaa4] sm:$0xff]
    %v3293 = vld [vmem:[#allocation14 + $0xaac] sm:$0xff]
    %v3294 = vld [vmem:[#allocation14 + $0xab4] sm:$0xf]
    %v3295 = vld [vmem:[#allocation14 + $0xab8] sm:$0xff]
    %v3296 = vld [vmem:[#allocation14 + $0xac0] sm:$0xff]
    %v3297 = vld [vmem:[#allocation14 + $0xac8] sm:$0xff]
    %v3298 = vld [vmem:[#allocation14 + $0xad0] sm:$0xf]
    %v3299 = vld [vmem:[#allocation14 + $0xad4] sm:$0xff]
    %v3300 = vld [vmem:[#allocation14 + $0xadc] sm:$0xff]
    %v3301 = vld [vmem:[#allocation14 + $0xae4] sm:$0xff]
    %v3302 = vld [vmem:[#allocation14 + $0xaec] sm:$0xf]
    %v3303 = vld [vmem:[#allocation14 + $0xaf0] sm:$0xff]
    %v3304 = vld [vmem:[#allocation14 + $0xaf8] sm:$0xff]
    %v3305 = vld [vmem:[#allocation14 + $0xb00] sm:$0xff]
    %v3306 = vld [vmem:[#allocation14 + $0xb08] sm:$0xf]
    %v3307 = vld [vmem:[#allocation14 + $0xb0c] sm:$0xff]
    %v3308 = vld [vmem:[#allocation14 + $0xb14] sm:$0xff]
    %v3309 = vld [vmem:[#allocation14 + $0xb1c] sm:$0xff]
    %v3310 = vld [vmem:[#allocation14 + $0xb24] sm:$0xf]
    %v3311 = vld [vmem:[#allocation14 + $0xb28] sm:$0xff]
    %v3312 = vld [vmem:[#allocation14 + $0xb30] sm:$0xff]
    %v3313 = vld [vmem:[#allocation14 + $0xb38] sm:$0xff]
    %v3314 = vld [vmem:[#allocation14 + $0xb40] sm:$0xf]
    %v3315 = vld [vmem:[#allocation14 + $0xb44] sm:$0xff]
    %v3316 = vld [vmem:[#allocation14 + $0xb4c] sm:$0xff]
    %v3317 = vld [vmem:[#allocation14 + $0xb54] sm:$0xff]
    %v3318 = vld [vmem:[#allocation14 + $0xb5c] sm:$0xf]
    %v3319 = vld [vmem:[#allocation14 + $0xb60] sm:$0xff]
    %v3320 = vld [vmem:[#allocation14 + $0xb68] sm:$0xff]
    %v3321 = vld [vmem:[#allocation14 + $0xb70] sm:$0xff]
    %v3322 = vld [vmem:[#allocation14 + $0xb78] sm:$0xf]
    %v3323 = vld [vmem:[#allocation14 + $0xb7c] sm:$0xff]
    %v3324 = vld [vmem:[#allocation14 + $0xb84] sm:$0xff]
    %v3325 = vld [vmem:[#allocation14 + $0xb8c] sm:$0xff]
    %v3326 = vld [vmem:[#allocation14 + $0xb94] sm:$0xf]
    %v3327 = vld [vmem:[#allocation14 + $0xb98] sm:$0xff]
    %v3328 = vld [vmem:[#allocation14 + $0xba0] sm:$0xff]
    %v3329 = vld [vmem:[#allocation14 + $0xba8] sm:$0xff]
    %v3330 = vld [vmem:[#allocation14 + $0xbb0] sm:$0xf]
    %v3331 = vld [vmem:[#allocation14 + $0xbb4] sm:$0xff]
    %v3332 = vld [vmem:[#allocation14 + $0xbbc] sm:$0xff]
    %v3333 = vld [vmem:[#allocation14 + $0xbc4] sm:$0xff]
    %v3334 = vld [vmem:[#allocation14 + $0xbcc] sm:$0xf]
    %v3335 = vld [vmem:[#allocation14 + $0xbd0] sm:$0xff]
    %v3336 = vld [vmem:[#allocation14 + $0xbd8] sm:$0xff]
    %v3337 = vld [vmem:[#allocation14 + $0xbe0] sm:$0xff]
    %v3338 = vld [vmem:[#allocation14 + $0xbe8] sm:$0xf]
    %v3339 = vld [vmem:[#allocation14 + $0xbec] sm:$0xff]
    %v3340 = vld [vmem:[#allocation14 + $0xbf4] sm:$0xff]
    %v3341 = vld [vmem:[#allocation14 + $0xbfc] sm:$0xff]
    %v3342 = vld [vmem:[#allocation14 + $0xc04] sm:$0xf]
    %v3343 = vld [vmem:[#allocation14 + $0xc08] sm:$0xff]
    %v3344 = vld [vmem:[#allocation14 + $0xc10] sm:$0xff]
    %v3345 = vld [vmem:[#allocation14 + $0xc18] sm:$0xff]
    %v3346 = vld [vmem:[#allocation14 + $0xc20] sm:$0xf]
    %v3347 = vld [vmem:[#allocation14 + $0xc24] sm:$0xff]
    %v3348 = vld [vmem:[#allocation14 + $0xc2c] sm:$0xff]
    %v3349 = vld [vmem:[#allocation14 + $0xc34] sm:$0xff]
    %v3350 = vld [vmem:[#allocation14 + $0xc3c] sm:$0xf]
    %v3351 = vld [vmem:[#allocation14 + $0xc40] sm:$0xff]
    %v3352 = vld [vmem:[#allocation14 + $0xc48] sm:$0xff]
    %v3353 = vld [vmem:[#allocation14 + $0xc50] sm:$0xff]
    %v3354 = vld [vmem:[#allocation14 + $0xc58] sm:$0xf]
    %v3355 = vld [vmem:[#allocation14 + $0xc5c] sm:$0xff]
    %v3356 = vld [vmem:[#allocation14 + $0xc64] sm:$0xff]
    %v3357 = vld [vmem:[#allocation14 + $0xc6c] sm:$0xff]
    %v3358 = vld [vmem:[#allocation14 + $0xc74] sm:$0xf]
    %v3359 = vld [vmem:[#allocation14 + $0xc78] sm:$0xff]
    %v3360 = vld [vmem:[#allocation14 + $0xc80] sm:$0xff]
    %v3361 = vld [vmem:[#allocation14 + $0xc88] sm:$0xff]
    %v3362 = vld [vmem:[#allocation14 + $0xc90] sm:$0xf]
    %v3363 = vld [vmem:[#allocation14 + $0xc94] sm:$0xff]
    %v3364 = vld [vmem:[#allocation14 + $0xc9c] sm:$0xff]
    %v3365 = vld [vmem:[#allocation14 + $0xca4] sm:$0xff]
    %v3366 = vld [vmem:[#allocation14 + $0xcac] sm:$0xf]
    %v3367 = vld [vmem:[#allocation14 + $0xcb0] sm:$0xff]
    %v3368 = vld [vmem:[#allocation14 + $0xcb8] sm:$0xff]
    %v3369 = vld [vmem:[#allocation14 + $0xcc0] sm:$0xff]
    %v3370 = vld [vmem:[#allocation14 + $0xcc8] sm:$0xf]
    %v3371 = vld [vmem:[#allocation14 + $0xccc] sm:$0xff]
    %v3372 = vld [vmem:[#allocation14 + $0xcd4] sm:$0xff]
    %v3373 = vld [vmem:[#allocation14 + $0xcdc] sm:$0xff]
    %v3374 = vld [vmem:[#allocation14 + $0xce4] sm:$0xf]
    %v3375 = vld [vmem:[#allocation14 + $0xce8] sm:$0xff]
    %v3376 = vld [vmem:[#allocation14 + $0xcf0] sm:$0xff]
    %v3377 = vld [vmem:[#allocation14 + $0xcf8] sm:$0xff]
    %v3378 = vld [vmem:[#allocation14 + $0xd00] sm:$0xf]
    %v3379 = vld [vmem:[#allocation14 + $0xd04] sm:$0xff]
    %v3380 = vld [vmem:[#allocation14 + $0xd0c] sm:$0xff]
    %v3381 = vld [vmem:[#allocation14 + $0xd14] sm:$0xff]
    %v3382 = vld [vmem:[#allocation14 + $0xd1c] sm:$0xf]
    %v3383 = vld [vmem:[#allocation14 + $0xd20] sm:$0xff]
    %v3384 = vld [vmem:[#allocation14 + $0xd28] sm:$0xff]
    %v3385 = vld [vmem:[#allocation14 + $0xd30] sm:$0xff]
    %v3386 = vld [vmem:[#allocation14 + $0xd38] sm:$0xf]
    %v3387 = vld [vmem:[#allocation14 + $0xd3c] sm:$0xff]
    %v3388 = vld [vmem:[#allocation14 + $0xd44] sm:$0xff]
    %v3389 = vld [vmem:[#allocation14 + $0xd4c] sm:$0xff]
    %v3390 = vld [vmem:[#allocation14 + $0xd54] sm:$0xf]
    %v3391 = vld [vmem:[#allocation14 + $0xd58] sm:$0xff]
    %v3392 = vld [vmem:[#allocation14 + $0xd60] sm:$0xff]
    %v3393 = vld [vmem:[#allocation14 + $0xd68] sm:$0xff]
    %v3394 = vld [vmem:[#allocation14 + $0xd70] sm:$0xf]
    %v3395 = vld [vmem:[#allocation14 + $0xd74] sm:$0xff]
    %v3396 = vld [vmem:[#allocation14 + $0xd7c] sm:$0xff]
    %v3397 = vld [vmem:[#allocation14 + $0xd84] sm:$0xff]
    %v3398 = vld [vmem:[#allocation14 + $0xd8c] sm:$0xf]
    %v3399 = vld [vmem:[#allocation14 + $0xd90] sm:$0xff]
    %v3400 = vld [vmem:[#allocation14 + $0xd98] sm:$0xff]
    %v3401 = vld [vmem:[#allocation14 + $0xda0] sm:$0xff]
    %v3402 = vld [vmem:[#allocation14 + $0xda8] sm:$0xf]
    %v3403 = vld [vmem:[#allocation14 + $0xdac] sm:$0xff]
    %v3404 = vld [vmem:[#allocation14 + $0xdb4] sm:$0xff]
    %v3405 = vld [vmem:[#allocation14 + $0xdbc] sm:$0xff]
    %v3406 = vld [vmem:[#allocation14 + $0xdc4] sm:$0xf]
    %v3407 = vld [vmem:[#allocation14 + $0xdc8] sm:$0xff]
    %v3408 = vld [vmem:[#allocation14 + $0xdd0] sm:$0xff]
    %v3409 = vld [vmem:[#allocation14 + $0xdd8] sm:$0xff]
    %v3410 = vld [vmem:[#allocation14 + $0xde0] sm:$0xf]
    %v3411 = vld [vmem:[#allocation14 + $0xde4] sm:$0xff]
    %v3412 = vld [vmem:[#allocation14 + $0xdec] sm:$0xff]
    %v3413 = vld [vmem:[#allocation14 + $0xdf4] sm:$0xff]
    %v3414 = vld [vmem:[#allocation14 + $0xdfc] sm:$0xf]
    %v3415 = vld [vmem:[#allocation16] sm:$0xff]
    %v3417 = vlaneseq
    %v3418 = vshrl.u32 %v3417, 7
    %v3419 = vsub.s32 0, %v3418
    %v3420 = vrot.slane %v3415, %v3419
    %v3421 = vlaneseq
    %v3422 = vshrl.u32 %v3421, 7
    %v3423 = vsub.s32 1, %v3422
    %v3424 = vrot.slane %v3415, %v3423
    %v3425 = vlaneseq
    %v3426 = vshrl.u32 %v3425, 7
    %v3427 = vsub.s32 2, %v3426
    %v3428 = vrot.slane %v3415, %v3427
    %v3429 = vlaneseq
    %v3430 = vshrl.u32 %v3429, 7
    %v3431 = vsub.s32 3, %v3430
    %v3432 = vrot.slane %v3415, %v3431
    %v3433 = vlaneseq
    %v3434 = vshrl.u32 %v3433, 7
    %v3435 = vsub.s32 4, %v3434
    %v3436 = vrot.slane %v3415, %v3435
    %v3437 = vlaneseq
    %v3438 = vshrl.u32 %v3437, 7
    %v3439 = vsub.s32 5, %v3438
    %v3440 = vrot.slane %v3415, %v3439
    %v3441 = vlaneseq
    %v3442 = vshrl.u32 %v3441, 7
    %v3443 = vsub.s32 6, %v3442
    %v3444 = vrot.slane %v3415, %v3443
    %v3964 = vunpack.c.l.b16 %v2903
    %v3965 = vunpack.c.h.b16 %v2903
    %v3966 = vunpack.c.l.b16 %v2904
    %v3967 = vunpack.c.h.b16 %v2904
    %v3968 = vunpack.c.l.b16 %v2905
    %v3969 = vunpack.c.h.b16 %v2905
    %v3970 = vunpack.c.l.b16 %v2906
    %v3971 = vunpack.c.l.b16 %v2907
    %v3972 = vunpack.c.h.b16 %v2907
    %v3973 = vunpack.c.l.b16 %v2908
    %v3974 = vunpack.c.h.b16 %v2908
    %v3975 = vunpack.c.l.b16 %v2909
    %v3976 = vunpack.c.h.b16 %v2909
    %v3977 = vunpack.c.l.b16 %v2910
    %v3978 = vunpack.c.l.b16 %v2911
    %v3979 = vunpack.c.h.b16 %v2911
    %v3980 = vunpack.c.l.b16 %v2912
    %v3981 = vunpack.c.h.b16 %v2912
    %v3982 = vunpack.c.l.b16 %v2913
    %v3983 = vunpack.c.h.b16 %v2913
    %v3984 = vunpack.c.l.b16 %v2914
    %v3985 = vunpack.c.l.b16 %v2915
    %v3986 = vunpack.c.h.b16 %v2915
    %v3987 = vunpack.c.l.b16 %v2916
    %v3988 = vunpack.c.h.b16 %v2916
    %v3989 = vunpack.c.l.b16 %v2917
    %v3990 = vunpack.c.h.b16 %v2917
    %v3991 = vunpack.c.l.b16 %v2918
    %v3992 = vunpack.c.l.b16 %v2919
    %v3993 = vunpack.c.h.b16 %v2919
    %v3994 = vunpack.c.l.b16 %v2920
    %v3995 = vunpack.c.h.b16 %v2920
    %v3996 = vunpack.c.l.b16 %v2921
    %v3997 = vunpack.c.h.b16 %v2921
    %v3998 = vunpack.c.l.b16 %v2922
    %v3999 = vunpack.c.l.b16 %v2923
    %v4000 = vunpack.c.h.b16 %v2923
    %v4001 = vunpack.c.l.b16 %v2924
    %v4002 = vunpack.c.h.b16 %v2924
    %v4003 = vunpack.c.l.b16 %v2925
    %v4004 = vunpack.c.h.b16 %v2925
    %v4005 = vunpack.c.l.b16 %v2926
    %v4006 = vunpack.c.l.b16 %v2927
    %v4007 = vunpack.c.h.b16 %v2927
    %v4008 = vunpack.c.l.b16 %v2928
    %v4009 = vunpack.c.h.b16 %v2928
    %v4010 = vunpack.c.l.b16 %v2929
    %v4011 = vunpack.c.h.b16 %v2929
    %v4012 = vunpack.c.l.b16 %v2930
    %v4013 = vunpack.c.l.b16 %v2931
    %v4014 = vunpack.c.h.b16 %v2931
    %v4015 = vunpack.c.l.b16 %v2932
    %v4016 = vunpack.c.h.b16 %v2932
    %v4017 = vunpack.c.l.b16 %v2933
    %v4018 = vunpack.c.h.b16 %v2933
    %v4019 = vunpack.c.l.b16 %v2934
    %v4020 = vunpack.c.l.b16 %v2935
    %v4021 = vunpack.c.h.b16 %v2935
    %v4022 = vunpack.c.l.b16 %v2936
    %v4023 = vunpack.c.h.b16 %v2936
    %v4024 = vunpack.c.l.b16 %v2937
    %v4025 = vunpack.c.h.b16 %v2937
    %v4026 = vunpack.c.l.b16 %v2938
    %v4027 = vunpack.c.l.b16 %v2939
    %v4028 = vunpack.c.h.b16 %v2939
    %v4029 = vunpack.c.l.b16 %v2940
    %v4030 = vunpack.c.h.b16 %v2940
    %v4031 = vunpack.c.l.b16 %v2941
    %v4032 = vunpack.c.h.b16 %v2941
    %v4033 = vunpack.c.l.b16 %v2942
    %v4034 = vunpack.c.l.b16 %v2943
    %v4035 = vunpack.c.h.b16 %v2943
    %v4036 = vunpack.c.l.b16 %v2944
    %v4037 = vunpack.c.h.b16 %v2944
    %v4038 = vunpack.c.l.b16 %v2945
    %v4039 = vunpack.c.h.b16 %v2945
    %v4040 = vunpack.c.l.b16 %v2946
    %v4041 = vunpack.c.l.b16 %v2947
    %v4042 = vunpack.c.h.b16 %v2947
    %v4043 = vunpack.c.l.b16 %v2948
    %v4044 = vunpack.c.h.b16 %v2948
    %v4045 = vunpack.c.l.b16 %v2949
    %v4046 = vunpack.c.h.b16 %v2949
    %v4047 = vunpack.c.l.b16 %v2950
    %v4048 = vunpack.c.l.b16 %v2951
    %v4049 = vunpack.c.h.b16 %v2951
    %v4050 = vunpack.c.l.b16 %v2952
    %v4051 = vunpack.c.h.b16 %v2952
    %v4052 = vunpack.c.l.b16 %v2953
    %v4053 = vunpack.c.h.b16 %v2953
    %v4054 = vunpack.c.l.b16 %v2954
    %v4055 = vunpack.c.l.b16 %v2955
    %v4056 = vunpack.c.h.b16 %v2955
    %v4057 = vunpack.c.l.b16 %v2956
    %v4058 = vunpack.c.h.b16 %v2956
    %v4059 = vunpack.c.l.b16 %v2957
    %v4060 = vunpack.c.h.b16 %v2957
    %v4061 = vunpack.c.l.b16 %v2958
    %v4062 = vunpack.c.l.b16 %v2959
    %v4063 = vunpack.c.h.b16 %v2959
    %v4064 = vunpack.c.l.b16 %v2960
    %v4065 = vunpack.c.h.b16 %v2960
    %v4066 = vunpack.c.l.b16 %v2961
    %v4067 = vunpack.c.h.b16 %v2961
    %v4068 = vunpack.c.l.b16 %v2962
    %v4069 = vunpack.c.l.b16 %v2963
    %v4070 = vunpack.c.h.b16 %v2963
    %v4071 = vunpack.c.l.b16 %v2964
    %v4072 = vunpack.c.h.b16 %v2964
    %v4073 = vunpack.c.l.b16 %v2965
    %v4074 = vunpack.c.h.b16 %v2965
    %v4075 = vunpack.c.l.b16 %v2966
    %v4076 = vunpack.c.l.b16 %v2967
    %v4077 = vunpack.c.h.b16 %v2967
    %v4078 = vunpack.c.l.b16 %v2968
    %v4079 = vunpack.c.h.b16 %v2968
    %v4080 = vunpack.c.l.b16 %v2969
    %v4081 = vunpack.c.h.b16 %v2969
    %v4082 = vunpack.c.l.b16 %v2970
    %v4083 = vunpack.c.l.b16 %v2971
    %v4084 = vunpack.c.h.b16 %v2971
    %v4085 = vunpack.c.l.b16 %v2972
    %v4086 = vunpack.c.h.b16 %v2972
    %v4087 = vunpack.c.l.b16 %v2973
    %v4088 = vunpack.c.h.b16 %v2973
    %v4089 = vunpack.c.l.b16 %v2974
    %v4090 = vunpack.c.l.b16 %v2975
    %v4091 = vunpack.c.h.b16 %v2975
    %v4092 = vunpack.c.l.b16 %v2976
    %v4093 = vunpack.c.h.b16 %v2976
    %v4094 = vunpack.c.l.b16 %v2977
    %v4095 = vunpack.c.h.b16 %v2977
    %v4096 = vunpack.c.l.b16 %v2978
    %v4097 = vunpack.c.l.b16 %v2979
    %v4098 = vunpack.c.h.b16 %v2979
    %v4099 = vunpack.c.l.b16 %v2980
    %v4100 = vunpack.c.h.b16 %v2980
    %v4101 = vunpack.c.l.b16 %v2981
    %v4102 = vunpack.c.h.b16 %v2981
    %v4103 = vunpack.c.l.b16 %v2982
    %v4104 = vunpack.c.l.b16 %v2983
    %v4105 = vunpack.c.h.b16 %v2983
    %v4106 = vunpack.c.l.b16 %v2984
    %v4107 = vunpack.c.h.b16 %v2984
    %v4108 = vunpack.c.l.b16 %v2985
    %v4109 = vunpack.c.h.b16 %v2985
    %v4110 = vunpack.c.l.b16 %v2986
    %v4111 = vunpack.c.l.b16 %v2987
    %v4112 = vunpack.c.h.b16 %v2987
    %v4113 = vunpack.c.l.b16 %v2988
    %v4114 = vunpack.c.h.b16 %v2988
    %v4115 = vunpack.c.l.b16 %v2989
    %v4116 = vunpack.c.h.b16 %v2989
    %v4117 = vunpack.c.l.b16 %v2990
    %v4118 = vunpack.c.l.b16 %v2991
    %v4119 = vunpack.c.h.b16 %v2991
    %v4120 = vunpack.c.l.b16 %v2992
    %v4121 = vunpack.c.h.b16 %v2992
    %v4122 = vunpack.c.l.b16 %v2993
    %v4123 = vunpack.c.h.b16 %v2993
    %v4124 = vunpack.c.l.b16 %v2994
    %v4125 = vunpack.c.l.b16 %v2995
    %v4126 = vunpack.c.h.b16 %v2995
    %v4127 = vunpack.c.l.b16 %v2996
    %v4128 = vunpack.c.h.b16 %v2996
    %v4129 = vunpack.c.l.b16 %v2997
    %v4130 = vunpack.c.h.b16 %v2997
    %v4131 = vunpack.c.l.b16 %v2998
    %v4132 = vunpack.c.l.b16 %v2999
    %v4133 = vunpack.c.h.b16 %v2999
    %v4134 = vunpack.c.l.b16 %v3000
    %v4135 = vunpack.c.h.b16 %v3000
    %v4136 = vunpack.c.l.b16 %v3001
    %v4137 = vunpack.c.h.b16 %v3001
    %v4138 = vunpack.c.l.b16 %v3002
    %v4139 = vunpack.c.l.b16 %v3003
    %v4140 = vunpack.c.h.b16 %v3003
    %v4141 = vunpack.c.l.b16 %v3004
    %v4142 = vunpack.c.h.b16 %v3004
    %v4143 = vunpack.c.l.b16 %v3005
    %v4144 = vunpack.c.h.b16 %v3005
    %v4145 = vunpack.c.l.b16 %v3006
    %v4146 = vunpack.c.l.b16 %v3007
    %v4147 = vunpack.c.h.b16 %v3007
    %v4148 = vunpack.c.l.b16 %v3008
    %v4149 = vunpack.c.h.b16 %v3008
    %v4150 = vunpack.c.l.b16 %v3009
    %v4151 = vunpack.c.h.b16 %v3009
    %v4152 = vunpack.c.l.b16 %v3010
    %v4153 = vunpack.c.l.b16 %v3011
    %v4154 = vunpack.c.h.b16 %v3011
    %v4155 = vunpack.c.l.b16 %v3012
    %v4156 = vunpack.c.h.b16 %v3012
    %v4157 = vunpack.c.l.b16 %v3013
    %v4158 = vunpack.c.h.b16 %v3013
    %v4159 = vunpack.c.l.b16 %v3014
    %v4160 = vunpack.c.l.b16 %v3015
    %v4161 = vunpack.c.h.b16 %v3015
    %v4162 = vunpack.c.l.b16 %v3016
    %v4163 = vunpack.c.h.b16 %v3016
    %v4164 = vunpack.c.l.b16 %v3017
    %v4165 = vunpack.c.h.b16 %v3017
    %v4166 = vunpack.c.l.b16 %v3018
    %v4167 = vunpack.c.l.b16 %v3019
    %v4168 = vunpack.c.h.b16 %v3019
    %v4169 = vunpack.c.l.b16 %v3020
    %v4170 = vunpack.c.h.b16 %v3020
    %v4171 = vunpack.c.l.b16 %v3021
    %v4172 = vunpack.c.h.b16 %v3021
    %v4173 = vunpack.c.l.b16 %v3022
    %v4174 = vunpack.c.l.b16 %v3023
    %v4175 = vunpack.c.h.b16 %v3023
    %v4176 = vunpack.c.l.b16 %v3024
    %v4177 = vunpack.c.h.b16 %v3024
    %v4178 = vunpack.c.l.b16 %v3025
    %v4179 = vunpack.c.h.b16 %v3025
    %v4180 = vunpack.c.l.b16 %v3026
    %v4181 = vunpack.c.l.b16 %v3027
    %v4182 = vunpack.c.h.b16 %v3027
    %v4183 = vunpack.c.l.b16 %v3028
    %v4184 = vunpack.c.h.b16 %v3028
    %v4185 = vunpack.c.l.b16 %v3029
    %v4186 = vunpack.c.h.b16 %v3029
    %v4187 = vunpack.c.l.b16 %v3030
    %v4188 = vunpack.c.l.b16 %v3031
    %v4189 = vunpack.c.h.b16 %v3031
    %v4190 = vunpack.c.l.b16 %v3032
    %v4191 = vunpack.c.h.b16 %v3032
    %v4192 = vunpack.c.l.b16 %v3033
    %v4193 = vunpack.c.h.b16 %v3033
    %v4194 = vunpack.c.l.b16 %v3034
    %v4195 = vunpack.c.l.b16 %v3035
    %v4196 = vunpack.c.h.b16 %v3035
    %v4197 = vunpack.c.l.b16 %v3036
    %v4198 = vunpack.c.h.b16 %v3036
    %v4199 = vunpack.c.l.b16 %v3037
    %v4200 = vunpack.c.h.b16 %v3037
    %v4201 = vunpack.c.l.b16 %v3038
    %v4202 = vunpack.c.l.b16 %v3039
    %v4203 = vunpack.c.h.b16 %v3039
    %v4204 = vunpack.c.l.b16 %v3040
    %v4205 = vunpack.c.h.b16 %v3040
    %v4206 = vunpack.c.l.b16 %v3041
    %v4207 = vunpack.c.h.b16 %v3041
    %v4208 = vunpack.c.l.b16 %v3042
    %v4209 = vunpack.c.l.b16 %v3043
    %v4210 = vunpack.c.h.b16 %v3043
    %v4211 = vunpack.c.l.b16 %v3044
    %v4212 = vunpack.c.h.b16 %v3044
    %v4213 = vunpack.c.l.b16 %v3045
    %v4214 = vunpack.c.h.b16 %v3045
    %v4215 = vunpack.c.l.b16 %v3046
    %v4216 = vunpack.c.l.b16 %v3047
    %v4217 = vunpack.c.h.b16 %v3047
    %v4218 = vunpack.c.l.b16 %v3048
    %v4219 = vunpack.c.h.b16 %v3048
    %v4220 = vunpack.c.l.b16 %v3049
    %v4221 = vunpack.c.h.b16 %v3049
    %v4222 = vunpack.c.l.b16 %v3050
    %v4223 = vunpack.c.l.b16 %v3051
    %v4224 = vunpack.c.h.b16 %v3051
    %v4225 = vunpack.c.l.b16 %v3052
    %v4226 = vunpack.c.h.b16 %v3052
    %v4227 = vunpack.c.l.b16 %v3053
    %v4228 = vunpack.c.h.b16 %v3053
    %v4229 = vunpack.c.l.b16 %v3054
    %v4230 = vunpack.c.l.b16 %v3055
    %v4231 = vunpack.c.h.b16 %v3055
    %v4232 = vunpack.c.l.b16 %v3056
    %v4233 = vunpack.c.h.b16 %v3056
    %v4234 = vunpack.c.l.b16 %v3057
    %v4235 = vunpack.c.h.b16 %v3057
    %v4236 = vunpack.c.l.b16 %v3058
    %v4237 = vunpack.c.l.b16 %v3059
    %v4238 = vunpack.c.h.b16 %v3059
    %v4239 = vunpack.c.l.b16 %v3060
    %v4240 = vunpack.c.h.b16 %v3060
    %v4241 = vunpack.c.l.b16 %v3061
    %v4242 = vunpack.c.h.b16 %v3061
    %v4243 = vunpack.c.l.b16 %v3062
    %v4244 = vunpack.c.l.b16 %v3063
    %v4245 = vunpack.c.h.b16 %v3063
    %v4246 = vunpack.c.l.b16 %v3064
    %v4247 = vunpack.c.h.b16 %v3064
    %v4248 = vunpack.c.l.b16 %v3065
    %v4249 = vunpack.c.h.b16 %v3065
    %v4250 = vunpack.c.l.b16 %v3066
    %v4251 = vunpack.c.l.b16 %v3067
    %v4252 = vunpack.c.h.b16 %v3067
    %v4253 = vunpack.c.l.b16 %v3068
    %v4254 = vunpack.c.h.b16 %v3068
    %v4255 = vunpack.c.l.b16 %v3069
    %v4256 = vunpack.c.h.b16 %v3069
    %v4257 = vunpack.c.l.b16 %v3070
    %v4258 = vunpack.c.l.b16 %v3071
    %v4259 = vunpack.c.h.b16 %v3071
    %v4260 = vunpack.c.l.b16 %v3072
    %v4261 = vunpack.c.h.b16 %v3072
    %v4262 = vunpack.c.l.b16 %v3073
    %v4263 = vunpack.c.h.b16 %v3073
    %v4264 = vunpack.c.l.b16 %v3074
    %v4265 = vunpack.c.l.b16 %v3075
    %v4266 = vunpack.c.h.b16 %v3075
    %v4267 = vunpack.c.l.b16 %v3076
    %v4268 = vunpack.c.h.b16 %v3076
    %v4269 = vunpack.c.l.b16 %v3077
    %v4270 = vunpack.c.h.b16 %v3077
    %v4271 = vunpack.c.l.b16 %v3078
    %v4272 = vunpack.c.l.b16 %v3079
    %v4273 = vunpack.c.h.b16 %v3079
    %v4274 = vunpack.c.l.b16 %v3080
    %v4275 = vunpack.c.h.b16 %v3080
    %v4276 = vunpack.c.l.b16 %v3081
    %v4277 = vunpack.c.h.b16 %v3081
    %v4278 = vunpack.c.l.b16 %v3082
    %v4279 = vunpack.c.l.b16 %v3083
    %v4280 = vunpack.c.h.b16 %v3083
    %v4281 = vunpack.c.l.b16 %v3084
    %v4282 = vunpack.c.h.b16 %v3084
    %v4283 = vunpack.c.l.b16 %v3085
    %v4284 = vunpack.c.h.b16 %v3085
    %v4285 = vunpack.c.l.b16 %v3086
    %v4286 = vunpack.c.l.b16 %v3087
    %v4287 = vunpack.c.h.b16 %v3087
    %v4288 = vunpack.c.l.b16 %v3088
    %v4289 = vunpack.c.h.b16 %v3088
    %v4290 = vunpack.c.l.b16 %v3089
    %v4291 = vunpack.c.h.b16 %v3089
    %v4292 = vunpack.c.l.b16 %v3090
    %v4293 = vunpack.c.l.b16 %v3091
    %v4294 = vunpack.c.h.b16 %v3091
    %v4295 = vunpack.c.l.b16 %v3092
    %v4296 = vunpack.c.h.b16 %v3092
    %v4297 = vunpack.c.l.b16 %v3093
    %v4298 = vunpack.c.h.b16 %v3093
    %v4299 = vunpack.c.l.b16 %v3094
    %v4300 = vunpack.c.l.b16 %v3095
    %v4301 = vunpack.c.h.b16 %v3095
    %v4302 = vunpack.c.l.b16 %v3096
    %v4303 = vunpack.c.h.b16 %v3096
    %v4304 = vunpack.c.l.b16 %v3097
    %v4305 = vunpack.c.h.b16 %v3097
    %v4306 = vunpack.c.l.b16 %v3098
    %v4307 = vunpack.c.l.b16 %v3099
    %v4308 = vunpack.c.h.b16 %v3099
    %v4309 = vunpack.c.l.b16 %v3100
    %v4310 = vunpack.c.h.b16 %v3100
    %v4311 = vunpack.c.l.b16 %v3101
    %v4312 = vunpack.c.h.b16 %v3101
    %v4313 = vunpack.c.l.b16 %v3102
    %v4314 = vunpack.c.l.b16 %v3103
    %v4315 = vunpack.c.h.b16 %v3103
    %v4316 = vunpack.c.l.b16 %v3104
    %v4317 = vunpack.c.h.b16 %v3104
    %v4318 = vunpack.c.l.b16 %v3105
    %v4319 = vunpack.c.h.b16 %v3105
    %v4320 = vunpack.c.l.b16 %v3106
    %v4321 = vunpack.c.l.b16 %v3107
    %v4322 = vunpack.c.h.b16 %v3107
    %v4323 = vunpack.c.l.b16 %v3108
    %v4324 = vunpack.c.h.b16 %v3108
    %v4325 = vunpack.c.l.b16 %v3109
    %v4326 = vunpack.c.h.b16 %v3109
    %v4327 = vunpack.c.l.b16 %v3110
    %v4328 = vunpack.c.l.b16 %v3111
    %v4329 = vunpack.c.h.b16 %v3111
    %v4330 = vunpack.c.l.b16 %v3112
    %v4331 = vunpack.c.h.b16 %v3112
    %v4332 = vunpack.c.l.b16 %v3113
    %v4333 = vunpack.c.h.b16 %v3113
    %v4334 = vunpack.c.l.b16 %v3114
    %v4335 = vunpack.c.l.b16 %v3115
    %v4336 = vunpack.c.h.b16 %v3115
    %v4337 = vunpack.c.l.b16 %v3116
    %v4338 = vunpack.c.h.b16 %v3116
    %v4339 = vunpack.c.l.b16 %v3117
    %v4340 = vunpack.c.h.b16 %v3117
    %v4341 = vunpack.c.l.b16 %v3118
    %v4342 = vunpack.c.l.b16 %v3119
    %v4343 = vunpack.c.h.b16 %v3119
    %v4344 = vunpack.c.l.b16 %v3120
    %v4345 = vunpack.c.h.b16 %v3120
    %v4346 = vunpack.c.l.b16 %v3121
    %v4347 = vunpack.c.h.b16 %v3121
    %v4348 = vunpack.c.l.b16 %v3122
    %v4349 = vunpack.c.l.b16 %v3123
    %v4350 = vunpack.c.h.b16 %v3123
    %v4351 = vunpack.c.l.b16 %v3124
    %v4352 = vunpack.c.h.b16 %v3124
    %v4353 = vunpack.c.l.b16 %v3125
    %v4354 = vunpack.c.h.b16 %v3125
    %v4355 = vunpack.c.l.b16 %v3126
    %v4356 = vunpack.c.l.b16 %v3127
    %v4357 = vunpack.c.h.b16 %v3127
    %v4358 = vunpack.c.l.b16 %v3128
    %v4359 = vunpack.c.h.b16 %v3128
    %v4360 = vunpack.c.l.b16 %v3129
    %v4361 = vunpack.c.h.b16 %v3129
    %v4362 = vunpack.c.l.b16 %v3130
    %v4363 = vunpack.c.l.b16 %v3131
    %v4364 = vunpack.c.h.b16 %v3131
    %v4365 = vunpack.c.l.b16 %v3132
    %v4366 = vunpack.c.h.b16 %v3132
    %v4367 = vunpack.c.l.b16 %v3133
    %v4368 = vunpack.c.h.b16 %v3133
    %v4369 = vunpack.c.l.b16 %v3134
    %v4370 = vunpack.c.l.b16 %v3135
    %v4371 = vunpack.c.h.b16 %v3135
    %v4372 = vunpack.c.l.b16 %v3136
    %v4373 = vunpack.c.h.b16 %v3136
    %v4374 = vunpack.c.l.b16 %v3137
    %v4375 = vunpack.c.h.b16 %v3137
    %v4376 = vunpack.c.l.b16 %v3138
    %v4377 = vunpack.c.l.b16 %v3139
    %v4378 = vunpack.c.h.b16 %v3139
    %v4379 = vunpack.c.l.b16 %v3140
    %v4380 = vunpack.c.h.b16 %v3140
    %v4381 = vunpack.c.l.b16 %v3141
    %v4382 = vunpack.c.h.b16 %v3141
    %v4383 = vunpack.c.l.b16 %v3142
    %v4384 = vunpack.c.l.b16 %v3143
    %v4385 = vunpack.c.h.b16 %v3143
    %v4386 = vunpack.c.l.b16 %v3144
    %v4387 = vunpack.c.h.b16 %v3144
    %v4388 = vunpack.c.l.b16 %v3145
    %v4389 = vunpack.c.h.b16 %v3145
    %v4390 = vunpack.c.l.b16 %v3146
    %v4391 = vunpack.c.l.b16 %v3147
    %v4392 = vunpack.c.h.b16 %v3147
    %v4393 = vunpack.c.l.b16 %v3148
    %v4394 = vunpack.c.h.b16 %v3148
    %v4395 = vunpack.c.l.b16 %v3149
    %v4396 = vunpack.c.h.b16 %v3149
    %v4397 = vunpack.c.l.b16 %v3150
    %v4398 = vunpack.c.l.b16 %v3151
    %v4399 = vunpack.c.h.b16 %v3151
    %v4400 = vunpack.c.l.b16 %v3152
    %v4401 = vunpack.c.h.b16 %v3152
    %v4402 = vunpack.c.l.b16 %v3153
    %v4403 = vunpack.c.h.b16 %v3153
    %v4404 = vunpack.c.l.b16 %v3154
    %v4405 = vunpack.c.l.b16 %v3155
    %v4406 = vunpack.c.h.b16 %v3155
    %v4407 = vunpack.c.l.b16 %v3156
    %v4408 = vunpack.c.h.b16 %v3156
    %v4409 = vunpack.c.l.b16 %v3157
    %v4410 = vunpack.c.h.b16 %v3157
    %v4411 = vunpack.c.l.b16 %v3158
    %v4412 = vunpack.c.l.b16 %v3159
    %v4413 = vunpack.c.h.b16 %v3159
    %v4414 = vunpack.c.l.b16 %v3160
    %v4415 = vunpack.c.h.b16 %v3160
    %v4416 = vunpack.c.l.b16 %v3161
    %v4417 = vunpack.c.h.b16 %v3161
    %v4418 = vunpack.c.l.b16 %v3162
    %v4419 = vunpack.c.l.b16 %v3163
    %v4420 = vunpack.c.h.b16 %v3163
    %v4421 = vunpack.c.l.b16 %v3164
    %v4422 = vunpack.c.h.b16 %v3164
    %v4423 = vunpack.c.l.b16 %v3165
    %v4424 = vunpack.c.h.b16 %v3165
    %v4425 = vunpack.c.l.b16 %v3166
    %v4426 = vunpack.c.l.b16 %v3167
    %v4427 = vunpack.c.h.b16 %v3167
    %v4428 = vunpack.c.l.b16 %v3168
    %v4429 = vunpack.c.h.b16 %v3168
    %v4430 = vunpack.c.l.b16 %v3169
    %v4431 = vunpack.c.h.b16 %v3169
    %v4432 = vunpack.c.l.b16 %v3170
    %v4433 = vunpack.c.l.b16 %v3171
    %v4434 = vunpack.c.h.b16 %v3171
    %v4435 = vunpack.c.l.b16 %v3172
    %v4436 = vunpack.c.h.b16 %v3172
    %v4437 = vunpack.c.l.b16 %v3173
    %v4438 = vunpack.c.h.b16 %v3173
    %v4439 = vunpack.c.l.b16 %v3174
    %v4440 = vunpack.c.l.b16 %v3175
    %v4441 = vunpack.c.h.b16 %v3175
    %v4442 = vunpack.c.l.b16 %v3176
    %v4443 = vunpack.c.h.b16 %v3176
    %v4444 = vunpack.c.l.b16 %v3177
    %v4445 = vunpack.c.h.b16 %v3177
    %v4446 = vunpack.c.l.b16 %v3178
    %v4447 = vunpack.c.l.b16 %v3179
    %v4448 = vunpack.c.h.b16 %v3179
    %v4449 = vunpack.c.l.b16 %v3180
    %v4450 = vunpack.c.h.b16 %v3180
    %v4451 = vunpack.c.l.b16 %v3181
    %v4452 = vunpack.c.h.b16 %v3181
    %v4453 = vunpack.c.l.b16 %v3182
    %v4454 = vunpack.c.l.b16 %v3183
    %v4455 = vunpack.c.h.b16 %v3183
    %v4456 = vunpack.c.l.b16 %v3184
    %v4457 = vunpack.c.h.b16 %v3184
    %v4458 = vunpack.c.l.b16 %v3185
    %v4459 = vunpack.c.h.b16 %v3185
    %v4460 = vunpack.c.l.b16 %v3186
    %v4461 = vunpack.c.l.b16 %v3187
    %v4462 = vunpack.c.h.b16 %v3187
    %v4463 = vunpack.c.l.b16 %v3188
    %v4464 = vunpack.c.h.b16 %v3188
    %v4465 = vunpack.c.l.b16 %v3189
    %v4466 = vunpack.c.h.b16 %v3189
    %v4467 = vunpack.c.l.b16 %v3190
    %v4468 = vunpack.c.l.b16 %v3191
    %v4469 = vunpack.c.h.b16 %v3191
    %v4470 = vunpack.c.l.b16 %v3192
    %v4471 = vunpack.c.h.b16 %v3192
    %v4472 = vunpack.c.l.b16 %v3193
    %v4473 = vunpack.c.h.b16 %v3193
    %v4474 = vunpack.c.l.b16 %v3194
    %v4475 = vunpack.c.l.b16 %v3195
    %v4476 = vunpack.c.h.b16 %v3195
    %v4477 = vunpack.c.l.b16 %v3196
    %v4478 = vunpack.c.h.b16 %v3196
    %v4479 = vunpack.c.l.b16 %v3197
    %v4480 = vunpack.c.h.b16 %v3197
    %v4481 = vunpack.c.l.b16 %v3198
    %v4482 = vunpack.c.l.b16 %v3199
    %v4483 = vunpack.c.h.b16 %v3199
    %v4484 = vunpack.c.l.b16 %v3200
    %v4485 = vunpack.c.h.b16 %v3200
    %v4486 = vunpack.c.l.b16 %v3201
    %v4487 = vunpack.c.h.b16 %v3201
    %v4488 = vunpack.c.l.b16 %v3202
    %v4489 = vunpack.c.l.b16 %v3203
    %v4490 = vunpack.c.h.b16 %v3203
    %v4491 = vunpack.c.l.b16 %v3204
    %v4492 = vunpack.c.h.b16 %v3204
    %v4493 = vunpack.c.l.b16 %v3205
    %v4494 = vunpack.c.h.b16 %v3205
    %v4495 = vunpack.c.l.b16 %v3206
    %v4496 = vunpack.c.l.b16 %v3207
    %v4497 = vunpack.c.h.b16 %v3207
    %v4498 = vunpack.c.l.b16 %v3208
    %v4499 = vunpack.c.h.b16 %v3208
    %v4500 = vunpack.c.l.b16 %v3209
    %v4501 = vunpack.c.h.b16 %v3209
    %v4502 = vunpack.c.l.b16 %v3210
    %v4503 = vunpack.c.l.b16 %v3211
    %v4504 = vunpack.c.h.b16 %v3211
    %v4505 = vunpack.c.l.b16 %v3212
    %v4506 = vunpack.c.h.b16 %v3212
    %v4507 = vunpack.c.l.b16 %v3213
    %v4508 = vunpack.c.h.b16 %v3213
    %v4509 = vunpack.c.l.b16 %v3214
    %v4510 = vunpack.c.l.b16 %v3215
    %v4511 = vunpack.c.h.b16 %v3215
    %v4512 = vunpack.c.l.b16 %v3216
    %v4513 = vunpack.c.h.b16 %v3216
    %v4514 = vunpack.c.l.b16 %v3217
    %v4515 = vunpack.c.h.b16 %v3217
    %v4516 = vunpack.c.l.b16 %v3218
    %v4517 = vunpack.c.l.b16 %v3219
    %v4518 = vunpack.c.h.b16 %v3219
    %v4519 = vunpack.c.l.b16 %v3220
    %v4520 = vunpack.c.h.b16 %v3220
    %v4521 = vunpack.c.l.b16 %v3221
    %v4522 = vunpack.c.h.b16 %v3221
    %v4523 = vunpack.c.l.b16 %v3222
    %v4524 = vunpack.c.l.b16 %v3223
    %v4525 = vunpack.c.h.b16 %v3223
    %v4526 = vunpack.c.l.b16 %v3224
    %v4527 = vunpack.c.h.b16 %v3224
    %v4528 = vunpack.c.l.b16 %v3225
    %v4529 = vunpack.c.h.b16 %v3225
    %v4530 = vunpack.c.l.b16 %v3226
    %v4531 = vunpack.c.l.b16 %v3227
    %v4532 = vunpack.c.h.b16 %v3227
    %v4533 = vunpack.c.l.b16 %v3228
    %v4534 = vunpack.c.h.b16 %v3228
    %v4535 = vunpack.c.l.b16 %v3229
    %v4536 = vunpack.c.h.b16 %v3229
    %v4537 = vunpack.c.l.b16 %v3230
    %v4538 = vunpack.c.l.b16 %v3231
    %v4539 = vunpack.c.h.b16 %v3231
    %v4540 = vunpack.c.l.b16 %v3232
    %v4541 = vunpack.c.h.b16 %v3232
    %v4542 = vunpack.c.l.b16 %v3233
    %v4543 = vunpack.c.h.b16 %v3233
    %v4544 = vunpack.c.l.b16 %v3234
    %v4545 = vunpack.c.l.b16 %v3235
    %v4546 = vunpack.c.h.b16 %v3235
    %v4547 = vunpack.c.l.b16 %v3236
    %v4548 = vunpack.c.h.b16 %v3236
    %v4549 = vunpack.c.l.b16 %v3237
    %v4550 = vunpack.c.h.b16 %v3237
    %v4551 = vunpack.c.l.b16 %v3238
    %v4552 = vunpack.c.l.b16 %v3239
    %v4553 = vunpack.c.h.b16 %v3239
    %v4554 = vunpack.c.l.b16 %v3240
    %v4555 = vunpack.c.h.b16 %v3240
    %v4556 = vunpack.c.l.b16 %v3241
    %v4557 = vunpack.c.h.b16 %v3241
    %v4558 = vunpack.c.l.b16 %v3242
    %v4559 = vunpack.c.l.b16 %v3243
    %v4560 = vunpack.c.h.b16 %v3243
    %v4561 = vunpack.c.l.b16 %v3244
    %v4562 = vunpack.c.h.b16 %v3244
    %v4563 = vunpack.c.l.b16 %v3245
    %v4564 = vunpack.c.h.b16 %v3245
    %v4565 = vunpack.c.l.b16 %v3246
    %v4566 = vunpack.c.l.b16 %v3247
    %v4567 = vunpack.c.h.b16 %v3247
    %v4568 = vunpack.c.l.b16 %v3248
    %v4569 = vunpack.c.h.b16 %v3248
    %v4570 = vunpack.c.l.b16 %v3249
    %v4571 = vunpack.c.h.b16 %v3249
    %v4572 = vunpack.c.l.b16 %v3250
    %v4573 = vunpack.c.l.b16 %v3251
    %v4574 = vunpack.c.h.b16 %v3251
    %v4575 = vunpack.c.l.b16 %v3252
    %v4576 = vunpack.c.h.b16 %v3252
    %v4577 = vunpack.c.l.b16 %v3253
    %v4578 = vunpack.c.h.b16 %v3253
    %v4579 = vunpack.c.l.b16 %v3254
    %v4580 = vunpack.c.l.b16 %v3255
    %v4581 = vunpack.c.h.b16 %v3255
    %v4582 = vunpack.c.l.b16 %v3256
    %v4583 = vunpack.c.h.b16 %v3256
    %v4584 = vunpack.c.l.b16 %v3257
    %v4585 = vunpack.c.h.b16 %v3257
    %v4586 = vunpack.c.l.b16 %v3258
    %v4587 = vunpack.c.l.b16 %v3259
    %v4588 = vunpack.c.h.b16 %v3259
    %v4589 = vunpack.c.l.b16 %v3260
    %v4590 = vunpack.c.h.b16 %v3260
    %v4591 = vunpack.c.l.b16 %v3261
    %v4592 = vunpack.c.h.b16 %v3261
    %v4593 = vunpack.c.l.b16 %v3262
    %v4594 = vunpack.c.l.b16 %v3263
    %v4595 = vunpack.c.h.b16 %v3263
    %v4596 = vunpack.c.l.b16 %v3264
    %v4597 = vunpack.c.h.b16 %v3264
    %v4598 = vunpack.c.l.b16 %v3265
    %v4599 = vunpack.c.h.b16 %v3265
    %v4600 = vunpack.c.l.b16 %v3266
    %v4601 = vunpack.c.l.b16 %v3267
    %v4602 = vunpack.c.h.b16 %v3267
    %v4603 = vunpack.c.l.b16 %v3268
    %v4604 = vunpack.c.h.b16 %v3268
    %v4605 = vunpack.c.l.b16 %v3269
    %v4606 = vunpack.c.h.b16 %v3269
    %v4607 = vunpack.c.l.b16 %v3270
    %v4608 = vunpack.c.l.b16 %v3271
    %v4609 = vunpack.c.h.b16 %v3271
    %v4610 = vunpack.c.l.b16 %v3272
    %v4611 = vunpack.c.h.b16 %v3272
    %v4612 = vunpack.c.l.b16 %v3273
    %v4613 = vunpack.c.h.b16 %v3273
    %v4614 = vunpack.c.l.b16 %v3274
    %v4615 = vunpack.c.l.b16 %v3275
    %v4616 = vunpack.c.h.b16 %v3275
    %v4617 = vunpack.c.l.b16 %v3276
    %v4618 = vunpack.c.h.b16 %v3276
    %v4619 = vunpack.c.l.b16 %v3277
    %v4620 = vunpack.c.h.b16 %v3277
    %v4621 = vunpack.c.l.b16 %v3278
    %v4622 = vunpack.c.l.b16 %v3279
    %v4623 = vunpack.c.h.b16 %v3279
    %v4624 = vunpack.c.l.b16 %v3280
    %v4625 = vunpack.c.h.b16 %v3280
    %v4626 = vunpack.c.l.b16 %v3281
    %v4627 = vunpack.c.h.b16 %v3281
    %v4628 = vunpack.c.l.b16 %v3282
    %v4629 = vunpack.c.l.b16 %v3283
    %v4630 = vunpack.c.h.b16 %v3283
    %v4631 = vunpack.c.l.b16 %v3284
    %v4632 = vunpack.c.h.b16 %v3284
    %v4633 = vunpack.c.l.b16 %v3285
    %v4634 = vunpack.c.h.b16 %v3285
    %v4635 = vunpack.c.l.b16 %v3286
    %v4636 = vunpack.c.l.b16 %v3287
    %v4637 = vunpack.c.h.b16 %v3287
    %v4638 = vunpack.c.l.b16 %v3288
    %v4639 = vunpack.c.h.b16 %v3288
    %v4640 = vunpack.c.l.b16 %v3289
    %v4641 = vunpack.c.h.b16 %v3289
    %v4642 = vunpack.c.l.b16 %v3290
    %v4643 = vunpack.c.l.b16 %v3291
    %v4644 = vunpack.c.h.b16 %v3291
    %v4645 = vunpack.c.l.b16 %v3292
    %v4646 = vunpack.c.h.b16 %v3292
    %v4647 = vunpack.c.l.b16 %v3293
    %v4648 = vunpack.c.h.b16 %v3293
    %v4649 = vunpack.c.l.b16 %v3294
    %v4650 = vunpack.c.l.b16 %v3295
    %v4651 = vunpack.c.h.b16 %v3295
    %v4652 = vunpack.c.l.b16 %v3296
    %v4653 = vunpack.c.h.b16 %v3296
    %v4654 = vunpack.c.l.b16 %v3297
    %v4655 = vunpack.c.h.b16 %v3297
    %v4656 = vunpack.c.l.b16 %v3298
    %v4657 = vunpack.c.l.b16 %v3299
    %v4658 = vunpack.c.h.b16 %v3299
    %v4659 = vunpack.c.l.b16 %v3300
    %v4660 = vunpack.c.h.b16 %v3300
    %v4661 = vunpack.c.l.b16 %v3301
    %v4662 = vunpack.c.h.b16 %v3301
    %v4663 = vunpack.c.l.b16 %v3302
    %v4664 = vunpack.c.l.b16 %v3303
    %v4665 = vunpack.c.h.b16 %v3303
    %v4666 = vunpack.c.l.b16 %v3304
    %v4667 = vunpack.c.h.b16 %v3304
    %v4668 = vunpack.c.l.b16 %v3305
    %v4669 = vunpack.c.h.b16 %v3305
    %v4670 = vunpack.c.l.b16 %v3306
    %v4671 = vunpack.c.l.b16 %v3307
    %v4672 = vunpack.c.h.b16 %v3307
    %v4673 = vunpack.c.l.b16 %v3308
    %v4674 = vunpack.c.h.b16 %v3308
    %v4675 = vunpack.c.l.b16 %v3309
    %v4676 = vunpack.c.h.b16 %v3309
    %v4677 = vunpack.c.l.b16 %v3310
    %v4678 = vunpack.c.l.b16 %v3311
    %v4679 = vunpack.c.h.b16 %v3311
    %v4680 = vunpack.c.l.b16 %v3312
    %v4681 = vunpack.c.h.b16 %v3312
    %v4682 = vunpack.c.l.b16 %v3313
    %v4683 = vunpack.c.h.b16 %v3313
    %v4684 = vunpack.c.l.b16 %v3314
    %v4685 = vunpack.c.l.b16 %v3315
    %v4686 = vunpack.c.h.b16 %v3315
    %v4687 = vunpack.c.l.b16 %v3316
    %v4688 = vunpack.c.h.b16 %v3316
    %v4689 = vunpack.c.l.b16 %v3317
    %v4690 = vunpack.c.h.b16 %v3317
    %v4691 = vunpack.c.l.b16 %v3318
    %v4692 = vunpack.c.l.b16 %v3319
    %v4693 = vunpack.c.h.b16 %v3319
    %v4694 = vunpack.c.l.b16 %v3320
    %v4695 = vunpack.c.h.b16 %v3320
    %v4696 = vunpack.c.l.b16 %v3321
    %v4697 = vunpack.c.h.b16 %v3321
    %v4698 = vunpack.c.l.b16 %v3322
    %v4699 = vunpack.c.l.b16 %v3323
    %v4700 = vunpack.c.h.b16 %v3323
    %v4701 = vunpack.c.l.b16 %v3324
    %v4702 = vunpack.c.h.b16 %v3324
    %v4703 = vunpack.c.l.b16 %v3325
    %v4704 = vunpack.c.h.b16 %v3325
    %v4705 = vunpack.c.l.b16 %v3326
    %v4706 = vunpack.c.l.b16 %v3327
    %v4707 = vunpack.c.h.b16 %v3327
    %v4708 = vunpack.c.l.b16 %v3328
    %v4709 = vunpack.c.h.b16 %v3328
    %v4710 = vunpack.c.l.b16 %v3329
    %v4711 = vunpack.c.h.b16 %v3329
    %v4712 = vunpack.c.l.b16 %v3330
    %v4713 = vunpack.c.l.b16 %v3331
    %v4714 = vunpack.c.h.b16 %v3331
    %v4715 = vunpack.c.l.b16 %v3332
    %v4716 = vunpack.c.h.b16 %v3332
    %v4717 = vunpack.c.l.b16 %v3333
    %v4718 = vunpack.c.h.b16 %v3333
    %v4719 = vunpack.c.l.b16 %v3334
    %v4720 = vunpack.c.l.b16 %v3335
    %v4721 = vunpack.c.h.b16 %v3335
    %v4722 = vunpack.c.l.b16 %v3336
    %v4723 = vunpack.c.h.b16 %v3336
    %v4724 = vunpack.c.l.b16 %v3337
    %v4725 = vunpack.c.h.b16 %v3337
    %v4726 = vunpack.c.l.b16 %v3338
    %v4727 = vunpack.c.l.b16 %v3339
    %v4728 = vunpack.c.h.b16 %v3339
    %v4729 = vunpack.c.l.b16 %v3340
    %v4730 = vunpack.c.h.b16 %v3340
    %v4731 = vunpack.c.l.b16 %v3341
    %v4732 = vunpack.c.h.b16 %v3341
    %v4733 = vunpack.c.l.b16 %v3342
    %v4734 = vunpack.c.l.b16 %v3343
    %v4735 = vunpack.c.h.b16 %v3343
    %v4736 = vunpack.c.l.b16 %v3344
    %v4737 = vunpack.c.h.b16 %v3344
    %v4738 = vunpack.c.l.b16 %v3345
    %v4739 = vunpack.c.h.b16 %v3345
    %v4740 = vunpack.c.l.b16 %v3346
    %v4741 = vunpack.c.l.b16 %v3347
    %v4742 = vunpack.c.h.b16 %v3347
    %v4743 = vunpack.c.l.b16 %v3348
    %v4744 = vunpack.c.h.b16 %v3348
    %v4745 = vunpack.c.l.b16 %v3349
    %v4746 = vunpack.c.h.b16 %v3349
    %v4747 = vunpack.c.l.b16 %v3350
    %v4748 = vunpack.c.l.b16 %v3351
    %v4749 = vunpack.c.h.b16 %v3351
    %v4750 = vunpack.c.l.b16 %v3352
    %v4751 = vunpack.c.h.b16 %v3352
    %v4752 = vunpack.c.l.b16 %v3353
    %v4753 = vunpack.c.h.b16 %v3353
    %v4754 = vunpack.c.l.b16 %v3354
    %v4755 = vunpack.c.l.b16 %v3355
    %v4756 = vunpack.c.h.b16 %v3355
    %v4757 = vunpack.c.l.b16 %v3356
    %v4758 = vunpack.c.h.b16 %v3356
    %v4759 = vunpack.c.l.b16 %v3357
    %v4760 = vunpack.c.h.b16 %v3357
    %v4761 = vunpack.c.l.b16 %v3358
    %v4762 = vunpack.c.l.b16 %v3359
    %v4763 = vunpack.c.h.b16 %v3359
    %v4764 = vunpack.c.l.b16 %v3360
    %v4765 = vunpack.c.h.b16 %v3360
    %v4766 = vunpack.c.l.b16 %v3361
    %v4767 = vunpack.c.h.b16 %v3361
    %v4768 = vunpack.c.l.b16 %v3362
    %v4769 = vunpack.c.l.b16 %v3363
    %v4770 = vunpack.c.h.b16 %v3363
    %v4771 = vunpack.c.l.b16 %v3364
    %v4772 = vunpack.c.h.b16 %v3364
    %v4773 = vunpack.c.l.b16 %v3365
    %v4774 = vunpack.c.h.b16 %v3365
    %v4775 = vunpack.c.l.b16 %v3366
    %v4776 = vunpack.c.l.b16 %v3367
    %v4777 = vunpack.c.h.b16 %v3367
    %v4778 = vunpack.c.l.b16 %v3368
    %v4779 = vunpack.c.h.b16 %v3368
    %v4780 = vunpack.c.l.b16 %v3369
    %v4781 = vunpack.c.h.b16 %v3369
    %v4782 = vunpack.c.l.b16 %v3370
    %v4783 = vunpack.c.l.b16 %v3371
    %v4784 = vunpack.c.h.b16 %v3371
    %v4785 = vunpack.c.l.b16 %v3372
    %v4786 = vunpack.c.h.b16 %v3372
    %v4787 = vunpack.c.l.b16 %v3373
    %v4788 = vunpack.c.h.b16 %v3373
    %v4789 = vunpack.c.l.b16 %v3374
    %v4790 = vunpack.c.l.b16 %v3375
    %v4791 = vunpack.c.h.b16 %v3375
    %v4792 = vunpack.c.l.b16 %v3376
    %v4793 = vunpack.c.h.b16 %v3376
    %v4794 = vunpack.c.l.b16 %v3377
    %v4795 = vunpack.c.h.b16 %v3377
    %v4796 = vunpack.c.l.b16 %v3378
    %v4797 = vunpack.c.l.b16 %v3379
    %v4798 = vunpack.c.h.b16 %v3379
    %v4799 = vunpack.c.l.b16 %v3380
    %v4800 = vunpack.c.h.b16 %v3380
    %v4801 = vunpack.c.l.b16 %v3381
    %v4802 = vunpack.c.h.b16 %v3381
    %v4803 = vunpack.c.l.b16 %v3382
    %v4804 = vunpack.c.l.b16 %v3383
    %v4805 = vunpack.c.h.b16 %v3383
    %v4806 = vunpack.c.l.b16 %v3384
    %v4807 = vunpack.c.h.b16 %v3384
    %v4808 = vunpack.c.l.b16 %v3385
    %v4809 = vunpack.c.h.b16 %v3385
    %v4810 = vunpack.c.l.b16 %v3386
    %v4811 = vunpack.c.l.b16 %v3387
    %v4812 = vunpack.c.h.b16 %v3387
    %v4813 = vunpack.c.l.b16 %v3388
    %v4814 = vunpack.c.h.b16 %v3388
    %v4815 = vunpack.c.l.b16 %v3389
    %v4816 = vunpack.c.h.b16 %v3389
    %v4817 = vunpack.c.l.b16 %v3390
    %v4818 = vunpack.c.l.b16 %v3391
    %v4819 = vunpack.c.h.b16 %v3391
    %v4820 = vunpack.c.l.b16 %v3392
    %v4821 = vunpack.c.h.b16 %v3392
    %v4822 = vunpack.c.l.b16 %v3393
    %v4823 = vunpack.c.h.b16 %v3393
    %v4824 = vunpack.c.l.b16 %v3394
    %v4825 = vunpack.c.l.b16 %v3395
    %v4826 = vunpack.c.h.b16 %v3395
    %v4827 = vunpack.c.l.b16 %v3396
    %v4828 = vunpack.c.h.b16 %v3396
    %v4829 = vunpack.c.l.b16 %v3397
    %v4830 = vunpack.c.h.b16 %v3397
    %v4831 = vunpack.c.l.b16 %v3398
    %v4832 = vunpack.c.l.b16 %v3399
    %v4833 = vunpack.c.h.b16 %v3399
    %v4834 = vunpack.c.l.b16 %v3400
    %v4835 = vunpack.c.h.b16 %v3400
    %v4836 = vunpack.c.l.b16 %v3401
    %v4837 = vunpack.c.h.b16 %v3401
    %v4838 = vunpack.c.l.b16 %v3402
    %v4839 = vunpack.c.l.b16 %v3403
    %v4840 = vunpack.c.h.b16 %v3403
    %v4841 = vunpack.c.l.b16 %v3404
    %v4842 = vunpack.c.h.b16 %v3404
    %v4843 = vunpack.c.l.b16 %v3405
    %v4844 = vunpack.c.h.b16 %v3405
    %v4845 = vunpack.c.l.b16 %v3406
    %v4846 = vunpack.c.l.b16 %v3407
    %v4847 = vunpack.c.h.b16 %v3407
    %v4848 = vunpack.c.l.b16 %v3408
    %v4849 = vunpack.c.h.b16 %v3408
    %v4850 = vunpack.c.l.b16 %v3409
    %v4851 = vunpack.c.h.b16 %v3409
    %v4852 = vunpack.c.l.b16 %v3410
    %v4853 = vunpack.c.l.b16 %v3411
    %v4854 = vunpack.c.h.b16 %v3411
    %v4855 = vunpack.c.l.b16 %v3412
    %v4856 = vunpack.c.h.b16 %v3412
    %v4857 = vunpack.c.l.b16 %v3413
    %v4858 = vunpack.c.h.b16 %v3413
    %v4859 = vunpack.c.l.b16 %v3414
    %v4860 = vpack.c.b16 %v3971, %v3964
    %v4861 = vpack.c.b16 %v3972, %v3965
    %v4862 = vpack.c.b16 %v3973, %v3966
    %v4863 = vpack.c.b16 %v3974, %v3967
    %v4864 = vpack.c.b16 %v3975, %v3968
    %v4865 = vpack.c.b16 %v3976, %v3969
    %v4866 = vpack.c.b16 %v3977, %v3970
    %v4867 = vpack.c.b16 %v3985, %v3978
    %v4868 = vpack.c.b16 %v3986, %v3979
    %v4869 = vpack.c.b16 %v3987, %v3980
    %v4870 = vpack.c.b16 %v3988, %v3981
    %v4871 = vpack.c.b16 %v3989, %v3982
    %v4872 = vpack.c.b16 %v3990, %v3983
    %v4873 = vpack.c.b16 %v3991, %v3984
    %v4874 = vpack.c.b16 %v3999, %v3992
    %v4875 = vpack.c.b16 %v4000, %v3993
    %v4876 = vpack.c.b16 %v4001, %v3994
    %v4877 = vpack.c.b16 %v4002, %v3995
    %v4878 = vpack.c.b16 %v4003, %v3996
    %v4879 = vpack.c.b16 %v4004, %v3997
    %v4880 = vpack.c.b16 %v4005, %v3998
    %v4881 = vpack.c.b16 %v4013, %v4006
    %v4882 = vpack.c.b16 %v4014, %v4007
    %v4883 = vpack.c.b16 %v4015, %v4008
    %v4884 = vpack.c.b16 %v4016, %v4009
    %v4885 = vpack.c.b16 %v4017, %v4010
    %v4886 = vpack.c.b16 %v4018, %v4011
    %v4887 = vpack.c.b16 %v4019, %v4012
    %v4888 = vpack.c.b16 %v4027, %v4020
    %v4889 = vpack.c.b16 %v4028, %v4021
    %v4890 = vpack.c.b16 %v4029, %v4022
    %v4891 = vpack.c.b16 %v4030, %v4023
    %v4892 = vpack.c.b16 %v4031, %v4024
    %v4893 = vpack.c.b16 %v4032, %v4025
    %v4894 = vpack.c.b16 %v4033, %v4026
    %v4895 = vpack.c.b16 %v4041, %v4034
    %v4896 = vpack.c.b16 %v4042, %v4035
    %v4897 = vpack.c.b16 %v4043, %v4036
    %v4898 = vpack.c.b16 %v4044, %v4037
    %v4899 = vpack.c.b16 %v4045, %v4038
    %v4900 = vpack.c.b16 %v4046, %v4039
    %v4901 = vpack.c.b16 %v4047, %v4040
    %v4902 = vpack.c.b16 %v4055, %v4048
    %v4903 = vpack.c.b16 %v4056, %v4049
    %v4904 = vpack.c.b16 %v4057, %v4050
    %v4905 = vpack.c.b16 %v4058, %v4051
    %v4906 = vpack.c.b16 %v4059, %v4052
    %v4907 = vpack.c.b16 %v4060, %v4053
    %v4908 = vpack.c.b16 %v4061, %v4054
    %v4909 = vpack.c.b16 %v4069, %v4062
    %v4910 = vpack.c.b16 %v4070, %v4063
    %v4911 = vpack.c.b16 %v4071, %v4064
    %v4912 = vpack.c.b16 %v4072, %v4065
    %v4913 = vpack.c.b16 %v4073, %v4066
    %v4914 = vpack.c.b16 %v4074, %v4067
    %v4915 = vpack.c.b16 %v4075, %v4068
    %v4916 = vpack.c.b16 %v4083, %v4076
    %v4917 = vpack.c.b16 %v4084, %v4077
    %v4918 = vpack.c.b16 %v4085, %v4078
    %v4919 = vpack.c.b16 %v4086, %v4079
    %v4920 = vpack.c.b16 %v4087, %v4080
    %v4921 = vpack.c.b16 %v4088, %v4081
    %v4922 = vpack.c.b16 %v4089, %v4082
    %v4923 = vpack.c.b16 %v4097, %v4090
    %v4924 = vpack.c.b16 %v4098, %v4091
    %v4925 = vpack.c.b16 %v4099, %v4092
    %v4926 = vpack.c.b16 %v4100, %v4093
    %v4927 = vpack.c.b16 %v4101, %v4094
    %v4928 = vpack.c.b16 %v4102, %v4095
    %v4929 = vpack.c.b16 %v4103, %v4096
    %v4930 = vpack.c.b16 %v4111, %v4104
    %v4931 = vpack.c.b16 %v4112, %v4105
    %v4932 = vpack.c.b16 %v4113, %v4106
    %v4933 = vpack.c.b16 %v4114, %v4107
    %v4934 = vpack.c.b16 %v4115, %v4108
    %v4935 = vpack.c.b16 %v4116, %v4109
    %v4936 = vpack.c.b16 %v4117, %v4110
    %v4937 = vpack.c.b16 %v4125, %v4118
    %v4938 = vpack.c.b16 %v4126, %v4119
    %v4939 = vpack.c.b16 %v4127, %v4120
    %v4940 = vpack.c.b16 %v4128, %v4121
    %v4941 = vpack.c.b16 %v4129, %v4122
    %v4942 = vpack.c.b16 %v4130, %v4123
    %v4943 = vpack.c.b16 %v4131, %v4124
    %v4944 = vpack.c.b16 %v4139, %v4132
    %v4945 = vpack.c.b16 %v4140, %v4133
    %v4946 = vpack.c.b16 %v4141, %v4134
    %v4947 = vpack.c.b16 %v4142, %v4135
    %v4948 = vpack.c.b16 %v4143, %v4136
    %v4949 = vpack.c.b16 %v4144, %v4137
    %v4950 = vpack.c.b16 %v4145, %v4138
    %v4951 = vpack.c.b16 %v4153, %v4146
    %v4952 = vpack.c.b16 %v4154, %v4147
    %v4953 = vpack.c.b16 %v4155, %v4148
    %v4954 = vpack.c.b16 %v4156, %v4149
    %v4955 = vpack.c.b16 %v4157, %v4150
    %v4956 = vpack.c.b16 %v4158, %v4151
    %v4957 = vpack.c.b16 %v4159, %v4152
    %v4958 = vpack.c.b16 %v4167, %v4160
    %v4959 = vpack.c.b16 %v4168, %v4161
    %v4960 = vpack.c.b16 %v4169, %v4162
    %v4961 = vpack.c.b16 %v4170, %v4163
    %v4962 = vpack.c.b16 %v4171, %v4164
    %v4963 = vpack.c.b16 %v4172, %v4165
    %v4964 = vpack.c.b16 %v4173, %v4166
    %v4965 = vpack.c.b16 %v4181, %v4174
    %v4966 = vpack.c.b16 %v4182, %v4175
    %v4967 = vpack.c.b16 %v4183, %v4176
    %v4968 = vpack.c.b16 %v4184, %v4177
    %v4969 = vpack.c.b16 %v4185, %v4178
    %v4970 = vpack.c.b16 %v4186, %v4179
    %v4971 = vpack.c.b16 %v4187, %v4180
    %v4972 = vpack.c.b16 %v4195, %v4188
    %v4973 = vpack.c.b16 %v4196, %v4189
    %v4974 = vpack.c.b16 %v4197, %v4190
    %v4975 = vpack.c.b16 %v4198, %v4191
    %v4976 = vpack.c.b16 %v4199, %v4192
    %v4977 = vpack.c.b16 %v4200, %v4193
    %v4978 = vpack.c.b16 %v4201, %v4194
    %v4979 = vpack.c.b16 %v4209, %v4202
    %v4980 = vpack.c.b16 %v4210, %v4203
    %v4981 = vpack.c.b16 %v4211, %v4204
    %v4982 = vpack.c.b16 %v4212, %v4205
    %v4983 = vpack.c.b16 %v4213, %v4206
    %v4984 = vpack.c.b16 %v4214, %v4207
    %v4985 = vpack.c.b16 %v4215, %v4208
    %v4986 = vpack.c.b16 %v4223, %v4216
    %v4987 = vpack.c.b16 %v4224, %v4217
    %v4988 = vpack.c.b16 %v4225, %v4218
    %v4989 = vpack.c.b16 %v4226, %v4219
    %v4990 = vpack.c.b16 %v4227, %v4220
    %v4991 = vpack.c.b16 %v4228, %v4221
    %v4992 = vpack.c.b16 %v4229, %v4222
    %v4993 = vpack.c.b16 %v4237, %v4230
    %v4994 = vpack.c.b16 %v4238, %v4231
    %v4995 = vpack.c.b16 %v4239, %v4232
    %v4996 = vpack.c.b16 %v4240, %v4233
    %v4997 = vpack.c.b16 %v4241, %v4234
    %v4998 = vpack.c.b16 %v4242, %v4235
    %v4999 = vpack.c.b16 %v4243, %v4236
    %v5000 = vpack.c.b16 %v4251, %v4244
    %v5001 = vpack.c.b16 %v4252, %v4245
    %v5002 = vpack.c.b16 %v4253, %v4246
    %v5003 = vpack.c.b16 %v4254, %v4247
    %v5004 = vpack.c.b16 %v4255, %v4248
    %v5005 = vpack.c.b16 %v4256, %v4249
    %v5006 = vpack.c.b16 %v4257, %v4250
    %v5007 = vpack.c.b16 %v4265, %v4258
    %v5008 = vpack.c.b16 %v4266, %v4259
    %v5009 = vpack.c.b16 %v4267, %v4260
    %v5010 = vpack.c.b16 %v4268, %v4261
    %v5011 = vpack.c.b16 %v4269, %v4262
    %v5012 = vpack.c.b16 %v4270, %v4263
    %v5013 = vpack.c.b16 %v4271, %v4264
    %v5014 = vpack.c.b16 %v4279, %v4272
    %v5015 = vpack.c.b16 %v4280, %v4273
    %v5016 = vpack.c.b16 %v4281, %v4274
    %v5017 = vpack.c.b16 %v4282, %v4275
    %v5018 = vpack.c.b16 %v4283, %v4276
    %v5019 = vpack.c.b16 %v4284, %v4277
    %v5020 = vpack.c.b16 %v4285, %v4278
    %v5021 = vpack.c.b16 %v4293, %v4286
    %v5022 = vpack.c.b16 %v4294, %v4287
    %v5023 = vpack.c.b16 %v4295, %v4288
    %v5024 = vpack.c.b16 %v4296, %v4289
    %v5025 = vpack.c.b16 %v4297, %v4290
    %v5026 = vpack.c.b16 %v4298, %v4291
    %v5027 = vpack.c.b16 %v4299, %v4292
    %v5028 = vpack.c.b16 %v4307, %v4300
    %v5029 = vpack.c.b16 %v4308, %v4301
    %v5030 = vpack.c.b16 %v4309, %v4302
    %v5031 = vpack.c.b16 %v4310, %v4303
    %v5032 = vpack.c.b16 %v4311, %v4304
    %v5033 = vpack.c.b16 %v4312, %v4305
    %v5034 = vpack.c.b16 %v4313, %v4306
    %v5035 = vpack.c.b16 %v4321, %v4314
    %v5036 = vpack.c.b16 %v4322, %v4315
    %v5037 = vpack.c.b16 %v4323, %v4316
    %v5038 = vpack.c.b16 %v4324, %v4317
    %v5039 = vpack.c.b16 %v4325, %v4318
    %v5040 = vpack.c.b16 %v4326, %v4319
    %v5041 = vpack.c.b16 %v4327, %v4320
    %v5042 = vpack.c.b16 %v4335, %v4328
    %v5043 = vpack.c.b16 %v4336, %v4329
    %v5044 = vpack.c.b16 %v4337, %v4330
    %v5045 = vpack.c.b16 %v4338, %v4331
    %v5046 = vpack.c.b16 %v4339, %v4332
    %v5047 = vpack.c.b16 %v4340, %v4333
    %v5048 = vpack.c.b16 %v4341, %v4334
    %v5049 = vpack.c.b16 %v4349, %v4342
    %v5050 = vpack.c.b16 %v4350, %v4343
    %v5051 = vpack.c.b16 %v4351, %v4344
    %v5052 = vpack.c.b16 %v4352, %v4345
    %v5053 = vpack.c.b16 %v4353, %v4346
    %v5054 = vpack.c.b16 %v4354, %v4347
    %v5055 = vpack.c.b16 %v4355, %v4348
    %v5056 = vpack.c.b16 %v4363, %v4356
    %v5057 = vpack.c.b16 %v4364, %v4357
    %v5058 = vpack.c.b16 %v4365, %v4358
    %v5059 = vpack.c.b16 %v4366, %v4359
    %v5060 = vpack.c.b16 %v4367, %v4360
    %v5061 = vpack.c.b16 %v4368, %v4361
    %v5062 = vpack.c.b16 %v4369, %v4362
    %v5063 = vpack.c.b16 %v4377, %v4370
    %v5064 = vpack.c.b16 %v4378, %v4371
    %v5065 = vpack.c.b16 %v4379, %v4372
    %v5066 = vpack.c.b16 %v4380, %v4373
    %v5067 = vpack.c.b16 %v4381, %v4374
    %v5068 = vpack.c.b16 %v4382, %v4375
    %v5069 = vpack.c.b16 %v4383, %v4376
    %v5070 = vpack.c.b16 %v4391, %v4384
    %v5071 = vpack.c.b16 %v4392, %v4385
    %v5072 = vpack.c.b16 %v4393, %v4386
    %v5073 = vpack.c.b16 %v4394, %v4387
    %v5074 = vpack.c.b16 %v4395, %v4388
    %v5075 = vpack.c.b16 %v4396, %v4389
    %v5076 = vpack.c.b16 %v4397, %v4390
    %v5077 = vpack.c.b16 %v4405, %v4398
    %v5078 = vpack.c.b16 %v4406, %v4399
    %v5079 = vpack.c.b16 %v4407, %v4400
    %v5080 = vpack.c.b16 %v4408, %v4401
    %v5081 = vpack.c.b16 %v4409, %v4402
    %v5082 = vpack.c.b16 %v4410, %v4403
    %v5083 = vpack.c.b16 %v4411, %v4404
    %v5084 = vpack.c.b16 %v4419, %v4412
    %v5085 = vpack.c.b16 %v4420, %v4413
    %v5086 = vpack.c.b16 %v4421, %v4414
    %v5087 = vpack.c.b16 %v4422, %v4415
    %v5088 = vpack.c.b16 %v4423, %v4416
    %v5089 = vpack.c.b16 %v4424, %v4417
    %v5090 = vpack.c.b16 %v4425, %v4418
    %v5091 = vpack.c.b16 %v4433, %v4426
    %v5092 = vpack.c.b16 %v4434, %v4427
    %v5093 = vpack.c.b16 %v4435, %v4428
    %v5094 = vpack.c.b16 %v4436, %v4429
    %v5095 = vpack.c.b16 %v4437, %v4430
    %v5096 = vpack.c.b16 %v4438, %v4431
    %v5097 = vpack.c.b16 %v4439, %v4432
    %v5098 = vpack.c.b16 %v4447, %v4440
    %v5099 = vpack.c.b16 %v4448, %v4441
    %v5100 = vpack.c.b16 %v4449, %v4442
    %v5101 = vpack.c.b16 %v4450, %v4443
    %v5102 = vpack.c.b16 %v4451, %v4444
    %v5103 = vpack.c.b16 %v4452, %v4445
    %v5104 = vpack.c.b16 %v4453, %v4446
    %v5105 = vpack.c.b16 %v4461, %v4454
    %v5106 = vpack.c.b16 %v4462, %v4455
    %v5107 = vpack.c.b16 %v4463, %v4456
    %v5108 = vpack.c.b16 %v4464, %v4457
    %v5109 = vpack.c.b16 %v4465, %v4458
    %v5110 = vpack.c.b16 %v4466, %v4459
    %v5111 = vpack.c.b16 %v4467, %v4460
    %v5112 = vpack.c.b16 %v4475, %v4468
    %v5113 = vpack.c.b16 %v4476, %v4469
    %v5114 = vpack.c.b16 %v4477, %v4470
    %v5115 = vpack.c.b16 %v4478, %v4471
    %v5116 = vpack.c.b16 %v4479, %v4472
    %v5117 = vpack.c.b16 %v4480, %v4473
    %v5118 = vpack.c.b16 %v4481, %v4474
    %v5119 = vpack.c.b16 %v4489, %v4482
    %v5120 = vpack.c.b16 %v4490, %v4483
    %v5121 = vpack.c.b16 %v4491, %v4484
    %v5122 = vpack.c.b16 %v4492, %v4485
    %v5123 = vpack.c.b16 %v4493, %v4486
    %v5124 = vpack.c.b16 %v4494, %v4487
    %v5125 = vpack.c.b16 %v4495, %v4488
    %v5126 = vpack.c.b16 %v4503, %v4496
    %v5127 = vpack.c.b16 %v4504, %v4497
    %v5128 = vpack.c.b16 %v4505, %v4498
    %v5129 = vpack.c.b16 %v4506, %v4499
    %v5130 = vpack.c.b16 %v4507, %v4500
    %v5131 = vpack.c.b16 %v4508, %v4501
    %v5132 = vpack.c.b16 %v4509, %v4502
    %v5133 = vpack.c.b16 %v4517, %v4510
    %v5134 = vpack.c.b16 %v4518, %v4511
    %v5135 = vpack.c.b16 %v4519, %v4512
    %v5136 = vpack.c.b16 %v4520, %v4513
    %v5137 = vpack.c.b16 %v4521, %v4514
    %v5138 = vpack.c.b16 %v4522, %v4515
    %v5139 = vpack.c.b16 %v4523, %v4516
    %v5140 = vpack.c.b16 %v4531, %v4524
    %v5141 = vpack.c.b16 %v4532, %v4525
    %v5142 = vpack.c.b16 %v4533, %v4526
    %v5143 = vpack.c.b16 %v4534, %v4527
    %v5144 = vpack.c.b16 %v4535, %v4528
    %v5145 = vpack.c.b16 %v4536, %v4529
    %v5146 = vpack.c.b16 %v4537, %v4530
    %v5147 = vpack.c.b16 %v4545, %v4538
    %v5148 = vpack.c.b16 %v4546, %v4539
    %v5149 = vpack.c.b16 %v4547, %v4540
    %v5150 = vpack.c.b16 %v4548, %v4541
    %v5151 = vpack.c.b16 %v4549, %v4542
    %v5152 = vpack.c.b16 %v4550, %v4543
    %v5153 = vpack.c.b16 %v4551, %v4544
    %v5154 = vpack.c.b16 %v4559, %v4552
    %v5155 = vpack.c.b16 %v4560, %v4553
    %v5156 = vpack.c.b16 %v4561, %v4554
    %v5157 = vpack.c.b16 %v4562, %v4555
    %v5158 = vpack.c.b16 %v4563, %v4556
    %v5159 = vpack.c.b16 %v4564, %v4557
    %v5160 = vpack.c.b16 %v4565, %v4558
    %v5161 = vpack.c.b16 %v4573, %v4566
    %v5162 = vpack.c.b16 %v4574, %v4567
    %v5163 = vpack.c.b16 %v4575, %v4568
    %v5164 = vpack.c.b16 %v4576, %v4569
    %v5165 = vpack.c.b16 %v4577, %v4570
    %v5166 = vpack.c.b16 %v4578, %v4571
    %v5167 = vpack.c.b16 %v4579, %v4572
    %v5168 = vpack.c.b16 %v4587, %v4580
    %v5169 = vpack.c.b16 %v4588, %v4581
    %v5170 = vpack.c.b16 %v4589, %v4582
    %v5171 = vpack.c.b16 %v4590, %v4583
    %v5172 = vpack.c.b16 %v4591, %v4584
    %v5173 = vpack.c.b16 %v4592, %v4585
    %v5174 = vpack.c.b16 %v4593, %v4586
    %v5175 = vpack.c.b16 %v4601, %v4594
    %v5176 = vpack.c.b16 %v4602, %v4595
    %v5177 = vpack.c.b16 %v4603, %v4596
    %v5178 = vpack.c.b16 %v4604, %v4597
    %v5179 = vpack.c.b16 %v4605, %v4598
    %v5180 = vpack.c.b16 %v4606, %v4599
    %v5181 = vpack.c.b16 %v4607, %v4600
    %v5182 = vpack.c.b16 %v4615, %v4608
    %v5183 = vpack.c.b16 %v4616, %v4609
    %v5184 = vpack.c.b16 %v4617, %v4610
    %v5185 = vpack.c.b16 %v4618, %v4611
    %v5186 = vpack.c.b16 %v4619, %v4612
    %v5187 = vpack.c.b16 %v4620, %v4613
    %v5188 = vpack.c.b16 %v4621, %v4614
    %v5189 = vpack.c.b16 %v4629, %v4622
    %v5190 = vpack.c.b16 %v4630, %v4623
    %v5191 = vpack.c.b16 %v4631, %v4624
    %v5192 = vpack.c.b16 %v4632, %v4625
    %v5193 = vpack.c.b16 %v4633, %v4626
    %v5194 = vpack.c.b16 %v4634, %v4627
    %v5195 = vpack.c.b16 %v4635, %v4628
    %v5196 = vpack.c.b16 %v4643, %v4636
    %v5197 = vpack.c.b16 %v4644, %v4637
    %v5198 = vpack.c.b16 %v4645, %v4638
    %v5199 = vpack.c.b16 %v4646, %v4639
    %v5200 = vpack.c.b16 %v4647, %v4640
    %v5201 = vpack.c.b16 %v4648, %v4641
    %v5202 = vpack.c.b16 %v4649, %v4642
    %v5203 = vpack.c.b16 %v4657, %v4650
    %v5204 = vpack.c.b16 %v4658, %v4651
    %v5205 = vpack.c.b16 %v4659, %v4652
    %v5206 = vpack.c.b16 %v4660, %v4653
    %v5207 = vpack.c.b16 %v4661, %v4654
    %v5208 = vpack.c.b16 %v4662, %v4655
    %v5209 = vpack.c.b16 %v4663, %v4656
    %v5210 = vpack.c.b16 %v4671, %v4664
    %v5211 = vpack.c.b16 %v4672, %v4665
    %v5212 = vpack.c.b16 %v4673, %v4666
    %v5213 = vpack.c.b16 %v4674, %v4667
    %v5214 = vpack.c.b16 %v4675, %v4668
    %v5215 = vpack.c.b16 %v4676, %v4669
    %v5216 = vpack.c.b16 %v4677, %v4670
    %v5217 = vpack.c.b16 %v4685, %v4678
    %v5218 = vpack.c.b16 %v4686, %v4679
    %v5219 = vpack.c.b16 %v4687, %v4680
    %v5220 = vpack.c.b16 %v4688, %v4681
    %v5221 = vpack.c.b16 %v4689, %v4682
    %v5222 = vpack.c.b16 %v4690, %v4683
    %v5223 = vpack.c.b16 %v4691, %v4684
    %v5224 = vpack.c.b16 %v4699, %v4692
    %v5225 = vpack.c.b16 %v4700, %v4693
    %v5226 = vpack.c.b16 %v4701, %v4694
    %v5227 = vpack.c.b16 %v4702, %v4695
    %v5228 = vpack.c.b16 %v4703, %v4696
    %v5229 = vpack.c.b16 %v4704, %v4697
    %v5230 = vpack.c.b16 %v4705, %v4698
    %v5231 = vpack.c.b16 %v4713, %v4706
    %v5232 = vpack.c.b16 %v4714, %v4707
    %v5233 = vpack.c.b16 %v4715, %v4708
    %v5234 = vpack.c.b16 %v4716, %v4709
    %v5235 = vpack.c.b16 %v4717, %v4710
    %v5236 = vpack.c.b16 %v4718, %v4711
    %v5237 = vpack.c.b16 %v4719, %v4712
    %v5238 = vpack.c.b16 %v4727, %v4720
    %v5239 = vpack.c.b16 %v4728, %v4721
    %v5240 = vpack.c.b16 %v4729, %v4722
    %v5241 = vpack.c.b16 %v4730, %v4723
    %v5242 = vpack.c.b16 %v4731, %v4724
    %v5243 = vpack.c.b16 %v4732, %v4725
    %v5244 = vpack.c.b16 %v4733, %v4726
    %v5245 = vpack.c.b16 %v4741, %v4734
    %v5246 = vpack.c.b16 %v4742, %v4735
    %v5247 = vpack.c.b16 %v4743, %v4736
    %v5248 = vpack.c.b16 %v4744, %v4737
    %v5249 = vpack.c.b16 %v4745, %v4738
    %v5250 = vpack.c.b16 %v4746, %v4739
    %v5251 = vpack.c.b16 %v4747, %v4740
    %v5252 = vpack.c.b16 %v4755, %v4748
    %v5253 = vpack.c.b16 %v4756, %v4749
    %v5254 = vpack.c.b16 %v4757, %v4750
    %v5255 = vpack.c.b16 %v4758, %v4751
    %v5256 = vpack.c.b16 %v4759, %v4752
    %v5257 = vpack.c.b16 %v4760, %v4753
    %v5258 = vpack.c.b16 %v4761, %v4754
    %v5259 = vpack.c.b16 %v4769, %v4762
    %v5260 = vpack.c.b16 %v4770, %v4763
    %v5261 = vpack.c.b16 %v4771, %v4764
    %v5262 = vpack.c.b16 %v4772, %v4765
    %v5263 = vpack.c.b16 %v4773, %v4766
    %v5264 = vpack.c.b16 %v4774, %v4767
    %v5265 = vpack.c.b16 %v4775, %v4768
    %v5266 = vpack.c.b16 %v4783, %v4776
    %v5267 = vpack.c.b16 %v4784, %v4777
    %v5268 = vpack.c.b16 %v4785, %v4778
    %v5269 = vpack.c.b16 %v4786, %v4779
    %v5270 = vpack.c.b16 %v4787, %v4780
    %v5271 = vpack.c.b16 %v4788, %v4781
    %v5272 = vpack.c.b16 %v4789, %v4782
    %v5273 = vpack.c.b16 %v4797, %v4790
    %v5274 = vpack.c.b16 %v4798, %v4791
    %v5275 = vpack.c.b16 %v4799, %v4792
    %v5276 = vpack.c.b16 %v4800, %v4793
    %v5277 = vpack.c.b16 %v4801, %v4794
    %v5278 = vpack.c.b16 %v4802, %v4795
    %v5279 = vpack.c.b16 %v4803, %v4796
    %v5280 = vpack.c.b16 %v4811, %v4804
    %v5281 = vpack.c.b16 %v4812, %v4805
    %v5282 = vpack.c.b16 %v4813, %v4806
    %v5283 = vpack.c.b16 %v4814, %v4807
    %v5284 = vpack.c.b16 %v4815, %v4808
    %v5285 = vpack.c.b16 %v4816, %v4809
    %v5286 = vpack.c.b16 %v4817, %v4810
    %v5287 = vpack.c.b16 %v4825, %v4818
    %v5288 = vpack.c.b16 %v4826, %v4819
    %v5289 = vpack.c.b16 %v4827, %v4820
    %v5290 = vpack.c.b16 %v4828, %v4821
    %v5291 = vpack.c.b16 %v4829, %v4822
    %v5292 = vpack.c.b16 %v4830, %v4823
    %v5293 = vpack.c.b16 %v4831, %v4824
    %v5294 = vpack.c.b16 %v4839, %v4832
    %v5295 = vpack.c.b16 %v4840, %v4833
    %v5296 = vpack.c.b16 %v4841, %v4834
    %v5297 = vpack.c.b16 %v4842, %v4835
    %v5298 = vpack.c.b16 %v4843, %v4836
    %v5299 = vpack.c.b16 %v4844, %v4837
    %v5300 = vpack.c.b16 %v4845, %v4838
    %v5301 = vpack.c.b16 %v4853, %v4846
    %v5302 = vpack.c.b16 %v4854, %v4847
    %v5303 = vpack.c.b16 %v4855, %v4848
    %v5304 = vpack.c.b16 %v4856, %v4849
    %v5305 = vpack.c.b16 %v4857, %v4850
    %v5306 = vpack.c.b16 %v4858, %v4851
    %v5307 = vpack.c.b16 %v4859, %v4852
    %5756 = vmatprep.subr.bf16.mxu0 %v4910
    %5757 = vmatpush1.bf16.msra.mxu0 %v4909
    %5758 = vmatprep.subr.bf16.mxu0 %v4903
    %5759 = vmatpush1.bf16.msra.mxu0 %v4902
    %5760 = vmatprep.subr.bf16.mxu0 %v4896
    %5761 = vmatpush1.bf16.msra.mxu0 %v4895
    %5762 = vmatprep.subr.bf16.mxu0 %v4889
    %5763 = vmatpush1.bf16.msra.mxu0 %v4888
    %5764 = vmatprep.subr.bf16.mxu0 %v4882
    %5765 = vmatpush1.bf16.msra.mxu0 %v4881
    %5766 = vmatprep.subr.bf16.mxu0 %v4875
    %5767 = vmatpush1.bf16.msra.mxu0 %v4874
    %5768 = vmatprep.subr.bf16.mxu0 %v4868
    %5769 = vmatpush1.bf16.msra.mxu0 %v4867
    %5770 = vmatprep.subr.bf16.mxu0 %v4861
    %5771 = vmatpush1.bf16.msra.mxu0 %v4860
    %5772 = vmatprep.subr.bf16.mxu0 %v4966
    %5773 = vmatpush2.bf16.msra.mxu0 %v4965
    %5774 = vmatprep.subr.bf16.mxu0 %v4959
    %5775 = vmatpush2.bf16.msra.mxu0 %v4958
    %5776 = vmatprep.subr.bf16.mxu0 %v4952
    %5777 = vmatpush2.bf16.msra.mxu0 %v4951
    %5778 = vmatprep.subr.bf16.mxu0 %v4945
    %5779 = vmatpush2.bf16.msra.mxu0 %v4944
    %5780 = vmatprep.subr.bf16.mxu0 %v4938
    %5781 = vmatpush2.bf16.msra.mxu0 %v4937
    %5782 = vmatprep.subr.bf16.mxu0 %v4931
    %5783 = vmatpush2.bf16.msra.mxu0 %v4930
    %5784 = vmatprep.subr.bf16.mxu0 %v4924
    %5785 = vmatpush2.bf16.msra.mxu0 %v4923
    %5786 = vmatprep.subr.bf16.mxu0 %v4917
    %5787 = vmatpush2.bf16.msra.mxu0 %v4916
    %5788 = vmatprep.mubr.bf16.mxu0 %v2896
    %5789 = vmatmul.mubr.bf16.gmra.mxu0 %v2895
    %v5790 = vpop.f32.mrf.mxu0
    %v5791 = vadd.f32 %v3420, %v5790
    %v5792 = vpop.f32.mrf.mxu0
    %v5793 = vadd.f32 %v3424, %v5792
    %v5794 = vpop.f32.mrf.mxu0
    %v5795 = vadd.f32 %v3420, %v5794
    %v5796 = vpop.f32.mrf.mxu0
    %v5797 = vadd.f32 %v3424, %v5796
    %5798 = vdwg.mxu0
    %5799 = vmatprep.subr.bf16.mxu0 %v5022
    %5800 = vmatpush1.bf16.msra.mxu0 %v5021
    %5801 = vmatprep.subr.bf16.mxu0 %v5015
    %5802 = vmatpush1.bf16.msra.mxu0 %v5014
    %5803 = vmatprep.subr.bf16.mxu0 %v5008
    %5804 = vmatpush1.bf16.msra.mxu0 %v5007
    %5805 = vmatprep.subr.bf16.mxu0 %v5001
    %5806 = vmatpush1.bf16.msra.mxu0 %v5000
    %5807 = vmatprep.subr.bf16.mxu0 %v4994
    %5808 = vmatpush1.bf16.msra.mxu0 %v4993
    %5809 = vmatprep.subr.bf16.mxu0 %v4987
    %5810 = vmatpush1.bf16.msra.mxu0 %v4986
    %5811 = vmatprep.subr.bf16.mxu0 %v4980
    %5812 = vmatpush1.bf16.msra.mxu0 %v4979
    %5813 = vmatprep.subr.bf16.mxu0 %v4973
    %5814 = vmatpush1.bf16.msra.mxu0 %v4972
    %5815 = vmatprep.subr.bf16.mxu0 %v5078
    %5816 = vmatpush2.bf16.msra.mxu0 %v5077
    %5817 = vmatprep.subr.bf16.mxu0 %v5071
    %5818 = vmatpush2.bf16.msra.mxu0 %v5070
    %5819 = vmatprep.subr.bf16.mxu0 %v5064
    %5820 = vmatpush2.bf16.msra.mxu0 %v5063
    %5821 = vmatprep.subr.bf16.mxu0 %v5057
    %5822 = vmatpush2.bf16.msra.mxu0 %v5056
    %5823 = vmatprep.subr.bf16.mxu0 %v5050
    %5824 = vmatpush2.bf16.msra.mxu0 %v5049
    %5825 = vmatprep.subr.bf16.mxu0 %v5043
    %5826 = vmatpush2.bf16.msra.mxu0 %v5042
    %5827 = vmatprep.subr.bf16.mxu0 %v5036
    %5828 = vmatpush2.bf16.msra.mxu0 %v5035
    %5829 = vmatprep.subr.bf16.mxu0 %v5029
    %5830 = vmatpush2.bf16.msra.mxu0 %v5028
    %5831 = vmatprep.mubr.bf16.mxu0 %v2898
    %5832 = vmatmul.mubr.bf16.gmra.mxu0 %v2897
    %v5833 = vpop.f32.mrf.mxu0
    %v5834 = vadd.f32 %v5791, %v5833
    %v5835 = vpop.f32.mrf.mxu0
    %v5836 = vadd.f32 %v5793, %v5835
    %v5837 = vpop.f32.mrf.mxu0
    %v5838 = vadd.f32 %v5795, %v5837
    %v5839 = vpop.f32.mrf.mxu0
    %v5840 = vadd.f32 %v5797, %v5839
    %5841 = vdwg.mxu0
    %5842 = vmatprep.subr.bf16.mxu0 %v5134
    %5843 = vmatpush1.bf16.msra.mxu0 %v5133
    %5844 = vmatprep.subr.bf16.mxu0 %v5127
    %5845 = vmatpush1.bf16.msra.mxu0 %v5126
    %5846 = vmatprep.subr.bf16.mxu0 %v5120
    %5847 = vmatpush1.bf16.msra.mxu0 %v5119
    %5848 = vmatprep.subr.bf16.mxu0 %v5113
    %5849 = vmatpush1.bf16.msra.mxu0 %v5112
    %5850 = vmatprep.subr.bf16.mxu0 %v5106
    %5851 = vmatpush1.bf16.msra.mxu0 %v5105
    %5852 = vmatprep.subr.bf16.mxu0 %v5099
    %5853 = vmatpush1.bf16.msra.mxu0 %v5098
    %5854 = vmatprep.subr.bf16.mxu0 %v5092
    %5855 = vmatpush1.bf16.msra.mxu0 %v5091
    %5856 = vmatprep.subr.bf16.mxu0 %v5085
    %5857 = vmatpush1.bf16.msra.mxu0 %v5084
    %5858 = vmatprep.subr.bf16.mxu0 %v5190
    %5859 = vmatpush2.bf16.msra.mxu0 %v5189
    %5860 = vmatprep.subr.bf16.mxu0 %v5183
    %5861 = vmatpush2.bf16.msra.mxu0 %v5182
    %5862 = vmatprep.subr.bf16.mxu0 %v5176
    %5863 = vmatpush2.bf16.msra.mxu0 %v5175
    %5864 = vmatprep.subr.bf16.mxu0 %v5169
    %5865 = vmatpush2.bf16.msra.mxu0 %v5168
    %5866 = vmatprep.subr.bf16.mxu0 %v5162
    %5867 = vmatpush2.bf16.msra.mxu0 %v5161
    %5868 = vmatprep.subr.bf16.mxu0 %v5155
    %5869 = vmatpush2.bf16.msra.mxu0 %v5154
    %5870 = vmatprep.subr.bf16.mxu0 %v5148
    %5871 = vmatpush2.bf16.msra.mxu0 %v5147
    %5872 = vmatprep.subr.bf16.mxu0 %v5141
    %5873 = vmatpush2.bf16.msra.mxu0 %v5140
    %5874 = vmatprep.mubr.bf16.mxu0 %v2900
    %5875 = vmatmul.mubr.bf16.gmra.mxu0 %v2899
    %v5876 = vpop.f32.mrf.mxu0
    %v5877 = vadd.f32 %v5834, %v5876
    %v5878 = vpop.f32.mrf.mxu0
    %v5879 = vadd.f32 %v5836, %v5878
    %v5880 = vpop.f32.mrf.mxu0
    %v5881 = vadd.f32 %v5838, %v5880
    %v5882 = vpop.f32.mrf.mxu0
    %v5883 = vadd.f32 %v5840, %v5882
    %5884 = vdwg.mxu0
    %5885 = vmatprep.subr.bf16.mxu0 %v5246
    %5886 = vmatpush1.bf16.msra.mxu0 %v5245
    %5887 = vmatprep.subr.bf16.mxu0 %v5239
    %5888 = vmatpush1.bf16.msra.mxu0 %v5238
    %5889 = vmatprep.subr.bf16.mxu0 %v5232
    %5890 = vmatpush1.bf16.msra.mxu0 %v5231
    %5891 = vmatprep.subr.bf16.mxu0 %v5225
    %5892 = vmatpush1.bf16.msra.mxu0 %v5224
    %5893 = vmatprep.subr.bf16.mxu0 %v5218
    %5894 = vmatpush1.bf16.msra.mxu0 %v5217
    %5895 = vmatprep.subr.bf16.mxu0 %v5211
    %5896 = vmatpush1.bf16.msra.mxu0 %v5210
    %5897 = vmatprep.subr.bf16.mxu0 %v5204
    %5898 = vmatpush1.bf16.msra.mxu0 %v5203
    %5899 = vmatprep.subr.bf16.mxu0 %v5197
    %5900 = vmatpush1.bf16.msra.mxu0 %v5196
    %5901 = vmatprep.subr.bf16.mxu0 %v5302
    %5902 = vmatpush2.bf16.msra.mxu0 %v5301
    %5903 = vmatprep.subr.bf16.mxu0 %v5295
    %5904 = vmatpush2.bf16.msra.mxu0 %v5294
    %5905 = vmatprep.subr.bf16.mxu0 %v5288
    %5906 = vmatpush2.bf16.msra.mxu0 %v5287
    %5907 = vmatprep.subr.bf16.mxu0 %v5281
    %5908 = vmatpush2.bf16.msra.mxu0 %v5280
    %5909 = vmatprep.subr.bf16.mxu0 %v5274
    %5910 = vmatpush2.bf16.msra.mxu0 %v5273
    %5911 = vmatprep.subr.bf16.mxu0 %v5267
    %5912 = vmatpush2.bf16.msra.mxu0 %v5266
    %5913 = vmatprep.subr.bf16.mxu0 %v5260
    %5914 = vmatpush2.bf16.msra.mxu0 %v5259
    %5915 = vmatprep.subr.bf16.mxu0 %v5253
    %5916 = vmatpush2.bf16.msra.mxu0 %v5252
    %5917 = vmatprep.mubr.bf16.mxu0 %v2902
    %5918 = vmatmul.mubr.bf16.gmra.mxu0 %v2901
    %v5919 = vpop.f32.mrf.mxu0
    %v5920 = vadd.f32 %v5877, %v5919
    %v5921 = vpop.f32.mrf.mxu0
    %v5922 = vadd.f32 %v5879, %v5921
    %v5923 = vpop.f32.mrf.mxu0
    %v5924 = vadd.f32 %v5881, %v5923
    %v5925 = vpop.f32.mrf.mxu0
    %v5926 = vadd.f32 %v5883, %v5925
    %5927 = vdwg.mxu0
    %5928 = vmatprep.subr.bf16.mxu0 %v4912
    %5929 = vmatpush1.bf16.msra.mxu0 %v4911
    %5930 = vmatprep.subr.bf16.mxu0 %v4905
    %5931 = vmatpush1.bf16.msra.mxu0 %v4904
    %5932 = vmatprep.subr.bf16.mxu0 %v4898
    %5933 = vmatpush1.bf16.msra.mxu0 %v4897
    %5934 = vmatprep.subr.bf16.mxu0 %v4891
    %5935 = vmatpush1.bf16.msra.mxu0 %v4890
    %5936 = vmatprep.subr.bf16.mxu0 %v4884
    %5937 = vmatpush1.bf16.msra.mxu0 %v4883
    %5938 = vmatprep.subr.bf16.mxu0 %v4877
    %5939 = vmatpush1.bf16.msra.mxu0 %v4876
    %5940 = vmatprep.subr.bf16.mxu0 %v4870
    %5941 = vmatpush1.bf16.msra.mxu0 %v4869
    %5942 = vmatprep.subr.bf16.mxu0 %v4863
    %5943 = vmatpush1.bf16.msra.mxu0 %v4862
    %5944 = vmatprep.subr.bf16.mxu0 %v4968
    %5945 = vmatpush2.bf16.msra.mxu0 %v4967
    %5946 = vmatprep.subr.bf16.mxu0 %v4961
    %5947 = vmatpush2.bf16.msra.mxu0 %v4960
    %5948 = vmatprep.subr.bf16.mxu0 %v4954
    %5949 = vmatpush2.bf16.msra.mxu0 %v4953
    %5950 = vmatprep.subr.bf16.mxu0 %v4947
    %5951 = vmatpush2.bf16.msra.mxu0 %v4946
    %5952 = vmatprep.subr.bf16.mxu0 %v4940
    %5953 = vmatpush2.bf16.msra.mxu0 %v4939
    %5954 = vmatprep.subr.bf16.mxu0 %v4933
    %5955 = vmatpush2.bf16.msra.mxu0 %v4932
    %5956 = vmatprep.subr.bf16.mxu0 %v4926
    %5957 = vmatpush2.bf16.msra.mxu0 %v4925
    %5958 = vmatprep.subr.bf16.mxu0 %v4919
    %5959 = vmatpush2.bf16.msra.mxu0 %v4918
    %5960 = vmatprep.mubr.bf16.mxu0 %v2896
    %5961 = vmatmul.mubr.bf16.gmra.mxu0 %v2895
    %v5962 = vpop.f32.mrf.mxu0
    %v5963 = vadd.f32 %v3428, %v5962
    %v5964 = vpop.f32.mrf.mxu0
    %v5965 = vadd.f32 %v3432, %v5964
    %v5966 = vpop.f32.mrf.mxu0
    %v5967 = vadd.f32 %v3428, %v5966
    %v5968 = vpop.f32.mrf.mxu0
    %v5969 = vadd.f32 %v3432, %v5968
    %5970 = vdwg.mxu0
    %5971 = vmatprep.subr.bf16.mxu0 %v5024
    %5972 = vmatpush1.bf16.msra.mxu0 %v5023
    %5973 = vmatprep.subr.bf16.mxu0 %v5017
    %5974 = vmatpush1.bf16.msra.mxu0 %v5016
    %5975 = vmatprep.subr.bf16.mxu0 %v5010
    %5976 = vmatpush1.bf16.msra.mxu0 %v5009
    %5977 = vmatprep.subr.bf16.mxu0 %v5003
    %5978 = vmatpush1.bf16.msra.mxu0 %v5002
    %5979 = vmatprep.subr.bf16.mxu0 %v4996
    %5980 = vmatpush1.bf16.msra.mxu0 %v4995
    %5981 = vmatprep.subr.bf16.mxu0 %v4989
    %5982 = vmatpush1.bf16.msra.mxu0 %v4988
    %5983 = vmatprep.subr.bf16.mxu0 %v4982
    %5984 = vmatpush1.bf16.msra.mxu0 %v4981
    %5985 = vmatprep.subr.bf16.mxu0 %v4975
    %5986 = vmatpush1.bf16.msra.mxu0 %v4974
    %5987 = vmatprep.subr.bf16.mxu0 %v5080
    %5988 = vmatpush2.bf16.msra.mxu0 %v5079
    %5989 = vmatprep.subr.bf16.mxu0 %v5073
    %5990 = vmatpush2.bf16.msra.mxu0 %v5072
    %5991 = vmatprep.subr.bf16.mxu0 %v5066
    %5992 = vmatpush2.bf16.msra.mxu0 %v5065
    %5993 = vmatprep.subr.bf16.mxu0 %v5059
    %5994 = vmatpush2.bf16.msra.mxu0 %v5058
    %5995 = vmatprep.subr.bf16.mxu0 %v5052
    %5996 = vmatpush2.bf16.msra.mxu0 %v5051
    %5997 = vmatprep.subr.bf16.mxu0 %v5045
    %5998 = vmatpush2.bf16.msra.mxu0 %v5044
    %5999 = vmatprep.subr.bf16.mxu0 %v5038
    %6000 = vmatpush2.bf16.msra.mxu0 %v5037
    %6001 = vmatprep.subr.bf16.mxu0 %v5031
    %6002 = vmatpush2.bf16.msra.mxu0 %v5030
    %6003 = vmatprep.mubr.bf16.mxu0 %v2898
    %6004 = vmatmul.mubr.bf16.gmra.mxu0 %v2897
    %v6005 = vpop.f32.mrf.mxu0
    %v6006 = vadd.f32 %v5963, %v6005
    %v6007 = vpop.f32.mrf.mxu0
    %v6008 = vadd.f32 %v5965, %v6007
    %v6009 = vpop.f32.mrf.mxu0
    %v6010 = vadd.f32 %v5967, %v6009
    %v6011 = vpop.f32.mrf.mxu0
    %v6012 = vadd.f32 %v5969, %v6011
    %6013 = vdwg.mxu0
    %6014 = vmatprep.subr.bf16.mxu0 %v5136
    %6015 = vmatpush1.bf16.msra.mxu0 %v5135
    %6016 = vmatprep.subr.bf16.mxu0 %v5129
    %6017 = vmatpush1.bf16.msra.mxu0 %v5128
    %6018 = vmatprep.subr.bf16.mxu0 %v5122
    %6019 = vmatpush1.bf16.msra.mxu0 %v5121
    %6020 = vmatprep.subr.bf16.mxu0 %v5115
    %6021 = vmatpush1.bf16.msra.mxu0 %v5114
    %6022 = vmatprep.subr.bf16.mxu0 %v5108
    %6023 = vmatpush1.bf16.msra.mxu0 %v5107
    %6024 = vmatprep.subr.bf16.mxu0 %v5101
    %6025 = vmatpush1.bf16.msra.mxu0 %v5100
    %6026 = vmatprep.subr.bf16.mxu0 %v5094
    %6027 = vmatpush1.bf16.msra.mxu0 %v5093
    %6028 = vmatprep.subr.bf16.mxu0 %v5087
    %6029 = vmatpush1.bf16.msra.mxu0 %v5086
    %6030 = vmatprep.subr.bf16.mxu0 %v5192
    %6031 = vmatpush2.bf16.msra.mxu0 %v5191
    %6032 = vmatprep.subr.bf16.mxu0 %v5185
    %6033 = vmatpush2.bf16.msra.mxu0 %v5184
    %6034 = vmatprep.subr.bf16.mxu0 %v5178
    %6035 = vmatpush2.bf16.msra.mxu0 %v5177
    %6036 = vmatprep.subr.bf16.mxu0 %v5171
    %6037 = vmatpush2.bf16.msra.mxu0 %v5170
    %6038 = vmatprep.subr.bf16.mxu0 %v5164
    %6039 = vmatpush2.bf16.msra.mxu0 %v5163
    %6040 = vmatprep.subr.bf16.mxu0 %v5157
    %6041 = vmatpush2.bf16.msra.mxu0 %v5156
    %6042 = vmatprep.subr.bf16.mxu0 %v5150
    %6043 = vmatpush2.bf16.msra.mxu0 %v5149
    %6044 = vmatprep.subr.bf16.mxu0 %v5143
    %6045 = vmatpush2.bf16.msra.mxu0 %v5142
    %6046 = vmatprep.mubr.bf16.mxu0 %v2900
    %6047 = vmatmul.mubr.bf16.gmra.mxu0 %v2899
    %v6048 = vpop.f32.mrf.mxu0
    %v6049 = vadd.f32 %v6006, %v6048
    %v6050 = vpop.f32.mrf.mxu0
    %v6051 = vadd.f32 %v6008, %v6050
    %v6052 = vpop.f32.mrf.mxu0
    %v6053 = vadd.f32 %v6010, %v6052
    %v6054 = vpop.f32.mrf.mxu0
    %v6055 = vadd.f32 %v6012, %v6054
    %6056 = vdwg.mxu0
    %6057 = vmatprep.subr.bf16.mxu0 %v5248
    %6058 = vmatpush1.bf16.msra.mxu0 %v5247
    %6059 = vmatprep.subr.bf16.mxu0 %v5241
    %6060 = vmatpush1.bf16.msra.mxu0 %v5240
    %6061 = vmatprep.subr.bf16.mxu0 %v5234
    %6062 = vmatpush1.bf16.msra.mxu0 %v5233
    %6063 = vmatprep.subr.bf16.mxu0 %v5227
    %6064 = vmatpush1.bf16.msra.mxu0 %v5226
    %6065 = vmatprep.subr.bf16.mxu0 %v5220
    %6066 = vmatpush1.bf16.msra.mxu0 %v5219
    %6067 = vmatprep.subr.bf16.mxu0 %v5213
    %6068 = vmatpush1.bf16.msra.mxu0 %v5212
    %6069 = vmatprep.subr.bf16.mxu0 %v5206
    %6070 = vmatpush1.bf16.msra.mxu0 %v5205
    %6071 = vmatprep.subr.bf16.mxu0 %v5199
    %6072 = vmatpush1.bf16.msra.mxu0 %v5198
    %6073 = vmatprep.subr.bf16.mxu0 %v5304
    %6074 = vmatpush2.bf16.msra.mxu0 %v5303
    %6075 = vmatprep.subr.bf16.mxu0 %v5297
    %6076 = vmatpush2.bf16.msra.mxu0 %v5296
    %6077 = vmatprep.subr.bf16.mxu0 %v5290
    %6078 = vmatpush2.bf16.msra.mxu0 %v5289
    %6079 = vmatprep.subr.bf16.mxu0 %v5283
    %6080 = vmatpush2.bf16.msra.mxu0 %v5282
    %6081 = vmatprep.subr.bf16.mxu0 %v5276
    %6082 = vmatpush2.bf16.msra.mxu0 %v5275
    %6083 = vmatprep.subr.bf16.mxu0 %v5269
    %6084 = vmatpush2.bf16.msra.mxu0 %v5268
    %6085 = vmatprep.subr.bf16.mxu0 %v5262
    %6086 = vmatpush2.bf16.msra.mxu0 %v5261
    %6087 = vmatprep.subr.bf16.mxu0 %v5255
    %6088 = vmatpush2.bf16.msra.mxu0 %v5254
    %6089 = vmatprep.mubr.bf16.mxu0 %v2902
    %6090 = vmatmul.mubr.bf16.gmra.mxu0 %v2901
    %v6091 = vpop.f32.mrf.mxu0
    %v6092 = vadd.f32 %v6049, %v6091
    %v6093 = vpop.f32.mrf.mxu0
    %v6094 = vadd.f32 %v6051, %v6093
    %v6095 = vpop.f32.mrf.mxu0
    %v6096 = vadd.f32 %v6053, %v6095
    %v6097 = vpop.f32.mrf.mxu0
    %v6098 = vadd.f32 %v6055, %v6097
    %6099 = vdwg.mxu0
    %6100 = vmatprep.subr.bf16.mxu0 %v4914
    %6101 = vmatpush1.bf16.msra.mxu0 %v4913
    %6102 = vmatprep.subr.bf16.mxu0 %v4907
    %6103 = vmatpush1.bf16.msra.mxu0 %v4906
    %6104 = vmatprep.subr.bf16.mxu0 %v4900
    %6105 = vmatpush1.bf16.msra.mxu0 %v4899
    %6106 = vmatprep.subr.bf16.mxu0 %v4893
    %6107 = vmatpush1.bf16.msra.mxu0 %v4892
    %6108 = vmatprep.subr.bf16.mxu0 %v4886
    %6109 = vmatpush1.bf16.msra.mxu0 %v4885
    %6110 = vmatprep.subr.bf16.mxu0 %v4879
    %6111 = vmatpush1.bf16.msra.mxu0 %v4878
    %6112 = vmatprep.subr.bf16.mxu0 %v4872
    %6113 = vmatpush1.bf16.msra.mxu0 %v4871
    %6114 = vmatprep.subr.bf16.mxu0 %v4865
    %6115 = vmatpush1.bf16.msra.mxu0 %v4864
    %6116 = vmatprep.subr.bf16.mxu0 %v4970
    %6117 = vmatpush2.bf16.msra.mxu0 %v4969
    %6118 = vmatprep.subr.bf16.mxu0 %v4963
    %6119 = vmatpush2.bf16.msra.mxu0 %v4962
    %6120 = vmatprep.subr.bf16.mxu0 %v4956
    %6121 = vmatpush2.bf16.msra.mxu0 %v4955
    %6122 = vmatprep.subr.bf16.mxu0 %v4949
    %6123 = vmatpush2.bf16.msra.mxu0 %v4948
    %6124 = vmatprep.subr.bf16.mxu0 %v4942
    %6125 = vmatpush2.bf16.msra.mxu0 %v4941
    %6126 = vmatprep.subr.bf16.mxu0 %v4935
    %6127 = vmatpush2.bf16.msra.mxu0 %v4934
    %6128 = vmatprep.subr.bf16.mxu0 %v4928
    %6129 = vmatpush2.bf16.msra.mxu0 %v4927
    %6130 = vmatprep.subr.bf16.mxu0 %v4921
    %6131 = vmatpush2.bf16.msra.mxu0 %v4920
    %6132 = vmatprep.mubr.bf16.mxu0 %v2896
    %6133 = vmatmul.mubr.bf16.gmra.mxu0 %v2895
    %v6134 = vpop.f32.mrf.mxu0
    %v6135 = vadd.f32 %v3436, %v6134
    %v6136 = vpop.f32.mrf.mxu0
    %v6137 = vadd.f32 %v3440, %v6136
    %v6138 = vpop.f32.mrf.mxu0
    %v6139 = vadd.f32 %v3436, %v6138
    %v6140 = vpop.f32.mrf.mxu0
    %v6141 = vadd.f32 %v3440, %v6140
    %6142 = vdwg.mxu0
    %6143 = vmatprep.subr.bf16.mxu0 %v5026
    %6144 = vmatpush1.bf16.msra.mxu0 %v5025
    %6145 = vmatprep.subr.bf16.mxu0 %v5019
    %6146 = vmatpush1.bf16.msra.mxu0 %v5018
    %6147 = vmatprep.subr.bf16.mxu0 %v5012
    %6148 = vmatpush1.bf16.msra.mxu0 %v5011
    %6149 = vmatprep.subr.bf16.mxu0 %v5005
    %6150 = vmatpush1.bf16.msra.mxu0 %v5004
    %6151 = vmatprep.subr.bf16.mxu0 %v4998
    %6152 = vmatpush1.bf16.msra.mxu0 %v4997
    %6153 = vmatprep.subr.bf16.mxu0 %v4991
    %6154 = vmatpush1.bf16.msra.mxu0 %v4990
    %6155 = vmatprep.subr.bf16.mxu0 %v4984
    %6156 = vmatpush1.bf16.msra.mxu0 %v4983
    %6157 = vmatprep.subr.bf16.mxu0 %v4977
    %6158 = vmatpush1.bf16.msra.mxu0 %v4976
    %6159 = vmatprep.subr.bf16.mxu0 %v5082
    %6160 = vmatpush2.bf16.msra.mxu0 %v5081
    %6161 = vmatprep.subr.bf16.mxu0 %v5075
    %6162 = vmatpush2.bf16.msra.mxu0 %v5074
    %6163 = vmatprep.subr.bf16.mxu0 %v5068
    %6164 = vmatpush2.bf16.msra.mxu0 %v5067
    %6165 = vmatprep.subr.bf16.mxu0 %v5061
    %6166 = vmatpush2.bf16.msra.mxu0 %v5060
    %6167 = vmatprep.subr.bf16.mxu0 %v5054
    %6168 = vmatpush2.bf16.msra.mxu0 %v5053
    %6169 = vmatprep.subr.bf16.mxu0 %v5047
    %6170 = vmatpush2.bf16.msra.mxu0 %v5046
    %6171 = vmatprep.subr.bf16.mxu0 %v5040
    %6172 = vmatpush2.bf16.msra.mxu0 %v5039
    %6173 = vmatprep.subr.bf16.mxu0 %v5033
    %6174 = vmatpush2.bf16.msra.mxu0 %v5032
    %6175 = vmatprep.mubr.bf16.mxu0 %v2898
    %6176 = vmatmul.mubr.bf16.gmra.mxu0 %v2897
    %v6177 = vpop.f32.mrf.mxu0
    %v6178 = vadd.f32 %v6135, %v6177
    %v6179 = vpop.f32.mrf.mxu0
    %v6180 = vadd.f32 %v6137, %v6179
    %v6181 = vpop.f32.mrf.mxu0
    %v6182 = vadd.f32 %v6139, %v6181
    %v6183 = vpop.f32.mrf.mxu0
    %v6184 = vadd.f32 %v6141, %v6183
    %6185 = vdwg.mxu0
    %6186 = vmatprep.subr.bf16.mxu0 %v5138
    %6187 = vmatpush1.bf16.msra.mxu0 %v5137
    %6188 = vmatprep.subr.bf16.mxu0 %v5131
    %6189 = vmatpush1.bf16.msra.mxu0 %v5130
    %6190 = vmatprep.subr.bf16.mxu0 %v5124
    %6191 = vmatpush1.bf16.msra.mxu0 %v5123
    %6192 = vmatprep.subr.bf16.mxu0 %v5117
    %6193 = vmatpush1.bf16.msra.mxu0 %v5116
    %6194 = vmatprep.subr.bf16.mxu0 %v5110
    %6195 = vmatpush1.bf16.msra.mxu0 %v5109
    %6196 = vmatprep.subr.bf16.mxu0 %v5103
    %6197 = vmatpush1.bf16.msra.mxu0 %v5102
    %6198 = vmatprep.subr.bf16.mxu0 %v5096
    %6199 = vmatpush1.bf16.msra.mxu0 %v5095
    %6200 = vmatprep.subr.bf16.mxu0 %v5089
    %6201 = vmatpush1.bf16.msra.mxu0 %v5088
    %6202 = vmatprep.subr.bf16.mxu0 %v5194
    %6203 = vmatpush2.bf16.msra.mxu0 %v5193
    %6204 = vmatprep.subr.bf16.mxu0 %v5187
    %6205 = vmatpush2.bf16.msra.mxu0 %v5186
    %6206 = vmatprep.subr.bf16.mxu0 %v5180
    %6207 = vmatpush2.bf16.msra.mxu0 %v5179
    %6208 = vmatprep.subr.bf16.mxu0 %v5173
    %6209 = vmatpush2.bf16.msra.mxu0 %v5172
    %6210 = vmatprep.subr.bf16.mxu0 %v5166
    %6211 = vmatpush2.bf16.msra.mxu0 %v5165
    %6212 = vmatprep.subr.bf16.mxu0 %v5159
    %6213 = vmatpush2.bf16.msra.mxu0 %v5158
    %6214 = vmatprep.subr.bf16.mxu0 %v5152
    %6215 = vmatpush2.bf16.msra.mxu0 %v5151
    %6216 = vmatprep.subr.bf16.mxu0 %v5145
    %6217 = vmatpush2.bf16.msra.mxu0 %v5144
    %6218 = vmatprep.mubr.bf16.mxu0 %v2900
    %6219 = vmatmul.mubr.bf16.gmra.mxu0 %v2899
    %v6220 = vpop.f32.mrf.mxu0
    %v6221 = vadd.f32 %v6178, %v6220
    %v6222 = vpop.f32.mrf.mxu0
    %v6223 = vadd.f32 %v6180, %v6222
    %v6224 = vpop.f32.mrf.mxu0
    %v6225 = vadd.f32 %v6182, %v6224
    %v6226 = vpop.f32.mrf.mxu0
    %v6227 = vadd.f32 %v6184, %v6226
    %6228 = vdwg.mxu0
    %6229 = vmatprep.subr.bf16.mxu0 %v5250
    %6230 = vmatpush1.bf16.msra.mxu0 %v5249
    %6231 = vmatprep.subr.bf16.mxu0 %v5243
    %6232 = vmatpush1.bf16.msra.mxu0 %v5242
    %6233 = vmatprep.subr.bf16.mxu0 %v5236
    %6234 = vmatpush1.bf16.msra.mxu0 %v5235
    %6235 = vmatprep.subr.bf16.mxu0 %v5229
    %6236 = vmatpush1.bf16.msra.mxu0 %v5228
    %6237 = vmatprep.subr.bf16.mxu0 %v5222
    %6238 = vmatpush1.bf16.msra.mxu0 %v5221
    %6239 = vmatprep.subr.bf16.mxu0 %v5215
    %6240 = vmatpush1.bf16.msra.mxu0 %v5214
    %6241 = vmatprep.subr.bf16.mxu0 %v5208
    %6242 = vmatpush1.bf16.msra.mxu0 %v5207
    %6243 = vmatprep.subr.bf16.mxu0 %v5201
    %6244 = vmatpush1.bf16.msra.mxu0 %v5200
    %6245 = vmatprep.subr.bf16.mxu0 %v5306
    %6246 = vmatpush2.bf16.msra.mxu0 %v5305
    %6247 = vmatprep.subr.bf16.mxu0 %v5299
    %6248 = vmatpush2.bf16.msra.mxu0 %v5298
    %6249 = vmatprep.subr.bf16.mxu0 %v5292
    %6250 = vmatpush2.bf16.msra.mxu0 %v5291
    %6251 = vmatprep.subr.bf16.mxu0 %v5285
    %6252 = vmatpush2.bf16.msra.mxu0 %v5284
    %6253 = vmatprep.subr.bf16.mxu0 %v5278
    %6254 = vmatpush2.bf16.msra.mxu0 %v5277
    %6255 = vmatprep.subr.bf16.mxu0 %v5271
    %6256 = vmatpush2.bf16.msra.mxu0 %v5270
    %6257 = vmatprep.subr.bf16.mxu0 %v5264
    %6258 = vmatpush2.bf16.msra.mxu0 %v5263
    %6259 = vmatprep.subr.bf16.mxu0 %v5257
    %6260 = vmatpush2.bf16.msra.mxu0 %v5256
    %6261 = vmatprep.mubr.bf16.mxu0 %v2902
    %6262 = vmatmul.mubr.bf16.gmra.mxu0 %v2901
    %v6263 = vpop.f32.mrf.mxu0
    %v6264 = vadd.f32 %v6221, %v6263
    %v6265 = vpop.f32.mrf.mxu0
    %v6266 = vadd.f32 %v6223, %v6265
    %v6267 = vpop.f32.mrf.mxu0
    %v6268 = vadd.f32 %v6225, %v6267
    %v6269 = vpop.f32.mrf.mxu0
    %v6270 = vadd.f32 %v6227, %v6269
    %6271 = vdwg.mxu0
    %6272 = vmatprep.subr.bf16.mxu0 0
    %6273 = vmatpush1.bf16.msra.mxu0 %v4915
    %6274 = vmatprep.subr.bf16.mxu0 0
    %6275 = vmatpush1.bf16.msra.mxu0 %v4908
    %6276 = vmatprep.subr.bf16.mxu0 0
    %6277 = vmatpush1.bf16.msra.mxu0 %v4901
    %6278 = vmatprep.subr.bf16.mxu0 0
    %6279 = vmatpush1.bf16.msra.mxu0 %v4894
    %6280 = vmatprep.subr.bf16.mxu0 0
    %6281 = vmatpush1.bf16.msra.mxu0 %v4887
    %6282 = vmatprep.subr.bf16.mxu0 0
    %6283 = vmatpush1.bf16.msra.mxu0 %v4880
    %6284 = vmatprep.subr.bf16.mxu0 0
    %6285 = vmatpush1.bf16.msra.mxu0 %v4873
    %6286 = vmatprep.subr.bf16.mxu0 0
    %6287 = vmatpush1.bf16.msra.mxu0 %v4866
    %6288 = vmatprep.subr.bf16.mxu0 0
    %6289 = vmatpush2.bf16.msra.mxu0 %v4971
    %6290 = vmatprep.subr.bf16.mxu0 0
    %6291 = vmatpush2.bf16.msra.mxu0 %v4964
    %6292 = vmatprep.subr.bf16.mxu0 0
    %6293 = vmatpush2.bf16.msra.mxu0 %v4957
    %6294 = vmatprep.subr.bf16.mxu0 0
    %6295 = vmatpush2.bf16.msra.mxu0 %v4950
    %6296 = vmatprep.subr.bf16.mxu0 0
    %6297 = vmatpush2.bf16.msra.mxu0 %v4943
    %6298 = vmatprep.subr.bf16.mxu0 0
    %6299 = vmatpush2.bf16.msra.mxu0 %v4936
    %6300 = vmatprep.subr.bf16.mxu0 0
    %6301 = vmatpush2.bf16.msra.mxu0 %v4929
    %6302 = vmatprep.subr.bf16.mxu0 0
    %6303 = vmatpush2.bf16.msra.mxu0 %v4922
    %6304 = vmatprep.mubr.bf16.mxu0 %v2896
    %6305 = vmatmul.mubr.bf16.gmra.mxu0 %v2895
    %v6306 = vpop.f32.mrf.mxu0
    %v6307 = vadd.f32 %v3444, %v6306
    %v6308 = vpop.f32.mrf.mxu0
    %v6309 = vpop.f32.mrf.mxu0
    %v6310 = vadd.f32 %v3444, %v6309
    %v6311 = vpop.f32.mrf.mxu0
    %6312 = vdwg.mxu0
    %6313 = vmatprep.subr.bf16.mxu0 0
    %6314 = vmatpush1.bf16.msra.mxu0 %v5027
    %6315 = vmatprep.subr.bf16.mxu0 0
    %6316 = vmatpush1.bf16.msra.mxu0 %v5020
    %6317 = vmatprep.subr.bf16.mxu0 0
    %6318 = vmatpush1.bf16.msra.mxu0 %v5013
    %6319 = vmatprep.subr.bf16.mxu0 0
    %6320 = vmatpush1.bf16.msra.mxu0 %v5006
    %6321 = vmatprep.subr.bf16.mxu0 0
    %6322 = vmatpush1.bf16.msra.mxu0 %v4999
    %6323 = vmatprep.subr.bf16.mxu0 0
    %6324 = vmatpush1.bf16.msra.mxu0 %v4992
    %6325 = vmatprep.subr.bf16.mxu0 0
    %6326 = vmatpush1.bf16.msra.mxu0 %v4985
    %6327 = vmatprep.subr.bf16.mxu0 0
    %6328 = vmatpush1.bf16.msra.mxu0 %v4978
    %6329 = vmatprep.subr.bf16.mxu0 0
    %6330 = vmatpush2.bf16.msra.mxu0 %v5083
    %6331 = vmatprep.subr.bf16.mxu0 0
    %6332 = vmatpush2.bf16.msra.mxu0 %v5076
    %6333 = vmatprep.subr.bf16.mxu0 0
    %6334 = vmatpush2.bf16.msra.mxu0 %v5069
    %6335 = vmatprep.subr.bf16.mxu0 0
    %6336 = vmatpush2.bf16.msra.mxu0 %v5062
    %6337 = vmatprep.subr.bf16.mxu0 0
    %6338 = vmatpush2.bf16.msra.mxu0 %v5055
    %6339 = vmatprep.subr.bf16.mxu0 0
    %6340 = vmatpush2.bf16.msra.mxu0 %v5048
    %6341 = vmatprep.subr.bf16.mxu0 0
    %6342 = vmatpush2.bf16.msra.mxu0 %v5041
    %6343 = vmatprep.subr.bf16.mxu0 0
    %6344 = vmatpush2.bf16.msra.mxu0 %v5034
    %6345 = vmatprep.mubr.bf16.mxu0 %v2898
    %6346 = vmatmul.mubr.bf16.gmra.mxu0 %v2897
    %v6347 = vpop.f32.mrf.mxu0
    %v6348 = vadd.f32 %v6307, %v6347
    %v6349 = vpop.f32.mrf.mxu0
    %v6350 = vpop.f32.mrf.mxu0
    %v6351 = vadd.f32 %v6310, %v6350
    %v6352 = vpop.f32.mrf.mxu0
    %6353 = vdwg.mxu0
    %6354 = vmatprep.subr.bf16.mxu0 0
    %6355 = vmatpush1.bf16.msra.mxu0 %v5139
    %6356 = vmatprep.subr.bf16.mxu0 0
    %6357 = vmatpush1.bf16.msra.mxu0 %v5132
    %6358 = vmatprep.subr.bf16.mxu0 0
    %6359 = vmatpush1.bf16.msra.mxu0 %v5125
    %6360 = vmatprep.subr.bf16.mxu0 0
    %6361 = vmatpush1.bf16.msra.mxu0 %v5118
    %6362 = vmatprep.subr.bf16.mxu0 0
    %6363 = vmatpush1.bf16.msra.mxu0 %v5111
    %6364 = vmatprep.subr.bf16.mxu0 0
    %6365 = vmatpush1.bf16.msra.mxu0 %v5104
    %6366 = vmatprep.subr.bf16.mxu0 0
    %6367 = vmatpush1.bf16.msra.mxu0 %v5097
    %6368 = vmatprep.subr.bf16.mxu0 0
    %6369 = vmatpush1.bf16.msra.mxu0 %v5090
    %6370 = vmatprep.subr.bf16.mxu0 0
    %6371 = vmatpush2.bf16.msra.mxu0 %v5195
    %6372 = vmatprep.subr.bf16.mxu0 0
    %6373 = vmatpush2.bf16.msra.mxu0 %v5188
    %6374 = vmatprep.subr.bf16.mxu0 0
    %6375 = vmatpush2.bf16.msra.mxu0 %v5181
    %6376 = vmatprep.subr.bf16.mxu0 0
    %6377 = vmatpush2.bf16.msra.mxu0 %v5174
    %6378 = vmatprep.subr.bf16.mxu0 0
    %6379 = vmatpush2.bf16.msra.mxu0 %v5167
    %6380 = vmatprep.subr.bf16.mxu0 0
    %6381 = vmatpush2.bf16.msra.mxu0 %v5160
    %6382 = vmatprep.subr.bf16.mxu0 0
    %6383 = vmatpush2.bf16.msra.mxu0 %v5153
    %6384 = vmatprep.subr.bf16.mxu0 0
    %6385 = vmatpush2.bf16.msra.mxu0 %v5146
    %6386 = vmatprep.mubr.bf16.mxu0 %v2900
    %6387 = vmatmul.mubr.bf16.gmra.mxu0 %v2899
    %v6388 = vpop.f32.mrf.mxu0
    %v6389 = vadd.f32 %v6348, %v6388
    %v6390 = vpop.f32.mrf.mxu0
    %v6391 = vpop.f32.mrf.mxu0
    %v6392 = vadd.f32 %v6351, %v6391
    %v6393 = vpop.f32.mrf.mxu0
    %6394 = vdwg.mxu0
    %6395 = vmatprep.subr.bf16.mxu0 0
    %6396 = vmatpush1.bf16.msra.mxu0 %v5251
    %6397 = vmatprep.subr.bf16.mxu0 0
    %6398 = vmatpush1.bf16.msra.mxu0 %v5244
    %6399 = vmatprep.subr.bf16.mxu0 0
    %6400 = vmatpush1.bf16.msra.mxu0 %v5237
    %6401 = vmatprep.subr.bf16.mxu0 0
    %6402 = vmatpush1.bf16.msra.mxu0 %v5230
    %6403 = vmatprep.subr.bf16.mxu0 0
    %6404 = vmatpush1.bf16.msra.mxu0 %v5223
    %6405 = vmatprep.subr.bf16.mxu0 0
    %6406 = vmatpush1.bf16.msra.mxu0 %v5216
    %6407 = vmatprep.subr.bf16.mxu0 0
    %6408 = vmatpush1.bf16.msra.mxu0 %v5209
    %6409 = vmatprep.subr.bf16.mxu0 0
    %6410 = vmatpush1.bf16.msra.mxu0 %v5202
    %6411 = vmatprep.subr.bf16.mxu0 0
    %6412 = vmatpush2.bf16.msra.mxu0 %v5307
    %6413 = vmatprep.subr.bf16.mxu0 0
    %6414 = vmatpush2.bf16.msra.mxu0 %v5300
    %6415 = vmatprep.subr.bf16.mxu0 0
    %6416 = vmatpush2.bf16.msra.mxu0 %v5293
    %6417 = vmatprep.subr.bf16.mxu0 0
    %6418 = vmatpush2.bf16.msra.mxu0 %v5286
    %6419 = vmatprep.subr.bf16.mxu0 0
    %6420 = vmatpush2.bf16.msra.mxu0 %v5279
    %6421 = vmatprep.subr.bf16.mxu0 0
    %6422 = vmatpush2.bf16.msra.mxu0 %v5272
    %6423 = vmatprep.subr.bf16.mxu0 0
    %6424 = vmatpush2.bf16.msra.mxu0 %v5265
    %6425 = vmatprep.subr.bf16.mxu0 0
    %6426 = vmatpush2.bf16.msra.mxu0 %v5258
    %6427 = vmatprep.mubr.bf16.mxu0 %v2902
    %6428 = vmatmul.mubr.bf16.gmra.mxu0 %v2901
    %v6429 = vpop.f32.mrf.mxu0
    %v6430 = vadd.f32 %v6389, %v6429
    %v6431 = vpop.f32.mrf.mxu0
    %v6432 = vpop.f32.mrf.mxu0
    %v6433 = vadd.f32 %v6392, %v6432
    %v6434 = vpop.f32.mrf.mxu0
    %6435 = vdwg.mxu0
    %v6436 = vtanh.pop %v5920
    %v6437 = vtanh.pop %v5922
    %v6438 = vtanh.pop %v6092
    %v6439 = vtanh.pop %v6094
    %v6440 = vtanh.pop %v6264
    %v6441 = vtanh.pop %v6266
    %v6442 = vtanh.pop %v6430
    %v6443 = vtanh.pop %v5924
    %v6444 = vtanh.pop %v5926
    %v6445 = vtanh.pop %v6096
    %v6446 = vtanh.pop %v6098
    %v6447 = vtanh.pop %v6268
    %v6448 = vtanh.pop %v6270
    %v6449 = vtanh.pop %v6433
    %6450 = vst [vmem:[#allocation17] sm:$0xff] %v6436
    %6451 = vst [vmem:[#allocation17 + $0x8] sm:$0xff] %v6437
    %6452 = vst [vmem:[#allocation17 + $0x10] sm:$0xff] %v6438
    %6453 = vst [vmem:[#allocation17 + $0x18] sm:$0xff] %v6439
    %6454 = vst [vmem:[#allocation17 + $0x20] sm:$0xff] %v6440
    %6455 = vst [vmem:[#allocation17 + $0x28] sm:$0xff] %v6441
    %6456 = vst [vmem:[#allocation17 + $0x30] sm:$0xff] %v6442
    %6457 = vst [vmem:[#allocation17 + $0x38] sm:$0xff] %v6443
    %6458 = vst [vmem:[#allocation17 + $0x40] sm:$0xff] %v6444
    %6459 = vst [vmem:[#allocation17 + $0x48] sm:$0xff] %v6445
    %6460 = vst [vmem:[#allocation17 + $0x50] sm:$0xff] %v6446
    %6461 = vst [vmem:[#allocation17 + $0x58] sm:$0xff] %v6447
    %6462 = vst [vmem:[#allocation17 + $0x60] sm:$0xff] %v6448
    %6463 = vst [vmem:[#allocation17 + $0x68] sm:$0xff] %v6449
    // Predicated region
    $region74: #{tpu_custom_call.1} parent=1 // pred_check
      _
    $region75: #{tpu_custom_call.1} parent=1 // pred_check_branch
      %6465 = sbr.rel (0) target = $region77
    $region76: #{tpu_custom_call.1} parent=1 // pred_region
      %s6467 = ssub.s32 1792, 1792
      %6468 = vsyncadd [#allocation4], %s6467
      %s6469 = sshll.u32 [#allocation17], 4
      %s6470 = int_to_ptr.vmem [resolvable:$true] %s6469
      %6475 = dma.vmem_to_hbm [thread:$0]  %s6470, 1792, %s9, [#allocation4], 896, 896, 56
    $region77: #{tpu_custom_call.1} parent=1 // pred_fallthru
      _
    // Predicated region
    $region78: #{tpu_custom_call.1} parent=1 // pred_check
      _
    $region79: #{tpu_custom_call.1} parent=1 // pred_check_branch
      %6477 = sbr.rel (0) target = $region81
    $region80: #{tpu_custom_call.1} parent=1 // pred_region
      %6478 = dma.done [#allocation4], 1792
    $region81: #{tpu_custom_call.1} parent=1 // pred_fallthru
      _
    %6479 = vsyncpa [#allocation3], 1
    %6480 = vsyncpa [#allocation6], 1
    %6481 = vsyncpa [#allocation9], 1
    %6482 = vsyncpa [#allocation12], 1
    %6483 = vsyncpa [#allocation15], 1
    %6484 = vsyncpa [#allocation4], 1

// kernel: tpu_custom_call.1
$region0: #{tpu_custom_call.1}
  #allocation0 [shape = 'u32[]', space=smem, size = 0x4, offset = 0x4, fixed_abs, tag = 'smem constant byte address 0x4 - core index']
  #allocation1 [shape = 'u32[144,128]{1,0:T(1,128)}', space=vmem, size = 0x12000, scoped, tag = 'internal scratch']
  %s0 = inlined_call_operand.hbm [shape: f32[16,100], index: 0, kind: input, shape index: {}]
  %s1 = inlined_call_operand.hbm [shape: bf16[100,256], index: 1, kind: input, shape index: {}]
  %s2 = inlined_call_operand.hbm [shape: bf16[1,256], index: 2, kind: input, shape index: {}]
  %s3 = inlined_call_operand.hbm [shape: bf16[256,512], index: 3, kind: input, shape index: {}]
  %s4 = inlined_call_operand.hbm [shape: bf16[1,512], index: 4, kind: input, shape index: {}]
  %s5 = inlined_call_operand.hbm [shape: bf16[512,1024], index: 5, kind: input, shape index: {}]
  %s6 = inlined_call_operand.hbm [shape: bf16[1,1024], index: 6, kind: input, shape index: {}]
  %s7 = inlined_call_operand.hbm [shape: bf16[1024,896], index: 7, kind: input, shape index: {}]
  %s8 = inlined_call_operand.hbm [shape: f32[1,896], index: 8, kind: input, shape index: {}]
  %s9 = inlined_call_operand.hbm [shape: f32[16,896], index: 9, kind: output, shape index: {}]
  %s10 = sld [smem:[#allocation0]]
  $region82: #{tpu_custom_call.1} parent=0
    _
  %s12 = ssub.s32 1, %s10
  %s13 = scalar_select 0, %s12, %s10
  $region1: #{tpu_custom_call.1} parent=0
    #allocation2 [shape = 'u8[8192]{0}', space=vmem, size = 0x2000, scoped, tag = 'input window, operand 0, single buffered']
    #allocation3 [shape = 's32[1]{0}', space=sflag, size = 0x4, scoped, tag = 'scoped memory for tpu_custom_call.1']
    #allocation4 [shape = 's32[1]{0}', space=sflag, size = 0x4, scoped, tag = 'scoped memory for tpu_custom_call.1']
    #allocation5 [shape = 'u8[53248]{0}', space=vmem, size = 0xd000, scoped, tag = 'input window, operand 1, single buffered']
    #allocation6 [shape = 's32[1]{0}', space=sflag, size = 0x4, scoped, tag = 'scoped memory for tpu_custom_call.1']
    #allocation7 [shape = 'u8[1024]{0}', space=vmem, size = 0x400, scoped, tag = 'input window, operand 2, single buffered']
    #allocation8 [shape = 'u8[262144]{0}', space=vmem, size = 0x40000, scoped, tag = 'input window, operand 3, single buffered']
    #allocation9 [shape = 's32[1]{0}', space=sflag, size = 0x4, scoped, tag = 'scoped memory for tpu_custom_call.1']
    #allocation10 [shape = 'u8[2048]{0}', space=vmem, size = 0x800, scoped, tag = 'input window, operand 4, single buffered']
    #allocation11 [shape = 'u8[1048576]{0}', space=vmem, size = 0x100000, scoped, tag = 'input window, operand 5, single buffered']
    #allocation12 [shape = 's32[1]{0}', space=sflag, size = 0x4, scoped, tag = 'scoped memory for tpu_custom_call.1']
    #allocation13 [shape = 'u8[4096]{0}', space=vmem, size = 0x1000, scoped, tag = 'input window, operand 6, single buffered']
    #allocation14 [shape = 'u8[1835008]{0}', space=vmem, size = 0x1c0000, scoped, tag = 'input window, operand 7, single buffered']
    #allocation15 [shape = 's32[1]{0}', space=sflag, size = 0x4, scoped, tag = 'scoped memory for tpu_custom_call.1']
    #allocation16 [shape = 'u8[3584]{0}', space=vmem, size = 0x1000, scoped, tag = 'input window, operand 8, single buffered']
    #allocation17 [shape = 'u8[57344]{0}', space=vmem, size = 0xe000, scoped, tag = 'output window, operand 0, single buffered']
    %14 = vsyncpa [#allocation3], 0
    %15 = vsyncpa [#allocation6], 0
    %16 = vsyncpa [#allocation9], 0
    %17 = vsyncpa [#allocation12], 0
    %18 = vsyncpa [#allocation15], 0
    %19 = vsyncpa [#allocation4], 0
    // Predicated region
    $region2: #{tpu_custom_call.1} parent=1 // pred_check
      _
    $region3: #{tpu_custom_call.1} parent=1 // pred_check_branch
      %21 = sbr.rel (0) target = $region5
    $region4: #{tpu_custom_call.1} parent=1 // pred_region
      %s23 = ssub.s32 256, 256
      %24 = vsyncadd [#allocation3], %s23
      %s25 = sshll.u32 [#allocation2], 4
      %s26 = int_to_ptr.vmem [resolvable:$true] %s25
      %31 = dma.hbm_to_vmem [thread:$0]  %s0, 256, %s26, [#allocation3], 128, 128, 8
    $region5: #{tpu_custom_call.1} parent=1 // pred_fallthru
      _
    // Predicated region
    $region6: #{tpu_custom_call.1} parent=1 // pred_check
      _
    $region7: #{tpu_custom_call.1} parent=1 // pred_check_branch
      %33 = sbr.rel (0) target = $region9
    $region8: #{tpu_custom_call.1} parent=1 // pred_region
      %s35 = ssub.s32 1664, 1664
      %36 = vsyncadd [#allocation6], %s35
      %s37 = sshll.u32 [#allocation5], 4
      %s38 = int_to_ptr.vmem [resolvable:$true] %s37
      %43 = dma.hbm_to_vmem [thread:$0]  %s1, 1664, %s38, [#allocation6], 128, 128, 8
    $region9: #{tpu_custom_call.1} parent=1 // pred_fallthru
      _
    // Predicated region
    $region10: #{tpu_custom_call.1} parent=1 // pred_check
      _
    $region11: #{tpu_custom_call.1} parent=1 // pred_check_branch
      %45 = sbr.rel (0) target = $region13
    $region12: #{tpu_custom_call.1} parent=1 // pred_region
      %s47 = ssub.s32 32, 32
      %48 = vsyncadd [#allocation6], %s47
      %s50 = sshll.u32 [#allocation7], 4
      %s51 = int_to_ptr.vmem [resolvable:$true] %s50
      %53 = dma.hbm_to_vmem [thread:$0]  %s2, 32, %s51, [#allocation6]
    $region13: #{tpu_custom_call.1} parent=1 // pred_fallthru
      _
    // Predicated region
    $region14: #{tpu_custom_call.1} parent=1 // pred_check
      _
    $region15: #{tpu_custom_call.1} parent=1 // pred_check_branch
      %55 = sbr.rel (0) target = $region17
    $region16: #{tpu_custom_call.1} parent=1 // pred_region
      %s57 = ssub.s32 8192, 8192
      %58 = vsyncadd [#allocation9], %s57
      %s59 = sshll.u32 [#allocation8], 4
      %s60 = int_to_ptr.vmem [resolvable:$true] %s59
      %65 = dma.hbm_to_vmem [thread:$0]  %s3, 8192, %s60, [#allocation9], 256, 256, 16
    $region17: #{tpu_custom_call.1} parent=1 // pred_fallthru
      _
    // Predicated region
    $region18: #{tpu_custom_call.1} parent=1 // pred_check
      _
    $region19: #{tpu_custom_call.1} parent=1 // pred_check_branch
      %67 = sbr.rel (0) target = $region21
    $region20: #{tpu_custom_call.1} parent=1 // pred_region
      %s69 = ssub.s32 64, 64
      %70 = vsyncadd [#allocation9], %s69
      %s72 = sshll.u32 [#allocation10], 4
      %s73 = int_to_ptr.vmem [resolvable:$true] %s72
      %75 = dma.hbm_to_vmem [thread:$0]  %s4, 64, %s73, [#allocation9]
    $region21: #{tpu_custom_call.1} parent=1 // pred_fallthru
      _
    // Predicated region
    $region22: #{tpu_custom_call.1} parent=1 // pred_check
      _
    $region23: #{tpu_custom_call.1} parent=1 // pred_check_branch
      %77 = sbr.rel (0) target = $region25
    $region24: #{tpu_custom_call.1} parent=1 // pred_region
      %s79 = ssub.s32 32768, 32768
      %80 = vsyncadd [#allocation12], %s79
      %s81 = sshll.u32 [#allocation11], 4
      %s82 = int_to_ptr.vmem [resolvable:$true] %s81
      %87 = dma.hbm_to_vmem [thread:$0]  %s5, 32768, %s82, [#allocation12], 512, 512, 32
    $region25: #{tpu_custom_call.1} parent=1 // pred_fallthru
      _
    // Predicated region
    $region26: #{tpu_custom_call.1} parent=1 // pred_check
      _
    $region27: #{tpu_custom_call.1} parent=1 // pred_check_branch
      %89 = sbr.rel (0) target = $region29
    $region28: #{tpu_custom_call.1} parent=1 // pred_region
      %s91 = ssub.s32 128, 128
      %92 = vsyncadd [#allocation12], %s91
      %s94 = sshll.u32 [#allocation13], 4
      %s95 = int_to_ptr.vmem [resolvable:$true] %s94
      %97 = dma.hbm_to_vmem [thread:$0]  %s6, 128, %s95, [#allocation12]
    $region29: #{tpu_custom_call.1} parent=1 // pred_fallthru
      _
    // Predicated region
    $region30: #{tpu_custom_call.1} parent=1 // pred_check
      _
    $region31: #{tpu_custom_call.1} parent=1 // pred_check_branch
      %99 = sbr.rel (0) target = $region33
    $region32: #{tpu_custom_call.1} parent=1 // pred_region
      %s101 = ssub.s32 57344, 57344
      %102 = vsyncadd [#allocation15], %s101
      %s103 = sshll.u32 [#allocation14], 4
      %s104 = int_to_ptr.vmem [resolvable:$true] %s103
      %109 = dma.hbm_to_vmem [thread:$0]  %s7, 57344, %s104, [#allocation15], 448, 448, 28
    $region33: #{tpu_custom_call.1} parent=1 // pred_fallthru
      _
    // Predicated region
    $region34: #{tpu_custom_call.1} parent=1 // pred_check
      _
    $region35: #{tpu_custom_call.1} parent=1 // pred_check_branch
      %111 = sbr.rel (0) target = $region37
    $region36: #{tpu_custom_call.1} parent=1 // pred_region
      %s113 = ssub.s32 112, 112
      %114 = vsyncadd [#allocation15], %s113
      %s116 = sshll.u32 [#allocation16], 4
      %s117 = int_to_ptr.vmem [resolvable:$true] %s116
      %119 = dma.hbm_to_vmem [thread:$0]  %s8, 112, %s117, [#allocation15]
    $region37: #{tpu_custom_call.1} parent=1 // pred_fallthru
      _
    // Predicated region
    $region38: #{tpu_custom_call.1} parent=1 // pred_check
      _
    $region39: #{tpu_custom_call.1} parent=1 // pred_check_branch
      %121 = sbr.rel (0) target = $region41
    $region40: #{tpu_custom_call.1} parent=1 // pred_region
      %122 = dma.done [#allocation3], 256
    $region41: #{tpu_custom_call.1} parent=1 // pred_fallthru
      _
    // Predicated region
    $region42: #{tpu_custom_call.1} parent=1 // pred_check
      _
    $region43: #{tpu_custom_call.1} parent=1 // pred_check_branch
      %124 = sbr.rel (0) target = $region45
    $region44: #{tpu_custom_call.1} parent=1 // pred_region
      %125 = dma.done [#allocation6], 1664
    $region45: #{tpu_custom_call.1} parent=1 // pred_fallthru
      _
    // Predicated region
    $region46: #{tpu_custom_call.1} parent=1 // pred_check
      _
    $region47: #{tpu_custom_call.1} parent=1 // pred_check_branch
      %127 = sbr.rel (0) target = $region49
    $region48: #{tpu_custom_call.1} parent=1 // pred_region
      %128 = dma.done [#allocation6], 32
    $region49: #{tpu_custom_call.1} parent=1 // pred_fallthru
      _
    // Predicated region
    $region50: #{tpu_custom_call.1} parent=1 // pred_check
      _
    $region51: #{tpu_custom_call.1} parent=1 // pred_check_branch
      %130 = sbr.rel (0) target = $region53
    $region52: #{tpu_custom_call.1} parent=1 // pred_region
      %131 = dma.done [#allocation9], 8192
    $region53: #{tpu_custom_call.1} parent=1 // pred_fallthru
      _
    // Predicated region
    $region54: #{tpu_custom_call.1} parent=1 // pred_check
      _
    $region55: #{tpu_custom_call.1} parent=1 // pred_check_branch
      %133 = sbr.rel (0) target = $region57
    $region56: #{tpu_custom_call.1} parent=1 // pred_region
      %134 = dma.done [#allocation9], 64
    $region57: #{tpu_custom_call.1} parent=1 // pred_fallthru
      _
    // Predicated region
    $region58: #{tpu_custom_call.1} parent=1 // pred_check
      _
    $region59: #{tpu_custom_call.1} parent=1 // pred_check_branch
      %136 = sbr.rel (0) target = $region61
    $region60: #{tpu_custom_call.1} parent=1 // pred_region
      %137 = dma.done [#allocation12], 32768
    $region61: #{tpu_custom_call.1} parent=1 // pred_fallthru
      _
    // Predicated region
    $region62: #{tpu_custom_call.1} parent=1 // pred_check
      _
    $region63: #{tpu_custom_call.1} parent=1 // pred_check_branch
      %139 = sbr.rel (0) target = $region65
    $region64: #{tpu_custom_call.1} parent=1 // pred_region
      %140 = dma.done [#allocation12], 128
    $region65: #{tpu_custom_call.1} parent=1 // pred_fallthru
      _
    // Predicated region
    $region66: #{tpu_custom_call.1} parent=1 // pred_check
      _
    $region67: #{tpu_custom_call.1} parent=1 // pred_check_branch
      %142 = sbr.rel (0) target = $region69
    $region68: #{tpu_custom_call.1} parent=1 // pred_region
      %143 = dma.done [#allocation15], 57344
    $region69: #{tpu_custom_call.1} parent=1 // pred_fallthru
      _
    // Predicated region
    $region70: #{tpu_custom_call.1} parent=1 // pred_check
      _
    $region71: #{tpu_custom_call.1} parent=1 // pred_check_branch
      %145 = sbr.rel (0) target = $region73
    $region72: #{tpu_custom_call.1} parent=1 // pred_region
      %146 = dma.done [#allocation15], 112
    $region73: #{tpu_custom_call.1} parent=1 // pred_fallthru
      _
    %v149 = vld [vmem:[#allocation2] sm:$0xff]
    %v150 = vld [vmem:[#allocation2 + $0x8] sm:$0xff]
    %v151 = vpack.c.bf16 %v150, %v149
    %v152 = vld [vmem:[#allocation5] sm:$0xff]
    %v153 = vld [vmem:[#allocation5 + $0x8] sm:$0xff]
    %v154 = vld [vmem:[#allocation5 + $0x10] sm:$0xff]
    %v155 = vld [vmem:[#allocation5 + $0x18] sm:$0xff]
    %v156 = vld [vmem:[#allocation5 + $0x20] sm:$0xff]
    %v157 = vld [vmem:[#allocation5 + $0x28] sm:$0xff]
    %v158 = vld [vmem:[#allocation5 + $0x30] sm:$0xff]
    %v159 = vld [vmem:[#allocation5 + $0x38] sm:$0xff]
    %v160 = vld [vmem:[#allocation5 + $0x40] sm:$0xff]
    %v161 = vld [vmem:[#allocation5 + $0x48] sm:$0xff]
    %v162 = vld [vmem:[#allocation5 + $0x50] sm:$0xff]
    %v163 = vld [vmem:[#allocation5 + $0x58] sm:$0xff]
    %v164 = vld [vmem:[#allocation5 + $0x60] sm:$0x33]
    %v178 = vunpack.c.l.b16 %v152
    %v179 = vunpack.c.h.b16 %v152
    %v180 = vunpack.c.l.b16 %v153
    %v181 = vunpack.c.h.b16 %v153
    %v182 = vunpack.c.l.b16 %v154
    %v183 = vunpack.c.h.b16 %v154
    %v184 = vunpack.c.l.b16 %v155
    %v185 = vunpack.c.h.b16 %v155
    %v186 = vunpack.c.l.b16 %v156
    %v187 = vunpack.c.h.b16 %v156
    %v188 = vunpack.c.l.b16 %v157
    %v189 = vunpack.c.h.b16 %v157
    %v190 = vunpack.c.l.b16 %v158
    %v191 = vunpack.c.h.b16 %v158
    %v192 = vunpack.c.l.b16 %v159
    %v193 = vunpack.c.h.b16 %v159
    %v194 = vunpack.c.l.b16 %v160
    %v195 = vunpack.c.h.b16 %v160
    %v196 = vunpack.c.l.b16 %v161
    %v197 = vunpack.c.h.b16 %v161
    %v198 = vunpack.c.l.b16 %v162
    %v199 = vunpack.c.h.b16 %v162
    %v200 = vunpack.c.l.b16 %v163
    %v201 = vunpack.c.h.b16 %v163
    %v202 = vunpack.c.l.b16 %v164
    %v203 = vunpack.c.h.b16 %v164
    %v204 = vpack.c.b16 %v180, %v178
    %v205 = vpack.c.b16 %v181, %v179
    %v206 = vpack.c.b16 %v184, %v182
    %v207 = vpack.c.b16 %v185, %v183
    %v208 = vpack.c.b16 %v188, %v186
    %v209 = vpack.c.b16 %v189, %v187
    %v210 = vpack.c.b16 %v192, %v190
    %v211 = vpack.c.b16 %v193, %v191
    %v212 = vpack.c.b16 %v196, %v194
    %v213 = vpack.c.b16 %v197, %v195
    %v214 = vpack.c.b16 %v200, %v198
    %v215 = vpack.c.b16 %v201, %v199
    %v216 = vpack.c.b16 %v202, %v202
    %v217 = vpack.c.b16 %v203, %v203
    %vm230 = vcmask 818176
    %v232 = vsel %vm230, %v151, 0
    %vm234 = vcmask 1041408
    %v236 = vsel %vm234, %v216, 0
    %v239 = vsel %vm234, %v217, 0
    %241 = vmatprep.subr.bf16.mxu0 0
    %242 = vmatpush1.bf16.msra.mxu0 0
    %243 = vmatprep.subr.bf16.mxu0 %v239
    %244 = vmatpush1.bf16.msra.mxu0 %v236
    %245 = vmatprep.subr.bf16.mxu0 %v215
    %246 = vmatpush1.bf16.msra.mxu0 %v214
    %247 = vmatprep.subr.bf16.mxu0 %v213
    %248 = vmatpush1.bf16.msra.mxu0 %v212
    %249 = vmatprep.subr.bf16.mxu0 %v211
    %250 = vmatpush1.bf16.msra.mxu0 %v210
    %251 = vmatprep.subr.bf16.mxu0 %v209
    %252 = vmatpush1.bf16.msra.mxu0 %v208
    %253 = vmatprep.subr.bf16.mxu0 %v207
    %254 = vmatpush1.bf16.msra.mxu0 %v206
    %255 = vmatprep.subr.bf16.mxu0 %v205
    %256 = vmatpush1.bf16.msra.mxu0 %v204
    %257 = vmatprep.subr.bf16.mxu0 0
    %258 = vmatpush2.bf16.msra.mxu0 0
    %259 = vmatprep.subr.bf16.mxu0 0
    %260 = vmatpush2.bf16.msra.mxu0 0
    %261 = vmatprep.subr.bf16.mxu0 0
    %262 = vmatpush2.bf16.msra.mxu0 0
    %263 = vmatprep.subr.bf16.mxu0 0
    %264 = vmatpush2.bf16.msra.mxu0 0
    %265 = vmatprep.subr.bf16.mxu0 0
    %266 = vmatpush2.bf16.msra.mxu0 0
    %267 = vmatprep.subr.bf16.mxu0 0
    %268 = vmatpush2.bf16.msra.mxu0 0
    %269 = vmatprep.subr.bf16.mxu0 0
    %270 = vmatpush2.bf16.msra.mxu0 0
    %271 = vmatprep.subr.bf16.mxu0 0
    %272 = vmatpush2.bf16.msra.mxu0 0
    %273 = vmatprep.mubr.bf16.mxu0 0
    %274 = vmatmul.mubr.bf16.gmra.mxu0 %v232
    %v275 = vpop.f32.mrf.mxu0
    %v276 = vadd.f32 0.0, %v275
    %v277 = vpop.f32.mrf.mxu0
    %v278 = vadd.f32 0.0, %v277
    %v279 = vpop.f32.mrf.mxu0
    %v280 = vadd.f32 0.0, %v279
    %v281 = vpop.f32.mrf.mxu0
    %v282 = vadd.f32 0.0, %v281
    %283 = vdwg.mxu0
    %v284 = vpack.c.bf16 %v280, %v276
    %v285 = vpack.c.bf16 %v282, %v278
    %v286 = vld [vmem:[#allocation7] sm:$0x3]
    %v289 = vunpack.c.l.s4 1966171168
    %v290 = vunpack.c.0.s8 %v289
    %v291 = vlaneseq
    %v292 = vshrl.u32 %v291, 7
    %v293 = vsub.s32 %v290, %v292
    %v294 = vrot.slane %v286, %v293
    %v295 = vcombine.high %v294, %v294
    %v297 = vunpack.c.l.s4 1966171168
    %v298 = vunpack.c.0.s8 %v297
    %v299 = vlaneseq
    %v300 = vshrl.u32 %v299, 7
    %v301 = vsub.s32 %v298, %v300
    %v302 = vrot.slane %v294, %v301
    %v304 = vunpack.c.l.s4 1966171168
    %v305 = vunpack.c.0.s8 %v304
    %v306 = vlaneseq
    %v307 = vshrl.u32 %v306, 7
    %v308 = vsub.s32 %v305, %v307
    %v309 = vrot.slane %v295, %v308
    %v311 = vpack.i.b16 %v302, %v302
    %v313 = vlaneseq
    %v314 = vshrl.u32 %v313, 7
    %v315 = vsub.s32 0, %v314
    %v316 = vrot.slane %v311, %v315
    %v318 = vpack.i.b16 %v309, %v309
    %v320 = vlaneseq
    %v321 = vshrl.u32 %v320, 7
    %v322 = vsub.s32 0, %v321
    %v323 = vrot.slane %v318, %v322
    %v324 = vadd.bf16 %v284, %v316
    %v325 = vadd.bf16 %v285, %v323
    %vm326 = vcmp.gt.bf16.partialorder %v324, 0
    %vm327 = vcmp.gt.bf16.partialorder %v325, 0
    %v328 = vmul.bf16 %v324, 1045249613
    %v329 = vmul.bf16 %v325, 1045249613
    %v330 = vsel %vm326, %v324, %v328
    %v331 = vsel %vm327, %v325, %v329
    %v332 = vld [vmem:[#allocation8] sm:$0xff]
    %v333 = vld [vmem:[#allocation8 + $0x8] sm:$0xff]
    %v334 = vld [vmem:[#allocation8 + $0x10] sm:$0xff]
    %v335 = vld [vmem:[#allocation8 + $0x18] sm:$0xff]
    %v336 = vld [vmem:[#allocation8 + $0x20] sm:$0xff]
    %v337 = vld [vmem:[#allocation8 + $0x28] sm:$0xff]
    %v338 = vld [vmem:[#allocation8 + $0x30] sm:$0xff]
    %v339 = vld [vmem:[#allocation8 + $0x38] sm:$0xff]
    %v340 = vld [vmem:[#allocation8 + $0x40] sm:$0xff]
    %v341 = vld [vmem:[#allocation8 + $0x48] sm:$0xff]
    %v342 = vld [vmem:[#allocation8 + $0x50] sm:$0xff]
    %v343 = vld [vmem:[#allocation8 + $0x58] sm:$0xff]
    %v344 = vld [vmem:[#allocation8 + $0x60] sm:$0xff]
    %v345 = vld [vmem:[#allocation8 + $0x68] sm:$0xff]
    %v346 = vld [vmem:[#allocation8 + $0x70] sm:$0xff]
    %v347 = vld [vmem:[#allocation8 + $0x78] sm:$0xff]
    %v348 = vld [vmem:[#allocation8 + $0x80] sm:$0xff]
    %v349 = vld [vmem:[#allocation8 + $0x88] sm:$0xff]
    %v350 = vld [vmem:[#allocation8 + $0x90] sm:$0xff]
    %v351 = vld [vmem:[#allocation8 + $0x98] sm:$0xff]
    %v352 = vld [vmem:[#allocation8 + $0xa0] sm:$0xff]
    %v353 = vld [vmem:[#allocation8 + $0xa8] sm:$0xff]
    %v354 = vld [vmem:[#allocation8 + $0xb0] sm:$0xff]
    %v355 = vld [vmem:[#allocation8 + $0xb8] sm:$0xff]
    %v356 = vld [vmem:[#allocation8 + $0xc0] sm:$0xff]
    %v357 = vld [vmem:[#allocation8 + $0xc8] sm:$0xff]
    %v358 = vld [vmem:[#allocation8 + $0xd0] sm:$0xff]
    %v359 = vld [vmem:[#allocation8 + $0xd8] sm:$0xff]
    %v360 = vld [vmem:[#allocation8 + $0xe0] sm:$0xff]
    %v361 = vld [vmem:[#allocation8 + $0xe8] sm:$0xff]
    %v362 = vld [vmem:[#allocation8 + $0xf0] sm:$0xff]
    %v363 = vld [vmem:[#allocation8 + $0xf8] sm:$0xff]
    %v364 = vld [vmem:[#allocation8 + $0x100] sm:$0xff]
    %v365 = vld [vmem:[#allocation8 + $0x108] sm:$0xff]
    %v366 = vld [vmem:[#allocation8 + $0x110] sm:$0xff]
    %v367 = vld [vmem:[#allocation8 + $0x118] sm:$0xff]
    %v368 = vld [vmem:[#allocation8 + $0x120] sm:$0xff]
    %v369 = vld [vmem:[#allocation8 + $0x128] sm:$0xff]
    %v370 = vld [vmem:[#allocation8 + $0x130] sm:$0xff]
    %v371 = vld [vmem:[#allocation8 + $0x138] sm:$0xff]
    %v372 = vld [vmem:[#allocation8 + $0x140] sm:$0xff]
    %v373 = vld [vmem:[#allocation8 + $0x148] sm:$0xff]
    %v374 = vld [vmem:[#allocation8 + $0x150] sm:$0xff]
    %v375 = vld [vmem:[#allocation8 + $0x158] sm:$0xff]
    %v376 = vld [vmem:[#allocation8 + $0x160] sm:$0xff]
    %v377 = vld [vmem:[#allocation8 + $0x168] sm:$0xff]
    %v378 = vld [vmem:[#allocation8 + $0x170] sm:$0xff]
    %v379 = vld [vmem:[#allocation8 + $0x178] sm:$0xff]
    %v380 = vld [vmem:[#allocation8 + $0x180] sm:$0xff]
    %v381 = vld [vmem:[#allocation8 + $0x188] sm:$0xff]
    %v382 = vld [vmem:[#allocation8 + $0x190] sm:$0xff]
    %v383 = vld [vmem:[#allocation8 + $0x198] sm:$0xff]
    %v384 = vld [vmem:[#allocation8 + $0x1a0] sm:$0xff]
    %v385 = vld [vmem:[#allocation8 + $0x1a8] sm:$0xff]
    %v386 = vld [vmem:[#allocation8 + $0x1b0] sm:$0xff]
    %v387 = vld [vmem:[#allocation8 + $0x1b8] sm:$0xff]
    %v388 = vld [vmem:[#allocation8 + $0x1c0] sm:$0xff]
    %v389 = vld [vmem:[#allocation8 + $0x1c8] sm:$0xff]
    %v390 = vld [vmem:[#allocation8 + $0x1d0] sm:$0xff]
    %v391 = vld [vmem:[#allocation8 + $0x1d8] sm:$0xff]
    %v392 = vld [vmem:[#allocation8 + $0x1e0] sm:$0xff]
    %v393 = vld [vmem:[#allocation8 + $0x1e8] sm:$0xff]
    %v394 = vld [vmem:[#allocation8 + $0x1f0] sm:$0xff]
    %v395 = vld [vmem:[#allocation8 + $0x1f8] sm:$0xff]
    %v460 = vunpack.c.l.b16 %v332
    %v461 = vunpack.c.h.b16 %v332
    %v462 = vunpack.c.l.b16 %v333
    %v463 = vunpack.c.h.b16 %v333
    %v464 = vunpack.c.l.b16 %v334
    %v465 = vunpack.c.h.b16 %v334
    %v466 = vunpack.c.l.b16 %v335
    %v467 = vunpack.c.h.b16 %v335
    %v468 = vunpack.c.l.b16 %v336
    %v469 = vunpack.c.h.b16 %v336
    %v470 = vunpack.c.l.b16 %v337
    %v471 = vunpack.c.h.b16 %v337
    %v472 = vunpack.c.l.b16 %v338
    %v473 = vunpack.c.h.b16 %v338
    %v474 = vunpack.c.l.b16 %v339
    %v475 = vunpack.c.h.b16 %v339
    %v476 = vunpack.c.l.b16 %v340
    %v477 = vunpack.c.h.b16 %v340
    %v478 = vunpack.c.l.b16 %v341
    %v479 = vunpack.c.h.b16 %v341
    %v480 = vunpack.c.l.b16 %v342
    %v481 = vunpack.c.h.b16 %v342
    %v482 = vunpack.c.l.b16 %v343
    %v483 = vunpack.c.h.b16 %v343
    %v484 = vunpack.c.l.b16 %v344
    %v485 = vunpack.c.h.b16 %v344
    %v486 = vunpack.c.l.b16 %v345
    %v487 = vunpack.c.h.b16 %v345
    %v488 = vunpack.c.l.b16 %v346
    %v489 = vunpack.c.h.b16 %v346
    %v490 = vunpack.c.l.b16 %v347
    %v491 = vunpack.c.h.b16 %v347
    %v492 = vunpack.c.l.b16 %v348
    %v493 = vunpack.c.h.b16 %v348
    %v494 = vunpack.c.l.b16 %v349
    %v495 = vunpack.c.h.b16 %v349
    %v496 = vunpack.c.l.b16 %v350
    %v497 = vunpack.c.h.b16 %v350
    %v498 = vunpack.c.l.b16 %v351
    %v499 = vunpack.c.h.b16 %v351
    %v500 = vunpack.c.l.b16 %v352
    %v501 = vunpack.c.h.b16 %v352
    %v502 = vunpack.c.l.b16 %v353
    %v503 = vunpack.c.h.b16 %v353
    %v504 = vunpack.c.l.b16 %v354
    %v505 = vunpack.c.h.b16 %v354
    %v506 = vunpack.c.l.b16 %v355
    %v507 = vunpack.c.h.b16 %v355
    %v508 = vunpack.c.l.b16 %v356
    %v509 = vunpack.c.h.b16 %v356
    %v510 = vunpack.c.l.b16 %v357
    %v511 = vunpack.c.h.b16 %v357
    %v512 = vunpack.c.l.b16 %v358
    %v513 = vunpack.c.h.b16 %v358
    %v514 = vunpack.c.l.b16 %v359
    %v515 = vunpack.c.h.b16 %v359
    %v516 = vunpack.c.l.b16 %v360
    %v517 = vunpack.c.h.b16 %v360
    %v518 = vunpack.c.l.b16 %v361
    %v519 = vunpack.c.h.b16 %v361
    %v520 = vunpack.c.l.b16 %v362
    %v521 = vunpack.c.h.b16 %v362
    %v522 = vunpack.c.l.b16 %v363
    %v523 = vunpack.c.h.b16 %v363
    %v524 = vunpack.c.l.b16 %v364
    %v525 = vunpack.c.h.b16 %v364
    %v526 = vunpack.c.l.b16 %v365
    %v527 = vunpack.c.h.b16 %v365
    %v528 = vunpack.c.l.b16 %v366
    %v529 = vunpack.c.h.b16 %v366
    %v530 = vunpack.c.l.b16 %v367
    %v531 = vunpack.c.h.b16 %v367
    %v532 = vunpack.c.l.b16 %v368
    %v533 = vunpack.c.h.b16 %v368
    %v534 = vunpack.c.l.b16 %v369
    %v535 = vunpack.c.h.b16 %v369
    %v536 = vunpack.c.l.b16 %v370
    %v537 = vunpack.c.h.b16 %v370
    %v538 = vunpack.c.l.b16 %v371
    %v539 = vunpack.c.h.b16 %v371
    %v540 = vunpack.c.l.b16 %v372
    %v541 = vunpack.c.h.b16 %v372
    %v542 = vunpack.c.l.b16 %v373
    %v543 = vunpack.c.h.b16 %v373
    %v544 = vunpack.c.l.b16 %v374
    %v545 = vunpack.c.h.b16 %v374
    %v546 = vunpack.c.l.b16 %v375
    %v547 = vunpack.c.h.b16 %v375
    %v548 = vunpack.c.l.b16 %v376
    %v549 = vunpack.c.h.b16 %v376
    %v550 = vunpack.c.l.b16 %v377
    %v551 = vunpack.c.h.b16 %v377
    %v552 = vunpack.c.l.b16 %v378
    %v553 = vunpack.c.h.b16 %v378
    %v554 = vunpack.c.l.b16 %v379
    %v555 = vunpack.c.h.b16 %v379
    %v556 = vunpack.c.l.b16 %v380
    %v557 = vunpack.c.h.b16 %v380
    %v558 = vunpack.c.l.b16 %v381
    %v559 = vunpack.c.h.b16 %v381
    %v560 = vunpack.c.l.b16 %v382
    %v561 = vunpack.c.h.b16 %v382
    %v562 = vunpack.c.l.b16 %v383
    %v563 = vunpack.c.h.b16 %v383
    %v564 = vunpack.c.l.b16 %v384
    %v565 = vunpack.c.h.b16 %v384
    %v566 = vunpack.c.l.b16 %v385
    %v567 = vunpack.c.h.b16 %v385
    %v568 = vunpack.c.l.b16 %v386
    %v569 = vunpack.c.h.b16 %v386
    %v570 = vunpack.c.l.b16 %v387
    %v571 = vunpack.c.h.b16 %v387
    %v572 = vunpack.c.l.b16 %v388
    %v573 = vunpack.c.h.b16 %v388
    %v574 = vunpack.c.l.b16 %v389
    %v575 = vunpack.c.h.b16 %v389
    %v576 = vunpack.c.l.b16 %v390
    %v577 = vunpack.c.h.b16 %v390
    %v578 = vunpack.c.l.b16 %v391
    %v579 = vunpack.c.h.b16 %v391
    %v580 = vunpack.c.l.b16 %v392
    %v581 = vunpack.c.h.b16 %v392
    %v582 = vunpack.c.l.b16 %v393
    %v583 = vunpack.c.h.b16 %v393
    %v584 = vunpack.c.l.b16 %v394
    %v585 = vunpack.c.h.b16 %v394
    %v586 = vunpack.c.l.b16 %v395
    %v587 = vunpack.c.h.b16 %v395
    %v588 = vpack.c.b16 %v464, %v460
    %v589 = vpack.c.b16 %v465, %v461
    %v590 = vpack.c.b16 %v466, %v462
    %v591 = vpack.c.b16 %v467, %v463
    %v592 = vpack.c.b16 %v472, %v468
    %v593 = vpack.c.b16 %v473, %v469
    %v594 = vpack.c.b16 %v474, %v470
    %v595 = vpack.c.b16 %v475, %v471
    %v596 = vpack.c.b16 %v480, %v476
    %v597 = vpack.c.b16 %v481, %v477
    %v598 = vpack.c.b16 %v482, %v478
    %v599 = vpack.c.b16 %v483, %v479
    %v600 = vpack.c.b16 %v488, %v484
    %v601 = vpack.c.b16 %v489, %v485
    %v602 = vpack.c.b16 %v490, %v486
    %v603 = vpack.c.b16 %v491, %v487
    %v604 = vpack.c.b16 %v496, %v492
    %v605 = vpack.c.b16 %v497, %v493
    %v606 = vpack.c.b16 %v498, %v494
    %v607 = vpack.c.b16 %v499, %v495
    %v608 = vpack.c.b16 %v504, %v500
    %v609 = vpack.c.b16 %v505, %v501
    %v610 = vpack.c.b16 %v506, %v502
    %v611 = vpack.c.b16 %v507, %v503
    %v612 = vpack.c.b16 %v512, %v508
    %v613 = vpack.c.b16 %v513, %v509
    %v614 = vpack.c.b16 %v514, %v510
    %v615 = vpack.c.b16 %v515, %v511
    %v616 = vpack.c.b16 %v520, %v516
    %v617 = vpack.c.b16 %v521, %v517
    %v618 = vpack.c.b16 %v522, %v518
    %v619 = vpack.c.b16 %v523, %v519
    %v620 = vpack.c.b16 %v528, %v524
    %v621 = vpack.c.b16 %v529, %v525
    %v622 = vpack.c.b16 %v530, %v526
    %v623 = vpack.c.b16 %v531, %v527
    %v624 = vpack.c.b16 %v536, %v532
    %v625 = vpack.c.b16 %v537, %v533
    %v626 = vpack.c.b16 %v538, %v534
    %v627 = vpack.c.b16 %v539, %v535
    %v628 = vpack.c.b16 %v544, %v540
    %v629 = vpack.c.b16 %v545, %v541
    %v630 = vpack.c.b16 %v546, %v542
    %v631 = vpack.c.b16 %v547, %v543
    %v632 = vpack.c.b16 %v552, %v548
    %v633 = vpack.c.b16 %v553, %v549
    %v634 = vpack.c.b16 %v554, %v550
    %v635 = vpack.c.b16 %v555, %v551
    %v636 = vpack.c.b16 %v560, %v556
    %v637 = vpack.c.b16 %v561, %v557
    %v638 = vpack.c.b16 %v562, %v558
    %v639 = vpack.c.b16 %v563, %v559
    %v640 = vpack.c.b16 %v568, %v564
    %v641 = vpack.c.b16 %v569, %v565
    %v642 = vpack.c.b16 %v570, %v566
    %v643 = vpack.c.b16 %v571, %v567
    %v644 = vpack.c.b16 %v576, %v572
    %v645 = vpack.c.b16 %v577, %v573
    %v646 = vpack.c.b16 %v578, %v574
    %v647 = vpack.c.b16 %v579, %v575
    %v648 = vpack.c.b16 %v584, %v580
    %v649 = vpack.c.b16 %v585, %v581
    %v650 = vpack.c.b16 %v586, %v582
    %v651 = vpack.c.b16 %v587, %v583
    %716 = vmatprep.subr.bf16.mxu0 %v617
    %717 = vmatpush1.bf16.msra.mxu0 %v616
    %718 = vmatprep.subr.bf16.mxu0 %v613
    %719 = vmatpush1.bf16.msra.mxu0 %v612
    %720 = vmatprep.subr.bf16.mxu0 %v609
    %721 = vmatpush1.bf16.msra.mxu0 %v608
    %722 = vmatprep.subr.bf16.mxu0 %v605
    %723 = vmatpush1.bf16.msra.mxu0 %v604
    %724 = vmatprep.subr.bf16.mxu0 %v601
    %725 = vmatpush1.bf16.msra.mxu0 %v600
    %726 = vmatprep.subr.bf16.mxu0 %v597
    %727 = vmatpush1.bf16.msra.mxu0 %v596
    %728 = vmatprep.subr.bf16.mxu0 %v593
    %729 = vmatpush1.bf16.msra.mxu0 %v592
    %730 = vmatprep.subr.bf16.mxu0 %v589
    %731 = vmatpush1.bf16.msra.mxu0 %v588
    %732 = vmatprep.subr.bf16.mxu0 %v649
    %733 = vmatpush2.bf16.msra.mxu0 %v648
    %734 = vmatprep.subr.bf16.mxu0 %v645
    %735 = vmatpush2.bf16.msra.mxu0 %v644
    %736 = vmatprep.subr.bf16.mxu0 %v641
    %737 = vmatpush2.bf16.msra.mxu0 %v640
    %738 = vmatprep.subr.bf16.mxu0 %v637
    %739 = vmatpush2.bf16.msra.mxu0 %v636
    %740 = vmatprep.subr.bf16.mxu0 %v633
    %741 = vmatpush2.bf16.msra.mxu0 %v632
    %742 = vmatprep.subr.bf16.mxu0 %v629
    %743 = vmatpush2.bf16.msra.mxu0 %v628
    %744 = vmatprep.subr.bf16.mxu0 %v625
    %745 = vmatpush2.bf16.msra.mxu0 %v624
    %746 = vmatprep.subr.bf16.mxu0 %v621
    %747 = vmatpush2.bf16.msra.mxu0 %v620
    %748 = vmatprep.mubr.bf16.mxu0 %v331
    %749 = vmatmul.mubr.bf16.gmra.mxu0 %v330
    %v750 = vpop.f32.mrf.mxu0
    %v751 = vadd.f32 0.0, %v750
    %v752 = vpop.f32.mrf.mxu0
    %v753 = vadd.f32 0.0, %v752
    %v754 = vpop.f32.mrf.mxu0
    %v755 = vadd.f32 0.0, %v754
    %v756 = vpop.f32.mrf.mxu0
    %v757 = vadd.f32 0.0, %v756
    %758 = vdwg.mxu0
    %759 = vmatprep.subr.bf16.mxu0 %v619
    %760 = vmatpush1.bf16.msra.mxu0 %v618
    %761 = vmatprep.subr.bf16.mxu0 %v615
    %762 = vmatpush1.bf16.msra.mxu0 %v614
    %763 = vmatprep.subr.bf16.mxu0 %v611
    %764 = vmatpush1.bf16.msra.mxu0 %v610
    %765 = vmatprep.subr.bf16.mxu0 %v607
    %766 = vmatpush1.bf16.msra.mxu0 %v606
    %767 = vmatprep.subr.bf16.mxu0 %v603
    %768 = vmatpush1.bf16.msra.mxu0 %v602
    %769 = vmatprep.subr.bf16.mxu0 %v599
    %770 = vmatpush1.bf16.msra.mxu0 %v598
    %771 = vmatprep.subr.bf16.mxu0 %v595
    %772 = vmatpush1.bf16.msra.mxu0 %v594
    %773 = vmatprep.subr.bf16.mxu0 %v591
    %774 = vmatpush1.bf16.msra.mxu0 %v590
    %775 = vmatprep.subr.bf16.mxu0 %v651
    %776 = vmatpush2.bf16.msra.mxu0 %v650
    %777 = vmatprep.subr.bf16.mxu0 %v647
    %778 = vmatpush2.bf16.msra.mxu0 %v646
    %779 = vmatprep.subr.bf16.mxu0 %v643
    %780 = vmatpush2.bf16.msra.mxu0 %v642
    %781 = vmatprep.subr.bf16.mxu0 %v639
    %782 = vmatpush2.bf16.msra.mxu0 %v638
    %783 = vmatprep.subr.bf16.mxu0 %v635
    %784 = vmatpush2.bf16.msra.mxu0 %v634
    %785 = vmatprep.subr.bf16.mxu0 %v631
    %786 = vmatpush2.bf16.msra.mxu0 %v630
    %787 = vmatprep.subr.bf16.mxu0 %v627
    %788 = vmatpush2.bf16.msra.mxu0 %v626
    %789 = vmatprep.subr.bf16.mxu0 %v623
    %790 = vmatpush2.bf16.msra.mxu0 %v622
    %791 = vmatprep.mubr.bf16.mxu0 %v331
    %792 = vmatmul.mubr.bf16.gmra.mxu0 %v330
    %v793 = vpop.f32.mrf.mxu0
    %v794 = vadd.f32 0.0, %v793
    %v795 = vpop.f32.mrf.mxu0
    %v796 = vadd.f32 0.0, %v795
    %v797 = vpop.f32.mrf.mxu0
    %v798 = vadd.f32 0.0, %v797
    %v799 = vpop.f32.mrf.mxu0
    %v800 = vadd.f32 0.0, %v799
    %801 = vdwg.mxu0
    %v802 = vpack.c.bf16 %v755, %v751
    %v803 = vpack.c.bf16 %v757, %v753
    %v804 = vpack.c.bf16 %v798, %v794
    %v805 = vpack.c.bf16 %v800, %v796
    %v806 = vld [vmem:[#allocation10] sm:$0xf]
    %v809 = vunpack.c.l.s4 1966171168
    %v810 = vunpack.c.0.s8 %v809
    %v811 = vlaneseq
    %v812 = vshrl.u32 %v811, 7
    %v813 = vsub.s32 %v810, %v812
    %v814 = vrot.slane %v806, %v813
    %v815 = vcombine.high %v814, %v814
    %v817 = vunpack.c.l.s4 1966171168
    %v818 = vunpack.c.0.s8 %v817
    %v819 = vlaneseq
    %v820 = vshrl.u32 %v819, 7
    %v821 = vsub.s32 %v818, %v820
    %v822 = vrot.slane %v814, %v821
    %v824 = vunpack.c.l.s4 1966171168
    %v825 = vunpack.c.0.s8 %v824
    %v826 = vlaneseq
    %v827 = vshrl.u32 %v826, 7
    %v828 = vsub.s32 %v825, %v827
    %v829 = vrot.slane %v815, %v828
    %v830 = vcombine.high %v822, %v822
    %v831 = vcombine.high %v829, %v829
    %v833 = vpack.i.b16 %v822, %v822
    %v835 = vlaneseq
    %v836 = vshrl.u32 %v835, 7
    %v837 = vsub.s32 0, %v836
    %v838 = vrot.slane %v833, %v837
    %v840 = vpack.i.b16 %v829, %v829
    %v842 = vlaneseq
    %v843 = vshrl.u32 %v842, 7
    %v844 = vsub.s32 0, %v843
    %v845 = vrot.slane %v840, %v844
    %v847 = vpack.i.b16 %v830, %v830
    %v849 = vlaneseq
    %v850 = vshrl.u32 %v849, 7
    %v851 = vsub.s32 0, %v850
    %v852 = vrot.slane %v847, %v851
    %v854 = vpack.i.b16 %v831, %v831
    %v856 = vlaneseq
    %v857 = vshrl.u32 %v856, 7
    %v858 = vsub.s32 0, %v857
    %v859 = vrot.slane %v854, %v858
    %v860 = vadd.bf16 %v802, %v838
    %v861 = vadd.bf16 %v803, %v845
    %v862 = vadd.bf16 %v804, %v852
    %v863 = vadd.bf16 %v805, %v859
    %vm864 = vcmp.gt.bf16.partialorder %v860, 0
    %vm865 = vcmp.gt.bf16.partialorder %v861, 0
    %vm866 = vcmp.gt.bf16.partialorder %v862, 0
    %vm867 = vcmp.gt.bf16.partialorder %v863, 0
    %v868 = vmul.bf16 %v860, 1045249613
    %v869 = vmul.bf16 %v861, 1045249613
    %v870 = vmul.bf16 %v862, 1045249613
    %v871 = vmul.bf16 %v863, 1045249613
    %v872 = vsel %vm864, %v860, %v868
    %v873 = vsel %vm865, %v861, %v869
    %v874 = vsel %vm866, %v862, %v870
    %v875 = vsel %vm867, %v863, %v871
    %v876 = vld [vmem:[#allocation11] sm:$0xff]
    %v877 = vld [vmem:[#allocation11 + $0x8] sm:$0xff]
    %v878 = vld [vmem:[#allocation11 + $0x10] sm:$0xff]
    %v879 = vld [vmem:[#allocation11 + $0x18] sm:$0xff]
    %v880 = vld [vmem:[#allocation11 + $0x20] sm:$0xff]
    %v881 = vld [vmem:[#allocation11 + $0x28] sm:$0xff]
    %v882 = vld [vmem:[#allocation11 + $0x30] sm:$0xff]
    %v883 = vld [vmem:[#allocation11 + $0x38] sm:$0xff]
    %v884 = vld [vmem:[#allocation11 + $0x40] sm:$0xff]
    %v885 = vld [vmem:[#allocation11 + $0x48] sm:$0xff]
    %v886 = vld [vmem:[#allocation11 + $0x50] sm:$0xff]
    %v887 = vld [vmem:[#allocation11 + $0x58] sm:$0xff]
    %v888 = vld [vmem:[#allocation11 + $0x60] sm:$0xff]
    %v889 = vld [vmem:[#allocation11 + $0x68] sm:$0xff]
    %v890 = vld [vmem:[#allocation11 + $0x70] sm:$0xff]
    %v891 = vld [vmem:[#allocation11 + $0x78] sm:$0xff]
    %v892 = vld [vmem:[#allocation11 + $0x80] sm:$0xff]
    %v893 = vld [vmem:[#allocation11 + $0x88] sm:$0xff]
    %v894 = vld [vmem:[#allocation11 + $0x90] sm:$0xff]
    %v895 = vld [vmem:[#allocation11 + $0x98] sm:$0xff]
    %v896 = vld [vmem:[#allocation11 + $0xa0] sm:$0xff]
    %v897 = vld [vmem:[#allocation11 + $0xa8] sm:$0xff]
    %v898 = vld [vmem:[#allocation11 + $0xb0] sm:$0xff]
    %v899 = vld [vmem:[#allocation11 + $0xb8] sm:$0xff]
    %v900 = vld [vmem:[#allocation11 + $0xc0] sm:$0xff]
    %v901 = vld [vmem:[#allocation11 + $0xc8] sm:$0xff]
    %v902 = vld [vmem:[#allocation11 + $0xd0] sm:$0xff]
    %v903 = vld [vmem:[#allocation11 + $0xd8] sm:$0xff]
    %v904 = vld [vmem:[#allocation11 + $0xe0] sm:$0xff]
    %v905 = vld [vmem:[#allocation11 + $0xe8] sm:$0xff]
    %v906 = vld [vmem:[#allocation11 + $0xf0] sm:$0xff]
    %v907 = vld [vmem:[#allocation11 + $0xf8] sm:$0xff]
    %v908 = vld [vmem:[#allocation11 + $0x100] sm:$0xff]
    %v909 = vld [vmem:[#allocation11 + $0x108] sm:$0xff]
    %v910 = vld [vmem:[#allocation11 + $0x110] sm:$0xff]
    %v911 = vld [vmem:[#allocation11 + $0x118] sm:$0xff]
    %v912 = vld [vmem:[#allocation11 + $0x120] sm:$0xff]
    %v913 = vld [vmem:[#allocation11 + $0x128] sm:$0xff]
    %v914 = vld [vmem:[#allocation11 + $0x130] sm:$0xff]
    %v915 = vld [vmem:[#allocation11 + $0x138] sm:$0xff]
    %v916 = vld [vmem:[#allocation11 + $0x140] sm:$0xff]
    %v917 = vld [vmem:[#allocation11 + $0x148] sm:$0xff]
    %v918 = vld [vmem:[#allocation11 + $0x150] sm:$0xff]
    %v919 = vld [vmem:[#allocation11 + $0x158] sm:$0xff]
    %v920 = vld [vmem:[#allocation11 + $0x160] sm:$0xff]
    %v921 = vld [vmem:[#allocation11 + $0x168] sm:$0xff]
    %v922 = vld [vmem:[#allocation11 + $0x170] sm:$0xff]
    %v923 = vld [vmem:[#allocation11 + $0x178] sm:$0xff]
    %v924 = vld [vmem:[#allocation11 + $0x180] sm:$0xff]
    %v925 = vld [vmem:[#allocation11 + $0x188] sm:$0xff]
    %v926 = vld [vmem:[#allocation11 + $0x190] sm:$0xff]
    %v927 = vld [vmem:[#allocation11 + $0x198] sm:$0xff]
    %v928 = vld [vmem:[#allocation11 + $0x1a0] sm:$0xff]
    %v929 = vld [vmem:[#allocation11 + $0x1a8] sm:$0xff]
    %v930 = vld [vmem:[#allocation11 + $0x1b0] sm:$0xff]
    %v931 = vld [vmem:[#allocation11 + $0x1b8] sm:$0xff]
    %v932 = vld [vmem:[#allocation11 + $0x1c0] sm:$0xff]
    %v933 = vld [vmem:[#allocation11 + $0x1c8] sm:$0xff]
    %v934 = vld [vmem:[#allocation11 + $0x1d0] sm:$0xff]
    %v935 = vld [vmem:[#allocation11 + $0x1d8] sm:$0xff]
    %v936 = vld [vmem:[#allocation11 + $0x1e0] sm:$0xff]
    %v937 = vld [vmem:[#allocation11 + $0x1e8] sm:$0xff]
    %v938 = vld [vmem:[#allocation11 + $0x1f0] sm:$0xff]
    %v939 = vld [vmem:[#allocation11 + $0x1f8] sm:$0xff]
    %v940 = vld [vmem:[#allocation11 + $0x200] sm:$0xff]
    %v941 = vld [vmem:[#allocation11 + $0x208] sm:$0xff]
    %v942 = vld [vmem:[#allocation11 + $0x210] sm:$0xff]
    %v943 = vld [vmem:[#allocation11 + $0x218] sm:$0xff]
    %v944 = vld [vmem:[#allocation11 + $0x220] sm:$0xff]
    %v945 = vld [vmem:[#allocation11 + $0x228] sm:$0xff]
    %v946 = vld [vmem:[#allocation11 + $0x230] sm:$0xff]
    %v947 = vld [vmem:[#allocation11 + $0x238] sm:$0xff]
    %v948 = vld [vmem:[#allocation11 + $0x240] sm:$0xff]
    %v949 = vld [vmem:[#allocation11 + $0x248] sm:$0xff]
    %v950 = vld [vmem:[#allocation11 + $0x250] sm:$0xff]
    %v951 = vld [vmem:[#allocation11 + $0x258] sm:$0xff]
    %v952 = vld [vmem:[#allocation11 + $0x260] sm:$0xff]
    %v953 = vld [vmem:[#allocation11 + $0x268] sm:$0xff]
    %v954 = vld [vmem:[#allocation11 + $0x270] sm:$0xff]
    %v955 = vld [vmem:[#allocation11 + $0x278] sm:$0xff]
    %v956 = vld [vmem:[#allocation11 + $0x280] sm:$0xff]
    %v957 = vld [vmem:[#allocation11 + $0x288] sm:$0xff]
    %v958 = vld [vmem:[#allocation11 + $0x290] sm:$0xff]
    %v959 = vld [vmem:[#allocation11 + $0x298] sm:$0xff]
    %v960 = vld [vmem:[#allocation11 + $0x2a0] sm:$0xff]
    %v961 = vld [vmem:[#allocation11 + $0x2a8] sm:$0xff]
    %v962 = vld [vmem:[#allocation11 + $0x2b0] sm:$0xff]
    %v963 = vld [vmem:[#allocation11 + $0x2b8] sm:$0xff]
    %v964 = vld [vmem:[#allocation11 + $0x2c0] sm:$0xff]
    %v965 = vld [vmem:[#allocation11 + $0x2c8] sm:$0xff]
    %v966 = vld [vmem:[#allocation11 + $0x2d0] sm:$0xff]
    %v967 = vld [vmem:[#allocation11 + $0x2d8] sm:$0xff]
    %v968 = vld [vmem:[#allocation11 + $0x2e0] sm:$0xff]
    %v969 = vld [vmem:[#allocation11 + $0x2e8] sm:$0xff]
    %v970 = vld [vmem:[#allocation11 + $0x2f0] sm:$0xff]
    %v971 = vld [vmem:[#allocation11 + $0x2f8] sm:$0xff]
    %v972 = vld [vmem:[#allocation11 + $0x300] sm:$0xff]
    %v973 = vld [vmem:[#allocation11 + $0x308] sm:$0xff]
    %v974 = vld [vmem:[#allocation11 + $0x310] sm:$0xff]
    %v975 = vld [vmem:[#allocation11 + $0x318] sm:$0xff]
    %v976 = vld [vmem:[#allocation11 + $0x320] sm:$0xff]
    %v977 = vld [vmem:[#allocation11 + $0x328] sm:$0xff]
    %v978 = vld [vmem:[#allocation11 + $0x330] sm:$0xff]
    %v979 = vld [vmem:[#allocation11 + $0x338] sm:$0xff]
    %v980 = vld [vmem:[#allocation11 + $0x340] sm:$0xff]
    %v981 = vld [vmem:[#allocation11 + $0x348] sm:$0xff]
    %v982 = vld [vmem:[#allocation11 + $0x350] sm:$0xff]
    %v983 = vld [vmem:[#allocation11 + $0x358] sm:$0xff]
    %v984 = vld [vmem:[#allocation11 + $0x360] sm:$0xff]
    %v985 = vld [vmem:[#allocation11 + $0x368] sm:$0xff]
    %v986 = vld [vmem:[#allocation11 + $0x370] sm:$0xff]
    %v987 = vld [vmem:[#allocation11 + $0x378] sm:$0xff]
    %v988 = vld [vmem:[#allocation11 + $0x380] sm:$0xff]
    %v989 = vld [vmem:[#allocation11 + $0x388] sm:$0xff]
    %v990 = vld [vmem:[#allocation11 + $0x390] sm:$0xff]
    %v991 = vld [vmem:[#allocation11 + $0x398] sm:$0xff]
    %v992 = vld [vmem:[#allocation11 + $0x3a0] sm:$0xff]
    %v993 = vld [vmem:[#allocation11 + $0x3a8] sm:$0xff]
    %v994 = vld [vmem:[#allocation11 + $0x3b0] sm:$0xff]
    %v995 = vld [vmem:[#allocation11 + $0x3b8] sm:$0xff]
    %v996 = vld [vmem:[#allocation11 + $0x3c0] sm:$0xff]
    %v997 = vld [vmem:[#allocation11 + $0x3c8] sm:$0xff]
    %v998 = vld [vmem:[#allocation11 + $0x3d0] sm:$0xff]
    %v999 = vld [vmem:[#allocation11 + $0x3d8] sm:$0xff]
    %v1000 = vld [vmem:[#allocation11 + $0x3e0] sm:$0xff]
    %v1001 = vld [vmem:[#allocation11 + $0x3e8] sm:$0xff]
    %v1002 = vld [vmem:[#allocation11 + $0x3f0] sm:$0xff]
    %v1003 = vld [vmem:[#allocation11 + $0x3f8] sm:$0xff]
    %v1004 = vld [vmem:[#allocation11 + $0x400] sm:$0xff]
    %v1005 = vld [vmem:[#allocation11 + $0x408] sm:$0xff]
    %v1006 = vld [vmem:[#allocation11 + $0x410] sm:$0xff]
    %v1007 = vld [vmem:[#allocation11 + $0x418] sm:$0xff]
    %v1008 = vld [vmem:[#allocation11 + $0x420] sm:$0xff]
    %v1009 = vld [vmem:[#allocation11 + $0x428] sm:$0xff]
    %v1010 = vld [vmem:[#allocation11 + $0x430] sm:$0xff]
    %v1011 = vld [vmem:[#allocation11 + $0x438] sm:$0xff]
    %v1012 = vld [vmem:[#allocation11 + $0x440] sm:$0xff]
    %v1013 = vld [vmem:[#allocation11 + $0x448] sm:$0xff]
    %v1014 = vld [vmem:[#allocation11 + $0x450] sm:$0xff]
    %v1015 = vld [vmem:[#allocation11 + $0x458] sm:$0xff]
    %v1016 = vld [vmem:[#allocation11 + $0x460] sm:$0xff]
    %v1017 = vld [vmem:[#allocation11 + $0x468] sm:$0xff]
    %v1018 = vld [vmem:[#allocation11 + $0x470] sm:$0xff]
    %v1019 = vld [vmem:[#allocation11 + $0x478] sm:$0xff]
    %v1020 = vld [vmem:[#allocation11 + $0x480] sm:$0xff]
    %v1021 = vld [vmem:[#allocation11 + $0x488] sm:$0xff]
    %v1022 = vld [vmem:[#allocation11 + $0x490] sm:$0xff]
    %v1023 = vld [vmem:[#allocation11 + $0x498] sm:$0xff]
    %v1024 = vld [vmem:[#allocation11 + $0x4a0] sm:$0xff]
    %v1025 = vld [vmem:[#allocation11 + $0x4a8] sm:$0xff]
    %v1026 = vld [vmem:[#allocation11 + $0x4b0] sm:$0xff]
    %v1027 = vld [vmem:[#allocation11 + $0x4b8] sm:$0xff]
    %v1028 = vld [vmem:[#allocation11 + $0x4c0] sm:$0xff]
    %v1029 = vld [vmem:[#allocation11 + $0x4c8] sm:$0xff]
    %v1030 = vld [vmem:[#allocation11 + $0x4d0] sm:$0xff]
    %v1031 = vld [vmem:[#allocation11 + $0x4d8] sm:$0xff]
    %v1032 = vld [vmem:[#allocation11 + $0x4e0] sm:$0xff]
    %v1033 = vld [vmem:[#allocation11 + $0x4e8] sm:$0xff]
    %v1034 = vld [vmem:[#allocation11 + $0x4f0] sm:$0xff]
    %v1035 = vld [vmem:[#allocation11 + $0x4f8] sm:$0xff]
    %v1036 = vld [vmem:[#allocation11 + $0x500] sm:$0xff]
    %v1037 = vld [vmem:[#allocation11 + $0x508] sm:$0xff]
    %v1038 = vld [vmem:[#allocation11 + $0x510] sm:$0xff]
    %v1039 = vld [vmem:[#allocation11 + $0x518] sm:$0xff]
    %v1040 = vld [vmem:[#allocation11 + $0x520] sm:$0xff]
    %v1041 = vld [vmem:[#allocation11 + $0x528] sm:$0xff]
    %v1042 = vld [vmem:[#allocation11 + $0x530] sm:$0xff]
    %v1043 = vld [vmem:[#allocation11 + $0x538] sm:$0xff]
    %v1044 = vld [vmem:[#allocation11 + $0x540] sm:$0xff]
    %v1045 = vld [vmem:[#allocation11 + $0x548] sm:$0xff]
    %v1046 = vld [vmem:[#allocation11 + $0x550] sm:$0xff]
    %v1047 = vld [vmem:[#allocation11 + $0x558] sm:$0xff]
    %v1048 = vld [vmem:[#allocation11 + $0x560] sm:$0xff]
    %v1049 = vld [vmem:[#allocation11 + $0x568] sm:$0xff]
    %v1050 = vld [vmem:[#allocation11 + $0x570] sm:$0xff]
    %v1051 = vld [vmem:[#allocation11 + $0x578] sm:$0xff]
    %v1052 = vld [vmem:[#allocation11 + $0x580] sm:$0xff]
    %v1053 = vld [vmem:[#allocation11 + $0x588] sm:$0xff]
    %v1054 = vld [vmem:[#allocation11 + $0x590] sm:$0xff]
    %v1055 = vld [vmem:[#allocation11 + $0x598] sm:$0xff]
    %v1056 = vld [vmem:[#allocation11 + $0x5a0] sm:$0xff]
    %v1057 = vld [vmem:[#allocation11 + $0x5a8] sm:$0xff]
    %v1058 = vld [vmem:[#allocation11 + $0x5b0] sm:$0xff]
    %v1059 = vld [vmem:[#allocation11 + $0x5b8] sm:$0xff]
    %v1060 = vld [vmem:[#allocation11 + $0x5c0] sm:$0xff]
    %v1061 = vld [vmem:[#allocation11 + $0x5c8] sm:$0xff]
    %v1062 = vld [vmem:[#allocation11 + $0x5d0] sm:$0xff]
    %v1063 = vld [vmem:[#allocation11 + $0x5d8] sm:$0xff]
    %v1064 = vld [vmem:[#allocation11 + $0x5e0] sm:$0xff]
    %v1065 = vld [vmem:[#allocation11 + $0x5e8] sm:$0xff]
    %v1066 = vld [vmem:[#allocation11 + $0x5f0] sm:$0xff]
    %v1067 = vld [vmem:[#allocation11 + $0x5f8] sm:$0xff]
    %v1068 = vld [vmem:[#allocation11 + $0x600] sm:$0xff]
    %v1069 = vld [vmem:[#allocation11 + $0x608] sm:$0xff]
    %v1070 = vld [vmem:[#allocation11 + $0x610] sm:$0xff]
    %v1071 = vld [vmem:[#allocation11 + $0x618] sm:$0xff]
    %v1072 = vld [vmem:[#allocation11 + $0x620] sm:$0xff]
    %v1073 = vld [vmem:[#allocation11 + $0x628] sm:$0xff]
    %v1074 = vld [vmem:[#allocation11 + $0x630] sm:$0xff]
    %v1075 = vld [vmem:[#allocation11 + $0x638] sm:$0xff]
    %v1076 = vld [vmem:[#allocation11 + $0x640] sm:$0xff]
    %v1077 = vld [vmem:[#allocation11 + $0x648] sm:$0xff]
    %v1078 = vld [vmem:[#allocation11 + $0x650] sm:$0xff]
    %v1079 = vld [vmem:[#allocation11 + $0x658] sm:$0xff]
    %v1080 = vld [vmem:[#allocation11 + $0x660] sm:$0xff]
    %v1081 = vld [vmem:[#allocation11 + $0x668] sm:$0xff]
    %v1082 = vld [vmem:[#allocation11 + $0x670] sm:$0xff]
    %v1083 = vld [vmem:[#allocation11 + $0x678] sm:$0xff]
    %v1084 = vld [vmem:[#allocation11 + $0x680] sm:$0xff]
    %v1085 = vld [vmem:[#allocation11 + $0x688] sm:$0xff]
    %v1086 = vld [vmem:[#allocation11 + $0x690] sm:$0xff]
    %v1087 = vld [vmem:[#allocation11 + $0x698] sm:$0xff]
    %v1088 = vld [vmem:[#allocation11 + $0x6a0] sm:$0xff]
    %v1089 = vld [vmem:[#allocation11 + $0x6a8] sm:$0xff]
    %v1090 = vld [vmem:[#allocation11 + $0x6b0] sm:$0xff]
    %v1091 = vld [vmem:[#allocation11 + $0x6b8] sm:$0xff]
    %v1092 = vld [vmem:[#allocation11 + $0x6c0] sm:$0xff]
    %v1093 = vld [vmem:[#allocation11 + $0x6c8] sm:$0xff]
    %v1094 = vld [vmem:[#allocation11 + $0x6d0] sm:$0xff]
    %v1095 = vld [vmem:[#allocation11 + $0x6d8] sm:$0xff]
    %v1096 = vld [vmem:[#allocation11 + $0x6e0] sm:$0xff]
    %v1097 = vld [vmem:[#allocation11 + $0x6e8] sm:$0xff]
    %v1098 = vld [vmem:[#allocation11 + $0x6f0] sm:$0xff]
    %v1099 = vld [vmem:[#allocation11 + $0x6f8] sm:$0xff]
    %v1100 = vld [vmem:[#allocation11 + $0x700] sm:$0xff]
    %v1101 = vld [vmem:[#allocation11 + $0x708] sm:$0xff]
    %v1102 = vld [vmem:[#allocation11 + $0x710] sm:$0xff]
    %v1103 = vld [vmem:[#allocation11 + $0x718] sm:$0xff]
    %v1104 = vld [vmem:[#allocation11 + $0x720] sm:$0xff]
    %v1105 = vld [vmem:[#allocation11 + $0x728] sm:$0xff]
    %v1106 = vld [vmem:[#allocation11 + $0x730] sm:$0xff]
    %v1107 = vld [vmem:[#allocation11 + $0x738] sm:$0xff]
    %v1108 = vld [vmem:[#allocation11 + $0x740] sm:$0xff]
    %v1109 = vld [vmem:[#allocation11 + $0x748] sm:$0xff]
    %v1110 = vld [vmem:[#allocation11 + $0x750] sm:$0xff]
    %v1111 = vld [vmem:[#allocation11 + $0x758] sm:$0xff]
    %v1112 = vld [vmem:[#allocation11 + $0x760] sm:$0xff]
    %v1113 = vld [vmem:[#allocation11 + $0x768] sm:$0xff]
    %v1114 = vld [vmem:[#allocation11 + $0x770] sm:$0xff]
    %v1115 = vld [vmem:[#allocation11 + $0x778] sm:$0xff]
    %v1116 = vld [vmem:[#allocation11 + $0x780] sm:$0xff]
    %v1117 = vld [vmem:[#allocation11 + $0x788] sm:$0xff]
    %v1118 = vld [vmem:[#allocation11 + $0x790] sm:$0xff]
    %v1119 = vld [vmem:[#allocation11 + $0x798] sm:$0xff]
    %v1120 = vld [vmem:[#allocation11 + $0x7a0] sm:$0xff]
    %v1121 = vld [vmem:[#allocation11 + $0x7a8] sm:$0xff]
    %v1122 = vld [vmem:[#allocation11 + $0x7b0] sm:$0xff]
    %v1123 = vld [vmem:[#allocation11 + $0x7b8] sm:$0xff]
    %v1124 = vld [vmem:[#allocation11 + $0x7c0] sm:$0xff]
    %v1125 = vld [vmem:[#allocation11 + $0x7c8] sm:$0xff]
    %v1126 = vld [vmem:[#allocation11 + $0x7d0] sm:$0xff]
    %v1127 = vld [vmem:[#allocation11 + $0x7d8] sm:$0xff]
    %v1128 = vld [vmem:[#allocation11 + $0x7e0] sm:$0xff]
    %v1129 = vld [vmem:[#allocation11 + $0x7e8] sm:$0xff]
    %v1130 = vld [vmem:[#allocation11 + $0x7f0] sm:$0xff]
    %v1131 = vld [vmem:[#allocation11 + $0x7f8] sm:$0xff]
    %v1388 = vunpack.c.l.b16 %v876
    %v1389 = vunpack.c.h.b16 %v876
    %v1390 = vunpack.c.l.b16 %v877
    %v1391 = vunpack.c.h.b16 %v877
    %v1392 = vunpack.c.l.b16 %v878
    %v1393 = vunpack.c.h.b16 %v878
    %v1394 = vunpack.c.l.b16 %v879
    %v1395 = vunpack.c.h.b16 %v879
    %v1396 = vunpack.c.l.b16 %v880
    %v1397 = vunpack.c.h.b16 %v880
    %v1398 = vunpack.c.l.b16 %v881
    %v1399 = vunpack.c.h.b16 %v881
    %v1400 = vunpack.c.l.b16 %v882
    %v1401 = vunpack.c.h.b16 %v882
    %v1402 = vunpack.c.l.b16 %v883
    %v1403 = vunpack.c.h.b16 %v883
    %v1404 = vunpack.c.l.b16 %v884
    %v1405 = vunpack.c.h.b16 %v884
    %v1406 = vunpack.c.l.b16 %v885
    %v1407 = vunpack.c.h.b16 %v885
    %v1408 = vunpack.c.l.b16 %v886
    %v1409 = vunpack.c.h.b16 %v886
    %v1410 = vunpack.c.l.b16 %v887
    %v1411 = vunpack.c.h.b16 %v887
    %v1412 = vunpack.c.l.b16 %v888
    %v1413 = vunpack.c.h.b16 %v888
    %v1414 = vunpack.c.l.b16 %v889
    %v1415 = vunpack.c.h.b16 %v889
    %v1416 = vunpack.c.l.b16 %v890
    %v1417 = vunpack.c.h.b16 %v890
    %v1418 = vunpack.c.l.b16 %v891
    %v1419 = vunpack.c.h.b16 %v891
    %v1420 = vunpack.c.l.b16 %v892
    %v1421 = vunpack.c.h.b16 %v892
    %v1422 = vunpack.c.l.b16 %v893
    %v1423 = vunpack.c.h.b16 %v893
    %v1424 = vunpack.c.l.b16 %v894
    %v1425 = vunpack.c.h.b16 %v894
    %v1426 = vunpack.c.l.b16 %v895
    %v1427 = vunpack.c.h.b16 %v895
    %v1428 = vunpack.c.l.b16 %v896
    %v1429 = vunpack.c.h.b16 %v896
    %v1430 = vunpack.c.l.b16 %v897
    %v1431 = vunpack.c.h.b16 %v897
    %v1432 = vunpack.c.l.b16 %v898
    %v1433 = vunpack.c.h.b16 %v898
    %v1434 = vunpack.c.l.b16 %v899
    %v1435 = vunpack.c.h.b16 %v899
    %v1436 = vunpack.c.l.b16 %v900
    %v1437 = vunpack.c.h.b16 %v900
    %v1438 = vunpack.c.l.b16 %v901
    %v1439 = vunpack.c.h.b16 %v901
    %v1440 = vunpack.c.l.b16 %v902
    %v1441 = vunpack.c.h.b16 %v902
    %v1442 = vunpack.c.l.b16 %v903
    %v1443 = vunpack.c.h.b16 %v903
    %v1444 = vunpack.c.l.b16 %v904
    %v1445 = vunpack.c.h.b16 %v904
    %v1446 = vunpack.c.l.b16 %v905
    %v1447 = vunpack.c.h.b16 %v905
    %v1448 = vunpack.c.l.b16 %v906
    %v1449 = vunpack.c.h.b16 %v906
    %v1450 = vunpack.c.l.b16 %v907
    %v1451 = vunpack.c.h.b16 %v907
    %v1452 = vunpack.c.l.b16 %v908
    %v1453 = vunpack.c.h.b16 %v908
    %v1454 = vunpack.c.l.b16 %v909
    %v1455 = vunpack.c.h.b16 %v909
    %v1456 = vunpack.c.l.b16 %v910
    %v1457 = vunpack.c.h.b16 %v910
    %v1458 = vunpack.c.l.b16 %v911
    %v1459 = vunpack.c.h.b16 %v911
    %v1460 = vunpack.c.l.b16 %v912
    %v1461 = vunpack.c.h.b16 %v912
    %v1462 = vunpack.c.l.b16 %v913
    %v1463 = vunpack.c.h.b16 %v913
    %v1464 = vunpack.c.l.b16 %v914
    %v1465 = vunpack.c.h.b16 %v914
    %v1466 = vunpack.c.l.b16 %v915
    %v1467 = vunpack.c.h.b16 %v915
    %v1468 = vunpack.c.l.b16 %v916
    %v1469 = vunpack.c.h.b16 %v916
    %v1470 = vunpack.c.l.b16 %v917
    %v1471 = vunpack.c.h.b16 %v917
    %v1472 = vunpack.c.l.b16 %v918
    %v1473 = vunpack.c.h.b16 %v918
    %v1474 = vunpack.c.l.b16 %v919
    %v1475 = vunpack.c.h.b16 %v919
    %v1476 = vunpack.c.l.b16 %v920
    %v1477 = vunpack.c.h.b16 %v920
    %v1478 = vunpack.c.l.b16 %v921
    %v1479 = vunpack.c.h.b16 %v921
    %v1480 = vunpack.c.l.b16 %v922
    %v1481 = vunpack.c.h.b16 %v922
    %v1482 = vunpack.c.l.b16 %v923
    %v1483 = vunpack.c.h.b16 %v923
    %v1484 = vunpack.c.l.b16 %v924
    %v1485 = vunpack.c.h.b16 %v924
    %v1486 = vunpack.c.l.b16 %v925
    %v1487 = vunpack.c.h.b16 %v925
    %v1488 = vunpack.c.l.b16 %v926
    %v1489 = vunpack.c.h.b16 %v926
    %v1490 = vunpack.c.l.b16 %v927
    %v1491 = vunpack.c.h.b16 %v927
    %v1492 = vunpack.c.l.b16 %v928
    %v1493 = vunpack.c.h.b16 %v928
    %v1494 = vunpack.c.l.b16 %v929
    %v1495 = vunpack.c.h.b16 %v929
    %v1496 = vunpack.c.l.b16 %v930
    %v1497 = vunpack.c.h.b16 %v930
    %v1498 = vunpack.c.l.b16 %v931
    %v1499 = vunpack.c.h.b16 %v931
    %v1500 = vunpack.c.l.b16 %v932
    %v1501 = vunpack.c.h.b16 %v932
    %v1502 = vunpack.c.l.b16 %v933
    %v1503 = vunpack.c.h.b16 %v933
    %v1504 = vunpack.c.l.b16 %v934
    %v1505 = vunpack.c.h.b16 %v934
    %v1506 = vunpack.c.l.b16 %v935
    %v1507 = vunpack.c.h.b16 %v935
    %v1508 = vunpack.c.l.b16 %v936
    %v1509 = vunpack.c.h.b16 %v936
    %v1510 = vunpack.c.l.b16 %v937
    %v1511 = vunpack.c.h.b16 %v937
    %v1512 = vunpack.c.l.b16 %v938
    %v1513 = vunpack.c.h.b16 %v938
    %v1514 = vunpack.c.l.b16 %v939
    %v1515 = vunpack.c.h.b16 %v939
    %v1516 = vunpack.c.l.b16 %v940
    %v1517 = vunpack.c.h.b16 %v940
    %v1518 = vunpack.c.l.b16 %v941
    %v1519 = vunpack.c.h.b16 %v941
    %v1520 = vunpack.c.l.b16 %v942
    %v1521 = vunpack.c.h.b16 %v942
    %v1522 = vunpack.c.l.b16 %v943
    %v1523 = vunpack.c.h.b16 %v943
    %v1524 = vunpack.c.l.b16 %v944
    %v1525 = vunpack.c.h.b16 %v944
    %v1526 = vunpack.c.l.b16 %v945
    %v1527 = vunpack.c.h.b16 %v945
    %v1528 = vunpack.c.l.b16 %v946
    %v1529 = vunpack.c.h.b16 %v946
    %v1530 = vunpack.c.l.b16 %v947
    %v1531 = vunpack.c.h.b16 %v947
    %v1532 = vunpack.c.l.b16 %v948
    %v1533 = vunpack.c.h.b16 %v948
    %v1534 = vunpack.c.l.b16 %v949
    %v1535 = vunpack.c.h.b16 %v949
    %v1536 = vunpack.c.l.b16 %v950
    %v1537 = vunpack.c.h.b16 %v950
    %v1538 = vunpack.c.l.b16 %v951
    %v1539 = vunpack.c.h.b16 %v951
    %v1540 = vunpack.c.l.b16 %v952
    %v1541 = vunpack.c.h.b16 %v952
    %v1542 = vunpack.c.l.b16 %v953
    %v1543 = vunpack.c.h.b16 %v953
    %v1544 = vunpack.c.l.b16 %v954
    %v1545 = vunpack.c.h.b16 %v954
    %v1546 = vunpack.c.l.b16 %v955
    %v1547 = vunpack.c.h.b16 %v955
    %v1548 = vunpack.c.l.b16 %v956
    %v1549 = vunpack.c.h.b16 %v956
    %v1550 = vunpack.c.l.b16 %v957
    %v1551 = vunpack.c.h.b16 %v957
    %v1552 = vunpack.c.l.b16 %v958
    %v1553 = vunpack.c.h.b16 %v958
    %v1554 = vunpack.c.l.b16 %v959
    %v1555 = vunpack.c.h.b16 %v959
    %v1556 = vunpack.c.l.b16 %v960
    %v1557 = vunpack.c.h.b16 %v960
    %v1558 = vunpack.c.l.b16 %v961
    %v1559 = vunpack.c.h.b16 %v961
    %v1560 = vunpack.c.l.b16 %v962
    %v1561 = vunpack.c.h.b16 %v962
    %v1562 = vunpack.c.l.b16 %v963
    %v1563 = vunpack.c.h.b16 %v963
    %v1564 = vunpack.c.l.b16 %v964
    %v1565 = vunpack.c.h.b16 %v964
    %v1566 = vunpack.c.l.b16 %v965
    %v1567 = vunpack.c.h.b16 %v965
    %v1568 = vunpack.c.l.b16 %v966
    %v1569 = vunpack.c.h.b16 %v966
    %v1570 = vunpack.c.l.b16 %v967
    %v1571 = vunpack.c.h.b16 %v967
    %v1572 = vunpack.c.l.b16 %v968
    %v1573 = vunpack.c.h.b16 %v968
    %v1574 = vunpack.c.l.b16 %v969
    %v1575 = vunpack.c.h.b16 %v969
    %v1576 = vunpack.c.l.b16 %v970
    %v1577 = vunpack.c.h.b16 %v970
    %v1578 = vunpack.c.l.b16 %v971
    %v1579 = vunpack.c.h.b16 %v971
    %v1580 = vunpack.c.l.b16 %v972
    %v1581 = vunpack.c.h.b16 %v972
    %v1582 = vunpack.c.l.b16 %v973
    %v1583 = vunpack.c.h.b16 %v973
    %v1584 = vunpack.c.l.b16 %v974
    %v1585 = vunpack.c.h.b16 %v974
    %v1586 = vunpack.c.l.b16 %v975
    %v1587 = vunpack.c.h.b16 %v975
    %v1588 = vunpack.c.l.b16 %v976
    %v1589 = vunpack.c.h.b16 %v976
    %v1590 = vunpack.c.l.b16 %v977
    %v1591 = vunpack.c.h.b16 %v977
    %v1592 = vunpack.c.l.b16 %v978
    %v1593 = vunpack.c.h.b16 %v978
    %v1594 = vunpack.c.l.b16 %v979
    %v1595 = vunpack.c.h.b16 %v979
    %v1596 = vunpack.c.l.b16 %v980
    %v1597 = vunpack.c.h.b16 %v980
    %v1598 = vunpack.c.l.b16 %v981
    %v1599 = vunpack.c.h.b16 %v981
    %v1600 = vunpack.c.l.b16 %v982
    %v1601 = vunpack.c.h.b16 %v982
    %v1602 = vunpack.c.l.b16 %v983
    %v1603 = vunpack.c.h.b16 %v983
    %v1604 = vunpack.c.l.b16 %v984
    %v1605 = vunpack.c.h.b16 %v984
    %v1606 = vunpack.c.l.b16 %v985
    %v1607 = vunpack.c.h.b16 %v985
    %v1608 = vunpack.c.l.b16 %v986
    %v1609 = vunpack.c.h.b16 %v986
    %v1610 = vunpack.c.l.b16 %v987
    %v1611 = vunpack.c.h.b16 %v987
    %v1612 = vunpack.c.l.b16 %v988
    %v1613 = vunpack.c.h.b16 %v988
    %v1614 = vunpack.c.l.b16 %v989
    %v1615 = vunpack.c.h.b16 %v989
    %v1616 = vunpack.c.l.b16 %v990
    %v1617 = vunpack.c.h.b16 %v990
    %v1618 = vunpack.c.l.b16 %v991
    %v1619 = vunpack.c.h.b16 %v991
    %v1620 = vunpack.c.l.b16 %v992
    %v1621 = vunpack.c.h.b16 %v992
    %v1622 = vunpack.c.l.b16 %v993
    %v1623 = vunpack.c.h.b16 %v993
    %v1624 = vunpack.c.l.b16 %v994
    %v1625 = vunpack.c.h.b16 %v994
    %v1626 = vunpack.c.l.b16 %v995
    %v1627 = vunpack.c.h.b16 %v995
    %v1628 = vunpack.c.l.b16 %v996
    %v1629 = vunpack.c.h.b16 %v996
    %v1630 = vunpack.c.l.b16 %v997
    %v1631 = vunpack.c.h.b16 %v997
    %v1632 = vunpack.c.l.b16 %v998
    %v1633 = vunpack.c.h.b16 %v998
    %v1634 = vunpack.c.l.b16 %v999
    %v1635 = vunpack.c.h.b16 %v999
    %v1636 = vunpack.c.l.b16 %v1000
    %v1637 = vunpack.c.h.b16 %v1000
    %v1638 = vunpack.c.l.b16 %v1001
    %v1639 = vunpack.c.h.b16 %v1001
    %v1640 = vunpack.c.l.b16 %v1002
    %v1641 = vunpack.c.h.b16 %v1002
    %v1642 = vunpack.c.l.b16 %v1003
    %v1643 = vunpack.c.h.b16 %v1003
    %v1644 = vunpack.c.l.b16 %v1004
    %v1645 = vunpack.c.h.b16 %v1004
    %v1646 = vunpack.c.l.b16 %v1005
    %v1647 = vunpack.c.h.b16 %v1005
    %v1648 = vunpack.c.l.b16 %v1006
    %v1649 = vunpack.c.h.b16 %v1006
    %v1650 = vunpack.c.l.b16 %v1007
    %v1651 = vunpack.c.h.b16 %v1007
    %v1652 = vunpack.c.l.b16 %v1008
    %v1653 = vunpack.c.h.b16 %v1008
    %v1654 = vunpack.c.l.b16 %v1009
    %v1655 = vunpack.c.h.b16 %v1009
    %v1656 = vunpack.c.l.b16 %v1010
    %v1657 = vunpack.c.h.b16 %v1010
    %v1658 = vunpack.c.l.b16 %v1011
    %v1659 = vunpack.c.h.b16 %v1011
    %v1660 = vunpack.c.l.b16 %v1012
    %v1661 = vunpack.c.h.b16 %v1012
    %v1662 = vunpack.c.l.b16 %v1013
    %v1663 = vunpack.c.h.b16 %v1013
    %v1664 = vunpack.c.l.b16 %v1014
    %v1665 = vunpack.c.h.b16 %v1014
    %v1666 = vunpack.c.l.b16 %v1015
    %v1667 = vunpack.c.h.b16 %v1015
    %v1668 = vunpack.c.l.b16 %v1016
    %v1669 = vunpack.c.h.b16 %v1016
    %v1670 = vunpack.c.l.b16 %v1017
    %v1671 = vunpack.c.h.b16 %v1017
    %v1672 = vunpack.c.l.b16 %v1018
    %v1673 = vunpack.c.h.b16 %v1018
    %v1674 = vunpack.c.l.b16 %v1019
    %v1675 = vunpack.c.h.b16 %v1019
    %v1676 = vunpack.c.l.b16 %v1020
    %v1677 = vunpack.c.h.b16 %v1020
    %v1678 = vunpack.c.l.b16 %v1021
    %v1679 = vunpack.c.h.b16 %v1021
    %v1680 = vunpack.c.l.b16 %v1022
    %v1681 = vunpack.c.h.b16 %v1022
    %v1682 = vunpack.c.l.b16 %v1023
    %v1683 = vunpack.c.h.b16 %v1023
    %v1684 = vunpack.c.l.b16 %v1024
    %v1685 = vunpack.c.h.b16 %v1024
    %v1686 = vunpack.c.l.b16 %v1025
    %v1687 = vunpack.c.h.b16 %v1025
    %v1688 = vunpack.c.l.b16 %v1026
    %v1689 = vunpack.c.h.b16 %v1026
    %v1690 = vunpack.c.l.b16 %v1027
    %v1691 = vunpack.c.h.b16 %v1027
    %v1692 = vunpack.c.l.b16 %v1028
    %v1693 = vunpack.c.h.b16 %v1028
    %v1694 = vunpack.c.l.b16 %v1029
    %v1695 = vunpack.c.h.b16 %v1029
    %v1696 = vunpack.c.l.b16 %v1030
    %v1697 = vunpack.c.h.b16 %v1030
    %v1698 = vunpack.c.l.b16 %v1031
    %v1699 = vunpack.c.h.b16 %v1031
    %v1700 = vunpack.c.l.b16 %v1032
    %v1701 = vunpack.c.h.b16 %v1032
    %v1702 = vunpack.c.l.b16 %v1033
    %v1703 = vunpack.c.h.b16 %v1033
    %v1704 = vunpack.c.l.b16 %v1034
    %v1705 = vunpack.c.h.b16 %v1034
    %v1706 = vunpack.c.l.b16 %v1035
    %v1707 = vunpack.c.h.b16 %v1035
    %v1708 = vunpack.c.l.b16 %v1036
    %v1709 = vunpack.c.h.b16 %v1036
    %v1710 = vunpack.c.l.b16 %v1037
    %v1711 = vunpack.c.h.b16 %v1037
    %v1712 = vunpack.c.l.b16 %v1038
    %v1713 = vunpack.c.h.b16 %v1038
    %v1714 = vunpack.c.l.b16 %v1039
    %v1715 = vunpack.c.h.b16 %v1039
    %v1716 = vunpack.c.l.b16 %v1040
    %v1717 = vunpack.c.h.b16 %v1040
    %v1718 = vunpack.c.l.b16 %v1041
    %v1719 = vunpack.c.h.b16 %v1041
    %v1720 = vunpack.c.l.b16 %v1042
    %v1721 = vunpack.c.h.b16 %v1042
    %v1722 = vunpack.c.l.b16 %v1043
    %v1723 = vunpack.c.h.b16 %v1043
    %v1724 = vunpack.c.l.b16 %v1044
    %v1725 = vunpack.c.h.b16 %v1044
    %v1726 = vunpack.c.l.b16 %v1045
    %v1727 = vunpack.c.h.b16 %v1045
    %v1728 = vunpack.c.l.b16 %v1046
    %v1729 = vunpack.c.h.b16 %v1046
    %v1730 = vunpack.c.l.b16 %v1047
    %v1731 = vunpack.c.h.b16 %v1047
    %v1732 = vunpack.c.l.b16 %v1048
    %v1733 = vunpack.c.h.b16 %v1048
    %v1734 = vunpack.c.l.b16 %v1049
    %v1735 = vunpack.c.h.b16 %v1049
    %v1736 = vunpack.c.l.b16 %v1050
    %v1737 = vunpack.c.h.b16 %v1050
    %v1738 = vunpack.c.l.b16 %v1051
    %v1739 = vunpack.c.h.b16 %v1051
    %v1740 = vunpack.c.l.b16 %v1052
    %v1741 = vunpack.c.h.b16 %v1052
    %v1742 = vunpack.c.l.b16 %v1053
    %v1743 = vunpack.c.h.b16 %v1053
    %v1744 = vunpack.c.l.b16 %v1054
    %v1745 = vunpack.c.h.b16 %v1054
    %v1746 = vunpack.c.l.b16 %v1055
    %v1747 = vunpack.c.h.b16 %v1055
    %v1748 = vunpack.c.l.b16 %v1056
    %v1749 = vunpack.c.h.b16 %v1056
    %v1750 = vunpack.c.l.b16 %v1057
    %v1751 = vunpack.c.h.b16 %v1057
    %v1752 = vunpack.c.l.b16 %v1058
    %v1753 = vunpack.c.h.b16 %v1058
    %v1754 = vunpack.c.l.b16 %v1059
    %v1755 = vunpack.c.h.b16 %v1059
    %v1756 = vunpack.c.l.b16 %v1060
    %v1757 = vunpack.c.h.b16 %v1060
    %v1758 = vunpack.c.l.b16 %v1061
    %v1759 = vunpack.c.h.b16 %v1061
    %v1760 = vunpack.c.l.b16 %v1062
    %v1761 = vunpack.c.h.b16 %v1062
    %v1762 = vunpack.c.l.b16 %v1063
    %v1763 = vunpack.c.h.b16 %v1063
    %v1764 = vunpack.c.l.b16 %v1064
    %v1765 = vunpack.c.h.b16 %v1064
    %v1766 = vunpack.c.l.b16 %v1065
    %v1767 = vunpack.c.h.b16 %v1065
    %v1768 = vunpack.c.l.b16 %v1066
    %v1769 = vunpack.c.h.b16 %v1066
    %v1770 = vunpack.c.l.b16 %v1067
    %v1771 = vunpack.c.h.b16 %v1067
    %v1772 = vunpack.c.l.b16 %v1068
    %v1773 = vunpack.c.h.b16 %v1068
    %v1774 = vunpack.c.l.b16 %v1069
    %v1775 = vunpack.c.h.b16 %v1069
    %v1776 = vunpack.c.l.b16 %v1070
    %v1777 = vunpack.c.h.b16 %v1070
    %v1778 = vunpack.c.l.b16 %v1071
    %v1779 = vunpack.c.h.b16 %v1071
    %v1780 = vunpack.c.l.b16 %v1072
    %v1781 = vunpack.c.h.b16 %v1072
    %v1782 = vunpack.c.l.b16 %v1073
    %v1783 = vunpack.c.h.b16 %v1073
    %v1784 = vunpack.c.l.b16 %v1074
    %v1785 = vunpack.c.h.b16 %v1074
    %v1786 = vunpack.c.l.b16 %v1075
    %v1787 = vunpack.c.h.b16 %v1075
    %v1788 = vunpack.c.l.b16 %v1076
    %v1789 = vunpack.c.h.b16 %v1076
    %v1790 = vunpack.c.l.b16 %v1077
    %v1791 = vunpack.c.h.b16 %v1077
    %v1792 = vunpack.c.l.b16 %v1078
    %v1793 = vunpack.c.h.b16 %v1078
    %v1794 = vunpack.c.l.b16 %v1079
    %v1795 = vunpack.c.h.b16 %v1079
    %v1796 = vunpack.c.l.b16 %v1080
    %v1797 = vunpack.c.h.b16 %v1080
    %v1798 = vunpack.c.l.b16 %v1081
    %v1799 = vunpack.c.h.b16 %v1081
    %v1800 = vunpack.c.l.b16 %v1082
    %v1801 = vunpack.c.h.b16 %v1082
    %v1802 = vunpack.c.l.b16 %v1083
    %v1803 = vunpack.c.h.b16 %v1083
    %v1804 = vunpack.c.l.b16 %v1084
    %v1805 = vunpack.c.h.b16 %v1084
    %v1806 = vunpack.c.l.b16 %v1085
    %v1807 = vunpack.c.h.b16 %v1085
    %v1808 = vunpack.c.l.b16 %v1086
    %v1809 = vunpack.c.h.b16 %v1086
    %v1810 = vunpack.c.l.b16 %v1087
    %v1811 = vunpack.c.h.b16 %v1087
    %v1812 = vunpack.c.l.b16 %v1088
    %v1813 = vunpack.c.h.b16 %v1088
    %v1814 = vunpack.c.l.b16 %v1089
    %v1815 = vunpack.c.h.b16 %v1089
    %v1816 = vunpack.c.l.b16 %v1090
    %v1817 = vunpack.c.h.b16 %v1090
    %v1818 = vunpack.c.l.b16 %v1091
    %v1819 = vunpack.c.h.b16 %v1091
    %v1820 = vunpack.c.l.b16 %v1092
    %v1821 = vunpack.c.h.b16 %v1092
    %v1822 = vunpack.c.l.b16 %v1093
    %v1823 = vunpack.c.h.b16 %v1093
    %v1824 = vunpack.c.l.b16 %v1094
    %v1825 = vunpack.c.h.b16 %v1094
    %v1826 = vunpack.c.l.b16 %v1095
    %v1827 = vunpack.c.h.b16 %v1095
    %v1828 = vunpack.c.l.b16 %v1096
    %v1829 = vunpack.c.h.b16 %v1096
    %v1830 = vunpack.c.l.b16 %v1097
    %v1831 = vunpack.c.h.b16 %v1097
    %v1832 = vunpack.c.l.b16 %v1098
    %v1833 = vunpack.c.h.b16 %v1098
    %v1834 = vunpack.c.l.b16 %v1099
    %v1835 = vunpack.c.h.b16 %v1099
    %v1836 = vunpack.c.l.b16 %v1100
    %v1837 = vunpack.c.h.b16 %v1100
    %v1838 = vunpack.c.l.b16 %v1101
    %v1839 = vunpack.c.h.b16 %v1101
    %v1840 = vunpack.c.l.b16 %v1102
    %v1841 = vunpack.c.h.b16 %v1102
    %v1842 = vunpack.c.l.b16 %v1103
    %v1843 = vunpack.c.h.b16 %v1103
    %v1844 = vunpack.c.l.b16 %v1104
    %v1845 = vunpack.c.h.b16 %v1104
    %v1846 = vunpack.c.l.b16 %v1105
    %v1847 = vunpack.c.h.b16 %v1105
    %v1848 = vunpack.c.l.b16 %v1106
    %v1849 = vunpack.c.h.b16 %v1106
    %v1850 = vunpack.c.l.b16 %v1107
    %v1851 = vunpack.c.h.b16 %v1107
    %v1852 = vunpack.c.l.b16 %v1108
    %v1853 = vunpack.c.h.b16 %v1108
    %v1854 = vunpack.c.l.b16 %v1109
    %v1855 = vunpack.c.h.b16 %v1109
    %v1856 = vunpack.c.l.b16 %v1110
    %v1857 = vunpack.c.h.b16 %v1110
    %v1858 = vunpack.c.l.b16 %v1111
    %v1859 = vunpack.c.h.b16 %v1111
    %v1860 = vunpack.c.l.b16 %v1112
    %v1861 = vunpack.c.h.b16 %v1112
    %v1862 = vunpack.c.l.b16 %v1113
    %v1863 = vunpack.c.h.b16 %v1113
    %v1864 = vunpack.c.l.b16 %v1114
    %v1865 = vunpack.c.h.b16 %v1114
    %v1866 = vunpack.c.l.b16 %v1115
    %v1867 = vunpack.c.h.b16 %v1115
    %v1868 = vunpack.c.l.b16 %v1116
    %v1869 = vunpack.c.h.b16 %v1116
    %v1870 = vunpack.c.l.b16 %v1117
    %v1871 = vunpack.c.h.b16 %v1117
    %v1872 = vunpack.c.l.b16 %v1118
    %v1873 = vunpack.c.h.b16 %v1118
    %v1874 = vunpack.c.l.b16 %v1119
    %v1875 = vunpack.c.h.b16 %v1119
    %v1876 = vunpack.c.l.b16 %v1120
    %v1877 = vunpack.c.h.b16 %v1120
    %v1878 = vunpack.c.l.b16 %v1121
    %v1879 = vunpack.c.h.b16 %v1121
    %v1880 = vunpack.c.l.b16 %v1122
    %v1881 = vunpack.c.h.b16 %v1122
    %v1882 = vunpack.c.l.b16 %v1123
    %v1883 = vunpack.c.h.b16 %v1123
    %v1884 = vunpack.c.l.b16 %v1124
    %v1885 = vunpack.c.h.b16 %v1124
    %v1886 = vunpack.c.l.b16 %v1125
    %v1887 = vunpack.c.h.b16 %v1125
    %v1888 = vunpack.c.l.b16 %v1126
    %v1889 = vunpack.c.h.b16 %v1126
    %v1890 = vunpack.c.l.b16 %v1127
    %v1891 = vunpack.c.h.b16 %v1127
    %v1892 = vunpack.c.l.b16 %v1128
    %v1893 = vunpack.c.h.b16 %v1128
    %v1894 = vunpack.c.l.b16 %v1129
    %v1895 = vunpack.c.h.b16 %v1129
    %v1896 = vunpack.c.l.b16 %v1130
    %v1897 = vunpack.c.h.b16 %v1130
    %v1898 = vunpack.c.l.b16 %v1131
    %v1899 = vunpack.c.h.b16 %v1131
    %v1900 = vpack.c.b16 %v1396, %v1388
    %v1901 = vpack.c.b16 %v1397, %v1389
    %v1902 = vpack.c.b16 %v1398, %v1390
    %v1903 = vpack.c.b16 %v1399, %v1391
    %v1904 = vpack.c.b16 %v1400, %v1392
    %v1905 = vpack.c.b16 %v1401, %v1393
    %v1906 = vpack.c.b16 %v1402, %v1394
    %v1907 = vpack.c.b16 %v1403, %v1395
    %v1908 = vpack.c.b16 %v1412, %v1404
    %v1909 = vpack.c.b16 %v1413, %v1405
    %v1910 = vpack.c.b16 %v1414, %v1406
    %v1911 = vpack.c.b16 %v1415, %v1407
    %v1912 = vpack.c.b16 %v1416, %v1408
    %v1913 = vpack.c.b16 %v1417, %v1409
    %v1914 = vpack.c.b16 %v1418, %v1410
    %v1915 = vpack.c.b16 %v1419, %v1411
    %v1916 = vpack.c.b16 %v1428, %v1420
    %v1917 = vpack.c.b16 %v1429, %v1421
    %v1918 = vpack.c.b16 %v1430, %v1422
    %v1919 = vpack.c.b16 %v1431, %v1423
    %v1920 = vpack.c.b16 %v1432, %v1424
    %v1921 = vpack.c.b16 %v1433, %v1425
    %v1922 = vpack.c.b16 %v1434, %v1426
    %v1923 = vpack.c.b16 %v1435, %v1427
    %v1924 = vpack.c.b16 %v1444, %v1436
    %v1925 = vpack.c.b16 %v1445, %v1437
    %v1926 = vpack.c.b16 %v1446, %v1438
    %v1927 = vpack.c.b16 %v1447, %v1439
    %v1928 = vpack.c.b16 %v1448, %v1440
    %v1929 = vpack.c.b16 %v1449, %v1441
    %v1930 = vpack.c.b16 %v1450, %v1442
    %v1931 = vpack.c.b16 %v1451, %v1443
    %v1932 = vpack.c.b16 %v1460, %v1452
    %v1933 = vpack.c.b16 %v1461, %v1453
    %v1934 = vpack.c.b16 %v1462, %v1454
    %v1935 = vpack.c.b16 %v1463, %v1455
    %v1936 = vpack.c.b16 %v1464, %v1456
    %v1937 = vpack.c.b16 %v1465, %v1457
    %v1938 = vpack.c.b16 %v1466, %v1458
    %v1939 = vpack.c.b16 %v1467, %v1459
    %v1940 = vpack.c.b16 %v1476, %v1468
    %v1941 = vpack.c.b16 %v1477, %v1469
    %v1942 = vpack.c.b16 %v1478, %v1470
    %v1943 = vpack.c.b16 %v1479, %v1471
    %v1944 = vpack.c.b16 %v1480, %v1472
    %v1945 = vpack.c.b16 %v1481, %v1473
    %v1946 = vpack.c.b16 %v1482, %v1474
    %v1947 = vpack.c.b16 %v1483, %v1475
    %v1948 = vpack.c.b16 %v1492, %v1484
    %v1949 = vpack.c.b16 %v1493, %v1485
    %v1950 = vpack.c.b16 %v1494, %v1486
    %v1951 = vpack.c.b16 %v1495, %v1487
    %v1952 = vpack.c.b16 %v1496, %v1488
    %v1953 = vpack.c.b16 %v1497, %v1489
    %v1954 = vpack.c.b16 %v1498, %v1490
    %v1955 = vpack.c.b16 %v1499, %v1491
    %v1956 = vpack.c.b16 %v1508, %v1500
    %v1957 = vpack.c.b16 %v1509, %v1501
    %v1958 = vpack.c.b16 %v1510, %v1502
    %v1959 = vpack.c.b16 %v1511, %v1503
    %v1960 = vpack.c.b16 %v1512, %v1504
    %v1961 = vpack.c.b16 %v1513, %v1505
    %v1962 = vpack.c.b16 %v1514, %v1506
    %v1963 = vpack.c.b16 %v1515, %v1507
    %v1964 = vpack.c.b16 %v1524, %v1516
    %v1965 = vpack.c.b16 %v1525, %v1517
    %v1966 = vpack.c.b16 %v1526, %v1518
    %v1967 = vpack.c.b16 %v1527, %v1519
    %v1968 = vpack.c.b16 %v1528, %v1520
    %v1969 = vpack.c.b16 %v1529, %v1521
    %v1970 = vpack.c.b16 %v1530, %v1522
    %v1971 = vpack.c.b16 %v1531, %v1523
    %v1972 = vpack.c.b16 %v1540, %v1532
    %v1973 = vpack.c.b16 %v1541, %v1533
    %v1974 = vpack.c.b16 %v1542, %v1534
    %v1975 = vpack.c.b16 %v1543, %v1535
    %v1976 = vpack.c.b16 %v1544, %v1536
    %v1977 = vpack.c.b16 %v1545, %v1537
    %v1978 = vpack.c.b16 %v1546, %v1538
    %v1979 = vpack.c.b16 %v1547, %v1539
    %v1980 = vpack.c.b16 %v1556, %v1548
    %v1981 = vpack.c.b16 %v1557, %v1549
    %v1982 = vpack.c.b16 %v1558, %v1550
    %v1983 = vpack.c.b16 %v1559, %v1551
    %v1984 = vpack.c.b16 %v1560, %v1552
    %v1985 = vpack.c.b16 %v1561, %v1553
    %v1986 = vpack.c.b16 %v1562, %v1554
    %v1987 = vpack.c.b16 %v1563, %v1555
    %v1988 = vpack.c.b16 %v1572, %v1564
    %v1989 = vpack.c.b16 %v1573, %v1565
    %v1990 = vpack.c.b16 %v1574, %v1566
    %v1991 = vpack.c.b16 %v1575, %v1567
    %v1992 = vpack.c.b16 %v1576, %v1568
    %v1993 = vpack.c.b16 %v1577, %v1569
    %v1994 = vpack.c.b16 %v1578, %v1570
    %v1995 = vpack.c.b16 %v1579, %v1571
    %v1996 = vpack.c.b16 %v1588, %v1580
    %v1997 = vpack.c.b16 %v1589, %v1581
    %v1998 = vpack.c.b16 %v1590, %v1582
    %v1999 = vpack.c.b16 %v1591, %v1583
    %v2000 = vpack.c.b16 %v1592, %v1584
    %v2001 = vpack.c.b16 %v1593, %v1585
    %v2002 = vpack.c.b16 %v1594, %v1586
    %v2003 = vpack.c.b16 %v1595, %v1587
    %v2004 = vpack.c.b16 %v1604, %v1596
    %v2005 = vpack.c.b16 %v1605, %v1597
    %v2006 = vpack.c.b16 %v1606, %v1598
    %v2007 = vpack.c.b16 %v1607, %v1599
    %v2008 = vpack.c.b16 %v1608, %v1600
    %v2009 = vpack.c.b16 %v1609, %v1601
    %v2010 = vpack.c.b16 %v1610, %v1602
    %v2011 = vpack.c.b16 %v1611, %v1603
    %v2012 = vpack.c.b16 %v1620, %v1612
    %v2013 = vpack.c.b16 %v1621, %v1613
    %v2014 = vpack.c.b16 %v1622, %v1614
    %v2015 = vpack.c.b16 %v1623, %v1615
    %v2016 = vpack.c.b16 %v1624, %v1616
    %v2017 = vpack.c.b16 %v1625, %v1617
    %v2018 = vpack.c.b16 %v1626, %v1618
    %v2019 = vpack.c.b16 %v1627, %v1619
    %v2020 = vpack.c.b16 %v1636, %v1628
    %v2021 = vpack.c.b16 %v1637, %v1629
    %v2022 = vpack.c.b16 %v1638, %v1630
    %v2023 = vpack.c.b16 %v1639, %v1631
    %v2024 = vpack.c.b16 %v1640, %v1632
    %v2025 = vpack.c.b16 %v1641, %v1633
    %v2026 = vpack.c.b16 %v1642, %v1634
    %v2027 = vpack.c.b16 %v1643, %v1635
    %v2028 = vpack.c.b16 %v1652, %v1644
    %v2029 = vpack.c.b16 %v1653, %v1645
    %v2030 = vpack.c.b16 %v1654, %v1646
    %v2031 = vpack.c.b16 %v1655, %v1647
    %v2032 = vpack.c.b16 %v1656, %v1648
    %v2033 = vpack.c.b16 %v1657, %v1649
    %v2034 = vpack.c.b16 %v1658, %v1650
    %v2035 = vpack.c.b16 %v1659, %v1651
    %v2036 = vpack.c.b16 %v1668, %v1660
    %v2037 = vpack.c.b16 %v1669, %v1661
    %v2038 = vpack.c.b16 %v1670, %v1662
    %v2039 = vpack.c.b16 %v1671, %v1663
    %v2040 = vpack.c.b16 %v1672, %v1664
    %v2041 = vpack.c.b16 %v1673, %v1665
    %v2042 = vpack.c.b16 %v1674, %v1666
    %v2043 = vpack.c.b16 %v1675, %v1667
    %v2044 = vpack.c.b16 %v1684, %v1676
    %v2045 = vpack.c.b16 %v1685, %v1677
    %v2046 = vpack.c.b16 %v1686, %v1678
    %v2047 = vpack.c.b16 %v1687, %v1679
    %v2048 = vpack.c.b16 %v1688, %v1680
    %v2049 = vpack.c.b16 %v1689, %v1681
    %v2050 = vpack.c.b16 %v1690, %v1682
    %v2051 = vpack.c.b16 %v1691, %v1683
    %v2052 = vpack.c.b16 %v1700, %v1692
    %v2053 = vpack.c.b16 %v1701, %v1693
    %v2054 = vpack.c.b16 %v1702, %v1694
    %v2055 = vpack.c.b16 %v1703, %v1695
    %v2056 = vpack.c.b16 %v1704, %v1696
    %v2057 = vpack.c.b16 %v1705, %v1697
    %v2058 = vpack.c.b16 %v1706, %v1698
    %v2059 = vpack.c.b16 %v1707, %v1699
    %v2060 = vpack.c.b16 %v1716, %v1708
    %v2061 = vpack.c.b16 %v1717, %v1709
    %v2062 = vpack.c.b16 %v1718, %v1710
    %v2063 = vpack.c.b16 %v1719, %v1711
    %v2064 = vpack.c.b16 %v1720, %v1712
    %v2065 = vpack.c.b16 %v1721, %v1713
    %v2066 = vpack.c.b16 %v1722, %v1714
    %v2067 = vpack.c.b16 %v1723, %v1715
    %v2068 = vpack.c.b16 %v1732, %v1724
    %v2069 = vpack.c.b16 %v1733, %v1725
    %v2070 = vpack.c.b16 %v1734, %v1726
    %v2071 = vpack.c.b16 %v1735, %v1727
    %v2072 = vpack.c.b16 %v1736, %v1728
    %v2073 = vpack.c.b16 %v1737, %v1729
    %v2074 = vpack.c.b16 %v1738, %v1730
    %v2075 = vpack.c.b16 %v1739, %v1731
    %v2076 = vpack.c.b16 %v1748, %v1740
    %v2077 = vpack.c.b16 %v1749, %v1741
    %v2078 = vpack.c.b16 %v1750, %v1742
    %v2079 = vpack.c.b16 %v1751, %v1743
    %v2080 = vpack.c.b16 %v1752, %v1744
    %v2081 = vpack.c.b16 %v1753, %v1745
    %v2082 = vpack.c.b16 %v1754, %v1746
    %v2083 = vpack.c.b16 %v1755, %v1747
    %v2084 = vpack.c.b16 %v1764, %v1756
    %v2085 = vpack.c.b16 %v1765, %v1757
    %v2086 = vpack.c.b16 %v1766, %v1758
    %v2087 = vpack.c.b16 %v1767, %v1759
    %v2088 = vpack.c.b16 %v1768, %v1760
    %v2089 = vpack.c.b16 %v1769, %v1761
    %v2090 = vpack.c.b16 %v1770, %v1762
    %v2091 = vpack.c.b16 %v1771, %v1763
    %v2092 = vpack.c.b16 %v1780, %v1772
    %v2093 = vpack.c.b16 %v1781, %v1773
    %v2094 = vpack.c.b16 %v1782, %v1774
    %v2095 = vpack.c.b16 %v1783, %v1775
    %v2096 = vpack.c.b16 %v1784, %v1776
    %v2097 = vpack.c.b16 %v1785, %v1777
    %v2098 = vpack.c.b16 %v1786, %v1778
    %v2099 = vpack.c.b16 %v1787, %v1779
    %v2100 = vpack.c.b16 %v1796, %v1788
    %v2101 = vpack.c.b16 %v1797, %v1789
    %v2102 = vpack.c.b16 %v1798, %v1790
    %v2103 = vpack.c.b16 %v1799, %v1791
    %v2104 = vpack.c.b16 %v1800, %v1792
    %v2105 = vpack.c.b16 %v1801, %v1793
    %v2106 = vpack.c.b16 %v1802, %v1794
    %v2107 = vpack.c.b16 %v1803, %v1795
    %v2108 = vpack.c.b16 %v1812, %v1804
    %v2109 = vpack.c.b16 %v1813, %v1805
    %v2110 = vpack.c.b16 %v1814, %v1806
    %v2111 = vpack.c.b16 %v1815, %v1807
    %v2112 = vpack.c.b16 %v1816, %v1808
    %v2113 = vpack.c.b16 %v1817, %v1809
    %v2114 = vpack.c.b16 %v1818, %v1810
    %v2115 = vpack.c.b16 %v1819, %v1811
    %v2116 = vpack.c.b16 %v1828, %v1820
    %v2117 = vpack.c.b16 %v1829, %v1821
    %v2118 = vpack.c.b16 %v1830, %v1822
    %v2119 = vpack.c.b16 %v1831, %v1823
    %v2120 = vpack.c.b16 %v1832, %v1824
    %v2121 = vpack.c.b16 %v1833, %v1825
    %v2122 = vpack.c.b16 %v1834, %v1826
    %v2123 = vpack.c.b16 %v1835, %v1827
    %v2124 = vpack.c.b16 %v1844, %v1836
    %v2125 = vpack.c.b16 %v1845, %v1837
    %v2126 = vpack.c.b16 %v1846, %v1838
    %v2127 = vpack.c.b16 %v1847, %v1839
    %v2128 = vpack.c.b16 %v1848, %v1840
    %v2129 = vpack.c.b16 %v1849, %v1841
    %v2130 = vpack.c.b16 %v1850, %v1842
    %v2131 = vpack.c.b16 %v1851, %v1843
    %v2132 = vpack.c.b16 %v1860, %v1852
    %v2133 = vpack.c.b16 %v1861, %v1853
    %v2134 = vpack.c.b16 %v1862, %v1854
    %v2135 = vpack.c.b16 %v1863, %v1855
    %v2136 = vpack.c.b16 %v1864, %v1856
    %v2137 = vpack.c.b16 %v1865, %v1857
    %v2138 = vpack.c.b16 %v1866, %v1858
    %v2139 = vpack.c.b16 %v1867, %v1859
    %v2140 = vpack.c.b16 %v1876, %v1868
    %v2141 = vpack.c.b16 %v1877, %v1869
    %v2142 = vpack.c.b16 %v1878, %v1870
    %v2143 = vpack.c.b16 %v1879, %v1871
    %v2144 = vpack.c.b16 %v1880, %v1872
    %v2145 = vpack.c.b16 %v1881, %v1873
    %v2146 = vpack.c.b16 %v1882, %v1874
    %v2147 = vpack.c.b16 %v1883, %v1875
    %v2148 = vpack.c.b16 %v1892, %v1884
    %v2149 = vpack.c.b16 %v1893, %v1885
    %v2150 = vpack.c.b16 %v1894, %v1886
    %v2151 = vpack.c.b16 %v1895, %v1887
    %v2152 = vpack.c.b16 %v1896, %v1888
    %v2153 = vpack.c.b16 %v1897, %v1889
    %v2154 = vpack.c.b16 %v1898, %v1890
    %v2155 = vpack.c.b16 %v1899, %v1891
    %2412 = vmatprep.subr.bf16.mxu0 %v1957
    %2413 = vmatpush1.bf16.msra.mxu0 %v1956
    %2414 = vmatprep.subr.bf16.mxu0 %v1949
    %2415 = vmatpush1.bf16.msra.mxu0 %v1948
    %2416 = vmatprep.subr.bf16.mxu0 %v1941
    %2417 = vmatpush1.bf16.msra.mxu0 %v1940
    %2418 = vmatprep.subr.bf16.mxu0 %v1933
    %2419 = vmatpush1.bf16.msra.mxu0 %v1932
    %2420 = vmatprep.subr.bf16.mxu0 %v1925
    %2421 = vmatpush1.bf16.msra.mxu0 %v1924
    %2422 = vmatprep.subr.bf16.mxu0 %v1917
    %2423 = vmatpush1.bf16.msra.mxu0 %v1916
    %2424 = vmatprep.subr.bf16.mxu0 %v1909
    %2425 = vmatpush1.bf16.msra.mxu0 %v1908
    %2426 = vmatprep.subr.bf16.mxu0 %v1901
    %2427 = vmatpush1.bf16.msra.mxu0 %v1900
    %2428 = vmatprep.subr.bf16.mxu0 %v2021
    %2429 = vmatpush2.bf16.msra.mxu0 %v2020
    %2430 = vmatprep.subr.bf16.mxu0 %v2013
    %2431 = vmatpush2.bf16.msra.mxu0 %v2012
    %2432 = vmatprep.subr.bf16.mxu0 %v2005
    %2433 = vmatpush2.bf16.msra.mxu0 %v2004
    %2434 = vmatprep.subr.bf16.mxu0 %v1997
    %2435 = vmatpush2.bf16.msra.mxu0 %v1996
    %2436 = vmatprep.subr.bf16.mxu0 %v1989
    %2437 = vmatpush2.bf16.msra.mxu0 %v1988
    %2438 = vmatprep.subr.bf16.mxu0 %v1981
    %2439 = vmatpush2.bf16.msra.mxu0 %v1980
    %2440 = vmatprep.subr.bf16.mxu0 %v1973
    %2441 = vmatpush2.bf16.msra.mxu0 %v1972
    %2442 = vmatprep.subr.bf16.mxu0 %v1965
    %2443 = vmatpush2.bf16.msra.mxu0 %v1964
    %2444 = vmatprep.mubr.bf16.mxu0 %v873
    %2445 = vmatmul.mubr.bf16.gmra.mxu0 %v872
    %v2446 = vpop.f32.mrf.mxu0
    %v2447 = vadd.f32 0.0, %v2446
    %v2448 = vpop.f32.mrf.mxu0
    %v2449 = vadd.f32 0.0, %v2448
    %v2450 = vpop.f32.mrf.mxu0
    %v2451 = vadd.f32 0.0, %v2450
    %v2452 = vpop.f32.mrf.mxu0
    %v2453 = vadd.f32 0.0, %v2452
    %2454 = vdwg.mxu0
    %2455 = vmatprep.subr.bf16.mxu0 %v2085
    %2456 = vmatpush1.bf16.msra.mxu0 %v2084
    %2457 = vmatprep.subr.bf16.mxu0 %v2077
    %2458 = vmatpush1.bf16.msra.mxu0 %v2076
    %2459 = vmatprep.subr.bf16.mxu0 %v2069
    %2460 = vmatpush1.bf16.msra.mxu0 %v2068
    %2461 = vmatprep.subr.bf16.mxu0 %v2061
    %2462 = vmatpush1.bf16.msra.mxu0 %v2060
    %2463 = vmatprep.subr.bf16.mxu0 %v2053
    %2464 = vmatpush1.bf16.msra.mxu0 %v2052
    %2465 = vmatprep.subr.bf16.mxu0 %v2045
    %2466 = vmatpush1.bf16.msra.mxu0 %v2044
    %2467 = vmatprep.subr.bf16.mxu0 %v2037
    %2468 = vmatpush1.bf16.msra.mxu0 %v2036
    %2469 = vmatprep.subr.bf16.mxu0 %v2029
    %2470 = vmatpush1.bf16.msra.mxu0 %v2028
    %2471 = vmatprep.subr.bf16.mxu0 %v2149
    %2472 = vmatpush2.bf16.msra.mxu0 %v2148
    %2473 = vmatprep.subr.bf16.mxu0 %v2141
    %2474 = vmatpush2.bf16.msra.mxu0 %v2140
    %2475 = vmatprep.subr.bf16.mxu0 %v2133
    %2476 = vmatpush2.bf16.msra.mxu0 %v2132
    %2477 = vmatprep.subr.bf16.mxu0 %v2125
    %2478 = vmatpush2.bf16.msra.mxu0 %v2124
    %2479 = vmatprep.subr.bf16.mxu0 %v2117
    %2480 = vmatpush2.bf16.msra.mxu0 %v2116
    %2481 = vmatprep.subr.bf16.mxu0 %v2109
    %2482 = vmatpush2.bf16.msra.mxu0 %v2108
    %2483 = vmatprep.subr.bf16.mxu0 %v2101
    %2484 = vmatpush2.bf16.msra.mxu0 %v2100
    %2485 = vmatprep.subr.bf16.mxu0 %v2093
    %2486 = vmatpush2.bf16.msra.mxu0 %v2092
    %2487 = vmatprep.mubr.bf16.mxu0 %v875
    %2488 = vmatmul.mubr.bf16.gmra.mxu0 %v874
    %v2489 = vpop.f32.mrf.mxu0
    %v2490 = vadd.f32 %v2447, %v2489
    %v2491 = vpop.f32.mrf.mxu0
    %v2492 = vadd.f32 %v2449, %v2491
    %v2493 = vpop.f32.mrf.mxu0
    %v2494 = vadd.f32 %v2451, %v2493
    %v2495 = vpop.f32.mrf.mxu0
    %v2496 = vadd.f32 %v2453, %v2495
    %2497 = vdwg.mxu0
    %2498 = vmatprep.subr.bf16.mxu0 %v1959
    %2499 = vmatpush1.bf16.msra.mxu0 %v1958
    %2500 = vmatprep.subr.bf16.mxu0 %v1951
    %2501 = vmatpush1.bf16.msra.mxu0 %v1950
    %2502 = vmatprep.subr.bf16.mxu0 %v1943
    %2503 = vmatpush1.bf16.msra.mxu0 %v1942
    %2504 = vmatprep.subr.bf16.mxu0 %v1935
    %2505 = vmatpush1.bf16.msra.mxu0 %v1934
    %2506 = vmatprep.subr.bf16.mxu0 %v1927
    %2507 = vmatpush1.bf16.msra.mxu0 %v1926
    %2508 = vmatprep.subr.bf16.mxu0 %v1919
    %2509 = vmatpush1.bf16.msra.mxu0 %v1918
    %2510 = vmatprep.subr.bf16.mxu0 %v1911
    %2511 = vmatpush1.bf16.msra.mxu0 %v1910
    %2512 = vmatprep.subr.bf16.mxu0 %v1903
    %2513 = vmatpush1.bf16.msra.mxu0 %v1902
    %2514 = vmatprep.subr.bf16.mxu0 %v2023
    %2515 = vmatpush2.bf16.msra.mxu0 %v2022
    %2516 = vmatprep.subr.bf16.mxu0 %v2015
    %2517 = vmatpush2.bf16.msra.mxu0 %v2014
    %2518 = vmatprep.subr.bf16.mxu0 %v2007
    %2519 = vmatpush2.bf16.msra.mxu0 %v2006
    %2520 = vmatprep.subr.bf16.mxu0 %v1999
    %2521 = vmatpush2.bf16.msra.mxu0 %v1998
    %2522 = vmatprep.subr.bf16.mxu0 %v1991
    %2523 = vmatpush2.bf16.msra.mxu0 %v1990
    %2524 = vmatprep.subr.bf16.mxu0 %v1983
    %2525 = vmatpush2.bf16.msra.mxu0 %v1982
    %2526 = vmatprep.subr.bf16.mxu0 %v1975
    %2527 = vmatpush2.bf16.msra.mxu0 %v1974
    %2528 = vmatprep.subr.bf16.mxu0 %v1967
    %2529 = vmatpush2.bf16.msra.mxu0 %v1966
    %2530 = vmatprep.mubr.bf16.mxu0 %v873
    %2531 = vmatmul.mubr.bf16.gmra.mxu0 %v872
    %v2532 = vpop.f32.mrf.mxu0
    %v2533 = vadd.f32 0.0, %v2532
    %v2534 = vpop.f32.mrf.mxu0
    %v2535 = vadd.f32 0.0, %v2534
    %v2536 = vpop.f32.mrf.mxu0
    %v2537 = vadd.f32 0.0, %v2536
    %v2538 = vpop.f32.mrf.mxu0
    %v2539 = vadd.f32 0.0, %v2538
    %2540 = vdwg.mxu0
    %2541 = vmatprep.subr.bf16.mxu0 %v2087
    %2542 = vmatpush1.bf16.msra.mxu0 %v2086
    %2543 = vmatprep.subr.bf16.mxu0 %v2079
    %2544 = vmatpush1.bf16.msra.mxu0 %v2078
    %2545 = vmatprep.subr.bf16.mxu0 %v2071
    %2546 = vmatpush1.bf16.msra.mxu0 %v2070
    %2547 = vmatprep.subr.bf16.mxu0 %v2063
    %2548 = vmatpush1.bf16.msra.mxu0 %v2062
    %2549 = vmatprep.subr.bf16.mxu0 %v2055
    %2550 = vmatpush1.bf16.msra.mxu0 %v2054
    %2551 = vmatprep.subr.bf16.mxu0 %v2047
    %2552 = vmatpush1.bf16.msra.mxu0 %v2046
    %2553 = vmatprep.subr.bf16.mxu0 %v2039
    %2554 = vmatpush1.bf16.msra.mxu0 %v2038
    %2555 = vmatprep.subr.bf16.mxu0 %v2031
    %2556 = vmatpush1.bf16.msra.mxu0 %v2030
    %2557 = vmatprep.subr.bf16.mxu0 %v2151
    %2558 = vmatpush2.bf16.msra.mxu0 %v2150
    %2559 = vmatprep.subr.bf16.mxu0 %v2143
    %2560 = vmatpush2.bf16.msra.mxu0 %v2142
    %2561 = vmatprep.subr.bf16.mxu0 %v2135
    %2562 = vmatpush2.bf16.msra.mxu0 %v2134
    %2563 = vmatprep.subr.bf16.mxu0 %v2127
    %2564 = vmatpush2.bf16.msra.mxu0 %v2126
    %2565 = vmatprep.subr.bf16.mxu0 %v2119
    %2566 = vmatpush2.bf16.msra.mxu0 %v2118
    %2567 = vmatprep.subr.bf16.mxu0 %v2111
    %2568 = vmatpush2.bf16.msra.mxu0 %v2110
    %2569 = vmatprep.subr.bf16.mxu0 %v2103
    %2570 = vmatpush2.bf16.msra.mxu0 %v2102
    %2571 = vmatprep.subr.bf16.mxu0 %v2095
    %2572 = vmatpush2.bf16.msra.mxu0 %v2094
    %2573 = vmatprep.mubr.bf16.mxu0 %v875
    %2574 = vmatmul.mubr.bf16.gmra.mxu0 %v874
    %v2575 = vpop.f32.mrf.mxu0
    %v2576 = vadd.f32 %v2533, %v2575
    %v2577 = vpop.f32.mrf.mxu0
    %v2578 = vadd.f32 %v2535, %v2577
    %v2579 = vpop.f32.mrf.mxu0
    %v2580 = vadd.f32 %v2537, %v2579
    %v2581 = vpop.f32.mrf.mxu0
    %v2582 = vadd.f32 %v2539, %v2581
    %2583 = vdwg.mxu0
    %2584 = vmatprep.subr.bf16.mxu0 %v1961
    %2585 = vmatpush1.bf16.msra.mxu0 %v1960
    %2586 = vmatprep.subr.bf16.mxu0 %v1953
    %2587 = vmatpush1.bf16.msra.mxu0 %v1952
    %2588 = vmatprep.subr.bf16.mxu0 %v1945
    %2589 = vmatpush1.bf16.msra.mxu0 %v1944
    %2590 = vmatprep.subr.bf16.mxu0 %v1937
    %2591 = vmatpush1.bf16.msra.mxu0 %v1936
    %2592 = vmatprep.subr.bf16.mxu0 %v1929
    %2593 = vmatpush1.bf16.msra.mxu0 %v1928
    %2594 = vmatprep.subr.bf16.mxu0 %v1921
    %2595 = vmatpush1.bf16.msra.mxu0 %v1920
    %2596 = vmatprep.subr.bf16.mxu0 %v1913
    %2597 = vmatpush1.bf16.msra.mxu0 %v1912
    %2598 = vmatprep.subr.bf16.mxu0 %v1905
    %2599 = vmatpush1.bf16.msra.mxu0 %v1904
    %2600 = vmatprep.subr.bf16.mxu0 %v2025
    %2601 = vmatpush2.bf16.msra.mxu0 %v2024
    %2602 = vmatprep.subr.bf16.mxu0 %v2017
    %2603 = vmatpush2.bf16.msra.mxu0 %v2016
    %2604 = vmatprep.subr.bf16.mxu0 %v2009
    %2605 = vmatpush2.bf16.msra.mxu0 %v2008
    %2606 = vmatprep.subr.bf16.mxu0 %v2001
    %2607 = vmatpush2.bf16.msra.mxu0 %v2000
    %2608 = vmatprep.subr.bf16.mxu0 %v1993
    %2609 = vmatpush2.bf16.msra.mxu0 %v1992
    %2610 = vmatprep.subr.bf16.mxu0 %v1985
    %2611 = vmatpush2.bf16.msra.mxu0 %v1984
    %2612 = vmatprep.subr.bf16.mxu0 %v1977
    %2613 = vmatpush2.bf16.msra.mxu0 %v1976
    %2614 = vmatprep.subr.bf16.mxu0 %v1969
    %2615 = vmatpush2.bf16.msra.mxu0 %v1968
    %2616 = vmatprep.mubr.bf16.mxu0 %v873
    %2617 = vmatmul.mubr.bf16.gmra.mxu0 %v872
    %v2618 = vpop.f32.mrf.mxu0
    %v2619 = vadd.f32 0.0, %v2618
    %v2620 = vpop.f32.mrf.mxu0
    %v2621 = vadd.f32 0.0, %v2620
    %v2622 = vpop.f32.mrf.mxu0
    %v2623 = vadd.f32 0.0, %v2622
    %v2624 = vpop.f32.mrf.mxu0
    %v2625 = vadd.f32 0.0, %v2624
    %2626 = vdwg.mxu0
    %2627 = vmatprep.subr.bf16.mxu0 %v2089
    %2628 = vmatpush1.bf16.msra.mxu0 %v2088
    %2629 = vmatprep.subr.bf16.mxu0 %v2081
    %2630 = vmatpush1.bf16.msra.mxu0 %v2080
    %2631 = vmatprep.subr.bf16.mxu0 %v2073
    %2632 = vmatpush1.bf16.msra.mxu0 %v2072
    %2633 = vmatprep.subr.bf16.mxu0 %v2065
    %2634 = vmatpush1.bf16.msra.mxu0 %v2064
    %2635 = vmatprep.subr.bf16.mxu0 %v2057
    %2636 = vmatpush1.bf16.msra.mxu0 %v2056
    %2637 = vmatprep.subr.bf16.mxu0 %v2049
    %2638 = vmatpush1.bf16.msra.mxu0 %v2048
    %2639 = vmatprep.subr.bf16.mxu0 %v2041
    %2640 = vmatpush1.bf16.msra.mxu0 %v2040
    %2641 = vmatprep.subr.bf16.mxu0 %v2033
    %2642 = vmatpush1.bf16.msra.mxu0 %v2032
    %2643 = vmatprep.subr.bf16.mxu0 %v2153
    %2644 = vmatpush2.bf16.msra.mxu0 %v2152
    %2645 = vmatprep.subr.bf16.mxu0 %v2145
    %2646 = vmatpush2.bf16.msra.mxu0 %v2144
    %2647 = vmatprep.subr.bf16.mxu0 %v2137
    %2648 = vmatpush2.bf16.msra.mxu0 %v2136
    %2649 = vmatprep.subr.bf16.mxu0 %v2129
    %2650 = vmatpush2.bf16.msra.mxu0 %v2128
    %2651 = vmatprep.subr.bf16.mxu0 %v2121
    %2652 = vmatpush2.bf16.msra.mxu0 %v2120
    %2653 = vmatprep.subr.bf16.mxu0 %v2113
    %2654 = vmatpush2.bf16.msra.mxu0 %v2112
    %2655 = vmatprep.subr.bf16.mxu0 %v2105
    %2656 = vmatpush2.bf16.msra.mxu0 %v2104
    %2657 = vmatprep.subr.bf16.mxu0 %v2097
    %2658 = vmatpush2.bf16.msra.mxu0 %v2096
    %2659 = vmatprep.mubr.bf16.mxu0 %v875
    %2660 = vmatmul.mubr.bf16.gmra.mxu0 %v874
    %v2661 = vpop.f32.mrf.mxu0
    %v2662 = vadd.f32 %v2619, %v2661
    %v2663 = vpop.f32.mrf.mxu0
    %v2664 = vadd.f32 %v2621, %v2663
    %v2665 = vpop.f32.mrf.mxu0
    %v2666 = vadd.f32 %v2623, %v2665
    %v2667 = vpop.f32.mrf.mxu0
    %v2668 = vadd.f32 %v2625, %v2667
    %2669 = vdwg.mxu0
    %2670 = vmatprep.subr.bf16.mxu0 %v1963
    %2671 = vmatpush1.bf16.msra.mxu0 %v1962
    %2672 = vmatprep.subr.bf16.mxu0 %v1955
    %2673 = vmatpush1.bf16.msra.mxu0 %v1954
    %2674 = vmatprep.subr.bf16.mxu0 %v1947
    %2675 = vmatpush1.bf16.msra.mxu0 %v1946
    %2676 = vmatprep.subr.bf16.mxu0 %v1939
    %2677 = vmatpush1.bf16.msra.mxu0 %v1938
    %2678 = vmatprep.subr.bf16.mxu0 %v1931
    %2679 = vmatpush1.bf16.msra.mxu0 %v1930
    %2680 = vmatprep.subr.bf16.mxu0 %v1923
    %2681 = vmatpush1.bf16.msra.mxu0 %v1922
    %2682 = vmatprep.subr.bf16.mxu0 %v1915
    %2683 = vmatpush1.bf16.msra.mxu0 %v1914
    %2684 = vmatprep.subr.bf16.mxu0 %v1907
    %2685 = vmatpush1.bf16.msra.mxu0 %v1906
    %2686 = vmatprep.subr.bf16.mxu0 %v2027
    %2687 = vmatpush2.bf16.msra.mxu0 %v2026
    %2688 = vmatprep.subr.bf16.mxu0 %v2019
    %2689 = vmatpush2.bf16.msra.mxu0 %v2018
    %2690 = vmatprep.subr.bf16.mxu0 %v2011
    %2691 = vmatpush2.bf16.msra.mxu0 %v2010
    %2692 = vmatprep.subr.bf16.mxu0 %v2003
    %2693 = vmatpush2.bf16.msra.mxu0 %v2002
    %2694 = vmatprep.subr.bf16.mxu0 %v1995
    %2695 = vmatpush2.bf16.msra.mxu0 %v1994
    %2696 = vmatprep.subr.bf16.mxu0 %v1987
    %2697 = vmatpush2.bf16.msra.mxu0 %v1986
    %2698 = vmatprep.subr.bf16.mxu0 %v1979
    %2699 = vmatpush2.bf16.msra.mxu0 %v1978
    %2700 = vmatprep.subr.bf16.mxu0 %v1971
    %2701 = vmatpush2.bf16.msra.mxu0 %v1970
    %2702 = vmatprep.mubr.bf16.mxu0 %v873
    %2703 = vmatmul.mubr.bf16.gmra.mxu0 %v872
    %v2704 = vpop.f32.mrf.mxu0
    %v2705 = vadd.f32 0.0, %v2704
    %v2706 = vpop.f32.mrf.mxu0
    %v2707 = vadd.f32 0.0, %v2706
    %v2708 = vpop.f32.mrf.mxu0
    %v2709 = vadd.f32 0.0, %v2708
    %v2710 = vpop.f32.mrf.mxu0
    %v2711 = vadd.f32 0.0, %v2710
    %2712 = vdwg.mxu0
    %2713 = vmatprep.subr.bf16.mxu0 %v2091
    %2714 = vmatpush1.bf16.msra.mxu0 %v2090
    %2715 = vmatprep.subr.bf16.mxu0 %v2083
    %2716 = vmatpush1.bf16.msra.mxu0 %v2082
    %2717 = vmatprep.subr.bf16.mxu0 %v2075
    %2718 = vmatpush1.bf16.msra.mxu0 %v2074
    %2719 = vmatprep.subr.bf16.mxu0 %v2067
    %2720 = vmatpush1.bf16.msra.mxu0 %v2066
    %2721 = vmatprep.subr.bf16.mxu0 %v2059
    %2722 = vmatpush1.bf16.msra.mxu0 %v2058
    %2723 = vmatprep.subr.bf16.mxu0 %v2051
    %2724 = vmatpush1.bf16.msra.mxu0 %v2050
    %2725 = vmatprep.subr.bf16.mxu0 %v2043
    %2726 = vmatpush1.bf16.msra.mxu0 %v2042
    %2727 = vmatprep.subr.bf16.mxu0 %v2035
    %2728 = vmatpush1.bf16.msra.mxu0 %v2034
    %2729 = vmatprep.subr.bf16.mxu0 %v2155
    %2730 = vmatpush2.bf16.msra.mxu0 %v2154
    %2731 = vmatprep.subr.bf16.mxu0 %v2147
    %2732 = vmatpush2.bf16.msra.mxu0 %v2146
    %2733 = vmatprep.subr.bf16.mxu0 %v2139
    %2734 = vmatpush2.bf16.msra.mxu0 %v2138
    %2735 = vmatprep.subr.bf16.mxu0 %v2131
    %2736 = vmatpush2.bf16.msra.mxu0 %v2130
    %2737 = vmatprep.subr.bf16.mxu0 %v2123
    %2738 = vmatpush2.bf16.msra.mxu0 %v2122
    %2739 = vmatprep.subr.bf16.mxu0 %v2115
    %2740 = vmatpush2.bf16.msra.mxu0 %v2114
    %2741 = vmatprep.subr.bf16.mxu0 %v2107
    %2742 = vmatpush2.bf16.msra.mxu0 %v2106
    %2743 = vmatprep.subr.bf16.mxu0 %v2099
    %2744 = vmatpush2.bf16.msra.mxu0 %v2098
    %2745 = vmatprep.mubr.bf16.mxu0 %v875
    %2746 = vmatmul.mubr.bf16.gmra.mxu0 %v874
    %v2747 = vpop.f32.mrf.mxu0
    %v2748 = vadd.f32 %v2705, %v2747
    %v2749 = vpop.f32.mrf.mxu0
    %v2750 = vadd.f32 %v2707, %v2749
    %v2751 = vpop.f32.mrf.mxu0
    %v2752 = vadd.f32 %v2709, %v2751
    %v2753 = vpop.f32.mrf.mxu0
    %v2754 = vadd.f32 %v2711, %v2753
    %2755 = vdwg.mxu0
    %v2756 = vpack.c.bf16 %v2494, %v2490
    %v2757 = vpack.c.bf16 %v2496, %v2492
    %v2758 = vpack.c.bf16 %v2580, %v2576
    %v2759 = vpack.c.bf16 %v2582, %v2578
    %v2760 = vpack.c.bf16 %v2666, %v2662
    %v2761 = vpack.c.bf16 %v2668, %v2664
    %v2762 = vpack.c.bf16 %v2752, %v2748
    %v2763 = vpack.c.bf16 %v2754, %v2750
    %v2764 = vld [vmem:[#allocation13] sm:$0xff]
    %v2766 = vcombine.high %v2764, %v2764
    %v2768 = vunpack.c.l.s4 1966171168
    %v2769 = vunpack.c.0.s8 %v2768
    %v2770 = vlaneseq
    %v2771 = vshrl.u32 %v2770, 7
    %v2772 = vsub.s32 %v2769, %v2771
    %v2773 = vrot.slane %v2764, %v2772
    %v2775 = vunpack.c.l.s4 1966171168
    %v2776 = vunpack.c.0.s8 %v2775
    %v2777 = vlaneseq
    %v2778 = vshrl.u32 %v2777, 7
    %v2779 = vsub.s32 %v2776, %v2778
    %v2780 = vrot.slane %v2766, %v2779
    %v2781 = vcombine.high %v2773, %v2773
    %v2782 = vcombine.high %v2780, %v2780
    %v2784 = vunpack.c.l.s4 1966171168
    %v2785 = vunpack.c.0.s8 %v2784
    %v2786 = vlaneseq
    %v2787 = vshrl.u32 %v2786, 7
    %v2788 = vsub.s32 %v2785, %v2787
    %v2789 = vrot.slane %v2773, %v2788
    %v2791 = vunpack.c.l.s4 1966171168
    %v2792 = vunpack.c.0.s8 %v2791
    %v2793 = vlaneseq
    %v2794 = vshrl.u32 %v2793, 7
    %v2795 = vsub.s32 %v2792, %v2794
    %v2796 = vrot.slane %v2780, %v2795
    %v2798 = vunpack.c.l.s4 1966171168
    %v2799 = vunpack.c.0.s8 %v2798
    %v2800 = vlaneseq
    %v2801 = vshrl.u32 %v2800, 7
    %v2802 = vsub.s32 %v2799, %v2801
    %v2803 = vrot.slane %v2781, %v2802
    %v2805 = vunpack.c.l.s4 1966171168
    %v2806 = vunpack.c.0.s8 %v2805
    %v2807 = vlaneseq
    %v2808 = vshrl.u32 %v2807, 7
    %v2809 = vsub.s32 %v2806, %v2808
    %v2810 = vrot.slane %v2782, %v2809
    %v2811 = vcombine.high %v2789, %v2789
    %v2812 = vcombine.high %v2796, %v2796
    %v2813 = vcombine.high %v2803, %v2803
    %v2814 = vcombine.high %v2810, %v2810
    %v2816 = vpack.i.b16 %v2789, %v2789
    %v2818 = vlaneseq
    %v2819 = vshrl.u32 %v2818, 7
    %v2820 = vsub.s32 0, %v2819
    %v2821 = vrot.slane %v2816, %v2820
    %v2823 = vpack.i.b16 %v2803, %v2803
    %v2825 = vlaneseq
    %v2826 = vshrl.u32 %v2825, 7
    %v2827 = vsub.s32 0, %v2826
    %v2828 = vrot.slane %v2823, %v2827
    %v2830 = vpack.i.b16 %v2811, %v2811
    %v2832 = vlaneseq
    %v2833 = vshrl.u32 %v2832, 7
    %v2834 = vsub.s32 0, %v2833
    %v2835 = vrot.slane %v2830, %v2834
    %v2837 = vpack.i.b16 %v2813, %v2813
    %v2839 = vlaneseq
    %v2840 = vshrl.u32 %v2839, 7
    %v2841 = vsub.s32 0, %v2840
    %v2842 = vrot.slane %v2837, %v2841
    %v2844 = vpack.i.b16 %v2796, %v2796
    %v2846 = vlaneseq
    %v2847 = vshrl.u32 %v2846, 7
    %v2848 = vsub.s32 0, %v2847
    %v2849 = vrot.slane %v2844, %v2848
    %v2851 = vpack.i.b16 %v2810, %v2810
    %v2853 = vlaneseq
    %v2854 = vshrl.u32 %v2853, 7
    %v2855 = vsub.s32 0, %v2854
    %v2856 = vrot.slane %v2851, %v2855
    %v2858 = vpack.i.b16 %v2812, %v2812
    %v2860 = vlaneseq
    %v2861 = vshrl.u32 %v2860, 7
    %v2862 = vsub.s32 0, %v2861
    %v2863 = vrot.slane %v2858, %v2862
    %v2865 = vpack.i.b16 %v2814, %v2814
    %v2867 = vlaneseq
    %v2868 = vshrl.u32 %v2867, 7
    %v2869 = vsub.s32 0, %v2868
    %v2870 = vrot.slane %v2865, %v2869
    %v2871 = vadd.bf16 %v2756, %v2821
    %v2872 = vadd.bf16 %v2757, %v2828
    %v2873 = vadd.bf16 %v2758, %v2835
    %v2874 = vadd.bf16 %v2759, %v2842
    %v2875 = vadd.bf16 %v2760, %v2849
    %v2876 = vadd.bf16 %v2761, %v2856
    %v2877 = vadd.bf16 %v2762, %v2863
    %v2878 = vadd.bf16 %v2763, %v2870
    %vm2879 = vcmp.gt.bf16.partialorder %v2871, 0
    %vm2880 = vcmp.gt.bf16.partialorder %v2872, 0
    %vm2881 = vcmp.gt.bf16.partialorder %v2873, 0
    %vm2882 = vcmp.gt.bf16.partialorder %v2874, 0
    %vm2883 = vcmp.gt.bf16.partialorder %v2875, 0
    %vm2884 = vcmp.gt.bf16.partialorder %v2876, 0
    %vm2885 = vcmp.gt.bf16.partialorder %v2877, 0
    %vm2886 = vcmp.gt.bf16.partialorder %v2878, 0
    %v2887 = vmul.bf16 %v2871, 1045249613
    %v2888 = vmul.bf16 %v2872, 1045249613
    %v2889 = vmul.bf16 %v2873, 1045249613
    %v2890 = vmul.bf16 %v2874, 1045249613
    %v2891 = vmul.bf16 %v2875, 1045249613
    %v2892 = vmul.bf16 %v2876, 1045249613
    %v2893 = vmul.bf16 %v2877, 1045249613
    %v2894 = vmul.bf16 %v2878, 1045249613
    %v2895 = vsel %vm2879, %v2871, %v2887
    %v2896 = vsel %vm2880, %v2872, %v2888
    %v2897 = vsel %vm2881, %v2873, %v2889
    %v2898 = vsel %vm2882, %v2874, %v2890
    %v2899 = vsel %vm2883, %v2875, %v2891
    %v2900 = vsel %vm2884, %v2876, %v2892
    %v2901 = vsel %vm2885, %v2877, %v2893
    %v2902 = vsel %vm2886, %v2878, %v2894
    %v2903 = vld [vmem:[#allocation14] sm:$0xff]
    %v2904 = vld [vmem:[#allocation14 + $0x8] sm:$0xff]
    %v2905 = vld [vmem:[#allocation14 + $0x10] sm:$0xff]
    %v2906 = vld [vmem:[#allocation14 + $0x18] sm:$0xf]
    %v2907 = vld [vmem:[#allocation14 + $0x1c] sm:$0xff]
    %v2908 = vld [vmem:[#allocation14 + $0x24] sm:$0xff]
    %v2909 = vld [vmem:[#allocation14 + $0x2c] sm:$0xff]
    %v2910 = vld [vmem:[#allocation14 + $0x34] sm:$0xf]
    %v2911 = vld [vmem:[#allocation14 + $0x38] sm:$0xff]
    %v2912 = vld [vmem:[#allocation14 + $0x40] sm:$0xff]
    %v2913 = vld [vmem:[#allocation14 + $0x48] sm:$0xff]
    %v2914 = vld [vmem:[#allocation14 + $0x50] sm:$0xf]
    %v2915 = vld [vmem:[#allocation14 + $0x54] sm:$0xff]
    %v2916 = vld [vmem:[#allocation14 + $0x5c] sm:$0xff]
    %v2917 = vld [vmem:[#allocation14 + $0x64] sm:$0xff]
    %v2918 = vld [vmem:[#allocation14 + $0x6c] sm:$0xf]
    %v2919 = vld [vmem:[#allocation14 + $0x70] sm:$0xff]
    %v2920 = vld [vmem:[#allocation14 + $0x78] sm:$0xff]
    %v2921 = vld [vmem:[#allocation14 + $0x80] sm:$0xff]
    %v2922 = vld [vmem:[#allocation14 + $0x88] sm:$0xf]
    %v2923 = vld [vmem:[#allocation14 + $0x8c] sm:$0xff]
    %v2924 = vld [vmem:[#allocation14 + $0x94] sm:$0xff]
    %v2925 = vld [vmem:[#allocation14 + $0x9c] sm:$0xff]
    %v2926 = vld [vmem:[#allocation14 + $0xa4] sm:$0xf]
    %v2927 = vld [vmem:[#allocation14 + $0xa8] sm:$0xff]
    %v2928 = vld [vmem:[#allocation14 + $0xb0] sm:$0xff]
    %v2929 = vld [vmem:[#allocation14 + $0xb8] sm:$0xff]
    %v2930 = vld [vmem:[#allocation14 + $0xc0] sm:$0xf]
    %v2931 = vld [vmem:[#allocation14 + $0xc4] sm:$0xff]
    %v2932 = vld [vmem:[#allocation14 + $0xcc] sm:$0xff]
    %v2933 = vld [vmem:[#allocation14 + $0xd4] sm:$0xff]
    %v2934 = vld [vmem:[#allocation14 + $0xdc] sm:$0xf]
    %v2935 = vld [vmem:[#allocation14 + $0xe0] sm:$0xff]
    %v2936 = vld [vmem:[#allocation14 + $0xe8] sm:$0xff]
    %v2937 = vld [vmem:[#allocation14 + $0xf0] sm:$0xff]
    %v2938 = vld [vmem:[#allocation14 + $0xf8] sm:$0xf]
    %v2939 = vld [vmem:[#allocation14 + $0xfc] sm:$0xff]
    %v2940 = vld [vmem:[#allocation14 + $0x104] sm:$0xff]
    %v2941 = vld [vmem:[#allocation14 + $0x10c] sm:$0xff]
    %v2942 = vld [vmem:[#allocation14 + $0x114] sm:$0xf]
    %v2943 = vld [vmem:[#allocation14 + $0x118] sm:$0xff]
    %v2944 = vld [vmem:[#allocation14 + $0x120] sm:$0xff]
    %v2945 = vld [vmem:[#allocation14 + $0x128] sm:$0xff]
    %v2946 = vld [vmem:[#allocation14 + $0x130] sm:$0xf]
    %v2947 = vld [vmem:[#allocation14 + $0x134] sm:$0xff]
    %v2948 = vld [vmem:[#allocation14 + $0x13c] sm:$0xff]
    %v2949 = vld [vmem:[#allocation14 + $0x144] sm:$0xff]
    %v2950 = vld [vmem:[#allocation14 + $0x14c] sm:$0xf]
    %v2951 = vld [vmem:[#allocation14 + $0x150] sm:$0xff]
    %v2952 = vld [vmem:[#allocation14 + $0x158] sm:$0xff]
    %v2953 = vld [vmem:[#allocation14 + $0x160] sm:$0xff]
    %v2954 = vld [vmem:[#allocation14 + $0x168] sm:$0xf]
    %v2955 = vld [vmem:[#allocation14 + $0x16c] sm:$0xff]
    %v2956 = vld [vmem:[#allocation14 + $0x174] sm:$0xff]
    %v2957 = vld [vmem:[#allocation14 + $0x17c] sm:$0xff]
    %v2958 = vld [vmem:[#allocation14 + $0x184] sm:$0xf]
    %v2959 = vld [vmem:[#allocation14 + $0x188] sm:$0xff]
    %v2960 = vld [vmem:[#allocation14 + $0x190] sm:$0xff]
    %v2961 = vld [vmem:[#allocation14 + $0x198] sm:$0xff]
    %v2962 = vld [vmem:[#allocation14 + $0x1a0] sm:$0xf]
    %v2963 = vld [vmem:[#allocation14 + $0x1a4] sm:$0xff]
    %v2964 = vld [vmem:[#allocation14 + $0x1ac] sm:$0xff]
    %v2965 = vld [vmem:[#allocation14 + $0x1b4] sm:$0xff]
    %v2966 = vld [vmem:[#allocation14 + $0x1bc] sm:$0xf]
    %v2967 = vld [vmem:[#allocation14 + $0x1c0] sm:$0xff]
    %v2968 = vld [vmem:[#allocation14 + $0x1c8] sm:$0xff]
    %v2969 = vld [vmem:[#allocation14 + $0x1d0] sm:$0xff]
    %v2970 = vld [vmem:[#allocation14 + $0x1d8] sm:$0xf]
    %v2971 = vld [vmem:[#allocation14 + $0x1dc] sm:$0xff]
    %v2972 = vld [vmem:[#allocation14 + $0x1e4] sm:$0xff]
    %v2973 = vld [vmem:[#allocation14 + $0x1ec] sm:$0xff]
    %v2974 = vld [vmem:[#allocation14 + $0x1f4] sm:$0xf]
    %v2975 = vld [vmem:[#allocation14 + $0x1f8] sm:$0xff]
    %v2976 = vld [vmem:[#allocation14 + $0x200] sm:$0xff]
    %v2977 = vld [vmem:[#allocation14 + $0x208] sm:$0xff]
    %v2978 = vld [vmem:[#allocation14 + $0x210] sm:$0xf]
    %v2979 = vld [vmem:[#allocation14 + $0x214] sm:$0xff]
    %v2980 = vld [vmem:[#allocation14 + $0x21c] sm:$0xff]
    %v2981 = vld [vmem:[#allocation14 + $0x224] sm:$0xff]
    %v2982 = vld [vmem:[#allocation14 + $0x22c] sm:$0xf]
    %v2983 = vld [vmem:[#allocation14 + $0x230] sm:$0xff]
    %v2984 = vld [vmem:[#allocation14 + $0x238] sm:$0xff]
    %v2985 = vld [vmem:[#allocation14 + $0x240] sm:$0xff]
    %v2986 = vld [vmem:[#allocation14 + $0x248] sm:$0xf]
    %v2987 = vld [vmem:[#allocation14 + $0x24c] sm:$0xff]
    %v2988 = vld [vmem:[#allocation14 + $0x254] sm:$0xff]
    %v2989 = vld [vmem:[#allocation14 + $0x25c] sm:$0xff]
    %v2990 = vld [vmem:[#allocation14 + $0x264] sm:$0xf]
    %v2991 = vld [vmem:[#allocation14 + $0x268] sm:$0xff]
    %v2992 = vld [vmem:[#allocation14 + $0x270] sm:$0xff]
    %v2993 = vld [vmem:[#allocation14 + $0x278] sm:$0xff]
    %v2994 = vld [vmem:[#allocation14 + $0x280] sm:$0xf]
    %v2995 = vld [vmem:[#allocation14 + $0x284] sm:$0xff]
    %v2996 = vld [vmem:[#allocation14 + $0x28c] sm:$0xff]
    %v2997 = vld [vmem:[#allocation14 + $0x294] sm:$0xff]
    %v2998 = vld [vmem:[#allocation14 + $0x29c] sm:$0xf]
    %v2999 = vld [vmem:[#allocation14 + $0x2a0] sm:$0xff]
    %v3000 = vld [vmem:[#allocation14 + $0x2a8] sm:$0xff]
    %v3001 = vld [vmem:[#allocation14 + $0x2b0] sm:$0xff]
    %v3002 = vld [vmem:[#allocation14 + $0x2b8] sm:$0xf]
    %v3003 = vld [vmem:[#allocation14 + $0x2bc] sm:$0xff]
    %v3004 = vld [vmem:[#allocation14 + $0x2c4] sm:$0xff]
    %v3005 = vld [vmem:[#allocation14 + $0x2cc] sm:$0xff]
    %v3006 = vld [vmem:[#allocation14 + $0x2d4] sm:$0xf]
    %v3007 = vld [vmem:[#allocation14 + $0x2d8] sm:$0xff]
    %v3008 = vld [vmem:[#allocation14 + $0x2e0] sm:$0xff]
    %v3009 = vld [vmem:[#allocation14 + $0x2e8] sm:$0xff]
    %v3010 = vld [vmem:[#allocation14 + $0x2f0] sm:$0xf]
    %v3011 = vld [vmem:[#allocation14 + $0x2f4] sm:$0xff]
    %v3012 = vld [vmem:[#allocation14 + $0x2fc] sm:$0xff]
    %v3013 = vld [vmem:[#allocation14 + $0x304] sm:$0xff]
    %v3014 = vld [vmem:[#allocation14 + $0x30c] sm:$0xf]
    %v3015 = vld [vmem:[#allocation14 + $0x310] sm:$0xff]
    %v3016 = vld [vmem:[#allocation14 + $0x318] sm:$0xff]
    %v3017 = vld [vmem:[#allocation14 + $0x320] sm:$0xff]
    %v3018 = vld [vmem:[#allocation14 + $0x328] sm:$0xf]
    %v3019 = vld [vmem:[#allocation14 + $0x32c] sm:$0xff]
    %v3020 = vld [vmem:[#allocation14 + $0x334] sm:$0xff]
    %v3021 = vld [vmem:[#allocation14 + $0x33c] sm:$0xff]
    %v3022 = vld [vmem:[#allocation14 + $0x344] sm:$0xf]
    %v3023 = vld [vmem:[#allocation14 + $0x348] sm:$0xff]
    %v3024 = vld [vmem:[#allocation14 + $0x350] sm:$0xff]
    %v3025 = vld [vmem:[#allocation14 + $0x358] sm:$0xff]
    %v3026 = vld [vmem:[#allocation14 + $0x360] sm:$0xf]
    %v3027 = vld [vmem:[#allocation14 + $0x364] sm:$0xff]
    %v3028 = vld [vmem:[#allocation14 + $0x36c] sm:$0xff]
    %v3029 = vld [vmem:[#allocation14 + $0x374] sm:$0xff]
    %v3030 = vld [vmem:[#allocation14 + $0x37c] sm:$0xf]
    %v3031 = vld [vmem:[#allocation14 + $0x380] sm:$0xff]
    %v3032 = vld [vmem:[#allocation14 + $0x388] sm:$0xff]
    %v3033 = vld [vmem:[#allocation14 + $0x390] sm:$0xff]
    %v3034 = vld [vmem:[#allocation14 + $0x398] sm:$0xf]
    %v3035 = vld [vmem:[#allocation14 + $0x39c] sm:$0xff]
    %v3036 = vld [vmem:[#allocation14 + $0x3a4] sm:$0xff]
    %v3037 = vld [vmem:[#allocation14 + $0x3ac] sm:$0xff]
    %v3038 = vld [vmem:[#allocation14 + $0x3b4] sm:$0xf]
    %v3039 = vld [vmem:[#allocation14 + $0x3b8] sm:$0xff]
    %v3040 = vld [vmem:[#allocation14 + $0x3c0] sm:$0xff]
    %v3041 = vld [vmem:[#allocation14 + $0x3c8] sm:$0xff]
    %v3042 = vld [vmem:[#allocation14 + $0x3d0] sm:$0xf]
    %v3043 = vld [vmem:[#allocation14 + $0x3d4] sm:$0xff]
    %v3044 = vld [vmem:[#allocation14 + $0x3dc] sm:$0xff]
    %v3045 = vld [vmem:[#allocation14 + $0x3e4] sm:$0xff]
    %v3046 = vld [vmem:[#allocation14 + $0x3ec] sm:$0xf]
    %v3047 = vld [vmem:[#allocation14 + $0x3f0] sm:$0xff]
    %v3048 = vld [vmem:[#allocation14 + $0x3f8] sm:$0xff]
    %v3049 = vld [vmem:[#allocation14 + $0x400] sm:$0xff]
    %v3050 = vld [vmem:[#allocation14 + $0x408] sm:$0xf]
    %v3051 = vld [vmem:[#allocation14 + $0x40c] sm:$0xff]
    %v3052 = vld [vmem:[#allocation14 + $0x414] sm:$0xff]
    %v3053 = vld [vmem:[#allocation14 + $0x41c] sm:$0xff]
    %v3054 = vld [vmem:[#allocation14 + $0x424] sm:$0xf]
    %v3055 = vld [vmem:[#allocation14 + $0x428] sm:$0xff]
    %v3056 = vld [vmem:[#allocation14 + $0x430] sm:$0xff]
    %v3057 = vld [vmem:[#allocation14 + $0x438] sm:$0xff]
    %v3058 = vld [vmem:[#allocation14 + $0x440] sm:$0xf]
    %v3059 = vld [vmem:[#allocation14 + $0x444] sm:$0xff]
    %v3060 = vld [vmem:[#allocation14 + $0x44c] sm:$0xff]
    %v3061 = vld [vmem:[#allocation14 + $0x454] sm:$0xff]
    %v3062 = vld [vmem:[#allocation14 + $0x45c] sm:$0xf]
    %v3063 = vld [vmem:[#allocation14 + $0x460] sm:$0xff]
    %v3064 = vld [vmem:[#allocation14 + $0x468] sm:$0xff]
    %v3065 = vld [vmem:[#allocation14 + $0x470] sm:$0xff]
    %v3066 = vld [vmem:[#allocation14 + $0x478] sm:$0xf]
    %v3067 = vld [vmem:[#allocation14 + $0x47c] sm:$0xff]
    %v3068 = vld [vmem:[#allocation14 + $0x484] sm:$0xff]
    %v3069 = vld [vmem:[#allocation14 + $0x48c] sm:$0xff]
    %v3070 = vld [vmem:[#allocation14 + $0x494] sm:$0xf]
    %v3071 = vld [vmem:[#allocation14 + $0x498] sm:$0xff]
    %v3072 = vld [vmem:[#allocation14 + $0x4a0] sm:$0xff]
    %v3073 = vld [vmem:[#allocation14 + $0x4a8] sm:$0xff]
    %v3074 = vld [vmem:[#allocation14 + $0x4b0] sm:$0xf]
    %v3075 = vld [vmem:[#allocation14 + $0x4b4] sm:$0xff]
    %v3076 = vld [vmem:[#allocation14 + $0x4bc] sm:$0xff]
    %v3077 = vld [vmem:[#allocation14 + $0x4c4] sm:$0xff]
    %v3078 = vld [vmem:[#allocation14 + $0x4cc] sm:$0xf]
    %v3079 = vld [vmem:[#allocation14 + $0x4d0] sm:$0xff]
    %v3080 = vld [vmem:[#allocation14 + $0x4d8] sm:$0xff]
    %v3081 = vld [vmem:[#allocation14 + $0x4e0] sm:$0xff]
    %v3082 = vld [vmem:[#allocation14 + $0x4e8] sm:$0xf]
    %v3083 = vld [vmem:[#allocation14 + $0x4ec] sm:$0xff]
    %v3084 = vld [vmem:[#allocation14 + $0x4f4] sm:$0xff]
    %v3085 = vld [vmem:[#allocation14 + $0x4fc] sm:$0xff]
    %v3086 = vld [vmem:[#allocation14 + $0x504] sm:$0xf]
    %v3087 = vld [vmem:[#allocation14 + $0x508] sm:$0xff]
    %v3088 = vld [vmem:[#allocation14 + $0x510] sm:$0xff]
    %v3089 = vld [vmem:[#allocation14 + $0x518] sm:$0xff]
    %v3090 = vld [vmem:[#allocation14 + $0x520] sm:$0xf]
    %v3091 = vld [vmem:[#allocation14 + $0x524] sm:$0xff]
    %v3092 = vld [vmem:[#allocation14 + $0x52c] sm:$0xff]
    %v3093 = vld [vmem:[#allocation14 + $0x534] sm:$0xff]
    %v3094 = vld [vmem:[#allocation14 + $0x53c] sm:$0xf]
    %v3095 = vld [vmem:[#allocation14 + $0x540] sm:$0xff]
    %v3096 = vld [vmem:[#allocation14 + $0x548] sm:$0xff]
    %v3097 = vld [vmem:[#allocation14 + $0x550] sm:$0xff]
    %v3098 = vld [vmem:[#allocation14 + $0x558] sm:$0xf]
    %v3099 = vld [vmem:[#allocation14 + $0x55c] sm:$0xff]
    %v3100 = vld [vmem:[#allocation14 + $0x564] sm:$0xff]
    %v3101 = vld [vmem:[#allocation14 + $0x56c] sm:$0xff]
    %v3102 = vld [vmem:[#allocation14 + $0x574] sm:$0xf]
    %v3103 = vld [vmem:[#allocation14 + $0x578] sm:$0xff]
    %v3104 = vld [vmem:[#allocation14 + $0x580] sm:$0xff]
    %v3105 = vld [vmem:[#allocation14 + $0x588] sm:$0xff]
    %v3106 = vld [vmem:[#allocation14 + $0x590] sm:$0xf]
    %v3107 = vld [vmem:[#allocation14 + $0x594] sm:$0xff]
    %v3108 = vld [vmem:[#allocation14 + $0x59c] sm:$0xff]
    %v3109 = vld [vmem:[#allocation14 + $0x5a4] sm:$0xff]
    %v3110 = vld [vmem:[#allocation14 + $0x5ac] sm:$0xf]
    %v3111 = vld [vmem:[#allocation14 + $0x5b0] sm:$0xff]
    %v3112 = vld [vmem:[#allocation14 + $0x5b8] sm:$0xff]
    %v3113 = vld [vmem:[#allocation14 + $0x5c0] sm:$0xff]
    %v3114 = vld [vmem:[#allocation14 + $0x5c8] sm:$0xf]
    %v3115 = vld [vmem:[#allocation14 + $0x5cc] sm:$0xff]
    %v3116 = vld [vmem:[#allocation14 + $0x5d4] sm:$0xff]
    %v3117 = vld [vmem:[#allocation14 + $0x5dc] sm:$0xff]
    %v3118 = vld [vmem:[#allocation14 + $0x5e4] sm:$0xf]
    %v3119 = vld [vmem:[#allocation14 + $0x5e8] sm:$0xff]
    %v3120 = vld [vmem:[#allocation14 + $0x5f0] sm:$0xff]
    %v3121 = vld [vmem:[#allocation14 + $0x5f8] sm:$0xff]
    %v3122 = vld [vmem:[#allocation14 + $0x600] sm:$0xf]
    %v3123 = vld [vmem:[#allocation14 + $0x604] sm:$0xff]
    %v3124 = vld [vmem:[#allocation14 + $0x60c] sm:$0xff]
    %v3125 = vld [vmem:[#allocation14 + $0x614] sm:$0xff]
    %v3126 = vld [vmem:[#allocation14 + $0x61c] sm:$0xf]
    %v3127 = vld [vmem:[#allocation14 + $0x620] sm:$0xff]
    %v3128 = vld [vmem:[#allocation14 + $0x628] sm:$0xff]
    %v3129 = vld [vmem:[#allocation14 + $0x630] sm:$0xff]
    %v3130 = vld [vmem:[#allocation14 + $0x638] sm:$0xf]
    %v3131 = vld [vmem:[#allocation14 + $0x63c] sm:$0xff]
    %v3132 = vld [vmem:[#allocation14 + $0x644] sm:$0xff]
    %v3133 = vld [vmem:[#allocation14 + $0x64c] sm:$0xff]
    %v3134 = vld [vmem:[#allocation14 + $0x654] sm:$0xf]
    %v3135 = vld [vmem:[#allocation14 + $0x658] sm:$0xff]
    %v3136 = vld [vmem:[#allocation14 + $0x660] sm:$0xff]
    %v3137 = vld [vmem:[#allocation14 + $0x668] sm:$0xff]
    %v3138 = vld [vmem:[#allocation14 + $0x670] sm:$0xf]
    %v3139 = vld [vmem:[#allocation14 + $0x674] sm:$0xff]
    %v3140 = vld [vmem:[#allocation14 + $0x67c] sm:$0xff]
    %v3141 = vld [vmem:[#allocation14 + $0x684] sm:$0xff]
    %v3142 = vld [vmem:[#allocation14 + $0x68c] sm:$0xf]
    %v3143 = vld [vmem:[#allocation14 + $0x690] sm:$0xff]
    %v3144 = vld [vmem:[#allocation14 + $0x698] sm:$0xff]
    %v3145 = vld [vmem:[#allocation14 + $0x6a0] sm:$0xff]
    %v3146 = vld [vmem:[#allocation14 + $0x6a8] sm:$0xf]
    %v3147 = vld [vmem:[#allocation14 + $0x6ac] sm:$0xff]
    %v3148 = vld [vmem:[#allocation14 + $0x6b4] sm:$0xff]
    %v3149 = vld [vmem:[#allocation14 + $0x6bc] sm:$0xff]
    %v3150 = vld [vmem:[#allocation14 + $0x6c4] sm:$0xf]
    %v3151 = vld [vmem:[#allocation14 + $0x6c8] sm:$0xff]
    %v3152 = vld [vmem:[#allocation14 + $0x6d0] sm:$0xff]
    %v3153 = vld [vmem:[#allocation14 + $0x6d8] sm:$0xff]
    %v3154 = vld [vmem:[#allocation14 + $0x6e0] sm:$0xf]
    %v3155 = vld [vmem:[#allocation14 + $0x6e4] sm:$0xff]
    %v3156 = vld [vmem:[#allocation14 + $0x6ec] sm:$0xff]
    %v3157 = vld [vmem:[#allocation14 + $0x6f4] sm:$0xff]
    %v3158 = vld [vmem:[#allocation14 + $0x6fc] sm:$0xf]
    %v3159 = vld [vmem:[#allocation14 + $0x700] sm:$0xff]
    %v3160 = vld [vmem:[#allocation14 + $0x708] sm:$0xff]
    %v3161 = vld [vmem:[#allocation14 + $0x710] sm:$0xff]
    %v3162 = vld [vmem:[#allocation14 + $0x718] sm:$0xf]
    %v3163 = vld [vmem:[#allocation14 + $0x71c] sm:$0xff]
    %v3164 = vld [vmem:[#allocation14 + $0x724] sm:$0xff]
    %v3165 = vld [vmem:[#allocation14 + $0x72c] sm:$0xff]
    %v3166 = vld [vmem:[#allocation14 + $0x734] sm:$0xf]
    %v3167 = vld [vmem:[#allocation14 + $0x738] sm:$0xff]
    %v3168 = vld [vmem:[#allocation14 + $0x740] sm:$0xff]
    %v3169 = vld [vmem:[#allocation14 + $0x748] sm:$0xff]
    %v3170 = vld [vmem:[#allocation14 + $0x750] sm:$0xf]
    %v3171 = vld [vmem:[#allocation14 + $0x754] sm:$0xff]
    %v3172 = vld [vmem:[#allocation14 + $0x75c] sm:$0xff]
    %v3173 = vld [vmem:[#allocation14 + $0x764] sm:$0xff]
    %v3174 = vld [vmem:[#allocation14 + $0x76c] sm:$0xf]
    %v3175 = vld [vmem:[#allocation14 + $0x770] sm:$0xff]
    %v3176 = vld [vmem:[#allocation14 + $0x778] sm:$0xff]
    %v3177 = vld [vmem:[#allocation14 + $0x780] sm:$0xff]
    %v3178 = vld [vmem:[#allocation14 + $0x788] sm:$0xf]
    %v3179 = vld [vmem:[#allocation14 + $0x78c] sm:$0xff]
    %v3180 = vld [vmem:[#allocation14 + $0x794] sm:$0xff]
    %v3181 = vld [vmem:[#allocation14 + $0x79c] sm:$0xff]
    %v3182 = vld [vmem:[#allocation14 + $0x7a4] sm:$0xf]
    %v3183 = vld [vmem:[#allocation14 + $0x7a8] sm:$0xff]
    %v3184 = vld [vmem:[#allocation14 + $0x7b0] sm:$0xff]
    %v3185 = vld [vmem:[#allocation14 + $0x7b8] sm:$0xff]
    %v3186 = vld [vmem:[#allocation14 + $0x7c0] sm:$0xf]
    %v3187 = vld [vmem:[#allocation14 + $0x7c4] sm:$0xff]
    %v3188 = vld [vmem:[#allocation14 + $0x7cc] sm:$0xff]
    %v3189 = vld [vmem:[#allocation14 + $0x7d4] sm:$0xff]
    %v3190 = vld [vmem:[#allocation14 + $0x7dc] sm:$0xf]
    %v3191 = vld [vmem:[#allocation14 + $0x7e0] sm:$0xff]
    %v3192 = vld [vmem:[#allocation14 + $0x7e8] sm:$0xff]
    %v3193 = vld [vmem:[#allocation14 + $0x7f0] sm:$0xff]
    %v3194 = vld [vmem:[#allocation14 + $0x7f8] sm:$0xf]
    %v3195 = vld [vmem:[#allocation14 + $0x7fc] sm:$0xff]
    %v3196 = vld [vmem:[#allocation14 + $0x804] sm:$0xff]
    %v3197 = vld [vmem:[#allocation14 + $0x80c] sm:$0xff]
    %v3198 = vld [vmem:[#allocation14 + $0x814] sm:$0xf]
    %v3199 = vld [vmem:[#allocation14 + $0x818] sm:$0xff]
    %v3200 = vld [vmem:[#allocation14 + $0x820] sm:$0xff]
    %v3201 = vld [vmem:[#allocation14 + $0x828] sm:$0xff]
    %v3202 = vld [vmem:[#allocation14 + $0x830] sm:$0xf]
    %v3203 = vld [vmem:[#allocation14 + $0x834] sm:$0xff]
    %v3204 = vld [vmem:[#allocation14 + $0x83c] sm:$0xff]
    %v3205 = vld [vmem:[#allocation14 + $0x844] sm:$0xff]
    %v3206 = vld [vmem:[#allocation14 + $0x84c] sm:$0xf]
    %v3207 = vld [vmem:[#allocation14 + $0x850] sm:$0xff]
    %v3208 = vld [vmem:[#allocation14 + $0x858] sm:$0xff]
    %v3209 = vld [vmem:[#allocation14 + $0x860] sm:$0xff]
    %v3210 = vld [vmem:[#allocation14 + $0x868] sm:$0xf]
    %v3211 = vld [vmem:[#allocation14 + $0x86c] sm:$0xff]
    %v3212 = vld [vmem:[#allocation14 + $0x874] sm:$0xff]
    %v3213 = vld [vmem:[#allocation14 + $0x87c] sm:$0xff]
    %v3214 = vld [vmem:[#allocation14 + $0x884] sm:$0xf]
    %v3215 = vld [vmem:[#allocation14 + $0x888] sm:$0xff]
    %v3216 = vld [vmem:[#allocation14 + $0x890] sm:$0xff]
    %v3217 = vld [vmem:[#allocation14 + $0x898] sm:$0xff]
    %v3218 = vld [vmem:[#allocation14 + $0x8a0] sm:$0xf]
    %v3219 = vld [vmem:[#allocation14 + $0x8a4] sm:$0xff]
    %v3220 = vld [vmem:[#allocation14 + $0x8ac] sm:$0xff]
    %v3221 = vld [vmem:[#allocation14 + $0x8b4] sm:$0xff]
    %v3222 = vld [vmem:[#allocation14 + $0x8bc] sm:$0xf]
    %v3223 = vld [vmem:[#allocation14 + $0x8c0] sm:$0xff]
    %v3224 = vld [vmem:[#allocation14 + $0x8c8] sm:$0xff]
    %v3225 = vld [vmem:[#allocation14 + $0x8d0] sm:$0xff]
    %v3226 = vld [vmem:[#allocation14 + $0x8d8] sm:$0xf]
    %v3227 = vld [vmem:[#allocation14 + $0x8dc] sm:$0xff]
    %v3228 = vld [vmem:[#allocation14 + $0x8e4] sm:$0xff]
    %v3229 = vld [vmem:[#allocation14 + $0x8ec] sm:$0xff]
    %v3230 = vld [vmem:[#allocation14 + $0x8f4] sm:$0xf]
    %v3231 = vld [vmem:[#allocation14 + $0x8f8] sm:$0xff]
    %v3232 = vld [vmem:[#allocation14 + $0x900] sm:$0xff]
    %v3233 = vld [vmem:[#allocation14 + $0x908] sm:$0xff]
    %v3234 = vld [vmem:[#allocation14 + $0x910] sm:$0xf]
    %v3235 = vld [vmem:[#allocation14 + $0x914] sm:$0xff]
    %v3236 = vld [vmem:[#allocation14 + $0x91c] sm:$0xff]
    %v3237 = vld [vmem:[#allocation14 + $0x924] sm:$0xff]
    %v3238 = vld [vmem:[#allocation14 + $0x92c] sm:$0xf]
    %v3239 = vld [vmem:[#allocation14 + $0x930] sm:$0xff]
    %v3240 = vld [vmem:[#allocation14 + $0x938] sm:$0xff]
    %v3241 = vld [vmem:[#allocation14 + $0x940] sm:$0xff]
    %v3242 = vld [vmem:[#allocation14 + $0x948] sm:$0xf]
    %v3243 = vld [vmem:[#allocation14 + $0x94c] sm:$0xff]
    %v3244 = vld [vmem:[#allocation14 + $0x954] sm:$0xff]
    %v3245 = vld [vmem:[#allocation14 + $0x95c] sm:$0xff]
    %v3246 = vld [vmem:[#allocation14 + $0x964] sm:$0xf]
    %v3247 = vld [vmem:[#allocation14 + $0x968] sm:$0xff]
    %v3248 = vld [vmem:[#allocation14 + $0x970] sm:$0xff]
    %v3249 = vld [vmem:[#allocation14 + $0x978] sm:$0xff]
    %v3250 = vld [vmem:[#allocation14 + $0x980] sm:$0xf]
    %v3251 = vld [vmem:[#allocation14 + $0x984] sm:$0xff]
    %v3252 = vld [vmem:[#allocation14 + $0x98c] sm:$0xff]
    %v3253 = vld [vmem:[#allocation14 + $0x994] sm:$0xff]
    %v3254 = vld [vmem:[#allocation14 + $0x99c] sm:$0xf]
    %v3255 = vld [vmem:[#allocation14 + $0x9a0] sm:$0xff]
    %v3256 = vld [vmem:[#allocation14 + $0x9a8] sm:$0xff]
    %v3257 = vld [vmem:[#allocation14 + $0x9b0] sm:$0xff]
    %v3258 = vld [vmem:[#allocation14 + $0x9b8] sm:$0xf]
    %v3259 = vld [vmem:[#allocation14 + $0x9bc] sm:$0xff]
    %v3260 = vld [vmem:[#allocation14 + $0x9c4] sm:$0xff]
    %v3261 = vld [vmem:[#allocation14 + $0x9cc] sm:$0xff]
    %v3262 = vld [vmem:[#allocation14 + $0x9d4] sm:$0xf]
    %v3263 = vld [vmem:[#allocation14 + $0x9d8] sm:$0xff]
    %v3264 = vld [vmem:[#allocation14 + $0x9e0] sm:$0xff]
    %v3265 = vld [vmem:[#allocation14 + $0x9e8] sm:$0xff]
    %v3266 = vld [vmem:[#allocation14 + $0x9f0] sm:$0xf]
    %v3267 = vld [vmem:[#allocation14 + $0x9f4] sm:$0xff]
    %v3268 = vld [vmem:[#allocation14 + $0x9fc] sm:$0xff]
    %v3269 = vld [vmem:[#allocation14 + $0xa04] sm:$0xff]
    %v3270 = vld [vmem:[#allocation14 + $0xa0c] sm:$0xf]
    %v3271 = vld [vmem:[#allocation14 + $0xa10] sm:$0xff]
    %v3272 = vld [vmem:[#allocation14 + $0xa18] sm:$0xff]
    %v3273 = vld [vmem:[#allocation14 + $0xa20] sm:$0xff]
    %v3274 = vld [vmem:[#allocation14 + $0xa28] sm:$0xf]
    %v3275 = vld [vmem:[#allocation14 + $0xa2c] sm:$0xff]
    %v3276 = vld [vmem:[#allocation14 + $0xa34] sm:$0xff]
    %v3277 = vld [vmem:[#allocation14 + $0xa3c] sm:$0xff]
    %v3278 = vld [vmem:[#allocation14 + $0xa44] sm:$0xf]
    %v3279 = vld [vmem:[#allocation14 + $0xa48] sm:$0xff]
    %v3280 = vld [vmem:[#allocation14 + $0xa50] sm:$0xff]
    %v3281 = vld [vmem:[#allocation14 + $0xa58] sm:$0xff]
    %v3282 = vld [vmem:[#allocation14 + $0xa60] sm:$0xf]
    %v3283 = vld [vmem:[#allocation14 + $0xa64] sm:$0xff]
    %v3284 = vld [vmem:[#allocation14 + $0xa6c] sm:$0xff]
    %v3285 = vld [vmem:[#allocation14 + $0xa74] sm:$0xff]
    %v3286 = vld [vmem:[#allocation14 + $0xa7c] sm:$0xf]
    %v3287 = vld [vmem:[#allocation14 + $0xa80] sm:$0xff]
    %v3288 = vld [vmem:[#allocation14 + $0xa88] sm:$0xff]
    %v3289 = vld [vmem:[#allocation14 + $0xa90] sm:$0xff]
    %v3290 = vld [vmem:[#allocation14 + $0xa98] sm:$0xf]
    %v3291 = vld [vmem:[#allocation14 + $0xa9c] sm:$0xff]
    %v3292 = vld [vmem:[#allocation14 + $0xaa4] sm:$0xff]
    %v3293 = vld [vmem:[#allocation14 + $0xaac] sm:$0xff]
    %v3294 = vld [vmem:[#allocation14 + $0xab4] sm:$0xf]
    %v3295 = vld [vmem:[#allocation14 + $0xab8] sm:$0xff]
    %v3296 = vld [vmem:[#allocation14 + $0xac0] sm:$0xff]
    %v3297 = vld [vmem:[#allocation14 + $0xac8] sm:$0xff]
    %v3298 = vld [vmem:[#allocation14 + $0xad0] sm:$0xf]
    %v3299 = vld [vmem:[#allocation14 + $0xad4] sm:$0xff]
    %v3300 = vld [vmem:[#allocation14 + $0xadc] sm:$0xff]
    %v3301 = vld [vmem:[#allocation14 + $0xae4] sm:$0xff]
    %v3302 = vld [vmem:[#allocation14 + $0xaec] sm:$0xf]
    %v3303 = vld [vmem:[#allocation14 + $0xaf0] sm:$0xff]
    %v3304 = vld [vmem:[#allocation14 + $0xaf8] sm:$0xff]
    %v3305 = vld [vmem:[#allocation14 + $0xb00] sm:$0xff]
    %v3306 = vld [vmem:[#allocation14 + $0xb08] sm:$0xf]
    %v3307 = vld [vmem:[#allocation14 + $0xb0c] sm:$0xff]
    %v3308 = vld [vmem:[#allocation14 + $0xb14] sm:$0xff]
    %v3309 = vld [vmem:[#allocation14 + $0xb1c] sm:$0xff]
    %v3310 = vld [vmem:[#allocation14 + $0xb24] sm:$0xf]
    %v3311 = vld [vmem:[#allocation14 + $0xb28] sm:$0xff]
    %v3312 = vld [vmem:[#allocation14 + $0xb30] sm:$0xff]
    %v3313 = vld [vmem:[#allocation14 + $0xb38] sm:$0xff]
    %v3314 = vld [vmem:[#allocation14 + $0xb40] sm:$0xf]
    %v3315 = vld [vmem:[#allocation14 + $0xb44] sm:$0xff]
    %v3316 = vld [vmem:[#allocation14 + $0xb4c] sm:$0xff]
    %v3317 = vld [vmem:[#allocation14 + $0xb54] sm:$0xff]
    %v3318 = vld [vmem:[#allocation14 + $0xb5c] sm:$0xf]
    %v3319 = vld [vmem:[#allocation14 + $0xb60] sm:$0xff]
    %v3320 = vld [vmem:[#allocation14 + $0xb68] sm:$0xff]
    %v3321 = vld [vmem:[#allocation14 + $0xb70] sm:$0xff]
    %v3322 = vld [vmem:[#allocation14 + $0xb78] sm:$0xf]
    %v3323 = vld [vmem:[#allocation14 + $0xb7c] sm:$0xff]
    %v3324 = vld [vmem:[#allocation14 + $0xb84] sm:$0xff]
    %v3325 = vld [vmem:[#allocation14 + $0xb8c] sm:$0xff]
    %v3326 = vld [vmem:[#allocation14 + $0xb94] sm:$0xf]
    %v3327 = vld [vmem:[#allocation14 + $0xb98] sm:$0xff]
    %v3328 = vld [vmem:[#allocation14 + $0xba0] sm:$0xff]
    %v3329 = vld [vmem:[#allocation14 + $0xba8] sm:$0xff]
    %v3330 = vld [vmem:[#allocation14 + $0xbb0] sm:$0xf]
    %v3331 = vld [vmem:[#allocation14 + $0xbb4] sm:$0xff]
    %v3332 = vld [vmem:[#allocation14 + $0xbbc] sm:$0xff]
    %v3333 = vld [vmem:[#allocation14 + $0xbc4] sm:$0xff]
    %v3334 = vld [vmem:[#allocation14 + $0xbcc] sm:$0xf]
    %v3335 = vld [vmem:[#allocation14 + $0xbd0] sm:$0xff]
    %v3336 = vld [vmem:[#allocation14 + $0xbd8] sm:$0xff]
    %v3337 = vld [vmem:[#allocation14 + $0xbe0] sm:$0xff]
    %v3338 = vld [vmem:[#allocation14 + $0xbe8] sm:$0xf]
    %v3339 = vld [vmem:[#allocation14 + $0xbec] sm:$0xff]
    %v3340 = vld [vmem:[#allocation14 + $0xbf4] sm:$0xff]
    %v3341 = vld [vmem:[#allocation14 + $0xbfc] sm:$0xff]
    %v3342 = vld [vmem:[#allocation14 + $0xc04] sm:$0xf]
    %v3343 = vld [vmem:[#allocation14 + $0xc08] sm:$0xff]
    %v3344 = vld [vmem:[#allocation14 + $0xc10] sm:$0xff]
    %v3345 = vld [vmem:[#allocation14 + $0xc18] sm:$0xff]
    %v3346 = vld [vmem:[#allocation14 + $0xc20] sm:$0xf]
    %v3347 = vld [vmem:[#allocation14 + $0xc24] sm:$0xff]
    %v3348 = vld [vmem:[#allocation14 + $0xc2c] sm:$0xff]
    %v3349 = vld [vmem:[#allocation14 + $0xc34] sm:$0xff]
    %v3350 = vld [vmem:[#allocation14 + $0xc3c] sm:$0xf]
    %v3351 = vld [vmem:[#allocation14 + $0xc40] sm:$0xff]
    %v3352 = vld [vmem:[#allocation14 + $0xc48] sm:$0xff]
    %v3353 = vld [vmem:[#allocation14 + $0xc50] sm:$0xff]
    %v3354 = vld [vmem:[#allocation14 + $0xc58] sm:$0xf]
    %v3355 = vld [vmem:[#allocation14 + $0xc5c] sm:$0xff]
    %v3356 = vld [vmem:[#allocation14 + $0xc64] sm:$0xff]
    %v3357 = vld [vmem:[#allocation14 + $0xc6c] sm:$0xff]
    %v3358 = vld [vmem:[#allocation14 + $0xc74] sm:$0xf]
    %v3359 = vld [vmem:[#allocation14 + $0xc78] sm:$0xff]
    %v3360 = vld [vmem:[#allocation14 + $0xc80] sm:$0xff]
    %v3361 = vld [vmem:[#allocation14 + $0xc88] sm:$0xff]
    %v3362 = vld [vmem:[#allocation14 + $0xc90] sm:$0xf]
    %v3363 = vld [vmem:[#allocation14 + $0xc94] sm:$0xff]
    %v3364 = vld [vmem:[#allocation14 + $0xc9c] sm:$0xff]
    %v3365 = vld [vmem:[#allocation14 + $0xca4] sm:$0xff]
    %v3366 = vld [vmem:[#allocation14 + $0xcac] sm:$0xf]
    %v3367 = vld [vmem:[#allocation14 + $0xcb0] sm:$0xff]
    %v3368 = vld [vmem:[#allocation14 + $0xcb8] sm:$0xff]
    %v3369 = vld [vmem:[#allocation14 + $0xcc0] sm:$0xff]
    %v3370 = vld [vmem:[#allocation14 + $0xcc8] sm:$0xf]
    %v3371 = vld [vmem:[#allocation14 + $0xccc] sm:$0xff]
    %v3372 = vld [vmem:[#allocation14 + $0xcd4] sm:$0xff]
    %v3373 = vld [vmem:[#allocation14 + $0xcdc] sm:$0xff]
    %v3374 = vld [vmem:[#allocation14 + $0xce4] sm:$0xf]
    %v3375 = vld [vmem:[#allocation14 + $0xce8] sm:$0xff]
    %v3376 = vld [vmem:[#allocation14 + $0xcf0] sm:$0xff]
    %v3377 = vld [vmem:[#allocation14 + $0xcf8] sm:$0xff]
    %v3378 = vld [vmem:[#allocation14 + $0xd00] sm:$0xf]
    %v3379 = vld [vmem:[#allocation14 + $0xd04] sm:$0xff]
    %v3380 = vld [vmem:[#allocation14 + $0xd0c] sm:$0xff]
    %v3381 = vld [vmem:[#allocation14 + $0xd14] sm:$0xff]
    %v3382 = vld [vmem:[#allocation14 + $0xd1c] sm:$0xf]
    %v3383 = vld [vmem:[#allocation14 + $0xd20] sm:$0xff]
    %v3384 = vld [vmem:[#allocation14 + $0xd28] sm:$0xff]
    %v3385 = vld [vmem:[#allocation14 + $0xd30] sm:$0xff]
    %v3386 = vld [vmem:[#allocation14 + $0xd38] sm:$0xf]
    %v3387 = vld [vmem:[#allocation14 + $0xd3c] sm:$0xff]
    %v3388 = vld [vmem:[#allocation14 + $0xd44] sm:$0xff]
    %v3389 = vld [vmem:[#allocation14 + $0xd4c] sm:$0xff]
    %v3390 = vld [vmem:[#allocation14 + $0xd54] sm:$0xf]
    %v3391 = vld [vmem:[#allocation14 + $0xd58] sm:$0xff]
    %v3392 = vld [vmem:[#allocation14 + $0xd60] sm:$0xff]
    %v3393 = vld [vmem:[#allocation14 + $0xd68] sm:$0xff]
    %v3394 = vld [vmem:[#allocation14 + $0xd70] sm:$0xf]
    %v3395 = vld [vmem:[#allocation14 + $0xd74] sm:$0xff]
    %v3396 = vld [vmem:[#allocation14 + $0xd7c] sm:$0xff]
    %v3397 = vld [vmem:[#allocation14 + $0xd84] sm:$0xff]
    %v3398 = vld [vmem:[#allocation14 + $0xd8c] sm:$0xf]
    %v3399 = vld [vmem:[#allocation14 + $0xd90] sm:$0xff]
    %v3400 = vld [vmem:[#allocation14 + $0xd98] sm:$0xff]
    %v3401 = vld [vmem:[#allocation14 + $0xda0] sm:$0xff]
    %v3402 = vld [vmem:[#allocation14 + $0xda8] sm:$0xf]
    %v3403 = vld [vmem:[#allocation14 + $0xdac] sm:$0xff]
    %v3404 = vld [vmem:[#allocation14 + $0xdb4] sm:$0xff]
    %v3405 = vld [vmem:[#allocation14 + $0xdbc] sm:$0xff]
    %v3406 = vld [vmem:[#allocation14 + $0xdc4] sm:$0xf]
    %v3407 = vld [vmem:[#allocation14 + $0xdc8] sm:$0xff]
    %v3408 = vld [vmem:[#allocation14 + $0xdd0] sm:$0xff]
    %v3409 = vld [vmem:[#allocation14 + $0xdd8] sm:$0xff]
    %v3410 = vld [vmem:[#allocation14 + $0xde0] sm:$0xf]
    %v3411 = vld [vmem:[#allocation14 + $0xde4] sm:$0xff]
    %v3412 = vld [vmem:[#allocation14 + $0xdec] sm:$0xff]
    %v3413 = vld [vmem:[#allocation14 + $0xdf4] sm:$0xff]
    %v3414 = vld [vmem:[#allocation14 + $0xdfc] sm:$0xf]
    %v3415 = vld [vmem:[#allocation16] sm:$0xff]
    %v3417 = vlaneseq
    %v3418 = vshrl.u32 %v3417, 7
    %v3419 = vsub.s32 0, %v3418
    %v3420 = vrot.slane %v3415, %v3419
    %v3421 = vlaneseq
    %v3422 = vshrl.u32 %v3421, 7
    %v3423 = vsub.s32 1, %v3422
    %v3424 = vrot.slane %v3415, %v3423
    %v3425 = vlaneseq
    %v3426 = vshrl.u32 %v3425, 7
    %v3427 = vsub.s32 2, %v3426
    %v3428 = vrot.slane %v3415, %v3427
    %v3429 = vlaneseq
    %v3430 = vshrl.u32 %v3429, 7
    %v3431 = vsub.s32 3, %v3430
    %v3432 = vrot.slane %v3415, %v3431
    %v3433 = vlaneseq
    %v3434 = vshrl.u32 %v3433, 7
    %v3435 = vsub.s32 4, %v3434
    %v3436 = vrot.slane %v3415, %v3435
    %v3437 = vlaneseq
    %v3438 = vshrl.u32 %v3437, 7
    %v3439 = vsub.s32 5, %v3438
    %v3440 = vrot.slane %v3415, %v3439
    %v3441 = vlaneseq
    %v3442 = vshrl.u32 %v3441, 7
    %v3443 = vsub.s32 6, %v3442
    %v3444 = vrot.slane %v3415, %v3443
    %v3964 = vunpack.c.l.b16 %v2903
    %v3965 = vunpack.c.h.b16 %v2903
    %v3966 = vunpack.c.l.b16 %v2904
    %v3967 = vunpack.c.h.b16 %v2904
    %v3968 = vunpack.c.l.b16 %v2905
    %v3969 = vunpack.c.h.b16 %v2905
    %v3970 = vunpack.c.l.b16 %v2906
    %v3971 = vunpack.c.l.b16 %v2907
    %v3972 = vunpack.c.h.b16 %v2907
    %v3973 = vunpack.c.l.b16 %v2908
    %v3974 = vunpack.c.h.b16 %v2908
    %v3975 = vunpack.c.l.b16 %v2909
    %v3976 = vunpack.c.h.b16 %v2909
    %v3977 = vunpack.c.l.b16 %v2910
    %v3978 = vunpack.c.l.b16 %v2911
    %v3979 = vunpack.c.h.b16 %v2911
    %v3980 = vunpack.c.l.b16 %v2912
    %v3981 = vunpack.c.h.b16 %v2912
    %v3982 = vunpack.c.l.b16 %v2913
    %v3983 = vunpack.c.h.b16 %v2913
    %v3984 = vunpack.c.l.b16 %v2914
    %v3985 = vunpack.c.l.b16 %v2915
    %v3986 = vunpack.c.h.b16 %v2915
    %v3987 = vunpack.c.l.b16 %v2916
    %v3988 = vunpack.c.h.b16 %v2916
    %v3989 = vunpack.c.l.b16 %v2917
    %v3990 = vunpack.c.h.b16 %v2917
    %v3991 = vunpack.c.l.b16 %v2918
    %v3992 = vunpack.c.l.b16 %v2919
    %v3993 = vunpack.c.h.b16 %v2919
    %v3994 = vunpack.c.l.b16 %v2920
    %v3995 = vunpack.c.h.b16 %v2920
    %v3996 = vunpack.c.l.b16 %v2921
    %v3997 = vunpack.c.h.b16 %v2921
    %v3998 = vunpack.c.l.b16 %v2922
    %v3999 = vunpack.c.l.b16 %v2923
    %v4000 = vunpack.c.h.b16 %v2923
    %v4001 = vunpack.c.l.b16 %v2924
    %v4002 = vunpack.c.h.b16 %v2924
    %v4003 = vunpack.c.l.b16 %v2925
    %v4004 = vunpack.c.h.b16 %v2925
    %v4005 = vunpack.c.l.b16 %v2926
    %v4006 = vunpack.c.l.b16 %v2927
    %v4007 = vunpack.c.h.b16 %v2927
    %v4008 = vunpack.c.l.b16 %v2928
    %v4009 = vunpack.c.h.b16 %v2928
    %v4010 = vunpack.c.l.b16 %v2929
    %v4011 = vunpack.c.h.b16 %v2929
    %v4012 = vunpack.c.l.b16 %v2930
    %v4013 = vunpack.c.l.b16 %v2931
    %v4014 = vunpack.c.h.b16 %v2931
    %v4015 = vunpack.c.l.b16 %v2932
    %v4016 = vunpack.c.h.b16 %v2932
    %v4017 = vunpack.c.l.b16 %v2933
    %v4018 = vunpack.c.h.b16 %v2933
    %v4019 = vunpack.c.l.b16 %v2934
    %v4020 = vunpack.c.l.b16 %v2935
    %v4021 = vunpack.c.h.b16 %v2935
    %v4022 = vunpack.c.l.b16 %v2936
    %v4023 = vunpack.c.h.b16 %v2936
    %v4024 = vunpack.c.l.b16 %v2937
    %v4025 = vunpack.c.h.b16 %v2937
    %v4026 = vunpack.c.l.b16 %v2938
    %v4027 = vunpack.c.l.b16 %v2939
    %v4028 = vunpack.c.h.b16 %v2939
    %v4029 = vunpack.c.l.b16 %v2940
    %v4030 = vunpack.c.h.b16 %v2940
    %v4031 = vunpack.c.l.b16 %v2941
    %v4032 = vunpack.c.h.b16 %v2941
    %v4033 = vunpack.c.l.b16 %v2942
    %v4034 = vunpack.c.l.b16 %v2943
    %v4035 = vunpack.c.h.b16 %v2943
    %v4036 = vunpack.c.l.b16 %v2944
    %v4037 = vunpack.c.h.b16 %v2944
    %v4038 = vunpack.c.l.b16 %v2945
    %v4039 = vunpack.c.h.b16 %v2945
    %v4040 = vunpack.c.l.b16 %v2946
    %v4041 = vunpack.c.l.b16 %v2947
    %v4042 = vunpack.c.h.b16 %v2947
    %v4043 = vunpack.c.l.b16 %v2948
    %v4044 = vunpack.c.h.b16 %v2948
    %v4045 = vunpack.c.l.b16 %v2949
    %v4046 = vunpack.c.h.b16 %v2949
    %v4047 = vunpack.c.l.b16 %v2950
    %v4048 = vunpack.c.l.b16 %v2951
    %v4049 = vunpack.c.h.b16 %v2951
    %v4050 = vunpack.c.l.b16 %v2952
    %v4051 = vunpack.c.h.b16 %v2952
    %v4052 = vunpack.c.l.b16 %v2953
    %v4053 = vunpack.c.h.b16 %v2953
    %v4054 = vunpack.c.l.b16 %v2954
    %v4055 = vunpack.c.l.b16 %v2955
    %v4056 = vunpack.c.h.b16 %v2955
    %v4057 = vunpack.c.l.b16 %v2956
    %v4058 = vunpack.c.h.b16 %v2956
    %v4059 = vunpack.c.l.b16 %v2957
    %v4060 = vunpack.c.h.b16 %v2957
    %v4061 = vunpack.c.l.b16 %v2958
    %v4062 = vunpack.c.l.b16 %v2959
    %v4063 = vunpack.c.h.b16 %v2959
    %v4064 = vunpack.c.l.b16 %v2960
    %v4065 = vunpack.c.h.b16 %v2960
    %v4066 = vunpack.c.l.b16 %v2961
    %v4067 = vunpack.c.h.b16 %v2961
    %v4068 = vunpack.c.l.b16 %v2962
    %v4069 = vunpack.c.l.b16 %v2963
    %v4070 = vunpack.c.h.b16 %v2963
    %v4071 = vunpack.c.l.b16 %v2964
    %v4072 = vunpack.c.h.b16 %v2964
    %v4073 = vunpack.c.l.b16 %v2965
    %v4074 = vunpack.c.h.b16 %v2965
    %v4075 = vunpack.c.l.b16 %v2966
    %v4076 = vunpack.c.l.b16 %v2967
    %v4077 = vunpack.c.h.b16 %v2967
    %v4078 = vunpack.c.l.b16 %v2968
    %v4079 = vunpack.c.h.b16 %v2968
    %v4080 = vunpack.c.l.b16 %v2969
    %v4081 = vunpack.c.h.b16 %v2969
    %v4082 = vunpack.c.l.b16 %v2970
    %v4083 = vunpack.c.l.b16 %v2971
    %v4084 = vunpack.c.h.b16 %v2971
    %v4085 = vunpack.c.l.b16 %v2972
    %v4086 = vunpack.c.h.b16 %v2972
    %v4087 = vunpack.c.l.b16 %v2973
    %v4088 = vunpack.c.h.b16 %v2973
    %v4089 = vunpack.c.l.b16 %v2974
    %v4090 = vunpack.c.l.b16 %v2975
    %v4091 = vunpack.c.h.b16 %v2975
    %v4092 = vunpack.c.l.b16 %v2976
    %v4093 = vunpack.c.h.b16 %v2976
    %v4094 = vunpack.c.l.b16 %v2977
    %v4095 = vunpack.c.h.b16 %v2977
    %v4096 = vunpack.c.l.b16 %v2978
    %v4097 = vunpack.c.l.b16 %v2979
    %v4098 = vunpack.c.h.b16 %v2979
    %v4099 = vunpack.c.l.b16 %v2980
    %v4100 = vunpack.c.h.b16 %v2980
    %v4101 = vunpack.c.l.b16 %v2981
    %v4102 = vunpack.c.h.b16 %v2981
    %v4103 = vunpack.c.l.b16 %v2982
    %v4104 = vunpack.c.l.b16 %v2983
    %v4105 = vunpack.c.h.b16 %v2983
    %v4106 = vunpack.c.l.b16 %v2984
    %v4107 = vunpack.c.h.b16 %v2984
    %v4108 = vunpack.c.l.b16 %v2985
    %v4109 = vunpack.c.h.b16 %v2985
    %v4110 = vunpack.c.l.b16 %v2986
    %v4111 = vunpack.c.l.b16 %v2987
    %v4112 = vunpack.c.h.b16 %v2987
    %v4113 = vunpack.c.l.b16 %v2988
    %v4114 = vunpack.c.h.b16 %v2988
    %v4115 = vunpack.c.l.b16 %v2989
    %v4116 = vunpack.c.h.b16 %v2989
    %v4117 = vunpack.c.l.b16 %v2990
    %v4118 = vunpack.c.l.b16 %v2991
    %v4119 = vunpack.c.h.b16 %v2991
    %v4120 = vunpack.c.l.b16 %v2992
    %v4121 = vunpack.c.h.b16 %v2992
    %v4122 = vunpack.c.l.b16 %v2993
    %v4123 = vunpack.c.h.b16 %v2993
    %v4124 = vunpack.c.l.b16 %v2994
    %v4125 = vunpack.c.l.b16 %v2995
    %v4126 = vunpack.c.h.b16 %v2995
    %v4127 = vunpack.c.l.b16 %v2996
    %v4128 = vunpack.c.h.b16 %v2996
    %v4129 = vunpack.c.l.b16 %v2997
    %v4130 = vunpack.c.h.b16 %v2997
    %v4131 = vunpack.c.l.b16 %v2998
    %v4132 = vunpack.c.l.b16 %v2999
    %v4133 = vunpack.c.h.b16 %v2999
    %v4134 = vunpack.c.l.b16 %v3000
    %v4135 = vunpack.c.h.b16 %v3000
    %v4136 = vunpack.c.l.b16 %v3001
    %v4137 = vunpack.c.h.b16 %v3001
    %v4138 = vunpack.c.l.b16 %v3002
    %v4139 = vunpack.c.l.b16 %v3003
    %v4140 = vunpack.c.h.b16 %v3003
    %v4141 = vunpack.c.l.b16 %v3004
    %v4142 = vunpack.c.h.b16 %v3004
    %v4143 = vunpack.c.l.b16 %v3005
    %v4144 = vunpack.c.h.b16 %v3005
    %v4145 = vunpack.c.l.b16 %v3006
    %v4146 = vunpack.c.l.b16 %v3007
    %v4147 = vunpack.c.h.b16 %v3007
    %v4148 = vunpack.c.l.b16 %v3008
    %v4149 = vunpack.c.h.b16 %v3008
    %v4150 = vunpack.c.l.b16 %v3009
    %v4151 = vunpack.c.h.b16 %v3009
    %v4152 = vunpack.c.l.b16 %v3010
    %v4153 = vunpack.c.l.b16 %v3011
    %v4154 = vunpack.c.h.b16 %v3011
    %v4155 = vunpack.c.l.b16 %v3012
    %v4156 = vunpack.c.h.b16 %v3012
    %v4157 = vunpack.c.l.b16 %v3013
    %v4158 = vunpack.c.h.b16 %v3013
    %v4159 = vunpack.c.l.b16 %v3014
    %v4160 = vunpack.c.l.b16 %v3015
    %v4161 = vunpack.c.h.b16 %v3015
    %v4162 = vunpack.c.l.b16 %v3016
    %v4163 = vunpack.c.h.b16 %v3016
    %v4164 = vunpack.c.l.b16 %v3017
    %v4165 = vunpack.c.h.b16 %v3017
    %v4166 = vunpack.c.l.b16 %v3018
    %v4167 = vunpack.c.l.b16 %v3019
    %v4168 = vunpack.c.h.b16 %v3019
    %v4169 = vunpack.c.l.b16 %v3020
    %v4170 = vunpack.c.h.b16 %v3020
    %v4171 = vunpack.c.l.b16 %v3021
    %v4172 = vunpack.c.h.b16 %v3021
    %v4173 = vunpack.c.l.b16 %v3022
    %v4174 = vunpack.c.l.b16 %v3023
    %v4175 = vunpack.c.h.b16 %v3023
    %v4176 = vunpack.c.l.b16 %v3024
    %v4177 = vunpack.c.h.b16 %v3024
    %v4178 = vunpack.c.l.b16 %v3025
    %v4179 = vunpack.c.h.b16 %v3025
    %v4180 = vunpack.c.l.b16 %v3026
    %v4181 = vunpack.c.l.b16 %v3027
    %v4182 = vunpack.c.h.b16 %v3027
    %v4183 = vunpack.c.l.b16 %v3028
    %v4184 = vunpack.c.h.b16 %v3028
    %v4185 = vunpack.c.l.b16 %v3029
    %v4186 = vunpack.c.h.b16 %v3029
    %v4187 = vunpack.c.l.b16 %v3030
    %v4188 = vunpack.c.l.b16 %v3031
    %v4189 = vunpack.c.h.b16 %v3031
    %v4190 = vunpack.c.l.b16 %v3032
    %v4191 = vunpack.c.h.b16 %v3032
    %v4192 = vunpack.c.l.b16 %v3033
    %v4193 = vunpack.c.h.b16 %v3033
    %v4194 = vunpack.c.l.b16 %v3034
    %v4195 = vunpack.c.l.b16 %v3035
    %v4196 = vunpack.c.h.b16 %v3035
    %v4197 = vunpack.c.l.b16 %v3036
    %v4198 = vunpack.c.h.b16 %v3036
    %v4199 = vunpack.c.l.b16 %v3037
    %v4200 = vunpack.c.h.b16 %v3037
    %v4201 = vunpack.c.l.b16 %v3038
    %v4202 = vunpack.c.l.b16 %v3039
    %v4203 = vunpack.c.h.b16 %v3039
    %v4204 = vunpack.c.l.b16 %v3040
    %v4205 = vunpack.c.h.b16 %v3040
    %v4206 = vunpack.c.l.b16 %v3041
    %v4207 = vunpack.c.h.b16 %v3041
    %v4208 = vunpack.c.l.b16 %v3042
    %v4209 = vunpack.c.l.b16 %v3043
    %v4210 = vunpack.c.h.b16 %v3043
    %v4211 = vunpack.c.l.b16 %v3044
    %v4212 = vunpack.c.h.b16 %v3044
    %v4213 = vunpack.c.l.b16 %v3045
    %v4214 = vunpack.c.h.b16 %v3045
    %v4215 = vunpack.c.l.b16 %v3046
    %v4216 = vunpack.c.l.b16 %v3047
    %v4217 = vunpack.c.h.b16 %v3047
    %v4218 = vunpack.c.l.b16 %v3048
    %v4219 = vunpack.c.h.b16 %v3048
    %v4220 = vunpack.c.l.b16 %v3049
    %v4221 = vunpack.c.h.b16 %v3049
    %v4222 = vunpack.c.l.b16 %v3050
    %v4223 = vunpack.c.l.b16 %v3051
    %v4224 = vunpack.c.h.b16 %v3051
    %v4225 = vunpack.c.l.b16 %v3052
    %v4226 = vunpack.c.h.b16 %v3052
    %v4227 = vunpack.c.l.b16 %v3053
    %v4228 = vunpack.c.h.b16 %v3053
    %v4229 = vunpack.c.l.b16 %v3054
    %v4230 = vunpack.c.l.b16 %v3055
    %v4231 = vunpack.c.h.b16 %v3055
    %v4232 = vunpack.c.l.b16 %v3056
    %v4233 = vunpack.c.h.b16 %v3056
    %v4234 = vunpack.c.l.b16 %v3057
    %v4235 = vunpack.c.h.b16 %v3057
    %v4236 = vunpack.c.l.b16 %v3058
    %v4237 = vunpack.c.l.b16 %v3059
    %v4238 = vunpack.c.h.b16 %v3059
    %v4239 = vunpack.c.l.b16 %v3060
    %v4240 = vunpack.c.h.b16 %v3060
    %v4241 = vunpack.c.l.b16 %v3061
    %v4242 = vunpack.c.h.b16 %v3061
    %v4243 = vunpack.c.l.b16 %v3062
    %v4244 = vunpack.c.l.b16 %v3063
    %v4245 = vunpack.c.h.b16 %v3063
    %v4246 = vunpack.c.l.b16 %v3064
    %v4247 = vunpack.c.h.b16 %v3064
    %v4248 = vunpack.c.l.b16 %v3065
    %v4249 = vunpack.c.h.b16 %v3065
    %v4250 = vunpack.c.l.b16 %v3066
    %v4251 = vunpack.c.l.b16 %v3067
    %v4252 = vunpack.c.h.b16 %v3067
    %v4253 = vunpack.c.l.b16 %v3068
    %v4254 = vunpack.c.h.b16 %v3068
    %v4255 = vunpack.c.l.b16 %v3069
    %v4256 = vunpack.c.h.b16 %v3069
    %v4257 = vunpack.c.l.b16 %v3070
    %v4258 = vunpack.c.l.b16 %v3071
    %v4259 = vunpack.c.h.b16 %v3071
    %v4260 = vunpack.c.l.b16 %v3072
    %v4261 = vunpack.c.h.b16 %v3072
    %v4262 = vunpack.c.l.b16 %v3073
    %v4263 = vunpack.c.h.b16 %v3073
    %v4264 = vunpack.c.l.b16 %v3074
    %v4265 = vunpack.c.l.b16 %v3075
    %v4266 = vunpack.c.h.b16 %v3075
    %v4267 = vunpack.c.l.b16 %v3076
    %v4268 = vunpack.c.h.b16 %v3076
    %v4269 = vunpack.c.l.b16 %v3077
    %v4270 = vunpack.c.h.b16 %v3077
    %v4271 = vunpack.c.l.b16 %v3078
    %v4272 = vunpack.c.l.b16 %v3079
    %v4273 = vunpack.c.h.b16 %v3079
    %v4274 = vunpack.c.l.b16 %v3080
    %v4275 = vunpack.c.h.b16 %v3080
    %v4276 = vunpack.c.l.b16 %v3081
    %v4277 = vunpack.c.h.b16 %v3081
    %v4278 = vunpack.c.l.b16 %v3082
    %v4279 = vunpack.c.l.b16 %v3083
    %v4280 = vunpack.c.h.b16 %v3083
    %v4281 = vunpack.c.l.b16 %v3084
    %v4282 = vunpack.c.h.b16 %v3084
    %v4283 = vunpack.c.l.b16 %v3085
    %v4284 = vunpack.c.h.b16 %v3085
    %v4285 = vunpack.c.l.b16 %v3086
    %v4286 = vunpack.c.l.b16 %v3087
    %v4287 = vunpack.c.h.b16 %v3087
    %v4288 = vunpack.c.l.b16 %v3088
    %v4289 = vunpack.c.h.b16 %v3088
    %v4290 = vunpack.c.l.b16 %v3089
    %v4291 = vunpack.c.h.b16 %v3089
    %v4292 = vunpack.c.l.b16 %v3090
    %v4293 = vunpack.c.l.b16 %v3091
    %v4294 = vunpack.c.h.b16 %v3091
    %v4295 = vunpack.c.l.b16 %v3092
    %v4296 = vunpack.c.h.b16 %v3092
    %v4297 = vunpack.c.l.b16 %v3093
    %v4298 = vunpack.c.h.b16 %v3093
    %v4299 = vunpack.c.l.b16 %v3094
    %v4300 = vunpack.c.l.b16 %v3095
    %v4301 = vunpack.c.h.b16 %v3095
    %v4302 = vunpack.c.l.b16 %v3096
    %v4303 = vunpack.c.h.b16 %v3096
    %v4304 = vunpack.c.l.b16 %v3097
    %v4305 = vunpack.c.h.b16 %v3097
    %v4306 = vunpack.c.l.b16 %v3098
    %v4307 = vunpack.c.l.b16 %v3099
    %v4308 = vunpack.c.h.b16 %v3099
    %v4309 = vunpack.c.l.b16 %v3100
    %v4310 = vunpack.c.h.b16 %v3100
    %v4311 = vunpack.c.l.b16 %v3101
    %v4312 = vunpack.c.h.b16 %v3101
    %v4313 = vunpack.c.l.b16 %v3102
    %v4314 = vunpack.c.l.b16 %v3103
    %v4315 = vunpack.c.h.b16 %v3103
    %v4316 = vunpack.c.l.b16 %v3104
    %v4317 = vunpack.c.h.b16 %v3104
    %v4318 = vunpack.c.l.b16 %v3105
    %v4319 = vunpack.c.h.b16 %v3105
    %v4320 = vunpack.c.l.b16 %v3106
    %v4321 = vunpack.c.l.b16 %v3107
    %v4322 = vunpack.c.h.b16 %v3107
    %v4323 = vunpack.c.l.b16 %v3108
    %v4324 = vunpack.c.h.b16 %v3108
    %v4325 = vunpack.c.l.b16 %v3109
    %v4326 = vunpack.c.h.b16 %v3109
    %v4327 = vunpack.c.l.b16 %v3110
    %v4328 = vunpack.c.l.b16 %v3111
    %v4329 = vunpack.c.h.b16 %v3111
    %v4330 = vunpack.c.l.b16 %v3112
    %v4331 = vunpack.c.h.b16 %v3112
    %v4332 = vunpack.c.l.b16 %v3113
    %v4333 = vunpack.c.h.b16 %v3113
    %v4334 = vunpack.c.l.b16 %v3114
    %v4335 = vunpack.c.l.b16 %v3115
    %v4336 = vunpack.c.h.b16 %v3115
    %v4337 = vunpack.c.l.b16 %v3116
    %v4338 = vunpack.c.h.b16 %v3116
    %v4339 = vunpack.c.l.b16 %v3117
    %v4340 = vunpack.c.h.b16 %v3117
    %v4341 = vunpack.c.l.b16 %v3118
    %v4342 = vunpack.c.l.b16 %v3119
    %v4343 = vunpack.c.h.b16 %v3119
    %v4344 = vunpack.c.l.b16 %v3120
    %v4345 = vunpack.c.h.b16 %v3120
    %v4346 = vunpack.c.l.b16 %v3121
    %v4347 = vunpack.c.h.b16 %v3121
    %v4348 = vunpack.c.l.b16 %v3122
    %v4349 = vunpack.c.l.b16 %v3123
    %v4350 = vunpack.c.h.b16 %v3123
    %v4351 = vunpack.c.l.b16 %v3124
    %v4352 = vunpack.c.h.b16 %v3124
    %v4353 = vunpack.c.l.b16 %v3125
    %v4354 = vunpack.c.h.b16 %v3125
    %v4355 = vunpack.c.l.b16 %v3126
    %v4356 = vunpack.c.l.b16 %v3127
    %v4357 = vunpack.c.h.b16 %v3127
    %v4358 = vunpack.c.l.b16 %v3128
    %v4359 = vunpack.c.h.b16 %v3128
    %v4360 = vunpack.c.l.b16 %v3129
    %v4361 = vunpack.c.h.b16 %v3129
    %v4362 = vunpack.c.l.b16 %v3130
    %v4363 = vunpack.c.l.b16 %v3131
    %v4364 = vunpack.c.h.b16 %v3131
    %v4365 = vunpack.c.l.b16 %v3132
    %v4366 = vunpack.c.h.b16 %v3132
    %v4367 = vunpack.c.l.b16 %v3133
    %v4368 = vunpack.c.h.b16 %v3133
    %v4369 = vunpack.c.l.b16 %v3134
    %v4370 = vunpack.c.l.b16 %v3135
    %v4371 = vunpack.c.h.b16 %v3135
    %v4372 = vunpack.c.l.b16 %v3136
    %v4373 = vunpack.c.h.b16 %v3136
    %v4374 = vunpack.c.l.b16 %v3137
    %v4375 = vunpack.c.h.b16 %v3137
    %v4376 = vunpack.c.l.b16 %v3138
    %v4377 = vunpack.c.l.b16 %v3139
    %v4378 = vunpack.c.h.b16 %v3139
    %v4379 = vunpack.c.l.b16 %v3140
    %v4380 = vunpack.c.h.b16 %v3140
    %v4381 = vunpack.c.l.b16 %v3141
    %v4382 = vunpack.c.h.b16 %v3141
    %v4383 = vunpack.c.l.b16 %v3142
    %v4384 = vunpack.c.l.b16 %v3143
    %v4385 = vunpack.c.h.b16 %v3143
    %v4386 = vunpack.c.l.b16 %v3144
    %v4387 = vunpack.c.h.b16 %v3144
    %v4388 = vunpack.c.l.b16 %v3145
    %v4389 = vunpack.c.h.b16 %v3145
    %v4390 = vunpack.c.l.b16 %v3146
    %v4391 = vunpack.c.l.b16 %v3147
    %v4392 = vunpack.c.h.b16 %v3147
    %v4393 = vunpack.c.l.b16 %v3148
    %v4394 = vunpack.c.h.b16 %v3148
    %v4395 = vunpack.c.l.b16 %v3149
    %v4396 = vunpack.c.h.b16 %v3149
    %v4397 = vunpack.c.l.b16 %v3150
    %v4398 = vunpack.c.l.b16 %v3151
    %v4399 = vunpack.c.h.b16 %v3151
    %v4400 = vunpack.c.l.b16 %v3152
    %v4401 = vunpack.c.h.b16 %v3152
    %v4402 = vunpack.c.l.b16 %v3153
    %v4403 = vunpack.c.h.b16 %v3153
    %v4404 = vunpack.c.l.b16 %v3154
    %v4405 = vunpack.c.l.b16 %v3155
    %v4406 = vunpack.c.h.b16 %v3155
    %v4407 = vunpack.c.l.b16 %v3156
    %v4408 = vunpack.c.h.b16 %v3156
    %v4409 = vunpack.c.l.b16 %v3157
    %v4410 = vunpack.c.h.b16 %v3157
    %v4411 = vunpack.c.l.b16 %v3158
    %v4412 = vunpack.c.l.b16 %v3159
    %v4413 = vunpack.c.h.b16 %v3159
    %v4414 = vunpack.c.l.b16 %v3160
    %v4415 = vunpack.c.h.b16 %v3160
    %v4416 = vunpack.c.l.b16 %v3161
    %v4417 = vunpack.c.h.b16 %v3161
    %v4418 = vunpack.c.l.b16 %v3162
    %v4419 = vunpack.c.l.b16 %v3163
    %v4420 = vunpack.c.h.b16 %v3163
    %v4421 = vunpack.c.l.b16 %v3164
    %v4422 = vunpack.c.h.b16 %v3164
    %v4423 = vunpack.c.l.b16 %v3165
    %v4424 = vunpack.c.h.b16 %v3165
    %v4425 = vunpack.c.l.b16 %v3166
    %v4426 = vunpack.c.l.b16 %v3167
    %v4427 = vunpack.c.h.b16 %v3167
    %v4428 = vunpack.c.l.b16 %v3168
    %v4429 = vunpack.c.h.b16 %v3168
    %v4430 = vunpack.c.l.b16 %v3169
    %v4431 = vunpack.c.h.b16 %v3169
    %v4432 = vunpack.c.l.b16 %v3170
    %v4433 = vunpack.c.l.b16 %v3171
    %v4434 = vunpack.c.h.b16 %v3171
    %v4435 = vunpack.c.l.b16 %v3172
    %v4436 = vunpack.c.h.b16 %v3172
    %v4437 = vunpack.c.l.b16 %v3173
    %v4438 = vunpack.c.h.b16 %v3173
    %v4439 = vunpack.c.l.b16 %v3174
    %v4440 = vunpack.c.l.b16 %v3175
    %v4441 = vunpack.c.h.b16 %v3175
    %v4442 = vunpack.c.l.b16 %v3176
    %v4443 = vunpack.c.h.b16 %v3176
    %v4444 = vunpack.c.l.b16 %v3177
    %v4445 = vunpack.c.h.b16 %v3177
    %v4446 = vunpack.c.l.b16 %v3178
    %v4447 = vunpack.c.l.b16 %v3179
    %v4448 = vunpack.c.h.b16 %v3179
    %v4449 = vunpack.c.l.b16 %v3180
    %v4450 = vunpack.c.h.b16 %v3180
    %v4451 = vunpack.c.l.b16 %v3181
    %v4452 = vunpack.c.h.b16 %v3181
    %v4453 = vunpack.c.l.b16 %v3182
    %v4454 = vunpack.c.l.b16 %v3183
    %v4455 = vunpack.c.h.b16 %v3183
    %v4456 = vunpack.c.l.b16 %v3184
    %v4457 = vunpack.c.h.b16 %v3184
    %v4458 = vunpack.c.l.b16 %v3185
    %v4459 = vunpack.c.h.b16 %v3185
    %v4460 = vunpack.c.l.b16 %v3186
    %v4461 = vunpack.c.l.b16 %v3187
    %v4462 = vunpack.c.h.b16 %v3187
    %v4463 = vunpack.c.l.b16 %v3188
    %v4464 = vunpack.c.h.b16 %v3188
    %v4465 = vunpack.c.l.b16 %v3189
    %v4466 = vunpack.c.h.b16 %v3189
    %v4467 = vunpack.c.l.b16 %v3190
    %v4468 = vunpack.c.l.b16 %v3191
    %v4469 = vunpack.c.h.b16 %v3191
    %v4470 = vunpack.c.l.b16 %v3192
    %v4471 = vunpack.c.h.b16 %v3192
    %v4472 = vunpack.c.l.b16 %v3193
    %v4473 = vunpack.c.h.b16 %v3193
    %v4474 = vunpack.c.l.b16 %v3194
    %v4475 = vunpack.c.l.b16 %v3195
    %v4476 = vunpack.c.h.b16 %v3195
    %v4477 = vunpack.c.l.b16 %v3196
    %v4478 = vunpack.c.h.b16 %v3196
    %v4479 = vunpack.c.l.b16 %v3197
    %v4480 = vunpack.c.h.b16 %v3197
    %v4481 = vunpack.c.l.b16 %v3198
    %v4482 = vunpack.c.l.b16 %v3199
    %v4483 = vunpack.c.h.b16 %v3199
    %v4484 = vunpack.c.l.b16 %v3200
    %v4485 = vunpack.c.h.b16 %v3200
    %v4486 = vunpack.c.l.b16 %v3201
    %v4487 = vunpack.c.h.b16 %v3201
    %v4488 = vunpack.c.l.b16 %v3202
    %v4489 = vunpack.c.l.b16 %v3203
    %v4490 = vunpack.c.h.b16 %v3203
    %v4491 = vunpack.c.l.b16 %v3204
    %v4492 = vunpack.c.h.b16 %v3204
    %v4493 = vunpack.c.l.b16 %v3205
    %v4494 = vunpack.c.h.b16 %v3205
    %v4495 = vunpack.c.l.b16 %v3206
    %v4496 = vunpack.c.l.b16 %v3207
    %v4497 = vunpack.c.h.b16 %v3207
    %v4498 = vunpack.c.l.b16 %v3208
    %v4499 = vunpack.c.h.b16 %v3208
    %v4500 = vunpack.c.l.b16 %v3209
    %v4501 = vunpack.c.h.b16 %v3209
    %v4502 = vunpack.c.l.b16 %v3210
    %v4503 = vunpack.c.l.b16 %v3211
    %v4504 = vunpack.c.h.b16 %v3211
    %v4505 = vunpack.c.l.b16 %v3212
    %v4506 = vunpack.c.h.b16 %v3212
    %v4507 = vunpack.c.l.b16 %v3213
    %v4508 = vunpack.c.h.b16 %v3213
    %v4509 = vunpack.c.l.b16 %v3214
    %v4510 = vunpack.c.l.b16 %v3215
    %v4511 = vunpack.c.h.b16 %v3215
    %v4512 = vunpack.c.l.b16 %v3216
    %v4513 = vunpack.c.h.b16 %v3216
    %v4514 = vunpack.c.l.b16 %v3217
    %v4515 = vunpack.c.h.b16 %v3217
    %v4516 = vunpack.c.l.b16 %v3218
    %v4517 = vunpack.c.l.b16 %v3219
    %v4518 = vunpack.c.h.b16 %v3219
    %v4519 = vunpack.c.l.b16 %v3220
    %v4520 = vunpack.c.h.b16 %v3220
    %v4521 = vunpack.c.l.b16 %v3221
    %v4522 = vunpack.c.h.b16 %v3221
    %v4523 = vunpack.c.l.b16 %v3222
    %v4524 = vunpack.c.l.b16 %v3223
    %v4525 = vunpack.c.h.b16 %v3223
    %v4526 = vunpack.c.l.b16 %v3224
    %v4527 = vunpack.c.h.b16 %v3224
    %v4528 = vunpack.c.l.b16 %v3225
    %v4529 = vunpack.c.h.b16 %v3225
    %v4530 = vunpack.c.l.b16 %v3226
    %v4531 = vunpack.c.l.b16 %v3227
    %v4532 = vunpack.c.h.b16 %v3227
    %v4533 = vunpack.c.l.b16 %v3228
    %v4534 = vunpack.c.h.b16 %v3228
    %v4535 = vunpack.c.l.b16 %v3229
    %v4536 = vunpack.c.h.b16 %v3229
    %v4537 = vunpack.c.l.b16 %v3230
    %v4538 = vunpack.c.l.b16 %v3231
    %v4539 = vunpack.c.h.b16 %v3231
    %v4540 = vunpack.c.l.b16 %v3232
    %v4541 = vunpack.c.h.b16 %v3232
    %v4542 = vunpack.c.l.b16 %v3233
    %v4543 = vunpack.c.h.b16 %v3233
    %v4544 = vunpack.c.l.b16 %v3234
    %v4545 = vunpack.c.l.b16 %v3235
    %v4546 = vunpack.c.h.b16 %v3235
    %v4547 = vunpack.c.l.b16 %v3236
    %v4548 = vunpack.c.h.b16 %v3236
    %v4549 = vunpack.c.l.b16 %v3237
    %v4550 = vunpack.c.h.b16 %v3237
    %v4551 = vunpack.c.l.b16 %v3238
    %v4552 = vunpack.c.l.b16 %v3239
    %v4553 = vunpack.c.h.b16 %v3239
    %v4554 = vunpack.c.l.b16 %v3240
    %v4555 = vunpack.c.h.b16 %v3240
    %v4556 = vunpack.c.l.b16 %v3241
    %v4557 = vunpack.c.h.b16 %v3241
    %v4558 = vunpack.c.l.b16 %v3242
    %v4559 = vunpack.c.l.b16 %v3243
    %v4560 = vunpack.c.h.b16 %v3243
    %v4561 = vunpack.c.l.b16 %v3244
    %v4562 = vunpack.c.h.b16 %v3244
    %v4563 = vunpack.c.l.b16 %v3245
    %v4564 = vunpack.c.h.b16 %v3245
    %v4565 = vunpack.c.l.b16 %v3246
    %v4566 = vunpack.c.l.b16 %v3247
    %v4567 = vunpack.c.h.b16 %v3247
    %v4568 = vunpack.c.l.b16 %v3248
    %v4569 = vunpack.c.h.b16 %v3248
    %v4570 = vunpack.c.l.b16 %v3249
    %v4571 = vunpack.c.h.b16 %v3249
    %v4572 = vunpack.c.l.b16 %v3250
    %v4573 = vunpack.c.l.b16 %v3251
    %v4574 = vunpack.c.h.b16 %v3251
    %v4575 = vunpack.c.l.b16 %v3252
    %v4576 = vunpack.c.h.b16 %v3252
    %v4577 = vunpack.c.l.b16 %v3253
    %v4578 = vunpack.c.h.b16 %v3253
    %v4579 = vunpack.c.l.b16 %v3254
    %v4580 = vunpack.c.l.b16 %v3255
    %v4581 = vunpack.c.h.b16 %v3255
    %v4582 = vunpack.c.l.b16 %v3256
    %v4583 = vunpack.c.h.b16 %v3256
    %v4584 = vunpack.c.l.b16 %v3257
    %v4585 = vunpack.c.h.b16 %v3257
    %v4586 = vunpack.c.l.b16 %v3258
    %v4587 = vunpack.c.l.b16 %v3259
    %v4588 = vunpack.c.h.b16 %v3259
    %v4589 = vunpack.c.l.b16 %v3260
    %v4590 = vunpack.c.h.b16 %v3260
    %v4591 = vunpack.c.l.b16 %v3261
    %v4592 = vunpack.c.h.b16 %v3261
    %v4593 = vunpack.c.l.b16 %v3262
    %v4594 = vunpack.c.l.b16 %v3263
    %v4595 = vunpack.c.h.b16 %v3263
    %v4596 = vunpack.c.l.b16 %v3264
    %v4597 = vunpack.c.h.b16 %v3264
    %v4598 = vunpack.c.l.b16 %v3265
    %v4599 = vunpack.c.h.b16 %v3265
    %v4600 = vunpack.c.l.b16 %v3266
    %v4601 = vunpack.c.l.b16 %v3267
    %v4602 = vunpack.c.h.b16 %v3267
    %v4603 = vunpack.c.l.b16 %v3268
    %v4604 = vunpack.c.h.b16 %v3268
    %v4605 = vunpack.c.l.b16 %v3269
    %v4606 = vunpack.c.h.b16 %v3269
    %v4607 = vunpack.c.l.b16 %v3270
    %v4608 = vunpack.c.l.b16 %v3271
    %v4609 = vunpack.c.h.b16 %v3271
    %v4610 = vunpack.c.l.b16 %v3272
    %v4611 = vunpack.c.h.b16 %v3272
    %v4612 = vunpack.c.l.b16 %v3273
    %v4613 = vunpack.c.h.b16 %v3273
    %v4614 = vunpack.c.l.b16 %v3274
    %v4615 = vunpack.c.l.b16 %v3275
    %v4616 = vunpack.c.h.b16 %v3275
    %v4617 = vunpack.c.l.b16 %v3276
    %v4618 = vunpack.c.h.b16 %v3276
    %v4619 = vunpack.c.l.b16 %v3277
    %v4620 = vunpack.c.h.b16 %v3277
    %v4621 = vunpack.c.l.b16 %v3278
    %v4622 = vunpack.c.l.b16 %v3279
    %v4623 = vunpack.c.h.b16 %v3279
    %v4624 = vunpack.c.l.b16 %v3280
    %v4625 = vunpack.c.h.b16 %v3280
    %v4626 = vunpack.c.l.b16 %v3281
    %v4627 = vunpack.c.h.b16 %v3281
    %v4628 = vunpack.c.l.b16 %v3282
    %v4629 = vunpack.c.l.b16 %v3283
    %v4630 = vunpack.c.h.b16 %v3283
    %v4631 = vunpack.c.l.b16 %v3284
    %v4632 = vunpack.c.h.b16 %v3284
    %v4633 = vunpack.c.l.b16 %v3285
    %v4634 = vunpack.c.h.b16 %v3285
    %v4635 = vunpack.c.l.b16 %v3286
    %v4636 = vunpack.c.l.b16 %v3287
    %v4637 = vunpack.c.h.b16 %v3287
    %v4638 = vunpack.c.l.b16 %v3288
    %v4639 = vunpack.c.h.b16 %v3288
    %v4640 = vunpack.c.l.b16 %v3289
    %v4641 = vunpack.c.h.b16 %v3289
    %v4642 = vunpack.c.l.b16 %v3290
    %v4643 = vunpack.c.l.b16 %v3291
    %v4644 = vunpack.c.h.b16 %v3291
    %v4645 = vunpack.c.l.b16 %v3292
    %v4646 = vunpack.c.h.b16 %v3292
    %v4647 = vunpack.c.l.b16 %v3293
    %v4648 = vunpack.c.h.b16 %v3293
    %v4649 = vunpack.c.l.b16 %v3294
    %v4650 = vunpack.c.l.b16 %v3295
    %v4651 = vunpack.c.h.b16 %v3295
    %v4652 = vunpack.c.l.b16 %v3296
    %v4653 = vunpack.c.h.b16 %v3296
    %v4654 = vunpack.c.l.b16 %v3297
    %v4655 = vunpack.c.h.b16 %v3297
    %v4656 = vunpack.c.l.b16 %v3298
    %v4657 = vunpack.c.l.b16 %v3299
    %v4658 = vunpack.c.h.b16 %v3299
    %v4659 = vunpack.c.l.b16 %v3300
    %v4660 = vunpack.c.h.b16 %v3300
    %v4661 = vunpack.c.l.b16 %v3301
    %v4662 = vunpack.c.h.b16 %v3301
    %v4663 = vunpack.c.l.b16 %v3302
    %v4664 = vunpack.c.l.b16 %v3303
    %v4665 = vunpack.c.h.b16 %v3303
    %v4666 = vunpack.c.l.b16 %v3304
    %v4667 = vunpack.c.h.b16 %v3304
    %v4668 = vunpack.c.l.b16 %v3305
    %v4669 = vunpack.c.h.b16 %v3305
    %v4670 = vunpack.c.l.b16 %v3306
    %v4671 = vunpack.c.l.b16 %v3307
    %v4672 = vunpack.c.h.b16 %v3307
    %v4673 = vunpack.c.l.b16 %v3308
    %v4674 = vunpack.c.h.b16 %v3308
    %v4675 = vunpack.c.l.b16 %v3309
    %v4676 = vunpack.c.h.b16 %v3309
    %v4677 = vunpack.c.l.b16 %v3310
    %v4678 = vunpack.c.l.b16 %v3311
    %v4679 = vunpack.c.h.b16 %v3311
    %v4680 = vunpack.c.l.b16 %v3312
    %v4681 = vunpack.c.h.b16 %v3312
    %v4682 = vunpack.c.l.b16 %v3313
    %v4683 = vunpack.c.h.b16 %v3313
    %v4684 = vunpack.c.l.b16 %v3314
    %v4685 = vunpack.c.l.b16 %v3315
    %v4686 = vunpack.c.h.b16 %v3315
    %v4687 = vunpack.c.l.b16 %v3316
    %v4688 = vunpack.c.h.b16 %v3316
    %v4689 = vunpack.c.l.b16 %v3317
    %v4690 = vunpack.c.h.b16 %v3317
    %v4691 = vunpack.c.l.b16 %v3318
    %v4692 = vunpack.c.l.b16 %v3319
    %v4693 = vunpack.c.h.b16 %v3319
    %v4694 = vunpack.c.l.b16 %v3320
    %v4695 = vunpack.c.h.b16 %v3320
    %v4696 = vunpack.c.l.b16 %v3321
    %v4697 = vunpack.c.h.b16 %v3321
    %v4698 = vunpack.c.l.b16 %v3322
    %v4699 = vunpack.c.l.b16 %v3323
    %v4700 = vunpack.c.h.b16 %v3323
    %v4701 = vunpack.c.l.b16 %v3324
    %v4702 = vunpack.c.h.b16 %v3324
    %v4703 = vunpack.c.l.b16 %v3325
    %v4704 = vunpack.c.h.b16 %v3325
    %v4705 = vunpack.c.l.b16 %v3326
    %v4706 = vunpack.c.l.b16 %v3327
    %v4707 = vunpack.c.h.b16 %v3327
    %v4708 = vunpack.c.l.b16 %v3328
    %v4709 = vunpack.c.h.b16 %v3328
    %v4710 = vunpack.c.l.b16 %v3329
    %v4711 = vunpack.c.h.b16 %v3329
    %v4712 = vunpack.c.l.b16 %v3330
    %v4713 = vunpack.c.l.b16 %v3331
    %v4714 = vunpack.c.h.b16 %v3331
    %v4715 = vunpack.c.l.b16 %v3332
    %v4716 = vunpack.c.h.b16 %v3332
    %v4717 = vunpack.c.l.b16 %v3333
    %v4718 = vunpack.c.h.b16 %v3333
    %v4719 = vunpack.c.l.b16 %v3334
    %v4720 = vunpack.c.l.b16 %v3335
    %v4721 = vunpack.c.h.b16 %v3335
    %v4722 = vunpack.c.l.b16 %v3336
    %v4723 = vunpack.c.h.b16 %v3336
    %v4724 = vunpack.c.l.b16 %v3337
    %v4725 = vunpack.c.h.b16 %v3337
    %v4726 = vunpack.c.l.b16 %v3338
    %v4727 = vunpack.c.l.b16 %v3339
    %v4728 = vunpack.c.h.b16 %v3339
    %v4729 = vunpack.c.l.b16 %v3340
    %v4730 = vunpack.c.h.b16 %v3340
    %v4731 = vunpack.c.l.b16 %v3341
    %v4732 = vunpack.c.h.b16 %v3341
    %v4733 = vunpack.c.l.b16 %v3342
    %v4734 = vunpack.c.l.b16 %v3343
    %v4735 = vunpack.c.h.b16 %v3343
    %v4736 = vunpack.c.l.b16 %v3344
    %v4737 = vunpack.c.h.b16 %v3344
    %v4738 = vunpack.c.l.b16 %v3345
    %v4739 = vunpack.c.h.b16 %v3345
    %v4740 = vunpack.c.l.b16 %v3346
    %v4741 = vunpack.c.l.b16 %v3347
    %v4742 = vunpack.c.h.b16 %v3347
    %v4743 = vunpack.c.l.b16 %v3348
    %v4744 = vunpack.c.h.b16 %v3348
    %v4745 = vunpack.c.l.b16 %v3349
    %v4746 = vunpack.c.h.b16 %v3349
    %v4747 = vunpack.c.l.b16 %v3350
    %v4748 = vunpack.c.l.b16 %v3351
    %v4749 = vunpack.c.h.b16 %v3351
    %v4750 = vunpack.c.l.b16 %v3352
    %v4751 = vunpack.c.h.b16 %v3352
    %v4752 = vunpack.c.l.b16 %v3353
    %v4753 = vunpack.c.h.b16 %v3353
    %v4754 = vunpack.c.l.b16 %v3354
    %v4755 = vunpack.c.l.b16 %v3355
    %v4756 = vunpack.c.h.b16 %v3355
    %v4757 = vunpack.c.l.b16 %v3356
    %v4758 = vunpack.c.h.b16 %v3356
    %v4759 = vunpack.c.l.b16 %v3357
    %v4760 = vunpack.c.h.b16 %v3357
    %v4761 = vunpack.c.l.b16 %v3358
    %v4762 = vunpack.c.l.b16 %v3359
    %v4763 = vunpack.c.h.b16 %v3359
    %v4764 = vunpack.c.l.b16 %v3360
    %v4765 = vunpack.c.h.b16 %v3360
    %v4766 = vunpack.c.l.b16 %v3361
    %v4767 = vunpack.c.h.b16 %v3361
    %v4768 = vunpack.c.l.b16 %v3362
    %v4769 = vunpack.c.l.b16 %v3363
    %v4770 = vunpack.c.h.b16 %v3363
    %v4771 = vunpack.c.l.b16 %v3364
    %v4772 = vunpack.c.h.b16 %v3364
    %v4773 = vunpack.c.l.b16 %v3365
    %v4774 = vunpack.c.h.b16 %v3365
    %v4775 = vunpack.c.l.b16 %v3366
    %v4776 = vunpack.c.l.b16 %v3367
    %v4777 = vunpack.c.h.b16 %v3367
    %v4778 = vunpack.c.l.b16 %v3368
    %v4779 = vunpack.c.h.b16 %v3368
    %v4780 = vunpack.c.l.b16 %v3369
    %v4781 = vunpack.c.h.b16 %v3369
    %v4782 = vunpack.c.l.b16 %v3370
    %v4783 = vunpack.c.l.b16 %v3371
    %v4784 = vunpack.c.h.b16 %v3371
    %v4785 = vunpack.c.l.b16 %v3372
    %v4786 = vunpack.c.h.b16 %v3372
    %v4787 = vunpack.c.l.b16 %v3373
    %v4788 = vunpack.c.h.b16 %v3373
    %v4789 = vunpack.c.l.b16 %v3374
    %v4790 = vunpack.c.l.b16 %v3375
    %v4791 = vunpack.c.h.b16 %v3375
    %v4792 = vunpack.c.l.b16 %v3376
    %v4793 = vunpack.c.h.b16 %v3376
    %v4794 = vunpack.c.l.b16 %v3377
    %v4795 = vunpack.c.h.b16 %v3377
    %v4796 = vunpack.c.l.b16 %v3378
    %v4797 = vunpack.c.l.b16 %v3379
    %v4798 = vunpack.c.h.b16 %v3379
    %v4799 = vunpack.c.l.b16 %v3380
    %v4800 = vunpack.c.h.b16 %v3380
    %v4801 = vunpack.c.l.b16 %v3381
    %v4802 = vunpack.c.h.b16 %v3381
    %v4803 = vunpack.c.l.b16 %v3382
    %v4804 = vunpack.c.l.b16 %v3383
    %v4805 = vunpack.c.h.b16 %v3383
    %v4806 = vunpack.c.l.b16 %v3384
    %v4807 = vunpack.c.h.b16 %v3384
    %v4808 = vunpack.c.l.b16 %v3385
    %v4809 = vunpack.c.h.b16 %v3385
    %v4810 = vunpack.c.l.b16 %v3386
    %v4811 = vunpack.c.l.b16 %v3387
    %v4812 = vunpack.c.h.b16 %v3387
    %v4813 = vunpack.c.l.b16 %v3388
    %v4814 = vunpack.c.h.b16 %v3388
    %v4815 = vunpack.c.l.b16 %v3389
    %v4816 = vunpack.c.h.b16 %v3389
    %v4817 = vunpack.c.l.b16 %v3390
    %v4818 = vunpack.c.l.b16 %v3391
    %v4819 = vunpack.c.h.b16 %v3391
    %v4820 = vunpack.c.l.b16 %v3392
    %v4821 = vunpack.c.h.b16 %v3392
    %v4822 = vunpack.c.l.b16 %v3393
    %v4823 = vunpack.c.h.b16 %v3393
    %v4824 = vunpack.c.l.b16 %v3394
    %v4825 = vunpack.c.l.b16 %v3395
    %v4826 = vunpack.c.h.b16 %v3395
    %v4827 = vunpack.c.l.b16 %v3396
    %v4828 = vunpack.c.h.b16 %v3396
    %v4829 = vunpack.c.l.b16 %v3397
    %v4830 = vunpack.c.h.b16 %v3397
    %v4831 = vunpack.c.l.b16 %v3398
    %v4832 = vunpack.c.l.b16 %v3399
    %v4833 = vunpack.c.h.b16 %v3399
    %v4834 = vunpack.c.l.b16 %v3400
    %v4835 = vunpack.c.h.b16 %v3400
    %v4836 = vunpack.c.l.b16 %v3401
    %v4837 = vunpack.c.h.b16 %v3401
    %v4838 = vunpack.c.l.b16 %v3402
    %v4839 = vunpack.c.l.b16 %v3403
    %v4840 = vunpack.c.h.b16 %v3403
    %v4841 = vunpack.c.l.b16 %v3404
    %v4842 = vunpack.c.h.b16 %v3404
    %v4843 = vunpack.c.l.b16 %v3405
    %v4844 = vunpack.c.h.b16 %v3405
    %v4845 = vunpack.c.l.b16 %v3406
    %v4846 = vunpack.c.l.b16 %v3407
    %v4847 = vunpack.c.h.b16 %v3407
    %v4848 = vunpack.c.l.b16 %v3408
    %v4849 = vunpack.c.h.b16 %v3408
    %v4850 = vunpack.c.l.b16 %v3409
    %v4851 = vunpack.c.h.b16 %v3409
    %v4852 = vunpack.c.l.b16 %v3410
    %v4853 = vunpack.c.l.b16 %v3411
    %v4854 = vunpack.c.h.b16 %v3411
    %v4855 = vunpack.c.l.b16 %v3412
    %v4856 = vunpack.c.h.b16 %v3412
    %v4857 = vunpack.c.l.b16 %v3413
    %v4858 = vunpack.c.h.b16 %v3413
    %v4859 = vunpack.c.l.b16 %v3414
    %v4860 = vpack.c.b16 %v3971, %v3964
    %v4861 = vpack.c.b16 %v3972, %v3965
    %v4862 = vpack.c.b16 %v3973, %v3966
    %v4863 = vpack.c.b16 %v3974, %v3967
    %v4864 = vpack.c.b16 %v3975, %v3968
    %v4865 = vpack.c.b16 %v3976, %v3969
    %v4866 = vpack.c.b16 %v3977, %v3970
    %v4867 = vpack.c.b16 %v3985, %v3978
    %v4868 = vpack.c.b16 %v3986, %v3979
    %v4869 = vpack.c.b16 %v3987, %v3980
    %v4870 = vpack.c.b16 %v3988, %v3981
    %v4871 = vpack.c.b16 %v3989, %v3982
    %v4872 = vpack.c.b16 %v3990, %v3983
    %v4873 = vpack.c.b16 %v3991, %v3984
    %v4874 = vpack.c.b16 %v3999, %v3992
    %v4875 = vpack.c.b16 %v4000, %v3993
    %v4876 = vpack.c.b16 %v4001, %v3994
    %v4877 = vpack.c.b16 %v4002, %v3995
    %v4878 = vpack.c.b16 %v4003, %v3996
    %v4879 = vpack.c.b16 %v4004, %v3997
    %v4880 = vpack.c.b16 %v4005, %v3998
    %v4881 = vpack.c.b16 %v4013, %v4006
    %v4882 = vpack.c.b16 %v4014, %v4007
    %v4883 = vpack.c.b16 %v4015, %v4008
    %v4884 = vpack.c.b16 %v4016, %v4009
    %v4885 = vpack.c.b16 %v4017, %v4010
    %v4886 = vpack.c.b16 %v4018, %v4011
    %v4887 = vpack.c.b16 %v4019, %v4012
    %v4888 = vpack.c.b16 %v4027, %v4020
    %v4889 = vpack.c.b16 %v4028, %v4021
    %v4890 = vpack.c.b16 %v4029, %v4022
    %v4891 = vpack.c.b16 %v4030, %v4023
    %v4892 = vpack.c.b16 %v4031, %v4024
    %v4893 = vpack.c.b16 %v4032, %v4025
    %v4894 = vpack.c.b16 %v4033, %v4026
    %v4895 = vpack.c.b16 %v4041, %v4034
    %v4896 = vpack.c.b16 %v4042, %v4035
    %v4897 = vpack.c.b16 %v4043, %v4036
    %v4898 = vpack.c.b16 %v4044, %v4037
    %v4899 = vpack.c.b16 %v4045, %v4038
    %v4900 = vpack.c.b16 %v4046, %v4039
    %v4901 = vpack.c.b16 %v4047, %v4040
    %v4902 = vpack.c.b16 %v4055, %v4048
    %v4903 = vpack.c.b16 %v4056, %v4049
    %v4904 = vpack.c.b16 %v4057, %v4050
    %v4905 = vpack.c.b16 %v4058, %v4051
    %v4906 = vpack.c.b16 %v4059, %v4052
    %v4907 = vpack.c.b16 %v4060, %v4053
    %v4908 = vpack.c.b16 %v4061, %v4054
    %v4909 = vpack.c.b16 %v4069, %v4062
    %v4910 = vpack.c.b16 %v4070, %v4063
    %v4911 = vpack.c.b16 %v4071, %v4064
    %v4912 = vpack.c.b16 %v4072, %v4065
    %v4913 = vpack.c.b16 %v4073, %v4066
    %v4914 = vpack.c.b16 %v4074, %v4067
    %v4915 = vpack.c.b16 %v4075, %v4068
    %v4916 = vpack.c.b16 %v4083, %v4076
    %v4917 = vpack.c.b16 %v4084, %v4077
    %v4918 = vpack.c.b16 %v4085, %v4078
    %v4919 = vpack.c.b16 %v4086, %v4079
    %v4920 = vpack.c.b16 %v4087, %v4080
    %v4921 = vpack.c.b16 %v4088, %v4081
    %v4922 = vpack.c.b16 %v4089, %v4082
    %v4923 = vpack.c.b16 %v4097, %v4090
    %v4924 = vpack.c.b16 %v4098, %v4091
    %v4925 = vpack.c.b16 %v4099, %v4092
    %v4926 = vpack.c.b16 %v4100, %v4093
    %v4927 = vpack.c.b16 %v4101, %v4094
    %v4928 = vpack.c.b16 %v4102, %v4095
    %v4929 = vpack.c.b16 %v4103, %v4096
    %v4930 = vpack.c.b16 %v4111, %v4104
    %v4931 = vpack.c.b16 %v4112, %v4105
    %v4932 = vpack.c.b16 %v4113, %v4106
    %v4933 = vpack.c.b16 %v4114, %v4107
    %v4934 = vpack.c.b16 %v4115, %v4108
    %v4935 = vpack.c.b16 %v4116, %v4109
    %v4936 = vpack.c.b16 %v4117, %v4110
    %v4937 = vpack.c.b16 %v4125, %v4118
    %v4938 = vpack.c.b16 %v4126, %v4119
    %v4939 = vpack.c.b16 %v4127, %v4120
    %v4940 = vpack.c.b16 %v4128, %v4121
    %v4941 = vpack.c.b16 %v4129, %v4122
    %v4942 = vpack.c.b16 %v4130, %v4123
    %v4943 = vpack.c.b16 %v4131, %v4124
    %v4944 = vpack.c.b16 %v4139, %v4132
    %v4945 = vpack.c.b16 %v4140, %v4133
    %v4946 = vpack.c.b16 %v4141, %v4134
    %v4947 = vpack.c.b16 %v4142, %v4135
    %v4948 = vpack.c.b16 %v4143, %v4136
    %v4949 = vpack.c.b16 %v4144, %v4137
    %v4950 = vpack.c.b16 %v4145, %v4138
    %v4951 = vpack.c.b16 %v4153, %v4146
    %v4952 = vpack.c.b16 %v4154, %v4147
    %v4953 = vpack.c.b16 %v4155, %v4148
    %v4954 = vpack.c.b16 %v4156, %v4149
    %v4955 = vpack.c.b16 %v4157, %v4150
    %v4956 = vpack.c.b16 %v4158, %v4151
    %v4957 = vpack.c.b16 %v4159, %v4152
    %v4958 = vpack.c.b16 %v4167, %v4160
    %v4959 = vpack.c.b16 %v4168, %v4161
    %v4960 = vpack.c.b16 %v4169, %v4162
    %v4961 = vpack.c.b16 %v4170, %v4163
    %v4962 = vpack.c.b16 %v4171, %v4164
    %v4963 = vpack.c.b16 %v4172, %v4165
    %v4964 = vpack.c.b16 %v4173, %v4166
    %v4965 = vpack.c.b16 %v4181, %v4174
    %v4966 = vpack.c.b16 %v4182, %v4175
    %v4967 = vpack.c.b16 %v4183, %v4176
    %v4968 = vpack.c.b16 %v4184, %v4177
    %v4969 = vpack.c.b16 %v4185, %v4178
    %v4970 = vpack.c.b16 %v4186, %v4179
    %v4971 = vpack.c.b16 %v4187, %v4180
    %v4972 = vpack.c.b16 %v4195, %v4188
    %v4973 = vpack.c.b16 %v4196, %v4189
    %v4974 = vpack.c.b16 %v4197, %v4190
    %v4975 = vpack.c.b16 %v4198, %v4191
    %v4976 = vpack.c.b16 %v4199, %v4192
    %v4977 = vpack.c.b16 %v4200, %v4193
    %v4978 = vpack.c.b16 %v4201, %v4194
    %v4979 = vpack.c.b16 %v4209, %v4202
    %v4980 = vpack.c.b16 %v4210, %v4203
    %v4981 = vpack.c.b16 %v4211, %v4204
    %v4982 = vpack.c.b16 %v4212, %v4205
    %v4983 = vpack.c.b16 %v4213, %v4206
    %v4984 = vpack.c.b16 %v4214, %v4207
    %v4985 = vpack.c.b16 %v4215, %v4208
    %v4986 = vpack.c.b16 %v4223, %v4216
    %v4987 = vpack.c.b16 %v4224, %v4217
    %v4988 = vpack.c.b16 %v4225, %v4218
    %v4989 = vpack.c.b16 %v4226, %v4219
    %v4990 = vpack.c.b16 %v4227, %v4220
    %v4991 = vpack.c.b16 %v4228, %v4221
    %v4992 = vpack.c.b16 %v4229, %v4222
    %v4993 = vpack.c.b16 %v4237, %v4230
    %v4994 = vpack.c.b16 %v4238, %v4231
    %v4995 = vpack.c.b16 %v4239, %v4232
    %v4996 = vpack.c.b16 %v4240, %v4233
    %v4997 = vpack.c.b16 %v4241, %v4234
    %v4998 = vpack.c.b16 %v4242, %v4235
    %v4999 = vpack.c.b16 %v4243, %v4236
    %v5000 = vpack.c.b16 %v4251, %v4244
    %v5001 = vpack.c.b16 %v4252, %v4245
    %v5002 = vpack.c.b16 %v4253, %v4246
    %v5003 = vpack.c.b16 %v4254, %v4247
    %v5004 = vpack.c.b16 %v4255, %v4248
    %v5005 = vpack.c.b16 %v4256, %v4249
    %v5006 = vpack.c.b16 %v4257, %v4250
    %v5007 = vpack.c.b16 %v4265, %v4258
    %v5008 = vpack.c.b16 %v4266, %v4259
    %v5009 = vpack.c.b16 %v4267, %v4260
    %v5010 = vpack.c.b16 %v4268, %v4261
    %v5011 = vpack.c.b16 %v4269, %v4262
    %v5012 = vpack.c.b16 %v4270, %v4263
    %v5013 = vpack.c.b16 %v4271, %v4264
    %v5014 = vpack.c.b16 %v4279, %v4272
    %v5015 = vpack.c.b16 %v4280, %v4273
    %v5016 = vpack.c.b16 %v4281, %v4274
    %v5017 = vpack.c.b16 %v4282, %v4275
    %v5018 = vpack.c.b16 %v4283, %v4276
    %v5019 = vpack.c.b16 %v4284, %v4277
    %v5020 = vpack.c.b16 %v4285, %v4278
    %v5021 = vpack.c.b16 %v4293, %v4286
    %v5022 = vpack.c.b16 %v4294, %v4287
    %v5023 = vpack.c.b16 %v4295, %v4288
    %v5024 = vpack.c.b16 %v4296, %v4289
    %v5025 = vpack.c.b16 %v4297, %v4290
    %v5026 = vpack.c.b16 %v4298, %v4291
    %v5027 = vpack.c.b16 %v4299, %v4292
    %v5028 = vpack.c.b16 %v4307, %v4300
    %v5029 = vpack.c.b16 %v4308, %v4301
    %v5030 = vpack.c.b16 %v4309, %v4302
    %v5031 = vpack.c.b16 %v4310, %v4303
    %v5032 = vpack.c.b16 %v4311, %v4304
    %v5033 = vpack.c.b16 %v4312, %v4305
    %v5034 = vpack.c.b16 %v4313, %v4306
    %v5035 = vpack.c.b16 %v4321, %v4314
    %v5036 = vpack.c.b16 %v4322, %v4315
    %v5037 = vpack.c.b16 %v4323, %v4316
    %v5038 = vpack.c.b16 %v4324, %v4317
    %v5039 = vpack.c.b16 %v4325, %v4318
    %v5040 = vpack.c.b16 %v4326, %v4319
    %v5041 = vpack.c.b16 %v4327, %v4320
    %v5042 = vpack.c.b16 %v4335, %v4328
    %v5043 = vpack.c.b16 %v4336, %v4329
    %v5044 = vpack.c.b16 %v4337, %v4330
    %v5045 = vpack.c.b16 %v4338, %v4331
    %v5046 = vpack.c.b16 %v4339, %v4332
    %v5047 = vpack.c.b16 %v4340, %v4333
    %v5048 = vpack.c.b16 %v4341, %v4334
    %v5049 = vpack.c.b16 %v4349, %v4342
    %v5050 = vpack.c.b16 %v4350, %v4343
    %v5051 = vpack.c.b16 %v4351, %v4344
    %v5052 = vpack.c.b16 %v4352, %v4345
    %v5053 = vpack.c.b16 %v4353, %v4346
    %v5054 = vpack.c.b16 %v4354, %v4347
    %v5055 = vpack.c.b16 %v4355, %v4348
    %v5056 = vpack.c.b16 %v4363, %v4356
    %v5057 = vpack.c.b16 %v4364, %v4357
    %v5058 = vpack.c.b16 %v4365, %v4358
    %v5059 = vpack.c.b16 %v4366, %v4359
    %v5060 = vpack.c.b16 %v4367, %v4360
    %v5061 = vpack.c.b16 %v4368, %v4361
    %v5062 = vpack.c.b16 %v4369, %v4362
    %v5063 = vpack.c.b16 %v4377, %v4370
    %v5064 = vpack.c.b16 %v4378, %v4371
    %v5065 = vpack.c.b16 %v4379, %v4372
    %v5066 = vpack.c.b16 %v4380, %v4373
    %v5067 = vpack.c.b16 %v4381, %v4374
    %v5068 = vpack.c.b16 %v4382, %v4375
    %v5069 = vpack.c.b16 %v4383, %v4376
    %v5070 = vpack.c.b16 %v4391, %v4384
    %v5071 = vpack.c.b16 %v4392, %v4385
    %v5072 = vpack.c.b16 %v4393, %v4386
    %v5073 = vpack.c.b16 %v4394, %v4387
    %v5074 = vpack.c.b16 %v4395, %v4388
    %v5075 = vpack.c.b16 %v4396, %v4389
    %v5076 = vpack.c.b16 %v4397, %v4390
    %v5077 = vpack.c.b16 %v4405, %v4398
    %v5078 = vpack.c.b16 %v4406, %v4399
    %v5079 = vpack.c.b16 %v4407, %v4400
    %v5080 = vpack.c.b16 %v4408, %v4401
    %v5081 = vpack.c.b16 %v4409, %v4402
    %v5082 = vpack.c.b16 %v4410, %v4403
    %v5083 = vpack.c.b16 %v4411, %v4404
    %v5084 = vpack.c.b16 %v4419, %v4412
    %v5085 = vpack.c.b16 %v4420, %v4413
    %v5086 = vpack.c.b16 %v4421, %v4414
    %v5087 = vpack.c.b16 %v4422, %v4415
    %v5088 = vpack.c.b16 %v4423, %v4416
    %v5089 = vpack.c.b16 %v4424, %v4417
    %v5090 = vpack.c.b16 %v4425, %v4418
    %v5091 = vpack.c.b16 %v4433, %v4426
    %v5092 = vpack.c.b16 %v4434, %v4427
    %v5093 = vpack.c.b16 %v4435, %v4428
    %v5094 = vpack.c.b16 %v4436, %v4429
    %v5095 = vpack.c.b16 %v4437, %v4430
    %v5096 = vpack.c.b16 %v4438, %v4431
    %v5097 = vpack.c.b16 %v4439, %v4432
    %v5098 = vpack.c.b16 %v4447, %v4440
    %v5099 = vpack.c.b16 %v4448, %v4441
    %v5100 = vpack.c.b16 %v4449, %v4442
    %v5101 = vpack.c.b16 %v4450, %v4443
    %v5102 = vpack.c.b16 %v4451, %v4444
    %v5103 = vpack.c.b16 %v4452, %v4445
    %v5104 = vpack.c.b16 %v4453, %v4446
    %v5105 = vpack.c.b16 %v4461, %v4454
    %v5106 = vpack.c.b16 %v4462, %v4455
    %v5107 = vpack.c.b16 %v4463, %v4456
    %v5108 = vpack.c.b16 %v4464, %v4457
    %v5109 = vpack.c.b16 %v4465, %v4458
    %v5110 = vpack.c.b16 %v4466, %v4459
    %v5111 = vpack.c.b16 %v4467, %v4460
    %v5112 = vpack.c.b16 %v4475, %v4468
    %v5113 = vpack.c.b16 %v4476, %v4469
    %v5114 = vpack.c.b16 %v4477, %v4470
    %v5115 = vpack.c.b16 %v4478, %v4471
    %v5116 = vpack.c.b16 %v4479, %v4472
    %v5117 = vpack.c.b16 %v4480, %v4473
    %v5118 = vpack.c.b16 %v4481, %v4474
    %v5119 = vpack.c.b16 %v4489, %v4482
    %v5120 = vpack.c.b16 %v4490, %v4483
    %v5121 = vpack.c.b16 %v4491, %v4484
    %v5122 = vpack.c.b16 %v4492, %v4485
    %v5123 = vpack.c.b16 %v4493, %v4486
    %v5124 = vpack.c.b16 %v4494, %v4487
    %v5125 = vpack.c.b16 %v4495, %v4488
    %v5126 = vpack.c.b16 %v4503, %v4496
    %v5127 = vpack.c.b16 %v4504, %v4497
    %v5128 = vpack.c.b16 %v4505, %v4498
    %v5129 = vpack.c.b16 %v4506, %v4499
    %v5130 = vpack.c.b16 %v4507, %v4500
    %v5131 = vpack.c.b16 %v4508, %v4501
    %v5132 = vpack.c.b16 %v4509, %v4502
    %v5133 = vpack.c.b16 %v4517, %v4510
    %v5134 = vpack.c.b16 %v4518, %v4511
    %v5135 = vpack.c.b16 %v4519, %v4512
    %v5136 = vpack.c.b16 %v4520, %v4513
    %v5137 = vpack.c.b16 %v4521, %v4514
    %v5138 = vpack.c.b16 %v4522, %v4515
    %v5139 = vpack.c.b16 %v4523, %v4516
    %v5140 = vpack.c.b16 %v4531, %v4524
    %v5141 = vpack.c.b16 %v4532, %v4525
    %v5142 = vpack.c.b16 %v4533, %v4526
    %v5143 = vpack.c.b16 %v4534, %v4527
    %v5144 = vpack.c.b16 %v4535, %v4528
    %v5145 = vpack.c.b16 %v4536, %v4529
    %v5146 = vpack.c.b16 %v4537, %v4530
    %v5147 = vpack.c.b16 %v4545, %v4538
    %v5148 = vpack.c.b16 %v4546, %v4539
    %v5149 = vpack.c.b16 %v4547, %v4540
    %v5150 = vpack.c.b16 %v4548, %v4541
    %v5151 = vpack.c.b16 %v4549, %v4542
    %v5152 = vpack.c.b16 %v4550, %v4543
    %v5153 = vpack.c.b16 %v4551, %v4544
    %v5154 = vpack.c.b16 %v4559, %v4552
    %v5155 = vpack.c.b16 %v4560, %v4553
    %v5156 = vpack.c.b16 %v4561, %v4554
    %v5157 = vpack.c.b16 %v4562, %v4555
    %v5158 = vpack.c.b16 %v4563, %v4556
    %v5159 = vpack.c.b16 %v4564, %v4557
    %v5160 = vpack.c.b16 %v4565, %v4558
    %v5161 = vpack.c.b16 %v4573, %v4566
    %v5162 = vpack.c.b16 %v4574, %v4567
    %v5163 = vpack.c.b16 %v4575, %v4568
    %v5164 = vpack.c.b16 %v4576, %v4569
    %v5165 = vpack.c.b16 %v4577, %v4570
    %v5166 = vpack.c.b16 %v4578, %v4571
    %v5167 = vpack.c.b16 %v4579, %v4572
    %v5168 = vpack.c.b16 %v4587, %v4580
    %v5169 = vpack.c.b16 %v4588, %v4581
    %v5170 = vpack.c.b16 %v4589, %v4582
    %v5171 = vpack.c.b16 %v4590, %v4583
    %v5172 = vpack.c.b16 %v4591, %v4584
    %v5173 = vpack.c.b16 %v4592, %v4585
    %v5174 = vpack.c.b16 %v4593, %v4586
    %v5175 = vpack.c.b16 %v4601, %v4594
    %v5176 = vpack.c.b16 %v4602, %v4595
    %v5177 = vpack.c.b16 %v4603, %v4596
    %v5178 = vpack.c.b16 %v4604, %v4597
    %v5179 = vpack.c.b16 %v4605, %v4598
    %v5180 = vpack.c.b16 %v4606, %v4599
    %v5181 = vpack.c.b16 %v4607, %v4600
    %v5182 = vpack.c.b16 %v4615, %v4608
    %v5183 = vpack.c.b16 %v4616, %v4609
    %v5184 = vpack.c.b16 %v4617, %v4610
    %v5185 = vpack.c.b16 %v4618, %v4611
    %v5186 = vpack.c.b16 %v4619, %v4612
    %v5187 = vpack.c.b16 %v4620, %v4613
    %v5188 = vpack.c.b16 %v4621, %v4614
    %v5189 = vpack.c.b16 %v4629, %v4622
    %v5190 = vpack.c.b16 %v4630, %v4623
    %v5191 = vpack.c.b16 %v4631, %v4624
    %v5192 = vpack.c.b16 %v4632, %v4625
    %v5193 = vpack.c.b16 %v4633, %v4626
    %v5194 = vpack.c.b16 %v4634, %v4627
    %v5195 = vpack.c.b16 %v4635, %v4628
    %v5196 = vpack.c.b16 %v4643, %v4636
    %v5197 = vpack.c.b16 %v4644, %v4637
    %v5198 = vpack.c.b16 %v4645, %v4638
    %v5199 = vpack.c.b16 %v4646, %v4639
    %v5200 = vpack.c.b16 %v4647, %v4640
    %v5201 = vpack.c.b16 %v4648, %v4641
    %v5202 = vpack.c.b16 %v4649, %v4642
    %v5203 = vpack.c.b16 %v4657, %v4650
    %v5204 = vpack.c.b16 %v4658, %v4651
    %v5205 = vpack.c.b16 %v4659, %v4652
    %v5206 = vpack.c.b16 %v4660, %v4653
    %v5207 = vpack.c.b16 %v4661, %v4654
    %v5208 = vpack.c.b16 %v4662, %v4655
    %v5209 = vpack.c.b16 %v4663, %v4656
    %v5210 = vpack.c.b16 %v4671, %v4664
    %v5211 = vpack.c.b16 %v4672, %v4665
    %v5212 = vpack.c.b16 %v4673, %v4666
    %v5213 = vpack.c.b16 %v4674, %v4667
    %v5214 = vpack.c.b16 %v4675, %v4668
    %v5215 = vpack.c.b16 %v4676, %v4669
    %v5216 = vpack.c.b16 %v4677, %v4670
    %v5217 = vpack.c.b16 %v4685, %v4678
    %v5218 = vpack.c.b16 %v4686, %v4679
    %v5219 = vpack.c.b16 %v4687, %v4680
    %v5220 = vpack.c.b16 %v4688, %v4681
    %v5221 = vpack.c.b16 %v4689, %v4682
    %v5222 = vpack.c.b16 %v4690, %v4683
    %v5223 = vpack.c.b16 %v4691, %v4684
    %v5224 = vpack.c.b16 %v4699, %v4692
    %v5225 = vpack.c.b16 %v4700, %v4693
    %v5226 = vpack.c.b16 %v4701, %v4694
    %v5227 = vpack.c.b16 %v4702, %v4695
    %v5228 = vpack.c.b16 %v4703, %v4696
    %v5229 = vpack.c.b16 %v4704, %v4697
    %v5230 = vpack.c.b16 %v4705, %v4698
    %v5231 = vpack.c.b16 %v4713, %v4706
    %v5232 = vpack.c.b16 %v4714, %v4707
    %v5233 = vpack.c.b16 %v4715, %v4708
    %v5234 = vpack.c.b16 %v4716, %v4709
    %v5235 = vpack.c.b16 %v4717, %v4710
    %v5236 = vpack.c.b16 %v4718, %v4711
    %v5237 = vpack.c.b16 %v4719, %v4712
    %v5238 = vpack.c.b16 %v4727, %v4720
    %v5239 = vpack.c.b16 %v4728, %v4721
    %v5240 = vpack.c.b16 %v4729, %v4722
    %v5241 = vpack.c.b16 %v4730, %v4723
    %v5242 = vpack.c.b16 %v4731, %v4724
    %v5243 = vpack.c.b16 %v4732, %v4725
    %v5244 = vpack.c.b16 %v4733, %v4726
    %v5245 = vpack.c.b16 %v4741, %v4734
    %v5246 = vpack.c.b16 %v4742, %v4735
    %v5247 = vpack.c.b16 %v4743, %v4736
    %v5248 = vpack.c.b16 %v4744, %v4737
    %v5249 = vpack.c.b16 %v4745, %v4738
    %v5250 = vpack.c.b16 %v4746, %v4739
    %v5251 = vpack.c.b16 %v4747, %v4740
    %v5252 = vpack.c.b16 %v4755, %v4748
    %v5253 = vpack.c.b16 %v4756, %v4749
    %v5254 = vpack.c.b16 %v4757, %v4750
    %v5255 = vpack.c.b16 %v4758, %v4751
    %v5256 = vpack.c.b16 %v4759, %v4752
    %v5257 = vpack.c.b16 %v4760, %v4753
    %v5258 = vpack.c.b16 %v4761, %v4754
    %v5259 = vpack.c.b16 %v4769, %v4762
    %v5260 = vpack.c.b16 %v4770, %v4763
    %v5261 = vpack.c.b16 %v4771, %v4764
    %v5262 = vpack.c.b16 %v4772, %v4765
    %v5263 = vpack.c.b16 %v4773, %v4766
    %v5264 = vpack.c.b16 %v4774, %v4767
    %v5265 = vpack.c.b16 %v4775, %v4768
    %v5266 = vpack.c.b16 %v4783, %v4776
    %v5267 = vpack.c.b16 %v4784, %v4777
    %v5268 = vpack.c.b16 %v4785, %v4778
    %v5269 = vpack.c.b16 %v4786, %v4779
    %v5270 = vpack.c.b16 %v4787, %v4780
    %v5271 = vpack.c.b16 %v4788, %v4781
    %v5272 = vpack.c.b16 %v4789, %v4782
    %v5273 = vpack.c.b16 %v4797, %v4790
    %v5274 = vpack.c.b16 %v4798, %v4791
    %v5275 = vpack.c.b16 %v4799, %v4792
    %v5276 = vpack.c.b16 %v4800, %v4793
    %v5277 = vpack.c.b16 %v4801, %v4794
    %v5278 = vpack.c.b16 %v4802, %v4795
    %v5279 = vpack.c.b16 %v4803, %v4796
    %v5280 = vpack.c.b16 %v4811, %v4804
    %v5281 = vpack.c.b16 %v4812, %v4805
    %v5282 = vpack.c.b16 %v4813, %v4806
    %v5283 = vpack.c.b16 %v4814, %v4807
    %v5284 = vpack.c.b16 %v4815, %v4808
    %v5285 = vpack.c.b16 %v4816, %v4809
    %v5286 = vpack.c.b16 %v4817, %v4810
    %v5287 = vpack.c.b16 %v4825, %v4818
    %v5288 = vpack.c.b16 %v4826, %v4819
    %v5289 = vpack.c.b16 %v4827, %v4820
    %v5290 = vpack.c.b16 %v4828, %v4821
    %v5291 = vpack.c.b16 %v4829, %v4822
    %v5292 = vpack.c.b16 %v4830, %v4823
    %v5293 = vpack.c.b16 %v4831, %v4824
    %v5294 = vpack.c.b16 %v4839, %v4832
    %v5295 = vpack.c.b16 %v4840, %v4833
    %v5296 = vpack.c.b16 %v4841, %v4834
    %v5297 = vpack.c.b16 %v4842, %v4835
    %v5298 = vpack.c.b16 %v4843, %v4836
    %v5299 = vpack.c.b16 %v4844, %v4837
    %v5300 = vpack.c.b16 %v4845, %v4838
    %v5301 = vpack.c.b16 %v4853, %v4846
    %v5302 = vpack.c.b16 %v4854, %v4847
    %v5303 = vpack.c.b16 %v4855, %v4848
    %v5304 = vpack.c.b16 %v4856, %v4849
    %v5305 = vpack.c.b16 %v4857, %v4850
    %v5306 = vpack.c.b16 %v4858, %v4851
    %v5307 = vpack.c.b16 %v4859, %v4852
    %5756 = vmatprep.subr.bf16.mxu0 %v4910
    %5757 = vmatpush1.bf16.msra.mxu0 %v4909
    %5758 = vmatprep.subr.bf16.mxu0 %v4903
    %5759 = vmatpush1.bf16.msra.mxu0 %v4902
    %5760 = vmatprep.subr.bf16.mxu0 %v4896
    %5761 = vmatpush1.bf16.msra.mxu0 %v4895
    %5762 = vmatprep.subr.bf16.mxu0 %v4889
    %5763 = vmatpush1.bf16.msra.mxu0 %v4888
    %5764 = vmatprep.subr.bf16.mxu0 %v4882
    %5765 = vmatpush1.bf16.msra.mxu0 %v4881
    %5766 = vmatprep.subr.bf16.mxu0 %v4875
    %5767 = vmatpush1.bf16.msra.mxu0 %v4874
    %5768 = vmatprep.subr.bf16.mxu0 %v4868
    %5769 = vmatpush1.bf16.msra.mxu0 %v4867
    %5770 = vmatprep.subr.bf16.mxu0 %v4861
    %5771 = vmatpush1.bf16.msra.mxu0 %v4860
    %5772 = vmatprep.subr.bf16.mxu0 %v4966
    %5773 = vmatpush2.bf16.msra.mxu0 %v4965
    %5774 = vmatprep.subr.bf16.mxu0 %v4959
    %5775 = vmatpush2.bf16.msra.mxu0 %v4958
    %5776 = vmatprep.subr.bf16.mxu0 %v4952
    %5777 = vmatpush2.bf16.msra.mxu0 %v4951
    %5778 = vmatprep.subr.bf16.mxu0 %v4945
    %5779 = vmatpush2.bf16.msra.mxu0 %v4944
    %5780 = vmatprep.subr.bf16.mxu0 %v4938
    %5781 = vmatpush2.bf16.msra.mxu0 %v4937
    %5782 = vmatprep.subr.bf16.mxu0 %v4931
    %5783 = vmatpush2.bf16.msra.mxu0 %v4930
    %5784 = vmatprep.subr.bf16.mxu0 %v4924
    %5785 = vmatpush2.bf16.msra.mxu0 %v4923
    %5786 = vmatprep.subr.bf16.mxu0 %v4917
    %5787 = vmatpush2.bf16.msra.mxu0 %v4916
    %5788 = vmatprep.mubr.bf16.mxu0 %v2896
    %5789 = vmatmul.mubr.bf16.gmra.mxu0 %v2895
    %v5790 = vpop.f32.mrf.mxu0
    %v5791 = vadd.f32 %v3420, %v5790
    %v5792 = vpop.f32.mrf.mxu0
    %v5793 = vadd.f32 %v3424, %v5792
    %v5794 = vpop.f32.mrf.mxu0
    %v5795 = vadd.f32 %v3420, %v5794
    %v5796 = vpop.f32.mrf.mxu0
    %v5797 = vadd.f32 %v3424, %v5796
    %5798 = vdwg.mxu0
    %5799 = vmatprep.subr.bf16.mxu0 %v5022
    %5800 = vmatpush1.bf16.msra.mxu0 %v5021
    %5801 = vmatprep.subr.bf16.mxu0 %v5015
    %5802 = vmatpush1.bf16.msra.mxu0 %v5014
    %5803 = vmatprep.subr.bf16.mxu0 %v5008
    %5804 = vmatpush1.bf16.msra.mxu0 %v5007
    %5805 = vmatprep.subr.bf16.mxu0 %v5001
    %5806 = vmatpush1.bf16.msra.mxu0 %v5000
    %5807 = vmatprep.subr.bf16.mxu0 %v4994
    %5808 = vmatpush1.bf16.msra.mxu0 %v4993
    %5809 = vmatprep.subr.bf16.mxu0 %v4987
    %5810 = vmatpush1.bf16.msra.mxu0 %v4986
    %5811 = vmatprep.subr.bf16.mxu0 %v4980
    %5812 = vmatpush1.bf16.msra.mxu0 %v4979
    %5813 = vmatprep.subr.bf16.mxu0 %v4973
    %5814 = vmatpush1.bf16.msra.mxu0 %v4972
    %5815 = vmatprep.subr.bf16.mxu0 %v5078
    %5816 = vmatpush2.bf16.msra.mxu0 %v5077
    %5817 = vmatprep.subr.bf16.mxu0 %v5071
    %5818 = vmatpush2.bf16.msra.mxu0 %v5070
    %5819 = vmatprep.subr.bf16.mxu0 %v5064
    %5820 = vmatpush2.bf16.msra.mxu0 %v5063
    %5821 = vmatprep.subr.bf16.mxu0 %v5057
    %5822 = vmatpush2.bf16.msra.mxu0 %v5056
    %5823 = vmatprep.subr.bf16.mxu0 %v5050
    %5824 = vmatpush2.bf16.msra.mxu0 %v5049
    %5825 = vmatprep.subr.bf16.mxu0 %v5043
    %5826 = vmatpush2.bf16.msra.mxu0 %v5042
    %5827 = vmatprep.subr.bf16.mxu0 %v5036
    %5828 = vmatpush2.bf16.msra.mxu0 %v5035
    %5829 = vmatprep.subr.bf16.mxu0 %v5029
    %5830 = vmatpush2.bf16.msra.mxu0 %v5028
    %5831 = vmatprep.mubr.bf16.mxu0 %v2898
    %5832 = vmatmul.mubr.bf16.gmra.mxu0 %v2897
    %v5833 = vpop.f32.mrf.mxu0
    %v5834 = vadd.f32 %v5791, %v5833
    %v5835 = vpop.f32.mrf.mxu0
    %v5836 = vadd.f32 %v5793, %v5835
    %v5837 = vpop.f32.mrf.mxu0
    %v5838 = vadd.f32 %v5795, %v5837
    %v5839 = vpop.f32.mrf.mxu0
    %v5840 = vadd.f32 %v5797, %v5839
    %5841 = vdwg.mxu0
    %5842 = vmatprep.subr.bf16.mxu0 %v5134
    %5843 = vmatpush1.bf16.msra.mxu0 %v5133
    %5844 = vmatprep.subr.bf16.mxu0 %v5127
    %5845 = vmatpush1.bf16.msra.mxu0 %v5126
    %5846 = vmatprep.subr.bf16.mxu0 %v5120
    %5847 = vmatpush1.bf16.msra.mxu0 %v5119
    %5848 = vmatprep.subr.bf16.mxu0 %v5113
    %5849 = vmatpush1.bf16.msra.mxu0 %v5112
    %5850 = vmatprep.subr.bf16.mxu0 %v5106
    %5851 = vmatpush1.bf16.msra.mxu0 %v5105
    %5852 = vmatprep.subr.bf16.mxu0 %v5099
    %5853 = vmatpush1.bf16.msra.mxu0 %v5098
    %5854 = vmatprep.subr.bf16.mxu0 %v5092
    %5855 = vmatpush1.bf16.msra.mxu0 %v5091
    %5856 = vmatprep.subr.bf16.mxu0 %v5085
    %5857 = vmatpush1.bf16.msra.mxu0 %v5084
    %5858 = vmatprep.subr.bf16.mxu0 %v5190
    %5859 = vmatpush2.bf16.msra.mxu0 %v5189
    %5860 = vmatprep.subr.bf16.mxu0 %v5183
    %5861 = vmatpush2.bf16.msra.mxu0 %v5182
    %5862 = vmatprep.subr.bf16.mxu0 %v5176
    %5863 = vmatpush2.bf16.msra.mxu0 %v5175
    %5864 = vmatprep.subr.bf16.mxu0 %v5169
    %5865 = vmatpush2.bf16.msra.mxu0 %v5168
    %5866 = vmatprep.subr.bf16.mxu0 %v5162
    %5867 = vmatpush2.bf16.msra.mxu0 %v5161
    %5868 = vmatprep.subr.bf16.mxu0 %v5155
    %5869 = vmatpush2.bf16.msra.mxu0 %v5154
    %5870 = vmatprep.subr.bf16.mxu0 %v5148
    %5871 = vmatpush2.bf16.msra.mxu0 %v5147
    %5872 = vmatprep.subr.bf16.mxu0 %v5141
    %5873 = vmatpush2.bf16.msra.mxu0 %v5140
    %5874 = vmatprep.mubr.bf16.mxu0 %v2900
    %5875 = vmatmul.mubr.bf16.gmra.mxu0 %v2899
    %v5876 = vpop.f32.mrf.mxu0
    %v5877 = vadd.f32 %v5834, %v5876
    %v5878 = vpop.f32.mrf.mxu0
    %v5879 = vadd.f32 %v5836, %v5878
    %v5880 = vpop.f32.mrf.mxu0
    %v5881 = vadd.f32 %v5838, %v5880
    %v5882 = vpop.f32.mrf.mxu0
    %v5883 = vadd.f32 %v5840, %v5882
    %5884 = vdwg.mxu0
    %5885 = vmatprep.subr.bf16.mxu0 %v5246
    %5886 = vmatpush1.bf16.msra.mxu0 %v5245
    %5887 = vmatprep.subr.bf16.mxu0 %v5239
    %5888 = vmatpush1.bf16.msra.mxu0 %v5238
    %5889 = vmatprep.subr.bf16.mxu0 %v5232
    %5890 = vmatpush1.bf16.msra.mxu0 %v5231
    %5891 = vmatprep.subr.bf16.mxu0 %v5225
    %5892 = vmatpush1.bf16.msra.mxu0 %v5224
    %5893 = vmatprep.subr.bf16.mxu0 %v5218
    %5894 = vmatpush1.bf16.msra.mxu0 %v5217
    %5895 = vmatprep.subr.bf16.mxu0 %v5211
    %5896 = vmatpush1.bf16.msra.mxu0 %v5210
    %5897 = vmatprep.subr.bf16.mxu0 %v5204
    %5898 = vmatpush1.bf16.msra.mxu0 %v5203
    %5899 = vmatprep.subr.bf16.mxu0 %v5197
    %5900 = vmatpush1.bf16.msra.mxu0 %v5196
    %5901 = vmatprep.subr.bf16.mxu0 %v5302
    %5902 = vmatpush2.bf16.msra.mxu0 %v5301
    %5903 = vmatprep.subr.bf16.mxu0 %v5295
    %5904 = vmatpush2.bf16.msra.mxu0 %v5294
    %5905 = vmatprep.subr.bf16.mxu0 %v5288
    %5906 = vmatpush2.bf16.msra.mxu0 %v5287
    %5907 = vmatprep.subr.bf16.mxu0 %v5281
    %5908 = vmatpush2.bf16.msra.mxu0 %v5280
    %5909 = vmatprep.subr.bf16.mxu0 %v5274
    %5910 = vmatpush2.bf16.msra.mxu0 %v5273
    %5911 = vmatprep.subr.bf16.mxu0 %v5267
    %5912 = vmatpush2.bf16.msra.mxu0 %v5266
    %5913 = vmatprep.subr.bf16.mxu0 %v5260
    %5914 = vmatpush2.bf16.msra.mxu0 %v5259
    %5915 = vmatprep.subr.bf16.mxu0 %v5253
    %5916 = vmatpush2.bf16.msra.mxu0 %v5252
    %5917 = vmatprep.mubr.bf16.mxu0 %v2902
    %5918 = vmatmul.mubr.bf16.gmra.mxu0 %v2901
    %v5919 = vpop.f32.mrf.mxu0
    %v5920 = vadd.f32 %v5877, %v5919
    %v5921 = vpop.f32.mrf.mxu0
    %v5922 = vadd.f32 %v5879, %v5921
    %v5923 = vpop.f32.mrf.mxu0
    %v5924 = vadd.f32 %v5881, %v5923
    %v5925 = vpop.f32.mrf.mxu0
    %v5926 = vadd.f32 %v5883, %v5925
    %5927 = vdwg.mxu0
    %5928 = vmatprep.subr.bf16.mxu0 %v4912
    %5929 = vmatpush1.bf16.msra.mxu0 %v4911
    %5930 = vmatprep.subr.bf16.mxu0 %v4905
    %5931 = vmatpush1.bf16.msra.mxu0 %v4904
    %5932 = vmatprep.subr.bf16.mxu0 %v4898
    %5933 = vmatpush1.bf16.msra.mxu0 %v4897
    %5934 = vmatprep.subr.bf16.mxu0 %v4891
    %5935 = vmatpush1.bf16.msra.mxu0 %v4890
    %5936 = vmatprep.subr.bf16.mxu0 %v4884
    %5937 = vmatpush1.bf16.msra.mxu0 %v4883
    %5938 = vmatprep.subr.bf16.mxu0 %v4877
    %5939 = vmatpush1.bf16.msra.mxu0 %v4876
    %5940 = vmatprep.subr.bf16.mxu0 %v4870
    %5941 = vmatpush1.bf16.msra.mxu0 %v4869
    %5942 = vmatprep.subr.bf16.mxu0 %v4863
    %5943 = vmatpush1.bf16.msra.mxu0 %v4862
    %5944 = vmatprep.subr.bf16.mxu0 %v4968
    %5945 = vmatpush2.bf16.msra.mxu0 %v4967
    %5946 = vmatprep.subr.bf16.mxu0 %v4961
    %5947 = vmatpush2.bf16.msra.mxu0 %v4960
    %5948 = vmatprep.subr.bf16.mxu0 %v4954
    %5949 = vmatpush2.bf16.msra.mxu0 %v4953
    %5950 = vmatprep.subr.bf16.mxu0 %v4947
    %5951 = vmatpush2.bf16.msra.mxu0 %v4946
    %5952 = vmatprep.subr.bf16.mxu0 %v4940
    %5953 = vmatpush2.bf16.msra.mxu0 %v4939
    %5954 = vmatprep.subr.bf16.mxu0 %v4933
    %5955 = vmatpush2.bf16.msra.mxu0 %v4932
    %5956 = vmatprep.subr.bf16.mxu0 %v4926
    %5957 = vmatpush2.bf16.msra.mxu0 %v4925
    %5958 = vmatprep.subr.bf16.mxu0 %v4919
    %5959 = vmatpush2.bf16.msra.mxu0 %v4918
    %5960 = vmatprep.mubr.bf16.mxu0 %v2896
    %5961 = vmatmul.mubr.bf16.gmra.mxu0 %v2895
    %v5962 = vpop.f32.mrf.mxu0
    %v5963 = vadd.f32 %v3428, %v5962
    %v5964 = vpop.f32.mrf.mxu0
    %v5965 = vadd.f32 %v3432, %v5964
    %v5966 = vpop.f32.mrf.mxu0
    %v5967 = vadd.f32 %v3428, %v5966
    %v5968 = vpop.f32.mrf.mxu0
    %v5969 = vadd.f32 %v3432, %v5968
    %5970 = vdwg.mxu0
    %5971 = vmatprep.subr.bf16.mxu0 %v5024
    %5972 = vmatpush1.bf16.msra.mxu0 %v5023
    %5973 = vmatprep.subr.bf16.mxu0 %v5017
    %5974 = vmatpush1.bf16.msra.mxu0 %v5016
    %5975 = vmatprep.subr.bf16.mxu0 %v5010
    %5976 = vmatpush1.bf16.msra.mxu0 %v5009
    %5977 = vmatprep.subr.bf16.mxu0 %v5003
    %5978 = vmatpush1.bf16.msra.mxu0 %v5002
    %5979 = vmatprep.subr.bf16.mxu0 %v4996
    %5980 = vmatpush1.bf16.msra.mxu0 %v4995
    %5981 = vmatprep.subr.bf16.mxu0 %v4989
    %5982 = vmatpush1.bf16.msra.mxu0 %v4988
    %5983 = vmatprep.subr.bf16.mxu0 %v4982
    %5984 = vmatpush1.bf16.msra.mxu0 %v4981
    %5985 = vmatprep.subr.bf16.mxu0 %v4975
    %5986 = vmatpush1.bf16.msra.mxu0 %v4974
    %5987 = vmatprep.subr.bf16.mxu0 %v5080
    %5988 = vmatpush2.bf16.msra.mxu0 %v5079
    %5989 = vmatprep.subr.bf16.mxu0 %v5073
    %5990 = vmatpush2.bf16.msra.mxu0 %v5072
    %5991 = vmatprep.subr.bf16.mxu0 %v5066
    %5992 = vmatpush2.bf16.msra.mxu0 %v5065
    %5993 = vmatprep.subr.bf16.mxu0 %v5059
    %5994 = vmatpush2.bf16.msra.mxu0 %v5058
    %5995 = vmatprep.subr.bf16.mxu0 %v5052
    %5996 = vmatpush2.bf16.msra.mxu0 %v5051
    %5997 = vmatprep.subr.bf16.mxu0 %v5045
    %5998 = vmatpush2.bf16.msra.mxu0 %v5044
    %5999 = vmatprep.subr.bf16.mxu0 %v5038
    %6000 = vmatpush2.bf16.msra.mxu0 %v5037
    %6001 = vmatprep.subr.bf16.mxu0 %v5031
    %6002 = vmatpush2.bf16.msra.mxu0 %v5030
    %6003 = vmatprep.mubr.bf16.mxu0 %v2898
    %6004 = vmatmul.mubr.bf16.gmra.mxu0 %v2897
    %v6005 = vpop.f32.mrf.mxu0
    %v6006 = vadd.f32 %v5963, %v6005
    %v6007 = vpop.f32.mrf.mxu0
    %v6008 = vadd.f32 %v5965, %v6007
    %v6009 = vpop.f32.mrf.mxu0
    %v6010 = vadd.f32 %v5967, %v6009
    %v6011 = vpop.f32.mrf.mxu0
    %v6012 = vadd.f32 %v5969, %v6011
    %6013 = vdwg.mxu0
    %6014 = vmatprep.subr.bf16.mxu0 %v5136
    %6015 = vmatpush1.bf16.msra.mxu0 %v5135
    %6016 = vmatprep.subr.bf16.mxu0 %v5129
    %6017 = vmatpush1.bf16.msra.mxu0 %v5128
    %6018 = vmatprep.subr.bf16.mxu0 %v5122
    %6019 = vmatpush1.bf16.msra.mxu0 %v5121
    %6020 = vmatprep.subr.bf16.mxu0 %v5115
    %6021 = vmatpush1.bf16.msra.mxu0 %v5114
    %6022 = vmatprep.subr.bf16.mxu0 %v5108
    %6023 = vmatpush1.bf16.msra.mxu0 %v5107
    %6024 = vmatprep.subr.bf16.mxu0 %v5101
    %6025 = vmatpush1.bf16.msra.mxu0 %v5100
    %6026 = vmatprep.subr.bf16.mxu0 %v5094
    %6027 = vmatpush1.bf16.msra.mxu0 %v5093
    %6028 = vmatprep.subr.bf16.mxu0 %v5087
    %6029 = vmatpush1.bf16.msra.mxu0 %v5086
    %6030 = vmatprep.subr.bf16.mxu0 %v5192
    %6031 = vmatpush2.bf16.msra.mxu0 %v5191
    %6032 = vmatprep.subr.bf16.mxu0 %v5185
    %6033 = vmatpush2.bf16.msra.mxu0 %v5184
    %6034 = vmatprep.subr.bf16.mxu0 %v5178
    %6035 = vmatpush2.bf16.msra.mxu0 %v5177
    %6036 = vmatprep.subr.bf16.mxu0 %v5171
    %6037 = vmatpush2.bf16.msra.mxu0 %v5170
    %6038 = vmatprep.subr.bf16.mxu0 %v5164
    %6039 = vmatpush2.bf16.msra.mxu0 %v5163
    %6040 = vmatprep.subr.bf16.mxu0 %v5157
    %6041 = vmatpush2.bf16.msra.mxu0 %v5156
    %6042 = vmatprep.subr.bf16.mxu0 %v5150
    %6043 = vmatpush2.bf16.msra.mxu0 %v5149
    %6044 = vmatprep.subr.bf16.mxu0 %v5143
    %6045 = vmatpush2.bf16.msra.mxu0 %v5142
    %6046 = vmatprep.mubr.bf16.mxu0 %v2900
    %6047 = vmatmul.mubr.bf16.gmra.mxu0 %v2899
    %v6048 = vpop.f32.mrf.mxu0
    %v6049 = vadd.f32 %v6006, %v6048
    %v6050 = vpop.f32.mrf.mxu0
    %v6051 = vadd.f32 %v6008, %v6050
    %v6052 = vpop.f32.mrf.mxu0
    %v6053 = vadd.f32 %v6010, %v6052
    %v6054 = vpop.f32.mrf.mxu0
    %v6055 = vadd.f32 %v6012, %v6054
    %6056 = vdwg.mxu0
    %6057 = vmatprep.subr.bf16.mxu0 %v5248
    %6058 = vmatpush1.bf16.msra.mxu0 %v5247
    %6059 = vmatprep.subr.bf16.mxu0 %v5241
    %6060 = vmatpush1.bf16.msra.mxu0 %v5240
    %6061 = vmatprep.subr.bf16.mxu0 %v5234
    %6062 = vmatpush1.bf16.msra.mxu0 %v5233
    %6063 = vmatprep.subr.bf16.mxu0 %v5227
    %6064 = vmatpush1.bf16.msra.mxu0 %v5226
    %6065 = vmatprep.subr.bf16.mxu0 %v5220
    %6066 = vmatpush1.bf16.msra.mxu0 %v5219
    %6067 = vmatprep.subr.bf16.mxu0 %v5213
    %6068 = vmatpush1.bf16.msra.mxu0 %v5212
    %6069 = vmatprep.subr.bf16.mxu0 %v5206
    %6070 = vmatpush1.bf16.msra.mxu0 %v5205
    %6071 = vmatprep.subr.bf16.mxu0 %v5199
    %6072 = vmatpush1.bf16.msra.mxu0 %v5198
    %6073 = vmatprep.subr.bf16.mxu0 %v5304
    %6074 = vmatpush2.bf16.msra.mxu0 %v5303
    %6075 = vmatprep.subr.bf16.mxu0 %v5297
    %6076 = vmatpush2.bf16.msra.mxu0 %v5296
    %6077 = vmatprep.subr.bf16.mxu0 %v5290
    %6078 = vmatpush2.bf16.msra.mxu0 %v5289
    %6079 = vmatprep.subr.bf16.mxu0 %v5283
    %6080 = vmatpush2.bf16.msra.mxu0 %v5282
    %6081 = vmatprep.subr.bf16.mxu0 %v5276
    %6082 = vmatpush2.bf16.msra.mxu0 %v5275
    %6083 = vmatprep.subr.bf16.mxu0 %v5269
    %6084 = vmatpush2.bf16.msra.mxu0 %v5268
    %6085 = vmatprep.subr.bf16.mxu0 %v5262
    %6086 = vmatpush2.bf16.msra.mxu0 %v5261
    %6087 = vmatprep.subr.bf16.mxu0 %v5255
    %6088 = vmatpush2.bf16.msra.mxu0 %v5254
    %6089 = vmatprep.mubr.bf16.mxu0 %v2902
    %6090 = vmatmul.mubr.bf16.gmra.mxu0 %v2901
    %v6091 = vpop.f32.mrf.mxu0
    %v6092 = vadd.f32 %v6049, %v6091
    %v6093 = vpop.f32.mrf.mxu0
    %v6094 = vadd.f32 %v6051, %v6093
    %v6095 = vpop.f32.mrf.mxu0
    %v6096 = vadd.f32 %v6053, %v6095
    %v6097 = vpop.f32.mrf.mxu0
    %v6098 = vadd.f32 %v6055, %v6097
    %6099 = vdwg.mxu0
    %6100 = vmatprep.subr.bf16.mxu0 %v4914
    %6101 = vmatpush1.bf16.msra.mxu0 %v4913
    %6102 = vmatprep.subr.bf16.mxu0 %v4907
    %6103 = vmatpush1.bf16.msra.mxu0 %v4906
    %6104 = vmatprep.subr.bf16.mxu0 %v4900
    %6105 = vmatpush1.bf16.msra.mxu0 %v4899
    %6106 = vmatprep.subr.bf16.mxu0 %v4893
    %6107 = vmatpush1.bf16.msra.mxu0 %v4892
    %6108 = vmatprep.subr.bf16.mxu0 %v4886
    %6109 = vmatpush1.bf16.msra.mxu0 %v4885
    %6110 = vmatprep.subr.bf16.mxu0 %v4879
    %6111 = vmatpush1.bf16.msra.mxu0 %v4878
    %6112 = vmatprep.subr.bf16.mxu0 %v4872
    %6113 = vmatpush1.bf16.msra.mxu0 %v4871
    %6114 = vmatprep.subr.bf16.mxu0 %v4865
    %6115 = vmatpush1.bf16.msra.mxu0 %v4864
    %6116 = vmatprep.subr.bf16.mxu0 %v4970
    %6117 = vmatpush2.bf16.msra.mxu0 %v4969
    %6118 = vmatprep.subr.bf16.mxu0 %v4963
    %6119 = vmatpush2.bf16.msra.mxu0 %v4962
    %6120 = vmatprep.subr.bf16.mxu0 %v4956
    %6121 = vmatpush2.bf16.msra.mxu0 %v4955
    %6122 = vmatprep.subr.bf16.mxu0 %v4949
    %6123 = vmatpush2.bf16.msra.mxu0 %v4948
    %6124 = vmatprep.subr.bf16.mxu0 %v4942
    %6125 = vmatpush2.bf16.msra.mxu0 %v4941
    %6126 = vmatprep.subr.bf16.mxu0 %v4935
    %6127 = vmatpush2.bf16.msra.mxu0 %v4934
    %6128 = vmatprep.subr.bf16.mxu0 %v4928
    %6129 = vmatpush2.bf16.msra.mxu0 %v4927
    %6130 = vmatprep.subr.bf16.mxu0 %v4921
    %6131 = vmatpush2.bf16.msra.mxu0 %v4920
    %6132 = vmatprep.mubr.bf16.mxu0 %v2896
    %6133 = vmatmul.mubr.bf16.gmra.mxu0 %v2895
    %v6134 = vpop.f32.mrf.mxu0
    %v6135 = vadd.f32 %v3436, %v6134
    %v6136 = vpop.f32.mrf.mxu0
    %v6137 = vadd.f32 %v3440, %v6136
    %v6138 = vpop.f32.mrf.mxu0
    %v6139 = vadd.f32 %v3436, %v6138
    %v6140 = vpop.f32.mrf.mxu0
    %v6141 = vadd.f32 %v3440, %v6140
    %6142 = vdwg.mxu0
    %6143 = vmatprep.subr.bf16.mxu0 %v5026
    %6144 = vmatpush1.bf16.msra.mxu0 %v5025
    %6145 = vmatprep.subr.bf16.mxu0 %v5019
    %6146 = vmatpush1.bf16.msra.mxu0 %v5018
    %6147 = vmatprep.subr.bf16.mxu0 %v5012
    %6148 = vmatpush1.bf16.msra.mxu0 %v5011
    %6149 = vmatprep.subr.bf16.mxu0 %v5005
    %6150 = vmatpush1.bf16.msra.mxu0 %v5004
    %6151 = vmatprep.subr.bf16.mxu0 %v4998
    %6152 = vmatpush1.bf16.msra.mxu0 %v4997
    %6153 = vmatprep.subr.bf16.mxu0 %v4991
    %6154 = vmatpush1.bf16.msra.mxu0 %v4990
    %6155 = vmatprep.subr.bf16.mxu0 %v4984
    %6156 = vmatpush1.bf16.msra.mxu0 %v4983
    %6157 = vmatprep.subr.bf16.mxu0 %v4977
    %6158 = vmatpush1.bf16.msra.mxu0 %v4976
    %6159 = vmatprep.subr.bf16.mxu0 %v5082
    %6160 = vmatpush2.bf16.msra.mxu0 %v5081
    %6161 = vmatprep.subr.bf16.mxu0 %v5075
    %6162 = vmatpush2.bf16.msra.mxu0 %v5074
    %6163 = vmatprep.subr.bf16.mxu0 %v5068
    %6164 = vmatpush2.bf16.msra.mxu0 %v5067
    %6165 = vmatprep.subr.bf16.mxu0 %v5061
    %6166 = vmatpush2.bf16.msra.mxu0 %v5060
    %6167 = vmatprep.subr.bf16.mxu0 %v5054
    %6168 = vmatpush2.bf16.msra.mxu0 %v5053
    %6169 = vmatprep.subr.bf16.mxu0 %v5047
    %6170 = vmatpush2.bf16.msra.mxu0 %v5046
    %6171 = vmatprep.subr.bf16.mxu0 %v5040
    %6172 = vmatpush2.bf16.msra.mxu0 %v5039
    %6173 = vmatprep.subr.bf16.mxu0 %v5033
    %6174 = vmatpush2.bf16.msra.mxu0 %v5032
    %6175 = vmatprep.mubr.bf16.mxu0 %v2898
    %6176 = vmatmul.mubr.bf16.gmra.mxu0 %v2897
    %v6177 = vpop.f32.mrf.mxu0
    %v6178 = vadd.f32 %v6135, %v6177
    %v6179 = vpop.f32.mrf.mxu0
    %v6180 = vadd.f32 %v6137, %v6179
    %v6181 = vpop.f32.mrf.mxu0
    %v6182 = vadd.f32 %v6139, %v6181
    %v6183 = vpop.f32.mrf.mxu0
    %v6184 = vadd.f32 %v6141, %v6183
    %6185 = vdwg.mxu0
    %6186 = vmatprep.subr.bf16.mxu0 %v5138
    %6187 = vmatpush1.bf16.msra.mxu0 %v5137
    %6188 = vmatprep.subr.bf16.mxu0 %v5131
    %6189 = vmatpush1.bf16.msra.mxu0 %v5130
    %6190 = vmatprep.subr.bf16.mxu0 %v5124
    %6191 = vmatpush1.bf16.msra.mxu0 %v5123
    %6192 = vmatprep.subr.bf16.mxu0 %v5117
    %6193 = vmatpush1.bf16.msra.mxu0 %v5116
    %6194 = vmatprep.subr.bf16.mxu0 %v5110
    %6195 = vmatpush1.bf16.msra.mxu0 %v5109
    %6196 = vmatprep.subr.bf16.mxu0 %v5103
    %6197 = vmatpush1.bf16.msra.mxu0 %v5102
    %6198 = vmatprep.subr.bf16.mxu0 %v5096
    %6199 = vmatpush1.bf16.msra.mxu0 %v5095
    %6200 = vmatprep.subr.bf16.mxu0 %v5089
    %6201 = vmatpush1.bf16.msra.mxu0 %v5088
    %6202 = vmatprep.subr.bf16.mxu0 %v5194
    %6203 = vmatpush2.bf16.msra.mxu0 %v5193
    %6204 = vmatprep.subr.bf16.mxu0 %v5187
    %6205 = vmatpush2.bf16.msra.mxu0 %v5186
    %6206 = vmatprep.subr.bf16.mxu0 %v5180
    %6207 = vmatpush2.bf16.msra.mxu0 %v5179
    %6208 = vmatprep.subr.bf16.mxu0 %v5173
    %6209 = vmatpush2.bf16.msra.mxu0 %v5172
    %6210 = vmatprep.subr.bf16.mxu0 %v5166
    %6211 = vmatpush2.bf16.msra.mxu0 %v5165
    %6212 = vmatprep.subr.bf16.mxu0 %v5159
    %6213 = vmatpush2.bf16.msra.mxu0 %v5158
    %6214 = vmatprep.subr.bf16.mxu0 %v5152
    %6215 = vmatpush2.bf16.msra.mxu0 %v5151
    %6216 = vmatprep.subr.bf16.mxu0 %v5145
    %6217 = vmatpush2.bf16.msra.mxu0 %v5144
    %6218 = vmatprep.mubr.bf16.mxu0 %v2900
    %6219 = vmatmul.mubr.bf16.gmra.mxu0 %v2899
    %v6220 = vpop.f32.mrf.mxu0
    %v6221 = vadd.f32 %v6178, %v6220
    %v6222 = vpop.f32.mrf.mxu0
    %v6223 = vadd.f32 %v6180, %v6222
    %v6224 = vpop.f32.mrf.mxu0
    %v6225 = vadd.f32 %v6182, %v6224
    %v6226 = vpop.f32.mrf.mxu0
    %v6227 = vadd.f32 %v6184, %v6226
    %6228 = vdwg.mxu0
    %6229 = vmatprep.subr.bf16.mxu0 %v5250
    %6230 = vmatpush1.bf16.msra.mxu0 %v5249
    %6231 = vmatprep.subr.bf16.mxu0 %v5243
    %6232 = vmatpush1.bf16.msra.mxu0 %v5242
    %6233 = vmatprep.subr.bf16.mxu0 %v5236
    %6234 = vmatpush1.bf16.msra.mxu0 %v5235
    %6235 = vmatprep.subr.bf16.mxu0 %v5229
    %6236 = vmatpush1.bf16.msra.mxu0 %v5228
    %6237 = vmatprep.subr.bf16.mxu0 %v5222
    %6238 = vmatpush1.bf16.msra.mxu0 %v5221
    %6239 = vmatprep.subr.bf16.mxu0 %v5215
    %6240 = vmatpush1.bf16.msra.mxu0 %v5214
    %6241 = vmatprep.subr.bf16.mxu0 %v5208
    %6242 = vmatpush1.bf16.msra.mxu0 %v5207
    %6243 = vmatprep.subr.bf16.mxu0 %v5201
    %6244 = vmatpush1.bf16.msra.mxu0 %v5200
    %6245 = vmatprep.subr.bf16.mxu0 %v5306
    %6246 = vmatpush2.bf16.msra.mxu0 %v5305
    %6247 = vmatprep.subr.bf16.mxu0 %v5299
    %6248 = vmatpush2.bf16.msra.mxu0 %v5298
    %6249 = vmatprep.subr.bf16.mxu0 %v5292
    %6250 = vmatpush2.bf16.msra.mxu0 %v5291
    %6251 = vmatprep.subr.bf16.mxu0 %v5285
    %6252 = vmatpush2.bf16.msra.mxu0 %v5284
    %6253 = vmatprep.subr.bf16.mxu0 %v5278
    %6254 = vmatpush2.bf16.msra.mxu0 %v5277
    %6255 = vmatprep.subr.bf16.mxu0 %v5271
    %6256 = vmatpush2.bf16.msra.mxu0 %v5270
    %6257 = vmatprep.subr.bf16.mxu0 %v5264
    %6258 = vmatpush2.bf16.msra.mxu0 %v5263
    %6259 = vmatprep.subr.bf16.mxu0 %v5257
    %6260 = vmatpush2.bf16.msra.mxu0 %v5256
    %6261 = vmatprep.mubr.bf16.mxu0 %v2902
    %6262 = vmatmul.mubr.bf16.gmra.mxu0 %v2901
    %v6263 = vpop.f32.mrf.mxu0
    %v6264 = vadd.f32 %v6221, %v6263
    %v6265 = vpop.f32.mrf.mxu0
    %v6266 = vadd.f32 %v6223, %v6265
    %v6267 = vpop.f32.mrf.mxu0
    %v6268 = vadd.f32 %v6225, %v6267
    %v6269 = vpop.f32.mrf.mxu0
    %v6270 = vadd.f32 %v6227, %v6269
    %6271 = vdwg.mxu0
    %6272 = vmatprep.subr.bf16.mxu0 0
    %6273 = vmatpush1.bf16.msra.mxu0 %v4915
    %6274 = vmatprep.subr.bf16.mxu0 0
    %6275 = vmatpush1.bf16.msra.mxu0 %v4908
    %6276 = vmatprep.subr.bf16.mxu0 0
    %6277 = vmatpush1.bf16.msra.mxu0 %v4901
    %6278 = vmatprep.subr.bf16.mxu0 0
    %6279 = vmatpush1.bf16.msra.mxu0 %v4894
    %6280 = vmatprep.subr.bf16.mxu0 0
    %6281 = vmatpush1.bf16.msra.mxu0 %v4887
    %6282 = vmatprep.subr.bf16.mxu0 0
    %6283 = vmatpush1.bf16.msra.mxu0 %v4880
    %6284 = vmatprep.subr.bf16.mxu0 0
    %6285 = vmatpush1.bf16.msra.mxu0 %v4873
    %6286 = vmatprep.subr.bf16.mxu0 0
    %6287 = vmatpush1.bf16.msra.mxu0 %v4866
    %6288 = vmatprep.subr.bf16.mxu0 0
    %6289 = vmatpush2.bf16.msra.mxu0 %v4971
    %6290 = vmatprep.subr.bf16.mxu0 0
    %6291 = vmatpush2.bf16.msra.mxu0 %v4964
    %6292 = vmatprep.subr.bf16.mxu0 0
    %6293 = vmatpush2.bf16.msra.mxu0 %v4957
    %6294 = vmatprep.subr.bf16.mxu0 0
    %6295 = vmatpush2.bf16.msra.mxu0 %v4950
    %6296 = vmatprep.subr.bf16.mxu0 0
    %6297 = vmatpush2.bf16.msra.mxu0 %v4943
    %6298 = vmatprep.subr.bf16.mxu0 0
    %6299 = vmatpush2.bf16.msra.mxu0 %v4936
    %6300 = vmatprep.subr.bf16.mxu0 0
    %6301 = vmatpush2.bf16.msra.mxu0 %v4929
    %6302 = vmatprep.subr.bf16.mxu0 0
    %6303 = vmatpush2.bf16.msra.mxu0 %v4922
    %6304 = vmatprep.mubr.bf16.mxu0 %v2896
    %6305 = vmatmul.mubr.bf16.gmra.mxu0 %v2895
    %v6306 = vpop.f32.mrf.mxu0
    %v6307 = vadd.f32 %v3444, %v6306
    %v6308 = vpop.f32.mrf.mxu0
    %v6309 = vpop.f32.mrf.mxu0
    %v6310 = vadd.f32 %v3444, %v6309
    %v6311 = vpop.f32.mrf.mxu0
    %6312 = vdwg.mxu0
    %6313 = vmatprep.subr.bf16.mxu0 0
    %6314 = vmatpush1.bf16.msra.mxu0 %v5027
    %6315 = vmatprep.subr.bf16.mxu0 0
    %6316 = vmatpush1.bf16.msra.mxu0 %v5020
    %6317 = vmatprep.subr.bf16.mxu0 0
    %6318 = vmatpush1.bf16.msra.mxu0 %v5013
    %6319 = vmatprep.subr.bf16.mxu0 0
    %6320 = vmatpush1.bf16.msra.mxu0 %v5006
    %6321 = vmatprep.subr.bf16.mxu0 0
    %6322 = vmatpush1.bf16.msra.mxu0 %v4999
    %6323 = vmatprep.subr.bf16.mxu0 0
    %6324 = vmatpush1.bf16.msra.mxu0 %v4992
    %6325 = vmatprep.subr.bf16.mxu0 0
    %6326 = vmatpush1.bf16.msra.mxu0 %v4985
    %6327 = vmatprep.subr.bf16.mxu0 0
    %6328 = vmatpush1.bf16.msra.mxu0 %v4978
    %6329 = vmatprep.subr.bf16.mxu0 0
    %6330 = vmatpush2.bf16.msra.mxu0 %v5083
    %6331 = vmatprep.subr.bf16.mxu0 0
    %6332 = vmatpush2.bf16.msra.mxu0 %v5076
    %6333 = vmatprep.subr.bf16.mxu0 0
    %6334 = vmatpush2.bf16.msra.mxu0 %v5069
    %6335 = vmatprep.subr.bf16.mxu0 0
    %6336 = vmatpush2.bf16.msra.mxu0 %v5062
    %6337 = vmatprep.subr.bf16.mxu0 0
    %6338 = vmatpush2.bf16.msra.mxu0 %v5055
    %6339 = vmatprep.subr.bf16.mxu0 0
    %6340 = vmatpush2.bf16.msra.mxu0 %v5048
    %6341 = vmatprep.subr.bf16.mxu0 0
    %6342 = vmatpush2.bf16.msra.mxu0 %v5041
    %6343 = vmatprep.subr.bf16.mxu0 0
    %6344 = vmatpush2.bf16.msra.mxu0 %v5034
    %6345 = vmatprep.mubr.bf16.mxu0 %v2898
    %6346 = vmatmul.mubr.bf16.gmra.mxu0 %v2897
    %v6347 = vpop.f32.mrf.mxu0
    %v6348 = vadd.f32 %v6307, %v6347
    %v6349 = vpop.f32.mrf.mxu0
    %v6350 = vpop.f32.mrf.mxu0
    %v6351 = vadd.f32 %v6310, %v6350
    %v6352 = vpop.f32.mrf.mxu0
    %6353 = vdwg.mxu0
    %6354 = vmatprep.subr.bf16.mxu0 0
    %6355 = vmatpush1.bf16.msra.mxu0 %v5139
    %6356 = vmatprep.subr.bf16.mxu0 0
    %6357 = vmatpush1.bf16.msra.mxu0 %v5132
    %6358 = vmatprep.subr.bf16.mxu0 0
    %6359 = vmatpush1.bf16.msra.mxu0 %v5125
    %6360 = vmatprep.subr.bf16.mxu0 0
    %6361 = vmatpush1.bf16.msra.mxu0 %v5118
    %6362 = vmatprep.subr.bf16.mxu0 0
    %6363 = vmatpush1.bf16.msra.mxu0 %v5111
    %6364 = vmatprep.subr.bf16.mxu0 0
    %6365 = vmatpush1.bf16.msra.mxu0 %v5104
    %6366 = vmatprep.subr.bf16.mxu0 0
    %6367 = vmatpush1.bf16.msra.mxu0 %v5097
    %6368 = vmatprep.subr.bf16.mxu0 0
    %6369 = vmatpush1.bf16.msra.mxu0 %v5090
    %6370 = vmatprep.subr.bf16.mxu0 0
    %6371 = vmatpush2.bf16.msra.mxu0 %v5195
    %6372 = vmatprep.subr.bf16.mxu0 0
    %6373 = vmatpush2.bf16.msra.mxu0 %v5188
    %6374 = vmatprep.subr.bf16.mxu0 0
    %6375 = vmatpush2.bf16.msra.mxu0 %v5181
    %6376 = vmatprep.subr.bf16.mxu0 0
    %6377 = vmatpush2.bf16.msra.mxu0 %v5174
    %6378 = vmatprep.subr.bf16.mxu0 0
    %6379 = vmatpush2.bf16.msra.mxu0 %v5167
    %6380 = vmatprep.subr.bf16.mxu0 0
    %6381 = vmatpush2.bf16.msra.mxu0 %v5160
    %6382 = vmatprep.subr.bf16.mxu0 0
    %6383 = vmatpush2.bf16.msra.mxu0 %v5153
    %6384 = vmatprep.subr.bf16.mxu0 0
    %6385 = vmatpush2.bf16.msra.mxu0 %v5146
    %6386 = vmatprep.mubr.bf16.mxu0 %v2900
    %6387 = vmatmul.mubr.bf16.gmra.mxu0 %v2899
    %v6388 = vpop.f32.mrf.mxu0
    %v6389 = vadd.f32 %v6348, %v6388
    %v6390 = vpop.f32.mrf.mxu0
    %v6391 = vpop.f32.mrf.mxu0
    %v6392 = vadd.f32 %v6351, %v6391
    %v6393 = vpop.f32.mrf.mxu0
    %6394 = vdwg.mxu0
    %6395 = vmatprep.subr.bf16.mxu0 0
    %6396 = vmatpush1.bf16.msra.mxu0 %v5251
    %6397 = vmatprep.subr.bf16.mxu0 0
    %6398 = vmatpush1.bf16.msra.mxu0 %v5244
    %6399 = vmatprep.subr.bf16.mxu0 0
    %6400 = vmatpush1.bf16.msra.mxu0 %v5237
    %6401 = vmatprep.subr.bf16.mxu0 0
    %6402 = vmatpush1.bf16.msra.mxu0 %v5230
    %6403 = vmatprep.subr.bf16.mxu0 0
    %6404 = vmatpush1.bf16.msra.mxu0 %v5223
    %6405 = vmatprep.subr.bf16.mxu0 0
    %6406 = vmatpush1.bf16.msra.mxu0 %v5216
    %6407 = vmatprep.subr.bf16.mxu0 0
    %6408 = vmatpush1.bf16.msra.mxu0 %v5209
    %6409 = vmatprep.subr.bf16.mxu0 0
    %6410 = vmatpush1.bf16.msra.mxu0 %v5202
    %6411 = vmatprep.subr.bf16.mxu0 0
    %6412 = vmatpush2.bf16.msra.mxu0 %v5307
    %6413 = vmatprep.subr.bf16.mxu0 0
    %6414 = vmatpush2.bf16.msra.mxu0 %v5300
    %6415 = vmatprep.subr.bf16.mxu0 0
    %6416 = vmatpush2.bf16.msra.mxu0 %v5293
    %6417 = vmatprep.subr.bf16.mxu0 0
    %6418 = vmatpush2.bf16.msra.mxu0 %v5286
    %6419 = vmatprep.subr.bf16.mxu0 0
    %6420 = vmatpush2.bf16.msra.mxu0 %v5279
    %6421 = vmatprep.subr.bf16.mxu0 0
    %6422 = vmatpush2.bf16.msra.mxu0 %v5272
    %6423 = vmatprep.subr.bf16.mxu0 0
    %6424 = vmatpush2.bf16.msra.mxu0 %v5265
    %6425 = vmatprep.subr.bf16.mxu0 0
    %6426 = vmatpush2.bf16.msra.mxu0 %v5258
    %6427 = vmatprep.mubr.bf16.mxu0 %v2902
    %6428 = vmatmul.mubr.bf16.gmra.mxu0 %v2901
    %v6429 = vpop.f32.mrf.mxu0
    %v6430 = vadd.f32 %v6389, %v6429
    %v6431 = vpop.f32.mrf.mxu0
    %v6432 = vpop.f32.mrf.mxu0
    %v6433 = vadd.f32 %v6392, %v6432
    %v6434 = vpop.f32.mrf.mxu0
    %6435 = vdwg.mxu0
    %v6436 = vtanh.pop %v5920
    %v6437 = vtanh.pop %v5922
    %v6438 = vtanh.pop %v6092
    %v6439 = vtanh.pop %v6094
    %v6440 = vtanh.pop %v6264
    %v6441 = vtanh.pop %v6266
    %v6442 = vtanh.pop %v6430
    %v6443 = vtanh.pop %v5924
    %v6444 = vtanh.pop %v5926
    %v6445 = vtanh.pop %v6096
    %v6446 = vtanh.pop %v6098
    %v6447 = vtanh.pop %v6268
    %v6448 = vtanh.pop %v6270
    %v6449 = vtanh.pop %v6433
    %6450 = vst [vmem:[#allocation17] sm:$0xff] %v6436
    %6451 = vst [vmem:[#allocation17 + $0x8] sm:$0xff] %v6437
    %6452 = vst [vmem:[#allocation17 + $0x10] sm:$0xff] %v6438
    %6453 = vst [vmem:[#allocation17 + $0x18] sm:$0xff] %v6439
    %6454 = vst [vmem:[#allocation17 + $0x20] sm:$0xff] %v6440
    %6455 = vst [vmem:[#allocation17 + $0x28] sm:$0xff] %v6441
    %6456 = vst [vmem:[#allocation17 + $0x30] sm:$0xff] %v6442
    %6457 = vst [vmem:[#allocation17 + $0x38] sm:$0xff] %v6443
    %6458 = vst [vmem:[#allocation17 + $0x40] sm:$0xff] %v6444
    %6459 = vst [vmem:[#allocation17 + $0x48] sm:$0xff] %v6445
    %6460 = vst [vmem:[#allocation17 + $0x50] sm:$0xff] %v6446
    %6461 = vst [vmem:[#allocation17 + $0x58] sm:$0xff] %v6447
    %6462 = vst [vmem:[#allocation17 + $0x60] sm:$0xff] %v6448
    %6463 = vst [vmem:[#allocation17 + $0x68] sm:$0xff] %v6449
    // Predicated region
    $region74: #{tpu_custom_call.1} parent=1 // pred_check
      _
    $region75: #{tpu_custom_call.1} parent=1 // pred_check_branch
      %6465 = sbr.rel (0) target = $region77
    $region76: #{tpu_custom_call.1} parent=1 // pred_region
      %s6467 = ssub.s32 1792, 1792
      %6468 = vsyncadd [#allocation4], %s6467
      %s6469 = sshll.u32 [#allocation17], 4
      %s6470 = int_to_ptr.vmem [resolvable:$true] %s6469
      %6475 = dma.vmem_to_hbm [thread:$0]  %s6470, 1792, %s9, [#allocation4], 896, 896, 56
    $region77: #{tpu_custom_call.1} parent=1 // pred_fallthru
      _
    // Predicated region
    $region78: #{tpu_custom_call.1} parent=1 // pred_check
      _
    $region79: #{tpu_custom_call.1} parent=1 // pred_check_branch
      %6477 = sbr.rel (0) target = $region81
    $region80: #{tpu_custom_call.1} parent=1 // pred_region
      %6478 = dma.done [#allocation4], 1792
    $region81: #{tpu_custom_call.1} parent=1 // pred_fallthru
      _
    %6479 = vsyncpa [#allocation3], 1
    %6480 = vsyncpa [#allocation6], 1
    %6481 = vsyncpa [#allocation9], 1
    %6482 = vsyncpa [#allocation12], 1
    %6483 = vsyncpa [#allocation15], 1
    %6484 = vsyncpa [#allocation4], 1

</llo_original>
